<compile_context>
chip_gen: v7x
topology: tpu7x:2x2x1
jax: 0.10.0
libtpu: 0.0.40
codegen_flags: <defaults>
</compile_context>

<pallas_src>
import jax
import jax.numpy as jnp
import numpy as np
from jax import lax
from jax.experimental import pallas as pl
from jax.experimental.pallas import tpu as pltpu


# ----------------------------- fused Encoder kernel -----------------------------

def _make_encoder_kernel(T, Tc, Bblk, unroll, mask_time):
    """Builds the fused 2-layer LSTM chunk kernel (PyTorch gate order [i, f, g, o])."""

    def kernel(x_ref, wih1_ref, whh1_ref, b1_ref,
               wih2_ref, whh2_ref, b2_ref,
               yseq1_ref, h1N_ref, c1N_ref, h2N_ref,
               xg1_s, xg2_s, h1_s, c1_s, h2_s, c2_s):
        H1p = h1_s.shape[1]
        H2p = h2_s.shape[1]
        t_chunk = pl.program_id(1)

        # (Re)initialize the recurrent state at the start of each batch block's
        # time sweep. Scratch persists across the whole grid, so this must run
        # whenever the (arbitrary) time index resets.
        @pl.when(t_chunk == 0)
        def _():
            h1_s[...] = jnp.zeros_like(h1_s)
            c1_s[...] = jnp.zeros_like(c1_s)
            h2_s[...] = jnp.zeros_like(h2_s)
            c2_s[...] = jnp.zeros_like(c2_s)

        def lstm_cell(gates, c_prev, Hp):
            # Gate slices are at multiples of Hp (multiple of 128) -> lane aligned.
            i = jax.nn.sigmoid(gates[:, 0 * Hp:1 * Hp])
            f = jax.nn.sigmoid(gates[:, 1 * Hp:2 * Hp])
            g = jnp.tanh(gates[:, 2 * Hp:3 * Hp])
            o = jax.nn.sigmoid(gates[:, 3 * Hp:4 * Hp])
            c_new = f * c_prev + i * g
            h_new = o * jnp.tanh(c_new)
            return h_new, c_new

        # --------------------------- layer 1 ---------------------------
        # Hoisted input->gates matmul for the whole chunk (bf16 operands, f32 acc),
        # bias folded in outside the recurrent loop.
        xg1_s[...] = (
            jnp.dot(x_ref[...].astype(jnp.bfloat16), wih1_ref[...],
                    preferred_element_type=jnp.float32)
            + b1_ref[...]
        )

        t0 = t_chunk * Tc

        def step1(t, carry):
            r0 = pl.multiple_of(t * Bblk, 8)           # sublane-aligned row offset
            gates = xg1_s[pl.ds(r0, Bblk), :] + jnp.dot(
                h1_s[...], whh1_ref[...], preferred_element_type=jnp.float32)
            h_new, c_new = lstm_cell(gates, c1_s[...], H1p)
            if mask_time:                               # only traced if Tp != T
                valid = (t0 + t) < T
                h_new = jnp.where(valid, h_new, h1_s[...])
                c_new = jnp.where(valid, c_new, c1_s[...])
            h1_s[...] = h_new
            c1_s[...] = c_new
            # Single per-step store, straight into the output block (lane-dense,
            # sublane-aligned); it doubles as the layer-2 input below.
            yseq1_ref[pl.ds(r0, Bblk), :] = h_new
            return carry

        lax.fori_loop(0, Tc, step1, 0, unroll=unroll)

        h1N_ref[...] = h1_s[...]
        c1N_ref[...] = c1_s[...]

        # --------------------------- layer 2 ---------------------------
        # Hoisted input->gates matmul over the chunk's layer-1 hidden sequence.
        xg2_s[...] = (
            jnp.dot(yseq1_ref[...].astype(jnp.bfloat16), wih2_ref[...],
                    preferred_element_type=jnp.float32)
            + b2_ref[...]
        )

        def step2(t, carry):
            r0 = pl.multiple_of(t * Bblk, 8)
            gates = xg2_s[pl.ds(r0, Bblk), :] + jnp.dot(
                h2_s[...], whh2_ref[...], preferred_element_type=jnp.float32)
            h_new, c_new = lstm_cell(gates, c2_s[...], H2p)
            if mask_time:
                valid = (t0 + t) < T
                h_new = jnp.where(valid, h_new, h2_s[...])
                c_new = jnp.where(valid, c_new, c2_s[...])
            h2_s[...] = h_new
            c2_s[...] = c_new
            return carry

        lax.fori_loop(0, Tc, step2, 0, unroll=unroll)
        h2N_ref[...] = h2_s[...]

    return kernel


# ------------------------------- weight preparation -------------------------------

def _round_up(n, m):
    return ((n + m - 1) // m) * m


def _prep_lstm_weights(w_ih, w_hh, b_ih, b_hh, in_pad=None):
    """PyTorch layout -> transposed, 128-lane-padded gate blocks.

    w_ih: (4H, In), w_hh: (4H, H), b_ih/b_hh: (4H,)
    Returns (wih_p (In_or_in_pad, 4Hp) bf16, whh_p (Hp, 4Hp) f32, b_p (1, 4Hp) f32, Hp).
    Padded gate columns / hidden rows are zero, so (with zero initial state) the
    padded part of the recurrent state stays exactly zero for all timesteps.
    """
    H = w_hh.shape[1]
    In = w_ih.shape[1]
    Hp = _round_up(H, 128)

    wih_t = jnp.asarray(w_ih, jnp.float32).T      # (In, 4H)
    whh_t = jnp.asarray(w_hh, jnp.float32).T      # (H, 4H)
    b = (jnp.asarray(b_ih, jnp.float32) + jnp.asarray(b_hh, jnp.float32)).reshape(1, 4 * H)

    def pad_gate_cols(m):
        r = m.shape[0]
        return jnp.pad(m.reshape(r, 4, H), ((0, 0), (0, 0), (0, Hp - H))).reshape(r, 4 * Hp)

    wih_p = pad_gate_cols(wih_t)                   # (In, 4Hp)
    whh_p = pad_gate_cols(whh_t)                   # (H, 4Hp)
    whh_p = jnp.pad(whh_p, ((0, Hp - H), (0, 0)))  # (Hp, 4Hp)
    if in_pad is not None and in_pad > In:
        wih_p = jnp.pad(wih_p, ((0, in_pad - In), (0, 0)))
    b_p = pad_gate_cols(b)                         # (1, 4Hp)
    # Input->gates weights in bf16 (MXU bf16 path, half the DMA); recurrence stays f32.
    return wih_p.astype(jnp.bfloat16), whh_p, b_p, Hp


# --------------------------------- Encoder module ----------------------------------

def init_lstm_params(key, input_size, hidden_size):
    """Deterministic init, matching PyTorch's U(-1/sqrt(H), 1/sqrt(H))."""
    k = 1.0 / np.sqrt(hidden_size)
    k_ih, k_hh, k_bih, k_bhh = jax.random.split(key, 4)
    return dict(
        w_ih=jax.random.uniform(k_ih, (4 * hidden_size, input_size), jnp.float32, -k, k),
        w_hh=jax.random.uniform(k_hh, (4 * hidden_size, hidden_size), jnp.float32, -k, k),
        b_ih=jax.random.uniform(k_bih, (4 * hidden_size,), jnp.float32, -k, k),
        b_hh=jax.random.uniform(k_bhh, (4 * hidden_size,), jnp.float32, -k, k),
    )


def init_encoder_params(key, n_features, embedding_dim=64):
    hidden_dim = 2 * embedding_dim
    k1, k2 = jax.random.split(key, 2)
    return dict(
        rnn1=init_lstm_params(k1, n_features, hidden_dim),
        rnn2=init_lstm_params(k2, hidden_dim, embedding_dim),
    )


def encoder_forward(params, x):
    """x: (batch, seq, n_features) float32.

    Returns (hidden_n, y, h_rnn1, c_rnn1, x_rnn1) with the exact PyTorch shapes:
      hidden_n: (1, B, embedding_dim)
      y:        int (= seq length, x.shape[1])
      h_rnn1:   (1, B, hidden_dim)
      c_rnn1:   (1, B, hidden_dim)
      x_rnn1:   (B, T, hidden_dim)
    """
    B, T, F = x.shape
    p1, p2 = params["rnn1"], params["rnn2"]
    H1 = p1["w_hh"].shape[1]   # hidden_dim
    H2 = p2["w_hh"].shape[1]   # embedding_dim

    wih1, whh1, b1, H1p = _prep_lstm_weights(**p1)
    wih2, whh2, b2, H2p = _prep_lstm_weights(in_pad=H1p, **p2)
    G1, G2 = 4 * H1p, 4 * H2p

    # ------------------- tiling: batch blocks + time chunks -------------------
    nb = 2 if B > 8 else 1                       # batch-parallel blocks (v7x megacore)
    Bp = _round_up(B, 8 * nb)                    # sublane-aligned padded batch
    Bblk = Bp // nb                              # rows per batch block (multiple of 8)

    Tc = max(1, min(T, 512 // Bblk))             # ~512 rows per hoisted MXU matmul
    nt = pl.cdiv(T, Tc)
    Tc = pl.cdiv(T, nt)                          # rebalance to minimize tail padding
    Tp = nt * Tc
    mask_time = (Tp != T)
    unroll = int(min(Tc, 8))
    R = Tc * Bblk                                # rows per chunk

    # x (B,T,F) -> (nb, Tp*Bblk, F), time-major within each batch block.
    xp = jnp.pad(jnp.asarray(x, jnp.float32), ((0, Bp - B), (0, Tp - T), (0, 0)))
    xp = xp.reshape(nb, Bblk, Tp, F).transpose(0, 2, 1, 3)   # (nb, Tp, Bblk, F)
    x_in = xp.reshape(nb, Tp * Bblk, F)

    # ---------------------- VMEM footprint / cost hints ----------------------
    chunk_bytes = (
        2 * (R * F * 4)                                          # x block (dbl buf)
        + 2 * (R * H1p * 4)                                      # yseq1 out block (dbl buf)
        + 2 * (wih1.size * 2 + whh1.size * 4 + b1.size * 4
               + wih2.size * 2 + whh2.size * 4 + b2.size * 4)    # resident weights
        + 2 * 4 * (2 * Bblk * H1p + Bblk * H2p)                  # small state outputs
        + 4 * (R * G1 + R * G2 + 2 * Bblk * H1p + 2 * Bblk * H2p)  # scratches
    )
    # Chunking bounds residency; clamp to [32, 48] MiB (safe on v5e/v6e/v7x).
    vmem_limit = int(min(max(2 * chunk_bytes, 32 << 20), 48 << 20))

    rows_total = nb * Tp * Bblk
    cost = pl.CostEstimate(
        flops=2 * rows_total * (F * G1 + H1p * G1 + H1p * G2 + H2p * G2),
        transcendentals=5 * rows_total * (H1p + H2p),
        bytes_accessed=int(x_in.size * 4 + rows_total * H1p * 4
                           + wih1.size * 2 + whh1.size * 4 + wih2.size * 2 + whh2.size * 4
                           + nb * Bblk * (2 * H1p + H2p) * 4),
    )

    kernel = _make_encoder_kernel(T, Tc, Bblk, unroll, mask_time)

    yseq1, h1N, c1N, h2N = pl.pallas_call(
        kernel,
        out_shape=(
            jax.ShapeDtypeStruct((nb, Tp * Bblk, H1p), jnp.float32),  # layer-1 sequence
            jax.ShapeDtypeStruct((nb, Bblk, H1p), jnp.float32),       # h_rnn1 (padded)
            jax.ShapeDtypeStruct((nb, Bblk, H1p), jnp.float32),       # c_rnn1 (padded)
            jax.ShapeDtypeStruct((nb, Bblk, H2p), jnp.float32),       # hidden_n (padded)
        ),
        grid_spec=pltpu.PrefetchScalarGridSpec(
            num_scalar_prefetch=0,
            grid=(nb, nt),
            in_specs=[
                pl.BlockSpec((None, R, F), lambda b, t: (b, t, 0)),   # streamed x chunk
                pl.BlockSpec(wih1.shape, lambda b, t: (0, 0)),        # resident weights
                pl.BlockSpec(whh1.shape, lambda b, t: (0, 0)),
                pl.BlockSpec(b1.shape, lambda b, t: (0, 0)),
                pl.BlockSpec(wih2.shape, lambda b, t: (0, 0)),
                pl.BlockSpec(whh2.shape, lambda b, t: (0, 0)),
                pl.BlockSpec(b2.shape, lambda b, t: (0, 0)),
            ],
            out_specs=[
                pl.BlockSpec((None, R, H1p), lambda b, t: (b, t, 0)),     # streamed yseq1
                pl.BlockSpec((None, Bblk, H1p), lambda b, t: (b, 0, 0)),  # resident states
                pl.BlockSpec((None, Bblk, H1p), lambda b, t: (b, 0, 0)),
                pl.BlockSpec((None, Bblk, H2p), lambda b, t: (b, 0, 0)),
            ],
            scratch_shapes=[
                pltpu.VMEM((R, G1), jnp.float32),     # hoisted x @ W_ih1 + b1 (chunk)
                pltpu.VMEM((R, G2), jnp.float32),     # hoisted h1 @ W_ih2 + b2 (chunk)
                pltpu.VMEM((Bblk, H1p), jnp.float32),  # h1 state (carried over time)
                pltpu.VMEM((Bblk, H1p), jnp.float32),  # c1 state
                pltpu.VMEM((Bblk, H2p), jnp.float32),  # h2 state
                pltpu.VMEM((Bblk, H2p), jnp.float32),  # c2 state
            ],
        ),
        cost_estimate=cost,
        compiler_params=pltpu.CompilerParams(
            dimension_semantics=("parallel", "arbitrary"),
            vmem_limit_bytes=vmem_limit,
        ),
    )(x_in, wih1, whh1, b1, wih2, whh2, b2)

    # (nb, Tp*Bblk, H1p) -> (B, T, H1)
    y4 = yseq1.reshape(nb, Tp, Bblk, H1p).transpose(0, 2, 1, 3)   # (nb, Bblk, Tp, H1p)
    x_rnn1 = y4.reshape(nb * Bblk, Tp, H1p)[:B, :T, :H1]
    h_rnn1 = h1N.reshape(nb * Bblk, H1p)[:B, :H1][None]           # (1, B, hidden_dim)
    c_rnn1 = c1N.reshape(nb * Bblk, H1p)[:B, :H1][None]           # (1, B, hidden_dim)
    hidden_n = h2N.reshape(nb * Bblk, H2p)[:B, :H2][None]         # (1, B, embedding_dim)
    return hidden_n, T, h_rnn1, c_rnn1, x_rnn1


# ------------------------------- pure-JAX reference --------------------------------

def _lstm_ref(x_tm, p):
    T, B, F = x_tm.shape
    H = p["w_hh"].shape[1]
    wih_t, whh_t = p["w_ih"].T, p["w_hh"].T
    b = p["b_ih"] + p["b_hh"]

    def step(carry, x_t):
        h, c = carry
        gates = x_t @ wih_t + h @ whh_t + b
        i = jax.nn.sigmoid(gates[:, 0 * H:1 * H])
        f = jax.nn.sigmoid(gates[:, 1 * H:2 * H])
        g = jnp.tanh(gates[:, 2 * H:3 * H])
        o = jax.nn.sigmoid(gates[:, 3 * H:4 * H])
        c = f * c + i * g
        h = o * jnp.tanh(c)
        return (h, c), h

    init = (jnp.zeros((B, H), jnp.float32), jnp.zeros((B, H), jnp.float32))
    (hN, cN), ys = lax.scan(step, init, x_tm)
    return ys, hN, cN


# --------------------------------------- main ----------------------------------------

if __name__ == "__main__":
    # Small shapes consistent with the module's forward (embedding_dim default = 64).
    batch, seq, n_features, embedding_dim = 2, 8, 4, 64
    hidden_dim = 2 * embedding_dim

    key = jax.random.PRNGKey(0)
    kp, kx = jax.random.split(key)
    params = init_encoder_params(kp, n_features, embedding_dim)
    x = jax.random.normal(kx, (batch, seq, n_features), jnp.float32)

    hidden_n, y, h_rnn1, c_rnn1, x_rnn1 = jax.block_until_ready(encoder_forward(params, x))

    # Shape checks (match PyTorch module exactly).
    assert hidden_n.shape == (1, batch, embedding_dim)
    assert y == seq
    assert h_rnn1.shape == (1, batch, hidden_dim)
    assert c_rnn1.shape == (1, batch, hidden_dim)
    assert x_rnn1.shape == (batch, seq, hidden_dim)

    # Numerical check against a pure-JAX reference LSTM.
    with jax.default_matmul_precision("highest"):
        x_tm = jnp.transpose(x, (1, 0, 2))
        ys1_ref, h1_ref, c1_ref = _lstm_ref(x_tm, params["rnn1"])
        _, h2_ref, _ = _lstm_ref(ys1_ref, params["rnn2"])
    np.testing.assert_allclose(np.asarray(x_rnn1),
                               np.asarray(jnp.transpose(ys1_ref, (1, 0, 2))),
                               rtol=1e-2, atol=1e-2)
    np.testing.assert_allclose(np.asarray(hidden_n[0]), np.asarray(h2_ref), rtol=1e-2, atol=1e-2)
    np.testing.assert_allclose(np.asarray(h_rnn1[0]), np.asarray(h1_ref), rtol=1e-2, atol=1e-2)
    np.testing.assert_allclose(np.asarray(c_rnn1[0]), np.asarray(c1_ref), rtol=1e-2, atol=1e-2)

    print("KERNEL_OK")
</pallas_src>

<mosaic_0001>
module attributes {stable_mosaic.version = 11 : i64} {
  func.func @kernel(%arg0: i32, %arg1: i32, %arg2: memref<1x64x4xf32, #tpu.memory_space<vmem>>, %arg3: memref<4x512xbf16, #tpu.memory_space<vmem>>, %arg4: memref<128x512xf32, #tpu.memory_space<vmem>>, %arg5: memref<1x512xf32, #tpu.memory_space<vmem>>, %arg6: memref<128x512xbf16, #tpu.memory_space<vmem>>, %arg7: memref<128x512xf32, #tpu.memory_space<vmem>>, %arg8: memref<1x512xf32, #tpu.memory_space<vmem>>, %arg9: memref<1x64x128xf32, #tpu.memory_space<vmem>>, %arg10: memref<1x8x128xf32, #tpu.memory_space<vmem>>, %arg11: memref<1x8x128xf32, #tpu.memory_space<vmem>>, %arg12: memref<1x8x128xf32, #tpu.memory_space<vmem>>, %arg13: memref<64x512xf32, #tpu.memory_space<vmem>>, %arg14: memref<64x512xf32, #tpu.memory_space<vmem>>, %arg15: memref<8x128xf32, #tpu.memory_space<vmem>>, %arg16: memref<8x128xf32, #tpu.memory_space<vmem>>, %arg17: memref<8x128xf32, #tpu.memory_space<vmem>>, %arg18: memref<8x128xf32, #tpu.memory_space<vmem>>) attributes {dimension_semantics = [#tpu.dimension_semantics<parallel>, #tpu.dimension_semantics<arbitrary>], iteration_bounds = array<i64: 1, 1>, scalar_prefetch = 0 : i64, scratch_operands = 6 : i64, tpu.core_type = #tpu.core_type<tc>, window_params = [{transform_indices = @transform_0, window_bounds = array<i64: 1, 64, 4>}, {pipeline_mode = #tpu.pipeline_mode<synchronous>, transform_indices = @transform_1, window_bounds = array<i64: 4, 512>}, {pipeline_mode = #tpu.pipeline_mode<synchronous>, transform_indices = @transform_2, window_bounds = array<i64: 128, 512>}, {pipeline_mode = #tpu.pipeline_mode<synchronous>, transform_indices = @transform_3, window_bounds = array<i64: 1, 512>}, {pipeline_mode = #tpu.pipeline_mode<synchronous>, transform_indices = @transform_4, window_bounds = array<i64: 128, 512>}, {pipeline_mode = #tpu.pipeline_mode<synchronous>, transform_indices = @transform_5, window_bounds = array<i64: 128, 512>}, {pipeline_mode = #tpu.pipeline_mode<synchronous>, transform_indices = @transform_6, window_bounds = array<i64: 1, 512>}, {transform_indices = @transform_7, window_bounds = array<i64: 1, 64, 128>}, {transform_indices = @transform_8, window_bounds = array<i64: 1, 8, 128>}, {transform_indices = @transform_9, window_bounds = array<i64: 1, 8, 128>}, {transform_indices = @transform_10, window_bounds = array<i64: 1, 8, 128>}]} {
    %c0_i32 = arith.constant 0 : i32
    %0 = arith.cmpi eq, %arg1, %c0_i32 : i32
    %1 = arith.extui %0 : i1 to i32
    %c0_i32_0 = arith.constant 0 : i32
    %2 = arith.cmpi ne, %1, %c0_i32_0 : i32
    scf.if %2 {
      %cst_316 = arith.constant 0.000000e+00 : f32
      %641 = vector.broadcast %cst_316 : f32 to vector<8x128xf32>
      %c0_317 = arith.constant 0 : index
      %c0_318 = arith.constant 0 : index
      %642 = vector.load %arg15[%c0_317, %c0_318] : memref<8x128xf32, #tpu.memory_space<vmem>>, vector<8x128xf32>
      tpu.vector_store %arg15[%c0_317, %c0_318], %641 {strides = array<i32>} : memref<8x128xf32, #tpu.memory_space<vmem>>, vector<8x128xf32>,
      %cst_319 = arith.constant 0.000000e+00 : f32
      %643 = vector.broadcast %cst_319 : f32 to vector<8x128xf32>
      %c0_320 = arith.constant 0 : index
      %c0_321 = arith.constant 0 : index
      %644 = vector.load %arg16[%c0_320, %c0_321] : memref<8x128xf32, #tpu.memory_space<vmem>>, vector<8x128xf32>
      tpu.vector_store %arg16[%c0_320, %c0_321], %643 {strides = array<i32>} : memref<8x128xf32, #tpu.memory_space<vmem>>, vector<8x128xf32>,
      %cst_322 = arith.constant 0.000000e+00 : f32
      %645 = vector.broadcast %cst_322 : f32 to vector<8x128xf32>
      %c0_323 = arith.constant 0 : index
      %c0_324 = arith.constant 0 : index
      %646 = vector.load %arg17[%c0_323, %c0_324] : memref<8x128xf32, #tpu.memory_space<vmem>>, vector<8x128xf32>
      tpu.vector_store %arg17[%c0_323, %c0_324], %645 {strides = array<i32>} : memref<8x128xf32, #tpu.memory_space<vmem>>, vector<8x128xf32>,
      %cst_325 = arith.constant 0.000000e+00 : f32
      %647 = vector.broadcast %cst_325 : f32 to vector<8x128xf32>
      %c0_326 = arith.constant 0 : index
      %c0_327 = arith.constant 0 : index
      %648 = vector.load %arg18[%c0_326, %c0_327] : memref<8x128xf32, #tpu.memory_space<vmem>>, vector<8x128xf32>
      tpu.vector_store %arg18[%c0_326, %c0_327], %647 {strides = array<i32>} : memref<8x128xf32, #tpu.memory_space<vmem>>, vector<8x128xf32>,
    } else {
    }
    %c0 = arith.constant 0 : index
    %c0_1 = arith.constant 0 : index
    %c0_2 = arith.constant 0 : index
    %3 = vector.load %arg2[%c0, %c0_1, %c0_2] : memref<1x64x4xf32, #tpu.memory_space<vmem>>, vector<1x64x4xf32>
    %4 = vector.shape_cast %3 : vector<1x64x4xf32> to vector<64x4xf32>
    %5 = arith.truncf %4 : vector<64x4xf32> to vector<64x4xbf16>
    %c0_3 = arith.constant 0 : index
    %c0_4 = arith.constant 0 : index
    %6 = vector.load %arg3[%c0_3, %c0_4] : memref<4x512xbf16, #tpu.memory_space<vmem>>, vector<4x512xbf16>
    %cst = arith.constant dense<0.000000e+00> : vector<64x512xf32>
    %7 = tpu.matmul %5, %6, %cst {dimension_numbers = #tpu.dot_dimension_numbers<[1], [0], [0], [1], [0, 0, 1, 1], [], []>} : vector<64x4xbf16>, vector<4x512xbf16>, vector<64x512xf32> -> vector<64x512xf32>
    %c0_5 = arith.constant 0 : index
    %c0_6 = arith.constant 0 : index
    %8 = vector.load %arg5[%c0_5, %c0_6] : memref<1x512xf32, #tpu.memory_space<vmem>>, vector<1x512xf32>
    %9 = vector.broadcast %8 : vector<1x512xf32> to vector<64x512xf32>
    %10 = arith.addf %7, %9 : vector<64x512xf32>
    %c0_7 = arith.constant 0 : index
    %c0_8 = arith.constant 0 : index
    %11 = vector.load %arg13[%c0_7, %c0_8] : memref<64x512xf32, #tpu.memory_space<vmem>>, vector<64x512xf32>
    tpu.vector_store %arg13[%c0_7, %c0_8], %10 {strides = array<i32>} : memref<64x512xf32, #tpu.memory_space<vmem>>, vector<64x512xf32>,
    %c0_i32_9 = arith.constant 0 : i32
    %c8_i32 = arith.constant 8 : i32
    %12 = arith.muli %c0_i32_9, %c8_i32 : i32
    %13 = tpu.assume_multiple %12, 8 : i32
    %14 = arith.index_cast %13 : i32 to index
    %c0_10 = arith.constant 0 : index
    %15 = vector.load %arg13[%14, %c0_10] : memref<64x512xf32, #tpu.memory_space<vmem>>, vector<8x512xf32>
    %c0_11 = arith.constant 0 : index
    %c0_12 = arith.constant 0 : index
    %16 = vector.load %arg15[%c0_11, %c0_12] : memref<8x128xf32, #tpu.memory_space<vmem>>, vector<8x128xf32>
    %c0_13 = arith.constant 0 : index
    %c0_14 = arith.constant 0 : index
    %17 = vector.load %arg4[%c0_13, %c0_14] : memref<128x512xf32, #tpu.memory_space<vmem>>, vector<128x512xf32>
    %cst_15 = arith.constant dense<0.000000e+00> : vector<8x512xf32>
    %18 = tpu.matmul %16, %17, %cst_15 {dimension_numbers = #tpu.dot_dimension_numbers<[1], [0], [0], [1], [0, 0, 1, 1], [], []>} : vector<8x128xf32>, vector<128x512xf32>, vector<8x512xf32> -> vector<8x512xf32>
    %19 = arith.addf %15, %18 : vector<8x512xf32>
    %c0_16 = arith.constant 0 : index
    %c0_17 = arith.constant 0 : index
    %20 = vector.load %arg16[%c0_16, %c0_17] : memref<8x128xf32, #tpu.memory_space<vmem>>, vector<8x128xf32>
    %21 = vector.extract_strided_slice %19 {offsets = [0, 0], sizes = [8, 128], strides = [1, 1]} : vector<8x512xf32> to vector<8x128xf32>
    %22 = arith.negf %21 : vector<8x128xf32>
    %23 = math.exp %22 : vector<8x128xf32>
    %cst_18 = arith.constant 1.000000e+00 : f32
    %24 = vector.broadcast %cst_18 : f32 to vector<8x128xf32>
    %25 = arith.addf %24, %23 : vector<8x128xf32>
    %26 = arith.divf %24, %25 : vector<8x128xf32>
    %27 = vector.extract_strided_slice %19 {offsets = [0, 128], sizes = [8, 128], strides = [1, 1]} : vector<8x512xf32> to vector<8x128xf32>
    %28 = arith.negf %27 : vector<8x128xf32>
    %29 = math.exp %28 : vector<8x128xf32>
    %cst_19 = arith.constant 1.000000e+00 : f32
    %30 = vector.broadcast %cst_19 : f32 to vector<8x128xf32>
    %31 = arith.addf %30, %29 : vector<8x128xf32>
    %32 = arith.divf %30, %31 : vector<8x128xf32>
    %33 = vector.extract_strided_slice %19 {offsets = [0, 256], sizes = [8, 128], strides = [1, 1]} : vector<8x512xf32> to vector<8x128xf32>
    %34 = math.tanh %33 : vector<8x128xf32>
    %35 = vector.extract_strided_slice %19 {offsets = [0, 384], sizes = [8, 128], strides = [1, 1]} : vector<8x512xf32> to vector<8x128xf32>
    %36 = arith.negf %35 : vector<8x128xf32>
    %37 = math.exp %36 : vector<8x128xf32>
    %cst_20 = arith.constant 1.000000e+00 : f32
    %38 = vector.broadcast %cst_20 : f32 to vector<8x128xf32>
    %39 = arith.addf %38, %37 : vector<8x128xf32>
    %40 = arith.divf %38, %39 : vector<8x128xf32>
    %41 = arith.mulf %32, %20 : vector<8x128xf32>
    %42 = arith.mulf %26, %34 : vector<8x128xf32>
    %43 = arith.addf %41, %42 : vector<8x128xf32>
    %44 = math.tanh %43 : vector<8x128xf32>
    %45 = arith.mulf %40, %44 : vector<8x128xf32>
    %c0_21 = arith.constant 0 : index
    %c0_22 = arith.constant 0 : index
    %46 = vector.load %arg15[%c0_21, %c0_22] : memref<8x128xf32, #tpu.memory_space<vmem>>, vector<8x128xf32>
    tpu.vector_store %arg15[%c0_21, %c0_22], %45 {strides = array<i32>} : memref<8x128xf32, #tpu.memory_space<vmem>>, vector<8x128xf32>,
    %c0_23 = arith.constant 0 : index
    %c0_24 = arith.constant 0 : index
    %47 = vector.load %arg16[%c0_23, %c0_24] : memref<8x128xf32, #tpu.memory_space<vmem>>, vector<8x128xf32>
    tpu.vector_store %arg16[%c0_23, %c0_24], %43 {strides = array<i32>} : memref<8x128xf32, #tpu.memory_space<vmem>>, vector<8x128xf32>,
    %c0_25 = arith.constant 0 : index
    %48 = arith.index_cast %13 : i32 to index
    %c0_26 = arith.constant 0 : index
    %49 = vector.load %arg9[%c0_25, %48, %c0_26] : memref<1x64x128xf32, #tpu.memory_space<vmem>>, vector<1x8x128xf32>
    %50 = vector.shape_cast %49 : vector<1x8x128xf32> to vector<8x128xf32>
    %51 = vector.shape_cast %45 : vector<8x128xf32> to vector<1x8x128xf32>
    tpu.vector_store %arg9[%c0_25, %48, %c0_26], %51 {strides = array<i32>} : memref<1x64x128xf32, #tpu.memory_space<vmem>>, vector<1x8x128xf32>,
    %c1_i32 = arith.constant 1 : i32
    %c8_i32_27 = arith.constant 8 : i32
    %52 = arith.muli %c1_i32, %c8_i32_27 : i32
    %53 = tpu.assume_multiple %52, 8 : i32
    %54 = arith.index_cast %53 : i32 to index
    %c0_28 = arith.constant 0 : index
    %55 = vector.load %arg13[%54, %c0_28] : memref<64x512xf32, #tpu.memory_space<vmem>>, vector<8x512xf32>
    %c0_29 = arith.constant 0 : index
    %c0_30 = arith.constant 0 : index
    %56 = vector.load %arg15[%c0_29, %c0_30] : memref<8x128xf32, #tpu.memory_space<vmem>>, vector<8x128xf32>
    %c0_31 = arith.constant 0 : index
    %c0_32 = arith.constant 0 : index
    %57 = vector.load %arg4[%c0_31, %c0_32] : memref<128x512xf32, #tpu.memory_space<vmem>>, vector<128x512xf32>
    %cst_33 = arith.constant dense<0.000000e+00> : vector<8x512xf32>
    %58 = tpu.matmul %56, %57, %cst_33 {dimension_numbers = #tpu.dot_dimension_numbers<[1], [0], [0], [1], [0, 0, 1, 1], [], []>} : vector<8x128xf32>, vector<128x512xf32>, vector<8x512xf32> -> vector<8x512xf32>
    %59 = arith.addf %55, %58 : vector<8x512xf32>
    %c0_34 = arith.constant 0 : index
    %c0_35 = arith.constant 0 : index
    %60 = vector.load %arg16[%c0_34, %c0_35] : memref<8x128xf32, #tpu.memory_space<vmem>>, vector<8x128xf32>
    %61 = vector.extract_strided_slice %59 {offsets = [0, 0], sizes = [8, 128], strides = [1, 1]} : vector<8x512xf32> to vector<8x128xf32>
    %62 = arith.negf %61 : vector<8x128xf32>
    %63 = math.exp %62 : vector<8x128xf32>
    %cst_36 = arith.constant 1.000000e+00 : f32
    %64 = vector.broadcast %cst_36 : f32 to vector<8x128xf32>
    %65 = arith.addf %64, %63 : vector<8x128xf32>
    %66 = arith.divf %64, %65 : vector<8x128xf32>
    %67 = vector.extract_strided_slice %59 {offsets = [0, 128], sizes = [8, 128], strides = [1, 1]} : vector<8x512xf32> to vector<8x128xf32>
    %68 = arith.negf %67 : vector<8x128xf32>
    %69 = math.exp %68 : vector<8x128xf32>
    %cst_37 = arith.constant 1.000000e+00 : f32
    %70 = vector.broadcast %cst_37 : f32 to vector<8x128xf32>
    %71 = arith.addf %70, %69 : vector<8x128xf32>
    %72 = arith.divf %70, %71 : vector<8x128xf32>
    %73 = vector.extract_strided_slice %59 {offsets = [0, 256], sizes = [8, 128], strides = [1, 1]} : vector<8x512xf32> to vector<8x128xf32>
    %74 = math.tanh %73 : vector<8x128xf32>
    %75 = vector.extract_strided_slice %59 {offsets = [0, 384], sizes = [8, 128], strides = [1, 1]} : vector<8x512xf32> to vector<8x128xf32>
    %76 = arith.negf %75 : vector<8x128xf32>
    %77 = math.exp %76 : vector<8x128xf32>
    %cst_38 = arith.constant 1.000000e+00 : f32
    %78 = vector.broadcast %cst_38 : f32 to vector<8x128xf32>
    %79 = arith.addf %78, %77 : vector<8x128xf32>
    %80 = arith.divf %78, %79 : vector<8x128xf32>
    %81 = arith.mulf %72, %60 : vector<8x128xf32>
    %82 = arith.mulf %66, %74 : vector<8x128xf32>
    %83 = arith.addf %81, %82 : vector<8x128xf32>
    %84 = math.tanh %83 : vector<8x128xf32>
    %85 = arith.mulf %80, %84 : vector<8x128xf32>
    %c0_39 = arith.constant 0 : index
    %c0_40 = arith.constant 0 : index
    %86 = vector.load %arg15[%c0_39, %c0_40] : memref<8x128xf32, #tpu.memory_space<vmem>>, vector<8x128xf32>
    tpu.vector_store %arg15[%c0_39, %c0_40], %85 {strides = array<i32>} : memref<8x128xf32, #tpu.memory_space<vmem>>, vector<8x128xf32>,
    %c0_41 = arith.constant 0 : index
    %c0_42 = arith.constant 0 : index
    %87 = vector.load %arg16[%c0_41, %c0_42] : memref<8x128xf32, #tpu.memory_space<vmem>>, vector<8x128xf32>
    tpu.vector_store %arg16[%c0_41, %c0_42], %83 {strides = array<i32>} : memref<8x128xf32, #tpu.memory_space<vmem>>, vector<8x128xf32>,
    %c0_43 = arith.constant 0 : index
    %88 = arith.index_cast %53 : i32 to index
    %c0_44 = arith.constant 0 : index
    %89 = vector.load %arg9[%c0_43, %88, %c0_44] : memref<1x64x128xf32, #tpu.memory_space<vmem>>, vector<1x8x128xf32>
    %90 = vector.shape_cast %89 : vector<1x8x128xf32> to vector<8x128xf32>
    %91 = vector.shape_cast %85 : vector<8x128xf32> to vector<1x8x128xf32>
    tpu.vector_store %arg9[%c0_43, %88, %c0_44], %91 {strides = array<i32>} : memref<1x64x128xf32, #tpu.memory_space<vmem>>, vector<1x8x128xf32>,
    %c2_i32 = arith.constant 2 : i32
    %c8_i32_45 = arith.constant 8 : i32
    %92 = arith.muli %c2_i32, %c8_i32_45 : i32
    %93 = tpu.assume_multiple %92, 8 : i32
    %94 = arith.index_cast %93 : i32 to index
    %c0_46 = arith.constant 0 : index
    %95 = vector.load %arg13[%94, %c0_46] : memref<64x512xf32, #tpu.memory_space<vmem>>, vector<8x512xf32>
    %c0_47 = arith.constant 0 : index
    %c0_48 = arith.constant 0 : index
    %96 = vector.load %arg15[%c0_47, %c0_48] : memref<8x128xf32, #tpu.memory_space<vmem>>, vector<8x128xf32>
    %c0_49 = arith.constant 0 : index
    %c0_50 = arith.constant 0 : index
    %97 = vector.load %arg4[%c0_49, %c0_50] : memref<128x512xf32, #tpu.memory_space<vmem>>, vector<128x512xf32>
    %cst_51 = arith.constant dense<0.000000e+00> : vector<8x512xf32>
    %98 = tpu.matmul %96, %97, %cst_51 {dimension_numbers = #tpu.dot_dimension_numbers<[1], [0], [0], [1], [0, 0, 1, 1], [], []>} : vector<8x128xf32>, vector<128x512xf32>, vector<8x512xf32> -> vector<8x512xf32>
    %99 = arith.addf %95, %98 : vector<8x512xf32>
    %c0_52 = arith.constant 0 : index
    %c0_53 = arith.constant 0 : index
    %100 = vector.load %arg16[%c0_52, %c0_53] : memref<8x128xf32, #tpu.memory_space<vmem>>, vector<8x128xf32>
    %101 = vector.extract_strided_slice %99 {offsets = [0, 0], sizes = [8, 128], strides = [1, 1]} : vector<8x512xf32> to vector<8x128xf32>
    %102 = arith.negf %101 : vector<8x128xf32>
    %103 = math.exp %102 : vector<8x128xf32>
    %cst_54 = arith.constant 1.000000e+00 : f32
    %104 = vector.broadcast %cst_54 : f32 to vector<8x128xf32>
    %105 = arith.addf %104, %103 : vector<8x128xf32>
    %106 = arith.divf %104, %105 : vector<8x128xf32>
    %107 = vector.extract_strided_slice %99 {offsets = [0, 128], sizes = [8, 128], strides = [1, 1]} : vector<8x512xf32> to vector<8x128xf32>
    %108 = arith.negf %107 : vector<8x128xf32>
    %109 = math.exp %108 : vector<8x128xf32>
    %cst_55 = arith.constant 1.000000e+00 : f32
    %110 = vector.broadcast %cst_55 : f32 to vector<8x128xf32>
    %111 = arith.addf %110, %109 : vector<8x128xf32>
    %112 = arith.divf %110, %111 : vector<8x128xf32>
    %113 = vector.extract_strided_slice %99 {offsets = [0, 256], sizes = [8, 128], strides = [1, 1]} : vector<8x512xf32> to vector<8x128xf32>
    %114 = math.tanh %113 : vector<8x128xf32>
    %115 = vector.extract_strided_slice %99 {offsets = [0, 384], sizes = [8, 128], strides = [1, 1]} : vector<8x512xf32> to vector<8x128xf32>
    %116 = arith.negf %115 : vector<8x128xf32>
    %117 = math.exp %116 : vector<8x128xf32>
    %cst_56 = arith.constant 1.000000e+00 : f32
    %118 = vector.broadcast %cst_56 : f32 to vector<8x128xf32>
    %119 = arith.addf %118, %117 : vector<8x128xf32>
    %120 = arith.divf %118, %119 : vector<8x128xf32>
    %121 = arith.mulf %112, %100 : vector<8x128xf32>
    %122 = arith.mulf %106, %114 : vector<8x128xf32>
    %123 = arith.addf %121, %122 : vector<8x128xf32>
    %124 = math.tanh %123 : vector<8x128xf32>
    %125 = arith.mulf %120, %124 : vector<8x128xf32>
    %c0_57 = arith.constant 0 : index
    %c0_58 = arith.constant 0 : index
    %126 = vector.load %arg15[%c0_57, %c0_58] : memref<8x128xf32, #tpu.memory_space<vmem>>, vector<8x128xf32>
    tpu.vector_store %arg15[%c0_57, %c0_58], %125 {strides = array<i32>} : memref<8x128xf32, #tpu.memory_space<vmem>>, vector<8x128xf32>,
    %c0_59 = arith.constant 0 : index
    %c0_60 = arith.constant 0 : index
    %127 = vector.load %arg16[%c0_59, %c0_60] : memref<8x128xf32, #tpu.memory_space<vmem>>, vector<8x128xf32>
    tpu.vector_store %arg16[%c0_59, %c0_60], %123 {strides = array<i32>} : memref<8x128xf32, #tpu.memory_space<vmem>>, vector<8x128xf32>,
    %c0_61 = arith.constant 0 : index
    %128 = arith.index_cast %93 : i32 to index
    %c0_62 = arith.constant 0 : index
    %129 = vector.load %arg9[%c0_61, %128, %c0_62] : memref<1x64x128xf32, #tpu.memory_space<vmem>>, vector<1x8x128xf32>
    %130 = vector.shape_cast %129 : vector<1x8x128xf32> to vector<8x128xf32>
    %131 = vector.shape_cast %125 : vector<8x128xf32> to vector<1x8x128xf32>
    tpu.vector_store %arg9[%c0_61, %128, %c0_62], %131 {strides = array<i32>} : memref<1x64x128xf32, #tpu.memory_space<vmem>>, vector<1x8x128xf32>,
    %c3_i32 = arith.constant 3 : i32
    %c8_i32_63 = arith.constant 8 : i32
    %132 = arith.muli %c3_i32, %c8_i32_63 : i32
    %133 = tpu.assume_multiple %132, 8 : i32
    %134 = arith.index_cast %133 : i32 to index
    %c0_64 = arith.constant 0 : index
    %135 = vector.load %arg13[%134, %c0_64] : memref<64x512xf32, #tpu.memory_space<vmem>>, vector<8x512xf32>
    %c0_65 = arith.constant 0 : index
    %c0_66 = arith.constant 0 : index
    %136 = vector.load %arg15[%c0_65, %c0_66] : memref<8x128xf32, #tpu.memory_space<vmem>>, vector<8x128xf32>
    %c0_67 = arith.constant 0 : index
    %c0_68 = arith.constant 0 : index
    %137 = vector.load %arg4[%c0_67, %c0_68] : memref<128x512xf32, #tpu.memory_space<vmem>>, vector<128x512xf32>
    %cst_69 = arith.constant dense<0.000000e+00> : vector<8x512xf32>
    %138 = tpu.matmul %136, %137, %cst_69 {dimension_numbers = #tpu.dot_dimension_numbers<[1], [0], [0], [1], [0, 0, 1, 1], [], []>} : vector<8x128xf32>, vector<128x512xf32>, vector<8x512xf32> -> vector<8x512xf32>
    %139 = arith.addf %135, %138 : vector<8x512xf32>
    %c0_70 = arith.constant 0 : index
    %c0_71 = arith.constant 0 : index
    %140 = vector.load %arg16[%c0_70, %c0_71] : memref<8x128xf32, #tpu.memory_space<vmem>>, vector<8x128xf32>
    %141 = vector.extract_strided_slice %139 {offsets = [0, 0], sizes = [8, 128], strides = [1, 1]} : vector<8x512xf32> to vector<8x128xf32>
    %142 = arith.negf %141 : vector<8x128xf32>
    %143 = math.exp %142 : vector<8x128xf32>
    %cst_72 = arith.constant 1.000000e+00 : f32
    %144 = vector.broadcast %cst_72 : f32 to vector<8x128xf32>
    %145 = arith.addf %144, %143 : vector<8x128xf32>
    %146 = arith.divf %144, %145 : vector<8x128xf32>
    %147 = vector.extract_strided_slice %139 {offsets = [0, 128], sizes = [8, 128], strides = [1, 1]} : vector<8x512xf32> to vector<8x128xf32>
    %148 = arith.negf %147 : vector<8x128xf32>
    %149 = math.exp %148 : vector<8x128xf32>
    %cst_73 = arith.constant 1.000000e+00 : f32
    %150 = vector.broadcast %cst_73 : f32 to vector<8x128xf32>
    %151 = arith.addf %150, %149 : vector<8x128xf32>
    %152 = arith.divf %150, %151 : vector<8x128xf32>
    %153 = vector.extract_strided_slice %139 {offsets = [0, 256], sizes = [8, 128], strides = [1, 1]} : vector<8x512xf32> to vector<8x128xf32>
    %154 = math.tanh %153 : vector<8x128xf32>
    %155 = vector.extract_strided_slice %139 {offsets = [0, 384], sizes = [8, 128], strides = [1, 1]} : vector<8x512xf32> to vector<8x128xf32>
    %156 = arith.negf %155 : vector<8x128xf32>
    %157 = math.exp %156 : vector<8x128xf32>
    %cst_74 = arith.constant 1.000000e+00 : f32
    %158 = vector.broadcast %cst_74 : f32 to vector<8x128xf32>
    %159 = arith.addf %158, %157 : vector<8x128xf32>
    %160 = arith.divf %158, %159 : vector<8x128xf32>
    %161 = arith.mulf %152, %140 : vector<8x128xf32>
    %162 = arith.mulf %146, %154 : vector<8x128xf32>
    %163 = arith.addf %161, %162 : vector<8x128xf32>
    %164 = math.tanh %163 : vector<8x128xf32>
    %165 = arith.mulf %160, %164 : vector<8x128xf32>
    %c0_75 = arith.constant 0 : index
    %c0_76 = arith.constant 0 : index
    %166 = vector.load %arg15[%c0_75, %c0_76] : memref<8x128xf32, #tpu.memory_space<vmem>>, vector<8x128xf32>
    tpu.vector_store %arg15[%c0_75, %c0_76], %165 {strides = array<i32>} : memref<8x128xf32, #tpu.memory_space<vmem>>, vector<8x128xf32>,
    %c0_77 = arith.constant 0 : index
    %c0_78 = arith.constant 0 : index
    %167 = vector.load %arg16[%c0_77, %c0_78] : memref<8x128xf32, #tpu.memory_space<vmem>>, vector<8x128xf32>
    tpu.vector_store %arg16[%c0_77, %c0_78], %163 {strides = array<i32>} : memref<8x128xf32, #tpu.memory_space<vmem>>, vector<8x128xf32>,
    %c0_79 = arith.constant 0 : index
    %168 = arith.index_cast %133 : i32 to index
    %c0_80 = arith.constant 0 : index
    %169 = vector.load %arg9[%c0_79, %168, %c0_80] : memref<1x64x128xf32, #tpu.memory_space<vmem>>, vector<1x8x128xf32>
    %170 = vector.shape_cast %169 : vector<1x8x128xf32> to vector<8x128xf32>
    %171 = vector.shape_cast %165 : vector<8x128xf32> to vector<1x8x128xf32>
    tpu.vector_store %arg9[%c0_79, %168, %c0_80], %171 {strides = array<i32>} : memref<1x64x128xf32, #tpu.memory_space<vmem>>, vector<1x8x128xf32>,
    %c4_i32 = arith.constant 4 : i32
    %c8_i32_81 = arith.constant 8 : i32
    %172 = arith.muli %c4_i32, %c8_i32_81 : i32
    %173 = tpu.assume_multiple %172, 8 : i32
    %174 = arith.index_cast %173 : i32 to index
    %c0_82 = arith.constant 0 : index
    %175 = vector.load %arg13[%174, %c0_82] : memref<64x512xf32, #tpu.memory_space<vmem>>, vector<8x512xf32>
    %c0_83 = arith.constant 0 : index
    %c0_84 = arith.constant 0 : index
    %176 = vector.load %arg15[%c0_83, %c0_84] : memref<8x128xf32, #tpu.memory_space<vmem>>, vector<8x128xf32>
    %c0_85 = arith.constant 0 : index
    %c0_86 = arith.constant 0 : index
    %177 = vector.load %arg4[%c0_85, %c0_86] : memref<128x512xf32, #tpu.memory_space<vmem>>, vector<128x512xf32>
    %cst_87 = arith.constant dense<0.000000e+00> : vector<8x512xf32>
    %178 = tpu.matmul %176, %177, %cst_87 {dimension_numbers = #tpu.dot_dimension_numbers<[1], [0], [0], [1], [0, 0, 1, 1], [], []>} : vector<8x128xf32>, vector<128x512xf32>, vector<8x512xf32> -> vector<8x512xf32>
    %179 = arith.addf %175, %178 : vector<8x512xf32>
    %c0_88 = arith.constant 0 : index
    %c0_89 = arith.constant 0 : index
    %180 = vector.load %arg16[%c0_88, %c0_89] : memref<8x128xf32, #tpu.memory_space<vmem>>, vector<8x128xf32>
    %181 = vector.extract_strided_slice %179 {offsets = [0, 0], sizes = [8, 128], strides = [1, 1]} : vector<8x512xf32> to vector<8x128xf32>
    %182 = arith.negf %181 : vector<8x128xf32>
    %183 = math.exp %182 : vector<8x128xf32>
    %cst_90 = arith.constant 1.000000e+00 : f32
    %184 = vector.broadcast %cst_90 : f32 to vector<8x128xf32>
    %185 = arith.addf %184, %183 : vector<8x128xf32>
    %186 = arith.divf %184, %185 : vector<8x128xf32>
    %187 = vector.extract_strided_slice %179 {offsets = [0, 128], sizes = [8, 128], strides = [1, 1]} : vector<8x512xf32> to vector<8x128xf32>
    %188 = arith.negf %187 : vector<8x128xf32>
    %189 = math.exp %188 : vector<8x128xf32>
    %cst_91 = arith.constant 1.000000e+00 : f32
    %190 = vector.broadcast %cst_91 : f32 to vector<8x128xf32>
    %191 = arith.addf %190, %189 : vector<8x128xf32>
    %192 = arith.divf %190, %191 : vector<8x128xf32>
    %193 = vector.extract_strided_slice %179 {offsets = [0, 256], sizes = [8, 128], strides = [1, 1]} : vector<8x512xf32> to vector<8x128xf32>
    %194 = math.tanh %193 : vector<8x128xf32>
    %195 = vector.extract_strided_slice %179 {offsets = [0, 384], sizes = [8, 128], strides = [1, 1]} : vector<8x512xf32> to vector<8x128xf32>
    %196 = arith.negf %195 : vector<8x128xf32>
    %197 = math.exp %196 : vector<8x128xf32>
    %cst_92 = arith.constant 1.000000e+00 : f32
    %198 = vector.broadcast %cst_92 : f32 to vector<8x128xf32>
    %199 = arith.addf %198, %197 : vector<8x128xf32>
    %200 = arith.divf %198, %199 : vector<8x128xf32>
    %201 = arith.mulf %192, %180 : vector<8x128xf32>
    %202 = arith.mulf %186, %194 : vector<8x128xf32>
    %203 = arith.addf %201, %202 : vector<8x128xf32>
    %204 = math.tanh %203 : vector<8x128xf32>
    %205 = arith.mulf %200, %204 : vector<8x128xf32>
    %c0_93 = arith.constant 0 : index
    %c0_94 = arith.constant 0 : index
    %206 = vector.load %arg15[%c0_93, %c0_94] : memref<8x128xf32, #tpu.memory_space<vmem>>, vector<8x128xf32>
    tpu.vector_store %arg15[%c0_93, %c0_94], %205 {strides = array<i32>} : memref<8x128xf32, #tpu.memory_space<vmem>>, vector<8x128xf32>,
    %c0_95 = arith.constant 0 : index
    %c0_96 = arith.constant 0 : index
    %207 = vector.load %arg16[%c0_95, %c0_96] : memref<8x128xf32, #tpu.memory_space<vmem>>, vector<8x128xf32>
    tpu.vector_store %arg16[%c0_95, %c0_96], %203 {strides = array<i32>} : memref<8x128xf32, #tpu.memory_space<vmem>>, vector<8x128xf32>,
    %c0_97 = arith.constant 0 : index
    %208 = arith.index_cast %173 : i32 to index
    %c0_98 = arith.constant 0 : index
    %209 = vector.load %arg9[%c0_97, %208, %c0_98] : memref<1x64x128xf32, #tpu.memory_space<vmem>>, vector<1x8x128xf32>
    %210 = vector.shape_cast %209 : vector<1x8x128xf32> to vector<8x128xf32>
    %211 = vector.shape_cast %205 : vector<8x128xf32> to vector<1x8x128xf32>
    tpu.vector_store %arg9[%c0_97, %208, %c0_98], %211 {strides = array<i32>} : memref<1x64x128xf32, #tpu.memory_space<vmem>>, vector<1x8x128xf32>,
    %c5_i32 = arith.constant 5 : i32
    %c8_i32_99 = arith.constant 8 : i32
    %212 = arith.muli %c5_i32, %c8_i32_99 : i32
    %213 = tpu.assume_multiple %212, 8 : i32
    %214 = arith.index_cast %213 : i32 to index
    %c0_100 = arith.constant 0 : index
    %215 = vector.load %arg13[%214, %c0_100] : memref<64x512xf32, #tpu.memory_space<vmem>>, vector<8x512xf32>
    %c0_101 = arith.constant 0 : index
    %c0_102 = arith.constant 0 : index
    %216 = vector.load %arg15[%c0_101, %c0_102] : memref<8x128xf32, #tpu.memory_space<vmem>>, vector<8x128xf32>
    %c0_103 = arith.constant 0 : index
    %c0_104 = arith.constant 0 : index
    %217 = vector.load %arg4[%c0_103, %c0_104] : memref<128x512xf32, #tpu.memory_space<vmem>>, vector<128x512xf32>
    %cst_105 = arith.constant dense<0.000000e+00> : vector<8x512xf32>
    %218 = tpu.matmul %216, %217, %cst_105 {dimension_numbers = #tpu.dot_dimension_numbers<[1], [0], [0], [1], [0, 0, 1, 1], [], []>} : vector<8x128xf32>, vector<128x512xf32>, vector<8x512xf32> -> vector<8x512xf32>
    %219 = arith.addf %215, %218 : vector<8x512xf32>
    %c0_106 = arith.constant 0 : index
    %c0_107 = arith.constant 0 : index
    %220 = vector.load %arg16[%c0_106, %c0_107] : memref<8x128xf32, #tpu.memory_space<vmem>>, vector<8x128xf32>
    %221 = vector.extract_strided_slice %219 {offsets = [0, 0], sizes = [8, 128], strides = [1, 1]} : vector<8x512xf32> to vector<8x128xf32>
    %222 = arith.negf %221 : vector<8x128xf32>
    %223 = math.exp %222 : vector<8x128xf32>
    %cst_108 = arith.constant 1.000000e+00 : f32
    %224 = vector.broadcast %cst_108 : f32 to vector<8x128xf32>
    %225 = arith.addf %224, %223 : vector<8x128xf32>
    %226 = arith.divf %224, %225 : vector<8x128xf32>
    %227 = vector.extract_strided_slice %219 {offsets = [0, 128], sizes = [8, 128], strides = [1, 1]} : vector<8x512xf32> to vector<8x128xf32>
    %228 = arith.negf %227 : vector<8x128xf32>
    %229 = math.exp %228 : vector<8x128xf32>
    %cst_109 = arith.constant 1.000000e+00 : f32
    %230 = vector.broadcast %cst_109 : f32 to vector<8x128xf32>
    %231 = arith.addf %230, %229 : vector<8x128xf32>
    %232 = arith.divf %230, %231 : vector<8x128xf32>
    %233 = vector.extract_strided_slice %219 {offsets = [0, 256], sizes = [8, 128], strides = [1, 1]} : vector<8x512xf32> to vector<8x128xf32>
    %234 = math.tanh %233 : vector<8x128xf32>
    %235 = vector.extract_strided_slice %219 {offsets = [0, 384], sizes = [8, 128], strides = [1, 1]} : vector<8x512xf32> to vector<8x128xf32>
    %236 = arith.negf %235 : vector<8x128xf32>
    %237 = math.exp %236 : vector<8x128xf32>
    %cst_110 = arith.constant 1.000000e+00 : f32
    %238 = vector.broadcast %cst_110 : f32 to vector<8x128xf32>
    %239 = arith.addf %238, %237 : vector<8x128xf32>
    %240 = arith.divf %238, %239 : vector<8x128xf32>
    %241 = arith.mulf %232, %220 : vector<8x128xf32>
    %242 = arith.mulf %226, %234 : vector<8x128xf32>
    %243 = arith.addf %241, %242 : vector<8x128xf32>
    %244 = math.tanh %243 : vector<8x128xf32>
    %245 = arith.mulf %240, %244 : vector<8x128xf32>
    %c0_111 = arith.constant 0 : index
    %c0_112 = arith.constant 0 : index
    %246 = vector.load %arg15[%c0_111, %c0_112] : memref<8x128xf32, #tpu.memory_space<vmem>>, vector<8x128xf32>
    tpu.vector_store %arg15[%c0_111, %c0_112], %245 {strides = array<i32>} : memref<8x128xf32, #tpu.memory_space<vmem>>, vector<8x128xf32>,
    %c0_113 = arith.constant 0 : index
    %c0_114 = arith.constant 0 : index
    %247 = vector.load %arg16[%c0_113, %c0_114] : memref<8x128xf32, #tpu.memory_space<vmem>>, vector<8x128xf32>
    tpu.vector_store %arg16[%c0_113, %c0_114], %243 {strides = array<i32>} : memref<8x128xf32, #tpu.memory_space<vmem>>, vector<8x128xf32>,
    %c0_115 = arith.constant 0 : index
    %248 = arith.index_cast %213 : i32 to index
    %c0_116 = arith.constant 0 : index
    %249 = vector.load %arg9[%c0_115, %248, %c0_116] : memref<1x64x128xf32, #tpu.memory_space<vmem>>, vector<1x8x128xf32>
    %250 = vector.shape_cast %249 : vector<1x8x128xf32> to vector<8x128xf32>
    %251 = vector.shape_cast %245 : vector<8x128xf32> to vector<1x8x128xf32>
    tpu.vector_store %arg9[%c0_115, %248, %c0_116], %251 {strides = array<i32>} : memref<1x64x128xf32, #tpu.memory_space<vmem>>, vector<1x8x128xf32>,
    %c6_i32 = arith.constant 6 : i32
    %c8_i32_117 = arith.constant 8 : i32
    %252 = arith.muli %c6_i32, %c8_i32_117 : i32
    %253 = tpu.assume_multiple %252, 8 : i32
    %254 = arith.index_cast %253 : i32 to index
    %c0_118 = arith.constant 0 : index
    %255 = vector.load %arg13[%254, %c0_118] : memref<64x512xf32, #tpu.memory_space<vmem>>, vector<8x512xf32>
    %c0_119 = arith.constant 0 : index
    %c0_120 = arith.constant 0 : index
    %256 = vector.load %arg15[%c0_119, %c0_120] : memref<8x128xf32, #tpu.memory_space<vmem>>, vector<8x128xf32>
    %c0_121 = arith.constant 0 : index
    %c0_122 = arith.constant 0 : index
    %257 = vector.load %arg4[%c0_121, %c0_122] : memref<128x512xf32, #tpu.memory_space<vmem>>, vector<128x512xf32>
    %cst_123 = arith.constant dense<0.000000e+00> : vector<8x512xf32>
    %258 = tpu.matmul %256, %257, %cst_123 {dimension_numbers = #tpu.dot_dimension_numbers<[1], [0], [0], [1], [0, 0, 1, 1], [], []>} : vector<8x128xf32>, vector<128x512xf32>, vector<8x512xf32> -> vector<8x512xf32>
    %259 = arith.addf %255, %258 : vector<8x512xf32>
    %c0_124 = arith.constant 0 : index
    %c0_125 = arith.constant 0 : index
    %260 = vector.load %arg16[%c0_124, %c0_125] : memref<8x128xf32, #tpu.memory_space<vmem>>, vector<8x128xf32>
    %261 = vector.extract_strided_slice %259 {offsets = [0, 0], sizes = [8, 128], strides = [1, 1]} : vector<8x512xf32> to vector<8x128xf32>
    %262 = arith.negf %261 : vector<8x128xf32>
    %263 = math.exp %262 : vector<8x128xf32>
    %cst_126 = arith.constant 1.000000e+00 : f32
    %264 = vector.broadcast %cst_126 : f32 to vector<8x128xf32>
    %265 = arith.addf %264, %263 : vector<8x128xf32>
    %266 = arith.divf %264, %265 : vector<8x128xf32>
    %267 = vector.extract_strided_slice %259 {offsets = [0, 128], sizes = [8, 128], strides = [1, 1]} : vector<8x512xf32> to vector<8x128xf32>
    %268 = arith.negf %267 : vector<8x128xf32>
    %269 = math.exp %268 : vector<8x128xf32>
    %cst_127 = arith.constant 1.000000e+00 : f32
    %270 = vector.broadcast %cst_127 : f32 to vector<8x128xf32>
    %271 = arith.addf %270, %269 : vector<8x128xf32>
    %272 = arith.divf %270, %271 : vector<8x128xf32>
    %273 = vector.extract_strided_slice %259 {offsets = [0, 256], sizes = [8, 128], strides = [1, 1]} : vector<8x512xf32> to vector<8x128xf32>
    %274 = math.tanh %273 : vector<8x128xf32>
    %275 = vector.extract_strided_slice %259 {offsets = [0, 384], sizes = [8, 128], strides = [1, 1]} : vector<8x512xf32> to vector<8x128xf32>
    %276 = arith.negf %275 : vector<8x128xf32>
    %277 = math.exp %276 : vector<8x128xf32>
    %cst_128 = arith.constant 1.000000e+00 : f32
    %278 = vector.broadcast %cst_128 : f32 to vector<8x128xf32>
    %279 = arith.addf %278, %277 : vector<8x128xf32>
    %280 = arith.divf %278, %279 : vector<8x128xf32>
    %281 = arith.mulf %272, %260 : vector<8x128xf32>
    %282 = arith.mulf %266, %274 : vector<8x128xf32>
    %283 = arith.addf %281, %282 : vector<8x128xf32>
    %284 = math.tanh %283 : vector<8x128xf32>
    %285 = arith.mulf %280, %284 : vector<8x128xf32>
    %c0_129 = arith.constant 0 : index
    %c0_130 = arith.constant 0 : index
    %286 = vector.load %arg15[%c0_129, %c0_130] : memref<8x128xf32, #tpu.memory_space<vmem>>, vector<8x128xf32>
    tpu.vector_store %arg15[%c0_129, %c0_130], %285 {strides = array<i32>} : memref<8x128xf32, #tpu.memory_space<vmem>>, vector<8x128xf32>,
    %c0_131 = arith.constant 0 : index
    %c0_132 = arith.constant 0 : index
    %287 = vector.load %arg16[%c0_131, %c0_132] : memref<8x128xf32, #tpu.memory_space<vmem>>, vector<8x128xf32>
    tpu.vector_store %arg16[%c0_131, %c0_132], %283 {strides = array<i32>} : memref<8x128xf32, #tpu.memory_space<vmem>>, vector<8x128xf32>,
    %c0_133 = arith.constant 0 : index
    %288 = arith.index_cast %253 : i32 to index
    %c0_134 = arith.constant 0 : index
    %289 = vector.load %arg9[%c0_133, %288, %c0_134] : memref<1x64x128xf32, #tpu.memory_space<vmem>>, vector<1x8x128xf32>
    %290 = vector.shape_cast %289 : vector<1x8x128xf32> to vector<8x128xf32>
    %291 = vector.shape_cast %285 : vector<8x128xf32> to vector<1x8x128xf32>
    tpu.vector_store %arg9[%c0_133, %288, %c0_134], %291 {strides = array<i32>} : memref<1x64x128xf32, #tpu.memory_space<vmem>>, vector<1x8x128xf32>,
    %c7_i32 = arith.constant 7 : i32
    %c8_i32_135 = arith.constant 8 : i32
    %292 = arith.muli %c7_i32, %c8_i32_135 : i32
    %293 = tpu.assume_multiple %292, 8 : i32
    %294 = arith.index_cast %293 : i32 to index
    %c0_136 = arith.constant 0 : index
    %295 = vector.load %arg13[%294, %c0_136] : memref<64x512xf32, #tpu.memory_space<vmem>>, vector<8x512xf32>
    %c0_137 = arith.constant 0 : index
    %c0_138 = arith.constant 0 : index
    %296 = vector.load %arg15[%c0_137, %c0_138] : memref<8x128xf32, #tpu.memory_space<vmem>>, vector<8x128xf32>
    %c0_139 = arith.constant 0 : index
    %c0_140 = arith.constant 0 : index
    %297 = vector.load %arg4[%c0_139, %c0_140] : memref<128x512xf32, #tpu.memory_space<vmem>>, vector<128x512xf32>
    %cst_141 = arith.constant dense<0.000000e+00> : vector<8x512xf32>
    %298 = tpu.matmul %296, %297, %cst_141 {dimension_numbers = #tpu.dot_dimension_numbers<[1], [0], [0], [1], [0, 0, 1, 1], [], []>} : vector<8x128xf32>, vector<128x512xf32>, vector<8x512xf32> -> vector<8x512xf32>
    %299 = arith.addf %295, %298 : vector<8x512xf32>
    %c0_142 = arith.constant 0 : index
    %c0_143 = arith.constant 0 : index
    %300 = vector.load %arg16[%c0_142, %c0_143] : memref<8x128xf32, #tpu.memory_space<vmem>>, vector<8x128xf32>
    %301 = vector.extract_strided_slice %299 {offsets = [0, 0], sizes = [8, 128], strides = [1, 1]} : vector<8x512xf32> to vector<8x128xf32>
    %302 = arith.negf %301 : vector<8x128xf32>
    %303 = math.exp %302 : vector<8x128xf32>
    %cst_144 = arith.constant 1.000000e+00 : f32
    %304 = vector.broadcast %cst_144 : f32 to vector<8x128xf32>
    %305 = arith.addf %304, %303 : vector<8x128xf32>
    %306 = arith.divf %304, %305 : vector<8x128xf32>
    %307 = vector.extract_strided_slice %299 {offsets = [0, 128], sizes = [8, 128], strides = [1, 1]} : vector<8x512xf32> to vector<8x128xf32>
    %308 = arith.negf %307 : vector<8x128xf32>
    %309 = math.exp %308 : vector<8x128xf32>
    %cst_145 = arith.constant 1.000000e+00 : f32
    %310 = vector.broadcast %cst_145 : f32 to vector<8x128xf32>
    %311 = arith.addf %310, %309 : vector<8x128xf32>
    %312 = arith.divf %310, %311 : vector<8x128xf32>
    %313 = vector.extract_strided_slice %299 {offsets = [0, 256], sizes = [8, 128], strides = [1, 1]} : vector<8x512xf32> to vector<8x128xf32>
    %314 = math.tanh %313 : vector<8x128xf32>
    %315 = vector.extract_strided_slice %299 {offsets = [0, 384], sizes = [8, 128], strides = [1, 1]} : vector<8x512xf32> to vector<8x128xf32>
    %316 = arith.negf %315 : vector<8x128xf32>
    %317 = math.exp %316 : vector<8x128xf32>
    %cst_146 = arith.constant 1.000000e+00 : f32
    %318 = vector.broadcast %cst_146 : f32 to vector<8x128xf32>
    %319 = arith.addf %318, %317 : vector<8x128xf32>
    %320 = arith.divf %318, %319 : vector<8x128xf32>
    %321 = arith.mulf %312, %300 : vector<8x128xf32>
    %322 = arith.mulf %306, %314 : vector<8x128xf32>
    %323 = arith.addf %321, %322 : vector<8x128xf32>
    %324 = math.tanh %323 : vector<8x128xf32>
    %325 = arith.mulf %320, %324 : vector<8x128xf32>
    %c0_147 = arith.constant 0 : index
    %c0_148 = arith.constant 0 : index
    %326 = vector.load %arg15[%c0_147, %c0_148] : memref<8x128xf32, #tpu.memory_space<vmem>>, vector<8x128xf32>
    tpu.vector_store %arg15[%c0_147, %c0_148], %325 {strides = array<i32>} : memref<8x128xf32, #tpu.memory_space<vmem>>, vector<8x128xf32>,
    %c0_149 = arith.constant 0 : index
    %c0_150 = arith.constant 0 : index
    %327 = vector.load %arg16[%c0_149, %c0_150] : memref<8x128xf32, #tpu.memory_space<vmem>>, vector<8x128xf32>
    tpu.vector_store %arg16[%c0_149, %c0_150], %323 {strides = array<i32>} : memref<8x128xf32, #tpu.memory_space<vmem>>, vector<8x128xf32>,
    %c0_151 = arith.constant 0 : index
    %328 = arith.index_cast %293 : i32 to index
    %c0_152 = arith.constant 0 : index
    %329 = vector.load %arg9[%c0_151, %328, %c0_152] : memref<1x64x128xf32, #tpu.memory_space<vmem>>, vector<1x8x128xf32>
    %330 = vector.shape_cast %329 : vector<1x8x128xf32> to vector<8x128xf32>
    %331 = vector.shape_cast %325 : vector<8x128xf32> to vector<1x8x128xf32>
    tpu.vector_store %arg9[%c0_151, %328, %c0_152], %331 {strides = array<i32>} : memref<1x64x128xf32, #tpu.memory_space<vmem>>, vector<1x8x128xf32>,
    %c8_i32_153 = arith.constant 8 : i32
    %c0_154 = arith.constant 0 : index
    %c0_155 = arith.constant 0 : index
    %332 = vector.load %arg15[%c0_154, %c0_155] : memref<8x128xf32, #tpu.memory_space<vmem>>, vector<8x128xf32>
    %c0_156 = arith.constant 0 : index
    %c0_157 = arith.constant 0 : index
    %c0_158 = arith.constant 0 : index
    %333 = vector.load %arg10[%c0_156, %c0_157, %c0_158] : memref<1x8x128xf32, #tpu.memory_space<vmem>>, vector<1x8x128xf32>
    %334 = vector.shape_cast %333 : vector<1x8x128xf32> to vector<8x128xf32>
    %335 = vector.shape_cast %332 : vector<8x128xf32> to vector<1x8x128xf32>
    tpu.vector_store %arg10[%c0_156, %c0_157, %c0_158], %335 {strides = array<i32>} : memref<1x8x128xf32, #tpu.memory_space<vmem>>, vector<1x8x128xf32>,
    %c0_159 = arith.constant 0 : index
    %c0_160 = arith.constant 0 : index
    %336 = vector.load %arg16[%c0_159, %c0_160] : memref<8x128xf32, #tpu.memory_space<vmem>>, vector<8x128xf32>
    %c0_161 = arith.constant 0 : index
    %c0_162 = arith.constant 0 : index
    %c0_163 = arith.constant 0 : index
    %337 = vector.load %arg11[%c0_161, %c0_162, %c0_163] : memref<1x8x128xf32, #tpu.memory_space<vmem>>, vector<1x8x128xf32>
    %338 = vector.shape_cast %337 : vector<1x8x128xf32> to vector<8x128xf32>
    %339 = vector.shape_cast %336 : vector<8x128xf32> to vector<1x8x128xf32>
    tpu.vector_store %arg11[%c0_161, %c0_162, %c0_163], %339 {strides = array<i32>} : memref<1x8x128xf32, #tpu.memory_space<vmem>>, vector<1x8x128xf32>,
    %c0_164 = arith.constant 0 : index
    %c0_165 = arith.constant 0 : index
    %c0_166 = arith.constant 0 : index
    %340 = vector.load %arg9[%c0_164, %c0_165, %c0_166] : memref<1x64x128xf32, #tpu.memory_space<vmem>>, vector<1x64x128xf32>
    %341 = vector.shape_cast %340 : vector<1x64x128xf32> to vector<64x128xf32>
    %342 = arith.truncf %341 : vector<64x128xf32> to vector<64x128xbf16>
    %c0_167 = arith.constant 0 : index
    %c0_168 = arith.constant 0 : index
    %343 = vector.load %arg6[%c0_167, %c0_168] : memref<128x512xbf16, #tpu.memory_space<vmem>>, vector<128x512xbf16>
    %cst_169 = arith.constant dense<0.000000e+00> : vector<64x512xf32>
    %344 = tpu.matmul %342, %343, %cst_169 {dimension_numbers = #tpu.dot_dimension_numbers<[1], [0], [0], [1], [0, 0, 1, 1], [], []>} : vector<64x128xbf16>, vector<128x512xbf16>, vector<64x512xf32> -> vector<64x512xf32>
    %c0_170 = arith.constant 0 : index
    %c0_171 = arith.constant 0 : index
    %345 = vector.load %arg8[%c0_170, %c0_171] : memref<1x512xf32, #tpu.memory_space<vmem>>, vector<1x512xf32>
    %346 = vector.broadcast %345 : vector<1x512xf32> to vector<64x512xf32>
    %347 = arith.addf %344, %346 : vector<64x512xf32>
    %c0_172 = arith.constant 0 : index
    %c0_173 = arith.constant 0 : index
    %348 = vector.load %arg14[%c0_172, %c0_173] : memref<64x512xf32, #tpu.memory_space<vmem>>, vector<64x512xf32>
    tpu.vector_store %arg14[%c0_172, %c0_173], %347 {strides = array<i32>} : memref<64x512xf32, #tpu.memory_space<vmem>>, vector<64x512xf32>,
    %c0_i32_174 = arith.constant 0 : i32
    %c8_i32_175 = arith.constant 8 : i32
    %349 = arith.muli %c0_i32_174, %c8_i32_175 : i32
    %350 = tpu.assume_multiple %349, 8 : i32
    %351 = arith.index_cast %350 : i32 to index
    %c0_176 = arith.constant 0 : index
    %352 = vector.load %arg14[%351, %c0_176] : memref<64x512xf32, #tpu.memory_space<vmem>>, vector<8x512xf32>
    %c0_177 = arith.constant 0 : index
    %c0_178 = arith.constant 0 : index
    %353 = vector.load %arg17[%c0_177, %c0_178] : memref<8x128xf32, #tpu.memory_space<vmem>>, vector<8x128xf32>
    %c0_179 = arith.constant 0 : index
    %c0_180 = arith.constant 0 : index
    %354 = vector.load %arg7[%c0_179, %c0_180] : memref<128x512xf32, #tpu.memory_space<vmem>>, vector<128x512xf32>
    %cst_181 = arith.constant dense<0.000000e+00> : vector<8x512xf32>
    %355 = tpu.matmul %353, %354, %cst_181 {dimension_numbers = #tpu.dot_dimension_numbers<[1], [0], [0], [1], [0, 0, 1, 1], [], []>} : vector<8x128xf32>, vector<128x512xf32>, vector<8x512xf32> -> vector<8x512xf32>
    %356 = arith.addf %352, %355 : vector<8x512xf32>
    %c0_182 = arith.constant 0 : index
    %c0_183 = arith.constant 0 : index
    %357 = vector.load %arg18[%c0_182, %c0_183] : memref<8x128xf32, #tpu.memory_space<vmem>>, vector<8x128xf32>
    %358 = vector.extract_strided_slice %356 {offsets = [0, 0], sizes = [8, 128], strides = [1, 1]} : vector<8x512xf32> to vector<8x128xf32>
    %359 = arith.negf %358 : vector<8x128xf32>
    %360 = math.exp %359 : vector<8x128xf32>
    %cst_184 = arith.constant 1.000000e+00 : f32
    %361 = vector.broadcast %cst_184 : f32 to vector<8x128xf32>
    %362 = arith.addf %361, %360 : vector<8x128xf32>
    %363 = arith.divf %361, %362 : vector<8x128xf32>
    %364 = vector.extract_strided_slice %356 {offsets = [0, 128], sizes = [8, 128], strides = [1, 1]} : vector<8x512xf32> to vector<8x128xf32>
    %365 = arith.negf %364 : vector<8x128xf32>
    %366 = math.exp %365 : vector<8x128xf32>
    %cst_185 = arith.constant 1.000000e+00 : f32
    %367 = vector.broadcast %cst_185 : f32 to vector<8x128xf32>
    %368 = arith.addf %367, %366 : vector<8x128xf32>
    %369 = arith.divf %367, %368 : vector<8x128xf32>
    %370 = vector.extract_strided_slice %356 {offsets = [0, 256], sizes = [8, 128], strides = [1, 1]} : vector<8x512xf32> to vector<8x128xf32>
    %371 = math.tanh %370 : vector<8x128xf32>
    %372 = vector.extract_strided_slice %356 {offsets = [0, 384], sizes = [8, 128], strides = [1, 1]} : vector<8x512xf32> to vector<8x128xf32>
    %373 = arith.negf %372 : vector<8x128xf32>
    %374 = math.exp %373 : vector<8x128xf32>
    %cst_186 = arith.constant 1.000000e+00 : f32
    %375 = vector.broadcast %cst_186 : f32 to vector<8x128xf32>
    %376 = arith.addf %375, %374 : vector<8x128xf32>
    %377 = arith.divf %375, %376 : vector<8x128xf32>
    %378 = arith.mulf %369, %357 : vector<8x128xf32>
    %379 = arith.mulf %363, %371 : vector<8x128xf32>
    %380 = arith.addf %378, %379 : vector<8x128xf32>
    %381 = math.tanh %380 : vector<8x128xf32>
    %382 = arith.mulf %377, %381 : vector<8x128xf32>
    %c0_187 = arith.constant 0 : index
    %c0_188 = arith.constant 0 : index
    %383 = vector.load %arg17[%c0_187, %c0_188] : memref<8x128xf32, #tpu.memory_space<vmem>>, vector<8x128xf32>
    tpu.vector_store %arg17[%c0_187, %c0_188], %382 {strides = array<i32>} : memref<8x128xf32, #tpu.memory_space<vmem>>, vector<8x128xf32>,
    %c0_189 = arith.constant 0 : index
    %c0_190 = arith.constant 0 : index
    %384 = vector.load %arg18[%c0_189, %c0_190] : memref<8x128xf32, #tpu.memory_space<vmem>>, vector<8x128xf32>
    tpu.vector_store %arg18[%c0_189, %c0_190], %380 {strides = array<i32>} : memref<8x128xf32, #tpu.memory_space<vmem>>, vector<8x128xf32>,
    %c1_i32_191 = arith.constant 1 : i32
    %c8_i32_192 = arith.constant 8 : i32
    %385 = arith.muli %c1_i32_191, %c8_i32_192 : i32
    %386 = tpu.assume_multiple %385, 8 : i32
    %387 = arith.index_cast %386 : i32 to index
    %c0_193 = arith.constant 0 : index
    %388 = vector.load %arg14[%387, %c0_193] : memref<64x512xf32, #tpu.memory_space<vmem>>, vector<8x512xf32>
    %c0_194 = arith.constant 0 : index
    %c0_195 = arith.constant 0 : index
    %389 = vector.load %arg17[%c0_194, %c0_195] : memref<8x128xf32, #tpu.memory_space<vmem>>, vector<8x128xf32>
    %c0_196 = arith.constant 0 : index
    %c0_197 = arith.constant 0 : index
    %390 = vector.load %arg7[%c0_196, %c0_197] : memref<128x512xf32, #tpu.memory_space<vmem>>, vector<128x512xf32>
    %cst_198 = arith.constant dense<0.000000e+00> : vector<8x512xf32>
    %391 = tpu.matmul %389, %390, %cst_198 {dimension_numbers = #tpu.dot_dimension_numbers<[1], [0], [0], [1], [0, 0, 1, 1], [], []>} : vector<8x128xf32>, vector<128x512xf32>, vector<8x512xf32> -> vector<8x512xf32>
    %392 = arith.addf %388, %391 : vector<8x512xf32>
    %c0_199 = arith.constant 0 : index
    %c0_200 = arith.constant 0 : index
    %393 = vector.load %arg18[%c0_199, %c0_200] : memref<8x128xf32, #tpu.memory_space<vmem>>, vector<8x128xf32>
    %394 = vector.extract_strided_slice %392 {offsets = [0, 0], sizes = [8, 128], strides = [1, 1]} : vector<8x512xf32> to vector<8x128xf32>
    %395 = arith.negf %394 : vector<8x128xf32>
    %396 = math.exp %395 : vector<8x128xf32>
    %cst_201 = arith.constant 1.000000e+00 : f32
    %397 = vector.broadcast %cst_201 : f32 to vector<8x128xf32>
    %398 = arith.addf %397, %396 : vector<8x128xf32>
    %399 = arith.divf %397, %398 : vector<8x128xf32>
    %400 = vector.extract_strided_slice %392 {offsets = [0, 128], sizes = [8, 128], strides = [1, 1]} : vector<8x512xf32> to vector<8x128xf32>
    %401 = arith.negf %400 : vector<8x128xf32>
    %402 = math.exp %401 : vector<8x128xf32>
    %cst_202 = arith.constant 1.000000e+00 : f32
    %403 = vector.broadcast %cst_202 : f32 to vector<8x128xf32>
    %404 = arith.addf %403, %402 : vector<8x128xf32>
    %405 = arith.divf %403, %404 : vector<8x128xf32>
    %406 = vector.extract_strided_slice %392 {offsets = [0, 256], sizes = [8, 128], strides = [1, 1]} : vector<8x512xf32> to vector<8x128xf32>
    %407 = math.tanh %406 : vector<8x128xf32>
    %408 = vector.extract_strided_slice %392 {offsets = [0, 384], sizes = [8, 128], strides = [1, 1]} : vector<8x512xf32> to vector<8x128xf32>
    %409 = arith.negf %408 : vector<8x128xf32>
    %410 = math.exp %409 : vector<8x128xf32>
    %cst_203 = arith.constant 1.000000e+00 : f32
    %411 = vector.broadcast %cst_203 : f32 to vector<8x128xf32>
    %412 = arith.addf %411, %410 : vector<8x128xf32>
    %413 = arith.divf %411, %412 : vector<8x128xf32>
    %414 = arith.mulf %405, %393 : vector<8x128xf32>
    %415 = arith.mulf %399, %407 : vector<8x128xf32>
    %416 = arith.addf %414, %415 : vector<8x128xf32>
    %417 = math.tanh %416 : vector<8x128xf32>
    %418 = arith.mulf %413, %417 : vector<8x128xf32>
    %c0_204 = arith.constant 0 : index
    %c0_205 = arith.constant 0 : index
    %419 = vector.load %arg17[%c0_204, %c0_205] : memref<8x128xf32, #tpu.memory_space<vmem>>, vector<8x128xf32>
    tpu.vector_store %arg17[%c0_204, %c0_205], %418 {strides = array<i32>} : memref<8x128xf32, #tpu.memory_space<vmem>>, vector<8x128xf32>,
    %c0_206 = arith.constant 0 : index
    %c0_207 = arith.constant 0 : index
    %420 = vector.load %arg18[%c0_206, %c0_207] : memref<8x128xf32, #tpu.memory_space<vmem>>, vector<8x128xf32>
    tpu.vector_store %arg18[%c0_206, %c0_207], %416 {strides = array<i32>} : memref<8x128xf32, #tpu.memory_space<vmem>>, vector<8x128xf32>,
    %c2_i32_208 = arith.constant 2 : i32
    %c8_i32_209 = arith.constant 8 : i32
    %421 = arith.muli %c2_i32_208, %c8_i32_209 : i32
    %422 = tpu.assume_multiple %421, 8 : i32
    %423 = arith.index_cast %422 : i32 to index
    %c0_210 = arith.constant 0 : index
    %424 = vector.load %arg14[%423, %c0_210] : memref<64x512xf32, #tpu.memory_space<vmem>>, vector<8x512xf32>
    %c0_211 = arith.constant 0 : index
    %c0_212 = arith.constant 0 : index
    %425 = vector.load %arg17[%c0_211, %c0_212] : memref<8x128xf32, #tpu.memory_space<vmem>>, vector<8x128xf32>
    %c0_213 = arith.constant 0 : index
    %c0_214 = arith.constant 0 : index
    %426 = vector.load %arg7[%c0_213, %c0_214] : memref<128x512xf32, #tpu.memory_space<vmem>>, vector<128x512xf32>
    %cst_215 = arith.constant dense<0.000000e+00> : vector<8x512xf32>
    %427 = tpu.matmul %425, %426, %cst_215 {dimension_numbers = #tpu.dot_dimension_numbers<[1], [0], [0], [1], [0, 0, 1, 1], [], []>} : vector<8x128xf32>, vector<128x512xf32>, vector<8x512xf32> -> vector<8x512xf32>
    %428 = arith.addf %424, %427 : vector<8x512xf32>
    %c0_216 = arith.constant 0 : index
    %c0_217 = arith.constant 0 : index
    %429 = vector.load %arg18[%c0_216, %c0_217] : memref<8x128xf32, #tpu.memory_space<vmem>>, vector<8x128xf32>
    %430 = vector.extract_strided_slice %428 {offsets = [0, 0], sizes = [8, 128], strides = [1, 1]} : vector<8x512xf32> to vector<8x128xf32>
    %431 = arith.negf %430 : vector<8x128xf32>
    %432 = math.exp %431 : vector<8x128xf32>
    %cst_218 = arith.constant 1.000000e+00 : f32
    %433 = vector.broadcast %cst_218 : f32 to vector<8x128xf32>
    %434 = arith.addf %433, %432 : vector<8x128xf32>
    %435 = arith.divf %433, %434 : vector<8x128xf32>
    %436 = vector.extract_strided_slice %428 {offsets = [0, 128], sizes = [8, 128], strides = [1, 1]} : vector<8x512xf32> to vector<8x128xf32>
    %437 = arith.negf %436 : vector<8x128xf32>
    %438 = math.exp %437 : vector<8x128xf32>
    %cst_219 = arith.constant 1.000000e+00 : f32
    %439 = vector.broadcast %cst_219 : f32 to vector<8x128xf32>
    %440 = arith.addf %439, %438 : vector<8x128xf32>
    %441 = arith.divf %439, %440 : vector<8x128xf32>
    %442 = vector.extract_strided_slice %428 {offsets = [0, 256], sizes = [8, 128], strides = [1, 1]} : vector<8x512xf32> to vector<8x128xf32>
    %443 = math.tanh %442 : vector<8x128xf32>
    %444 = vector.extract_strided_slice %428 {offsets = [0, 384], sizes = [8, 128], strides = [1, 1]} : vector<8x512xf32> to vector<8x128xf32>
    %445 = arith.negf %444 : vector<8x128xf32>
    %446 = math.exp %445 : vector<8x128xf32>
    %cst_220 = arith.constant 1.000000e+00 : f32
    %447 = vector.broadcast %cst_220 : f32 to vector<8x128xf32>
    %448 = arith.addf %447, %446 : vector<8x128xf32>
    %449 = arith.divf %447, %448 : vector<8x128xf32>
    %450 = arith.mulf %441, %429 : vector<8x128xf32>
    %451 = arith.mulf %435, %443 : vector<8x128xf32>
    %452 = arith.addf %450, %451 : vector<8x128xf32>
    %453 = math.tanh %452 : vector<8x128xf32>
    %454 = arith.mulf %449, %453 : vector<8x128xf32>
    %c0_221 = arith.constant 0 : index
    %c0_222 = arith.constant 0 : index
    %455 = vector.load %arg17[%c0_221, %c0_222] : memref<8x128xf32, #tpu.memory_space<vmem>>, vector<8x128xf32>
    tpu.vector_store %arg17[%c0_221, %c0_222], %454 {strides = array<i32>} : memref<8x128xf32, #tpu.memory_space<vmem>>, vector<8x128xf32>,
    %c0_223 = arith.constant 0 : index
    %c0_224 = arith.constant 0 : index
    %456 = vector.load %arg18[%c0_223, %c0_224] : memref<8x128xf32, #tpu.memory_space<vmem>>, vector<8x128xf32>
    tpu.vector_store %arg18[%c0_223, %c0_224], %452 {strides = array<i32>} : memref<8x128xf32, #tpu.memory_space<vmem>>, vector<8x128xf32>,
    %c3_i32_225 = arith.constant 3 : i32
    %c8_i32_226 = arith.constant 8 : i32
    %457 = arith.muli %c3_i32_225, %c8_i32_226 : i32
    %458 = tpu.assume_multiple %457, 8 : i32
    %459 = arith.index_cast %458 : i32 to index
    %c0_227 = arith.constant 0 : index
    %460 = vector.load %arg14[%459, %c0_227] : memref<64x512xf32, #tpu.memory_space<vmem>>, vector<8x512xf32>
    %c0_228 = arith.constant 0 : index
    %c0_229 = arith.constant 0 : index
    %461 = vector.load %arg17[%c0_228, %c0_229] : memref<8x128xf32, #tpu.memory_space<vmem>>, vector<8x128xf32>
    %c0_230 = arith.constant 0 : index
    %c0_231 = arith.constant 0 : index
    %462 = vector.load %arg7[%c0_230, %c0_231] : memref<128x512xf32, #tpu.memory_space<vmem>>, vector<128x512xf32>
    %cst_232 = arith.constant dense<0.000000e+00> : vector<8x512xf32>
    %463 = tpu.matmul %461, %462, %cst_232 {dimension_numbers = #tpu.dot_dimension_numbers<[1], [0], [0], [1], [0, 0, 1, 1], [], []>} : vector<8x128xf32>, vector<128x512xf32>, vector<8x512xf32> -> vector<8x512xf32>
    %464 = arith.addf %460, %463 : vector<8x512xf32>
    %c0_233 = arith.constant 0 : index
    %c0_234 = arith.constant 0 : index
    %465 = vector.load %arg18[%c0_233, %c0_234] : memref<8x128xf32, #tpu.memory_space<vmem>>, vector<8x128xf32>
    %466 = vector.extract_strided_slice %464 {offsets = [0, 0], sizes = [8, 128], strides = [1, 1]} : vector<8x512xf32> to vector<8x128xf32>
    %467 = arith.negf %466 : vector<8x128xf32>
    %468 = math.exp %467 : vector<8x128xf32>
    %cst_235 = arith.constant 1.000000e+00 : f32
    %469 = vector.broadcast %cst_235 : f32 to vector<8x128xf32>
    %470 = arith.addf %469, %468 : vector<8x128xf32>
    %471 = arith.divf %469, %470 : vector<8x128xf32>
    %472 = vector.extract_strided_slice %464 {offsets = [0, 128], sizes = [8, 128], strides = [1, 1]} : vector<8x512xf32> to vector<8x128xf32>
    %473 = arith.negf %472 : vector<8x128xf32>
    %474 = math.exp %473 : vector<8x128xf32>
    %cst_236 = arith.constant 1.000000e+00 : f32
    %475 = vector.broadcast %cst_236 : f32 to vector<8x128xf32>
    %476 = arith.addf %475, %474 : vector<8x128xf32>
    %477 = arith.divf %475, %476 : vector<8x128xf32>
    %478 = vector.extract_strided_slice %464 {offsets = [0, 256], sizes = [8, 128], strides = [1, 1]} : vector<8x512xf32> to vector<8x128xf32>
    %479 = math.tanh %478 : vector<8x128xf32>
    %480 = vector.extract_strided_slice %464 {offsets = [0, 384], sizes = [8, 128], strides = [1, 1]} : vector<8x512xf32> to vector<8x128xf32>
    %481 = arith.negf %480 : vector<8x128xf32>
    %482 = math.exp %481 : vector<8x128xf32>
    %cst_237 = arith.constant 1.000000e+00 : f32
    %483 = vector.broadcast %cst_237 : f32 to vector<8x128xf32>
    %484 = arith.addf %483, %482 : vector<8x128xf32>
    %485 = arith.divf %483, %484 : vector<8x128xf32>
    %486 = arith.mulf %477, %465 : vector<8x128xf32>
    %487 = arith.mulf %471, %479 : vector<8x128xf32>
    %488 = arith.addf %486, %487 : vector<8x128xf32>
    %489 = math.tanh %488 : vector<8x128xf32>
    %490 = arith.mulf %485, %489 : vector<8x128xf32>
    %c0_238 = arith.constant 0 : index
    %c0_239 = arith.constant 0 : index
    %491 = vector.load %arg17[%c0_238, %c0_239] : memref<8x128xf32, #tpu.memory_space<vmem>>, vector<8x128xf32>
    tpu.vector_store %arg17[%c0_238, %c0_239], %490 {strides = array<i32>} : memref<8x128xf32, #tpu.memory_space<vmem>>, vector<8x128xf32>,
    %c0_240 = arith.constant 0 : index
    %c0_241 = arith.constant 0 : index
    %492 = vector.load %arg18[%c0_240, %c0_241] : memref<8x128xf32, #tpu.memory_space<vmem>>, vector<8x128xf32>
    tpu.vector_store %arg18[%c0_240, %c0_241], %488 {strides = array<i32>} : memref<8x128xf32, #tpu.memory_space<vmem>>, vector<8x128xf32>,
    %c4_i32_242 = arith.constant 4 : i32
    %c8_i32_243 = arith.constant 8 : i32
    %493 = arith.muli %c4_i32_242, %c8_i32_243 : i32
    %494 = tpu.assume_multiple %493, 8 : i32
    %495 = arith.index_cast %494 : i32 to index
    %c0_244 = arith.constant 0 : index
    %496 = vector.load %arg14[%495, %c0_244] : memref<64x512xf32, #tpu.memory_space<vmem>>, vector<8x512xf32>
    %c0_245 = arith.constant 0 : index
    %c0_246 = arith.constant 0 : index
    %497 = vector.load %arg17[%c0_245, %c0_246] : memref<8x128xf32, #tpu.memory_space<vmem>>, vector<8x128xf32>
    %c0_247 = arith.constant 0 : index
    %c0_248 = arith.constant 0 : index
    %498 = vector.load %arg7[%c0_247, %c0_248] : memref<128x512xf32, #tpu.memory_space<vmem>>, vector<128x512xf32>
    %cst_249 = arith.constant dense<0.000000e+00> : vector<8x512xf32>
    %499 = tpu.matmul %497, %498, %cst_249 {dimension_numbers = #tpu.dot_dimension_numbers<[1], [0], [0], [1], [0, 0, 1, 1], [], []>} : vector<8x128xf32>, vector<128x512xf32>, vector<8x512xf32> -> vector<8x512xf32>
    %500 = arith.addf %496, %499 : vector<8x512xf32>
    %c0_250 = arith.constant 0 : index
    %c0_251 = arith.constant 0 : index
    %501 = vector.load %arg18[%c0_250, %c0_251] : memref<8x128xf32, #tpu.memory_space<vmem>>, vector<8x128xf32>
    %502 = vector.extract_strided_slice %500 {offsets = [0, 0], sizes = [8, 128], strides = [1, 1]} : vector<8x512xf32> to vector<8x128xf32>
    %503 = arith.negf %502 : vector<8x128xf32>
    %504 = math.exp %503 : vector<8x128xf32>
    %cst_252 = arith.constant 1.000000e+00 : f32
    %505 = vector.broadcast %cst_252 : f32 to vector<8x128xf32>
    %506 = arith.addf %505, %504 : vector<8x128xf32>
    %507 = arith.divf %505, %506 : vector<8x128xf32>
    %508 = vector.extract_strided_slice %500 {offsets = [0, 128], sizes = [8, 128], strides = [1, 1]} : vector<8x512xf32> to vector<8x128xf32>
    %509 = arith.negf %508 : vector<8x128xf32>
    %510 = math.exp %509 : vector<8x128xf32>
    %cst_253 = arith.constant 1.000000e+00 : f32
    %511 = vector.broadcast %cst_253 : f32 to vector<8x128xf32>
    %512 = arith.addf %511, %510 : vector<8x128xf32>
    %513 = arith.divf %511, %512 : vector<8x128xf32>
    %514 = vector.extract_strided_slice %500 {offsets = [0, 256], sizes = [8, 128], strides = [1, 1]} : vector<8x512xf32> to vector<8x128xf32>
    %515 = math.tanh %514 : vector<8x128xf32>
    %516 = vector.extract_strided_slice %500 {offsets = [0, 384], sizes = [8, 128], strides = [1, 1]} : vector<8x512xf32> to vector<8x128xf32>
    %517 = arith.negf %516 : vector<8x128xf32>
    %518 = math.exp %517 : vector<8x128xf32>
    %cst_254 = arith.constant 1.000000e+00 : f32
    %519 = vector.broadcast %cst_254 : f32 to vector<8x128xf32>
    %520 = arith.addf %519, %518 : vector<8x128xf32>
    %521 = arith.divf %519, %520 : vector<8x128xf32>
    %522 = arith.mulf %513, %501 : vector<8x128xf32>
    %523 = arith.mulf %507, %515 : vector<8x128xf32>
    %524 = arith.addf %522, %523 : vector<8x128xf32>
    %525 = math.tanh %524 : vector<8x128xf32>
    %526 = arith.mulf %521, %525 : vector<8x128xf32>
    %c0_255 = arith.constant 0 : index
    %c0_256 = arith.constant 0 : index
    %527 = vector.load %arg17[%c0_255, %c0_256] : memref<8x128xf32, #tpu.memory_space<vmem>>, vector<8x128xf32>
    tpu.vector_store %arg17[%c0_255, %c0_256], %526 {strides = array<i32>} : memref<8x128xf32, #tpu.memory_space<vmem>>, vector<8x128xf32>,
    %c0_257 = arith.constant 0 : index
    %c0_258 = arith.constant 0 : index
    %528 = vector.load %arg18[%c0_257, %c0_258] : memref<8x128xf32, #tpu.memory_space<vmem>>, vector<8x128xf32>
    tpu.vector_store %arg18[%c0_257, %c0_258], %524 {strides = array<i32>} : memref<8x128xf32, #tpu.memory_space<vmem>>, vector<8x128xf32>,
    %c5_i32_259 = arith.constant 5 : i32
    %c8_i32_260 = arith.constant 8 : i32
    %529 = arith.muli %c5_i32_259, %c8_i32_260 : i32
    %530 = tpu.assume_multiple %529, 8 : i32
    %531 = arith.index_cast %530 : i32 to index
    %c0_261 = arith.constant 0 : index
    %532 = vector.load %arg14[%531, %c0_261] : memref<64x512xf32, #tpu.memory_space<vmem>>, vector<8x512xf32>
    %c0_262 = arith.constant 0 : index
    %c0_263 = arith.constant 0 : index
    %533 = vector.load %arg17[%c0_262, %c0_263] : memref<8x128xf32, #tpu.memory_space<vmem>>, vector<8x128xf32>
    %c0_264 = arith.constant 0 : index
    %c0_265 = arith.constant 0 : index
    %534 = vector.load %arg7[%c0_264, %c0_265] : memref<128x512xf32, #tpu.memory_space<vmem>>, vector<128x512xf32>
    %cst_266 = arith.constant dense<0.000000e+00> : vector<8x512xf32>
    %535 = tpu.matmul %533, %534, %cst_266 {dimension_numbers = #tpu.dot_dimension_numbers<[1], [0], [0], [1], [0, 0, 1, 1], [], []>} : vector<8x128xf32>, vector<128x512xf32>, vector<8x512xf32> -> vector<8x512xf32>
    %536 = arith.addf %532, %535 : vector<8x512xf32>
    %c0_267 = arith.constant 0 : index
    %c0_268 = arith.constant 0 : index
    %537 = vector.load %arg18[%c0_267, %c0_268] : memref<8x128xf32, #tpu.memory_space<vmem>>, vector<8x128xf32>
    %538 = vector.extract_strided_slice %536 {offsets = [0, 0], sizes = [8, 128], strides = [1, 1]} : vector<8x512xf32> to vector<8x128xf32>
    %539 = arith.negf %538 : vector<8x128xf32>
    %540 = math.exp %539 : vector<8x128xf32>
    %cst_269 = arith.constant 1.000000e+00 : f32
    %541 = vector.broadcast %cst_269 : f32 to vector<8x128xf32>
    %542 = arith.addf %541, %540 : vector<8x128xf32>
    %543 = arith.divf %541, %542 : vector<8x128xf32>
    %544 = vector.extract_strided_slice %536 {offsets = [0, 128], sizes = [8, 128], strides = [1, 1]} : vector<8x512xf32> to vector<8x128xf32>
    %545 = arith.negf %544 : vector<8x128xf32>
    %546 = math.exp %545 : vector<8x128xf32>
    %cst_270 = arith.constant 1.000000e+00 : f32
    %547 = vector.broadcast %cst_270 : f32 to vector<8x128xf32>
    %548 = arith.addf %547, %546 : vector<8x128xf32>
    %549 = arith.divf %547, %548 : vector<8x128xf32>
    %550 = vector.extract_strided_slice %536 {offsets = [0, 256], sizes = [8, 128], strides = [1, 1]} : vector<8x512xf32> to vector<8x128xf32>
    %551 = math.tanh %550 : vector<8x128xf32>
    %552 = vector.extract_strided_slice %536 {offsets = [0, 384], sizes = [8, 128], strides = [1, 1]} : vector<8x512xf32> to vector<8x128xf32>
    %553 = arith.negf %552 : vector<8x128xf32>
    %554 = math.exp %553 : vector<8x128xf32>
    %cst_271 = arith.constant 1.000000e+00 : f32
    %555 = vector.broadcast %cst_271 : f32 to vector<8x128xf32>
    %556 = arith.addf %555, %554 : vector<8x128xf32>
    %557 = arith.divf %555, %556 : vector<8x128xf32>
    %558 = arith.mulf %549, %537 : vector<8x128xf32>
    %559 = arith.mulf %543, %551 : vector<8x128xf32>
    %560 = arith.addf %558, %559 : vector<8x128xf32>
    %561 = math.tanh %560 : vector<8x128xf32>
    %562 = arith.mulf %557, %561 : vector<8x128xf32>
    %c0_272 = arith.constant 0 : index
    %c0_273 = arith.constant 0 : index
    %563 = vector.load %arg17[%c0_272, %c0_273] : memref<8x128xf32, #tpu.memory_space<vmem>>, vector<8x128xf32>
    tpu.vector_store %arg17[%c0_272, %c0_273], %562 {strides = array<i32>} : memref<8x128xf32, #tpu.memory_space<vmem>>, vector<8x128xf32>,
    %c0_274 = arith.constant 0 : index
    %c0_275 = arith.constant 0 : index
    %564 = vector.load %arg18[%c0_274, %c0_275] : memref<8x128xf32, #tpu.memory_space<vmem>>, vector<8x128xf32>
    tpu.vector_store %arg18[%c0_274, %c0_275], %560 {strides = array<i32>} : memref<8x128xf32, #tpu.memory_space<vmem>>, vector<8x128xf32>,
    %c6_i32_276 = arith.constant 6 : i32
    %c8_i32_277 = arith.constant 8 : i32
    %565 = arith.muli %c6_i32_276, %c8_i32_277 : i32
    %566 = tpu.assume_multiple %565, 8 : i32
    %567 = arith.index_cast %566 : i32 to index
    %c0_278 = arith.constant 0 : index
    %568 = vector.load %arg14[%567, %c0_278] : memref<64x512xf32, #tpu.memory_space<vmem>>, vector<8x512xf32>
    %c0_279 = arith.constant 0 : index
    %c0_280 = arith.constant 0 : index
    %569 = vector.load %arg17[%c0_279, %c0_280] : memref<8x128xf32, #tpu.memory_space<vmem>>, vector<8x128xf32>
    %c0_281 = arith.constant 0 : index
    %c0_282 = arith.constant 0 : index
    %570 = vector.load %arg7[%c0_281, %c0_282] : memref<128x512xf32, #tpu.memory_space<vmem>>, vector<128x512xf32>
    %cst_283 = arith.constant dense<0.000000e+00> : vector<8x512xf32>
    %571 = tpu.matmul %569, %570, %cst_283 {dimension_numbers = #tpu.dot_dimension_numbers<[1], [0], [0], [1], [0, 0, 1, 1], [], []>} : vector<8x128xf32>, vector<128x512xf32>, vector<8x512xf32> -> vector<8x512xf32>
    %572 = arith.addf %568, %571 : vector<8x512xf32>
    %c0_284 = arith.constant 0 : index
    %c0_285 = arith.constant 0 : index
    %573 = vector.load %arg18[%c0_284, %c0_285] : memref<8x128xf32, #tpu.memory_space<vmem>>, vector<8x128xf32>
    %574 = vector.extract_strided_slice %572 {offsets = [0, 0], sizes = [8, 128], strides = [1, 1]} : vector<8x512xf32> to vector<8x128xf32>
    %575 = arith.negf %574 : vector<8x128xf32>
    %576 = math.exp %575 : vector<8x128xf32>
    %cst_286 = arith.constant 1.000000e+00 : f32
    %577 = vector.broadcast %cst_286 : f32 to vector<8x128xf32>
    %578 = arith.addf %577, %576 : vector<8x128xf32>
    %579 = arith.divf %577, %578 : vector<8x128xf32>
    %580 = vector.extract_strided_slice %572 {offsets = [0, 128], sizes = [8, 128], strides = [1, 1]} : vector<8x512xf32> to vector<8x128xf32>
    %581 = arith.negf %580 : vector<8x128xf32>
    %582 = math.exp %581 : vector<8x128xf32>
    %cst_287 = arith.constant 1.000000e+00 : f32
    %583 = vector.broadcast %cst_287 : f32 to vector<8x128xf32>
    %584 = arith.addf %583, %582 : vector<8x128xf32>
    %585 = arith.divf %583, %584 : vector<8x128xf32>
    %586 = vector.extract_strided_slice %572 {offsets = [0, 256], sizes = [8, 128], strides = [1, 1]} : vector<8x512xf32> to vector<8x128xf32>
    %587 = math.tanh %586 : vector<8x128xf32>
    %588 = vector.extract_strided_slice %572 {offsets = [0, 384], sizes = [8, 128], strides = [1, 1]} : vector<8x512xf32> to vector<8x128xf32>
    %589 = arith.negf %588 : vector<8x128xf32>
    %590 = math.exp %589 : vector<8x128xf32>
    %cst_288 = arith.constant 1.000000e+00 : f32
    %591 = vector.broadcast %cst_288 : f32 to vector<8x128xf32>
    %592 = arith.addf %591, %590 : vector<8x128xf32>
    %593 = arith.divf %591, %592 : vector<8x128xf32>
    %594 = arith.mulf %585, %573 : vector<8x128xf32>
    %595 = arith.mulf %579, %587 : vector<8x128xf32>
    %596 = arith.addf %594, %595 : vector<8x128xf32>
    %597 = math.tanh %596 : vector<8x128xf32>
    %598 = arith.mulf %593, %597 : vector<8x128xf32>
    %c0_289 = arith.constant 0 : index
    %c0_290 = arith.constant 0 : index
    %599 = vector.load %arg17[%c0_289, %c0_290] : memref<8x128xf32, #tpu.memory_space<vmem>>, vector<8x128xf32>
    tpu.vector_store %arg17[%c0_289, %c0_290], %598 {strides = array<i32>} : memref<8x128xf32, #tpu.memory_space<vmem>>, vector<8x128xf32>,
    %c0_291 = arith.constant 0 : index
    %c0_292 = arith.constant 0 : index
    %600 = vector.load %arg18[%c0_291, %c0_292] : memref<8x128xf32, #tpu.memory_space<vmem>>, vector<8x128xf32>
    tpu.vector_store %arg18[%c0_291, %c0_292], %596 {strides = array<i32>} : memref<8x128xf32, #tpu.memory_space<vmem>>, vector<8x128xf32>,
    %c7_i32_293 = arith.constant 7 : i32
    %c8_i32_294 = arith.constant 8 : i32
    %601 = arith.muli %c7_i32_293, %c8_i32_294 : i32
    %602 = tpu.assume_multiple %601, 8 : i32
    %603 = arith.index_cast %602 : i32 to index
    %c0_295 = arith.constant 0 : index
    %604 = vector.load %arg14[%603, %c0_295] : memref<64x512xf32, #tpu.memory_space<vmem>>, vector<8x512xf32>
    %c0_296 = arith.constant 0 : index
    %c0_297 = arith.constant 0 : index
    %605 = vector.load %arg17[%c0_296, %c0_297] : memref<8x128xf32, #tpu.memory_space<vmem>>, vector<8x128xf32>
    %c0_298 = arith.constant 0 : index
    %c0_299 = arith.constant 0 : index
    %606 = vector.load %arg7[%c0_298, %c0_299] : memref<128x512xf32, #tpu.memory_space<vmem>>, vector<128x512xf32>
    %cst_300 = arith.constant dense<0.000000e+00> : vector<8x512xf32>
    %607 = tpu.matmul %605, %606, %cst_300 {dimension_numbers = #tpu.dot_dimension_numbers<[1], [0], [0], [1], [0, 0, 1, 1], [], []>} : vector<8x128xf32>, vector<128x512xf32>, vector<8x512xf32> -> vector<8x512xf32>
    %608 = arith.addf %604, %607 : vector<8x512xf32>
    %c0_301 = arith.constant 0 : index
    %c0_302 = arith.constant 0 : index
    %609 = vector.load %arg18[%c0_301, %c0_302] : memref<8x128xf32, #tpu.memory_space<vmem>>, vector<8x128xf32>
    %610 = vector.extract_strided_slice %608 {offsets = [0, 0], sizes = [8, 128], strides = [1, 1]} : vector<8x512xf32> to vector<8x128xf32>
    %611 = arith.negf %610 : vector<8x128xf32>
    %612 = math.exp %611 : vector<8x128xf32>
    %cst_303 = arith.constant 1.000000e+00 : f32
    %613 = vector.broadcast %cst_303 : f32 to vector<8x128xf32>
    %614 = arith.addf %613, %612 : vector<8x128xf32>
    %615 = arith.divf %613, %614 : vector<8x128xf32>
    %616 = vector.extract_strided_slice %608 {offsets = [0, 128], sizes = [8, 128], strides = [1, 1]} : vector<8x512xf32> to vector<8x128xf32>
    %617 = arith.negf %616 : vector<8x128xf32>
    %618 = math.exp %617 : vector<8x128xf32>
    %cst_304 = arith.constant 1.000000e+00 : f32
    %619 = vector.broadcast %cst_304 : f32 to vector<8x128xf32>
    %620 = arith.addf %619, %618 : vector<8x128xf32>
    %621 = arith.divf %619, %620 : vector<8x128xf32>
    %622 = vector.extract_strided_slice %608 {offsets = [0, 256], sizes = [8, 128], strides = [1, 1]} : vector<8x512xf32> to vector<8x128xf32>
    %623 = math.tanh %622 : vector<8x128xf32>
    %624 = vector.extract_strided_slice %608 {offsets = [0, 384], sizes = [8, 128], strides = [1, 1]} : vector<8x512xf32> to vector<8x128xf32>
    %625 = arith.negf %624 : vector<8x128xf32>
    %626 = math.exp %625 : vector<8x128xf32>
    %cst_305 = arith.constant 1.000000e+00 : f32
    %627 = vector.broadcast %cst_305 : f32 to vector<8x128xf32>
    %628 = arith.addf %627, %626 : vector<8x128xf32>
    %629 = arith.divf %627, %628 : vector<8x128xf32>
    %630 = arith.mulf %621, %609 : vector<8x128xf32>
    %631 = arith.mulf %615, %623 : vector<8x128xf32>
    %632 = arith.addf %630, %631 : vector<8x128xf32>
    %633 = math.tanh %632 : vector<8x128xf32>
    %634 = arith.mulf %629, %633 : vector<8x128xf32>
    %c0_306 = arith.constant 0 : index
    %c0_307 = arith.constant 0 : index
    %635 = vector.load %arg17[%c0_306, %c0_307] : memref<8x128xf32, #tpu.memory_space<vmem>>, vector<8x128xf32>
    tpu.vector_store %arg17[%c0_306, %c0_307], %634 {strides = array<i32>} : memref<8x128xf32, #tpu.memory_space<vmem>>, vector<8x128xf32>,
    %c0_308 = arith.constant 0 : index
    %c0_309 = arith.constant 0 : index
    %636 = vector.load %arg18[%c0_308, %c0_309] : memref<8x128xf32, #tpu.memory_space<vmem>>, vector<8x128xf32>
    tpu.vector_store %arg18[%c0_308, %c0_309], %632 {strides = array<i32>} : memref<8x128xf32, #tpu.memory_space<vmem>>, vector<8x128xf32>,
    %c8_i32_310 = arith.constant 8 : i32
    %c0_311 = arith.constant 0 : index
    %c0_312 = arith.constant 0 : index
    %637 = vector.load %arg17[%c0_311, %c0_312] : memref<8x128xf32, #tpu.memory_space<vmem>>, vector<8x128xf32>
    %c0_313 = arith.constant 0 : index
    %c0_314 = arith.constant 0 : index
    %c0_315 = arith.constant 0 : index
    %638 = vector.load %arg12[%c0_313, %c0_314, %c0_315] : memref<1x8x128xf32, #tpu.memory_space<vmem>>, vector<1x8x128xf32>
    %639 = vector.shape_cast %638 : vector<1x8x128xf32> to vector<8x128xf32>
    %640 = vector.shape_cast %637 : vector<8x128xf32> to vector<1x8x128xf32>
    tpu.vector_store %arg12[%c0_313, %c0_314, %c0_315], %640 {strides = array<i32>} : memref<1x8x128xf32, #tpu.memory_space<vmem>>, vector<1x8x128xf32>,
    return
  }
  func.func @transform_0(%arg0: i32, %arg1: i32) -> (i32, i32, i32) {
    %c0_i32 = arith.constant 0 : i32
    %c0_i32_0 = arith.constant 0 : i32
    return %arg0, %arg1, %c0_i32 : i32, i32, i32
  }
  func.func @transform_1(%arg0: i32, %arg1: i32) -> (i32, i32) {
    %c0_i32 = arith.constant 0 : i32
    %c0_i32_0 = arith.constant 0 : i32
    %c0_i32_1 = arith.constant 0 : i32
    return %c0_i32, %c0_i32_0 : i32, i32
  }
  func.func @transform_2(%arg0: i32, %arg1: i32) -> (i32, i32) {
    %c0_i32 = arith.constant 0 : i32
    %c0_i32_0 = arith.constant 0 : i32
    %c0_i32_1 = arith.constant 0 : i32
    return %c0_i32, %c0_i32_0 : i32, i32
  }
  func.func @transform_3(%arg0: i32, %arg1: i32) -> (i32, i32) {
    %c0_i32 = arith.constant 0 : i32
    %c0_i32_0 = arith.constant 0 : i32
    %c0_i32_1 = arith.constant 0 : i32
    return %c0_i32, %c0_i32_0 : i32, i32
  }
  func.func @transform_4(%arg0: i32, %arg1: i32) -> (i32, i32) {
    %c0_i32 = arith.constant 0 : i32
    %c0_i32_0 = arith.constant 0 : i32
    %c0_i32_1 = arith.constant 0 : i32
    return %c0_i32, %c0_i32_0 : i32, i32
  }
  func.func @transform_5(%arg0: i32, %arg1: i32) -> (i32, i32) {
    %c0_i32 = arith.constant 0 : i32
    %c0_i32_0 = arith.constant 0 : i32
    %c0_i32_1 = arith.constant 0 : i32
    return %c0_i32, %c0_i32_0 : i32, i32
  }
  func.func @transform_6(%arg0: i32, %arg1: i32) -> (i32, i32) {
    %c0_i32 = arith.constant 0 : i32
    %c0_i32_0 = arith.constant 0 : i32
    %c0_i32_1 = arith.constant 0 : i32
    return %c0_i32, %c0_i32_0 : i32, i32
  }
  func.func @transform_7(%arg0: i32, %arg1: i32) -> (i32, i32, i32) {
    %c0_i32 = arith.constant 0 : i32
    %c0_i32_0 = arith.constant 0 : i32
    return %arg0, %arg1, %c0_i32 : i32, i32, i32
  }
  func.func @transform_8(%arg0: i32, %arg1: i32) -> (i32, i32, i32) {
    %c0_i32 = arith.constant 0 : i32
    %c0_i32_0 = arith.constant 0 : i32
    %c0_i32_1 = arith.constant 0 : i32
    return %arg0, %c0_i32, %c0_i32_0 : i32, i32, i32
  }
  func.func @transform_9(%arg0: i32, %arg1: i32) -> (i32, i32, i32) {
    %c0_i32 = arith.constant 0 : i32
    %c0_i32_0 = arith.constant 0 : i32
    %c0_i32_1 = arith.constant 0 : i32
    return %arg0, %c0_i32, %c0_i32_0 : i32, i32, i32
  }
  func.func @transform_10(%arg0: i32, %arg1: i32) -> (i32, i32, i32) {
    %c0_i32 = arith.constant 0 : i32
    %c0_i32_0 = arith.constant 0 : i32
    %c0_i32_1 = arith.constant 0 : i32
    return %arg0, %c0_i32, %c0_i32_0 : i32, i32, i32
  }
}

</mosaic_0001>

<llo_original>
// kernel: tpu_custom_call.1
$region0: #{tpu_custom_call.1}
  #allocation0 [shape = 'u32[]', space=smem, size = 0x4, offset = 0x4, fixed_abs, tag = 'smem constant byte address 0x4 - core index']
  #allocation1 [shape = 'u32[144,128]{1,0:T(1,128)}', space=vmem, size = 0x12000, scoped, tag = 'internal scratch']
  #allocation2 [shape = 'f32[64,512]{1,0:T(8,128)}', space=vmem, size = 0x20000, scoped, tag = 'scratch operand']
  #allocation3 [shape = 'f32[64,512]{1,0:T(8,128)}', space=vmem, size = 0x20000, scoped, tag = 'scratch operand']
  #allocation4 [shape = 'f32[8,128]{1,0:T(8,128)}', space=vmem, size = 0x1000, scoped, tag = 'scratch operand']
  #allocation5 [shape = 'f32[8,128]{1,0:T(8,128)}', space=vmem, size = 0x1000, scoped, tag = 'scratch operand']
  #allocation6 [shape = 'f32[8,128]{1,0:T(8,128)}', space=vmem, size = 0x1000, scoped, tag = 'scratch operand']
  #allocation7 [shape = 'f32[8,128]{1,0:T(8,128)}', space=vmem, size = 0x1000, scoped, tag = 'scratch operand']
  %s0 = inlined_call_operand.vmem [shape: f32[1,64,4], index: 0, kind: input, shape index: {}]
  %s1 = inlined_call_operand.vmem [shape: bf16[4,512], index: 1, kind: input, shape index: {}]
  %s2 = inlined_call_operand.hbm [shape: f32[128,512], index: 2, kind: input, shape index: {}]
  %s3 = inlined_call_operand.vmem [shape: f32[1,512], index: 3, kind: input, shape index: {}]
  %s4 = inlined_call_operand.hbm [shape: bf16[128,512], index: 4, kind: input, shape index: {}]
  %s5 = inlined_call_operand.hbm [shape: f32[128,512], index: 5, kind: input, shape index: {}]
  %s6 = inlined_call_operand.vmem [shape: f32[1,512], index: 6, kind: input, shape index: {}]
  %s7 = inlined_call_operand.hbm [shape: f32[1,64,128], index: 7, kind: output, shape index: {0}]
  %s8 = inlined_call_operand.hbm [shape: f32[1,8,128], index: 8, kind: output, shape index: {1}]
  %s9 = inlined_call_operand.hbm [shape: f32[1,8,128], index: 9, kind: output, shape index: {2}]
  %s10 = inlined_call_operand.hbm [shape: f32[1,8,128], index: 10, kind: output, shape index: {3}]
  %11 = xla_tuple %s7, %s8, %s9, %s10
  %s12 = sld [smem:[#allocation0]]
  $region78: #{tpu_custom_call.1} parent=0
    _
  %s14 = ssub.s32 1, %s12
  %s15 = scalar_select 0, %s14, %s12
  $region1: #{tpu_custom_call.1} parent=0
    #allocation8 [shape = 'u8[262144]{0}', space=vmem, size = 0x40000, scoped, tag = 'input window, operand 2, single buffered']
    #allocation9 [shape = 's32[1]{0}', space=sflag, size = 0x4, scoped, tag = 'scoped memory for tpu_custom_call.1']
    #allocation10 [shape = 's32[1]{0}', space=sflag, size = 0x4, scoped, tag = 'scoped memory for tpu_custom_call.1']
    #allocation11 [shape = 'u8[131072]{0}', space=vmem, size = 0x20000, scoped, tag = 'input window, operand 4, single buffered']
    #allocation12 [shape = 's32[1]{0}', space=sflag, size = 0x4, scoped, tag = 'scoped memory for tpu_custom_call.1']
    #allocation13 [shape = 'u8[262144]{0}', space=vmem, size = 0x40000, scoped, tag = 'input window, operand 5, single buffered']
    #allocation14 [shape = 'u8[32768]{0}', space=vmem, size = 0x8000, scoped, tag = 'output window, operand 0, single buffered']
    #allocation15 [shape = 'u8[4096]{0}', space=vmem, size = 0x1000, scoped, tag = 'output window, operand 1, single buffered']
    #allocation16 [shape = 's32[1]{0}', space=sflag, size = 0x4, scoped, tag = 'scoped memory for tpu_custom_call.1']
    #allocation17 [shape = 'u8[4096]{0}', space=vmem, size = 0x1000, scoped, tag = 'output window, operand 2, single buffered']
    #allocation18 [shape = 'u8[4096]{0}', space=vmem, size = 0x1000, scoped, tag = 'output window, operand 3, single buffered']
    #allocation19 [shape = 's32[1]{0}', space=sflag, size = 0x4, scoped, tag = 'scoped memory for tpu_custom_call.1']
    %16 = vsyncpa [#allocation9], 0
    %17 = vsyncpa [#allocation12], 0
    %18 = vsyncpa [#allocation10], 0
    %19 = vsyncpa [#allocation16], 0
    %20 = vsyncpa [#allocation19], 0
    // Predicated region
    $region2: #{tpu_custom_call.1} parent=1 // pred_check
      _
    $region3: #{tpu_custom_call.1} parent=1 // pred_check_branch
      %22 = sbr.rel (0) target = $region5
    $region4: #{tpu_custom_call.1} parent=1 // pred_region
      _
    $region5: #{tpu_custom_call.1} parent=1 // pred_fallthru
      _
    // Predicated region
    $region6: #{tpu_custom_call.1} parent=1 // pred_check
      _
    $region7: #{tpu_custom_call.1} parent=1 // pred_check_branch
      %24 = sbr.rel (0) target = $region9
    $region8: #{tpu_custom_call.1} parent=1 // pred_region
      _
    $region9: #{tpu_custom_call.1} parent=1 // pred_fallthru
      _
    // Predicated region
    $region10: #{tpu_custom_call.1} parent=1 // pred_check
      _
    $region11: #{tpu_custom_call.1} parent=1 // pred_check_branch
      %26 = sbr.rel (0) target = $region13
    $region12: #{tpu_custom_call.1} parent=1 // pred_region
      %s28 = ssub.s32 8192, 8192
      %29 = vsyncadd [#allocation9], %s28
      %s30 = sshll.u32 [#allocation8], 4
      %s31 = int_to_ptr.vmem [resolvable:$true] %s30
      %36 = dma.hbm_to_vmem [thread:$0]  %s2, 8192, %s31, [#allocation9], 512, 512, 32
    $region13: #{tpu_custom_call.1} parent=1 // pred_fallthru
      _
    // Predicated region
    $region14: #{tpu_custom_call.1} parent=1 // pred_check
      _
    $region15: #{tpu_custom_call.1} parent=1 // pred_check_branch
      %38 = sbr.rel (0) target = $region17
    $region16: #{tpu_custom_call.1} parent=1 // pred_region
      _
    $region17: #{tpu_custom_call.1} parent=1 // pred_fallthru
      _
    // Predicated region
    $region18: #{tpu_custom_call.1} parent=1 // pred_check
      _
    $region19: #{tpu_custom_call.1} parent=1 // pred_check_branch
      %40 = sbr.rel (0) target = $region21
    $region20: #{tpu_custom_call.1} parent=1 // pred_region
      %s42 = ssub.s32 4096, 4096
      %43 = vsyncadd [#allocation12], %s42
      %s44 = sshll.u32 [#allocation11], 4
      %s45 = int_to_ptr.vmem [resolvable:$true] %s44
      %50 = dma.hbm_to_vmem [thread:$0]  %s4, 4096, %s45, [#allocation12], 256, 256, 16
    $region21: #{tpu_custom_call.1} parent=1 // pred_fallthru
      _
    // Predicated region
    $region22: #{tpu_custom_call.1} parent=1 // pred_check
      _
    $region23: #{tpu_custom_call.1} parent=1 // pred_check_branch
      %52 = sbr.rel (0) target = $region25
    $region24: #{tpu_custom_call.1} parent=1 // pred_region
      %s54 = ssub.s32 8192, 8192
      %55 = vsyncadd [#allocation12], %s54
      %s56 = sshll.u32 [#allocation13], 4
      %s57 = int_to_ptr.vmem [resolvable:$true] %s56
      %62 = dma.hbm_to_vmem [thread:$0]  %s5, 8192, %s57, [#allocation12], 512, 512, 32
    $region25: #{tpu_custom_call.1} parent=1 // pred_fallthru
      _
    // Predicated region
    $region26: #{tpu_custom_call.1} parent=1 // pred_check
      _
    $region27: #{tpu_custom_call.1} parent=1 // pred_check_branch
      %64 = sbr.rel (0) target = $region29
    $region28: #{tpu_custom_call.1} parent=1 // pred_region
      _
    $region29: #{tpu_custom_call.1} parent=1 // pred_fallthru
      _
    // Predicated region
    $region30: #{tpu_custom_call.1} parent=1 // pred_check
      _
    $region31: #{tpu_custom_call.1} parent=1 // pred_check_branch
      %66 = sbr.rel (0) target = $region33
    $region32: #{tpu_custom_call.1} parent=1 // pred_region
      %67 = dma.done [#allocation9], 8192
    $region33: #{tpu_custom_call.1} parent=1 // pred_fallthru
      _
    // Predicated region
    $region34: #{tpu_custom_call.1} parent=1 // pred_check
      _
    $region35: #{tpu_custom_call.1} parent=1 // pred_check_branch
      %69 = sbr.rel (0) target = $region37
    $region36: #{tpu_custom_call.1} parent=1 // pred_region
      %70 = dma.done [#allocation12], 4096
    $region37: #{tpu_custom_call.1} parent=1 // pred_fallthru
      _
    // Predicated region
    $region38: #{tpu_custom_call.1} parent=1 // pred_check
      _
    $region39: #{tpu_custom_call.1} parent=1 // pred_check_branch
      %72 = sbr.rel (0) target = $region41
    $region40: #{tpu_custom_call.1} parent=1 // pred_region
      %73 = dma.done [#allocation12], 8192
    $region41: #{tpu_custom_call.1} parent=1 // pred_fallthru
      _
    %p75 = scmp.eq.s32.totalorder 0, 0
    // Predicated region
    $region42: #{tpu_custom_call.1} parent=1 // pred_check
      %p76 = pneg %p75
    $region43: #{tpu_custom_call.1} parent=1 // pred_check_branch
      %78 = sbr.rel (%p76) target = $region45
    $region44: #{tpu_custom_call.1} parent=1 // pred_region
      %79 = vst [vmem:[#allocation4] sm:$0xff] 0.0
      %80 = vst [vmem:[#allocation5] sm:$0xff] 0.0
      %81 = vst [vmem:[#allocation6] sm:$0xff] 0.0
      %82 = vst [vmem:[#allocation7] sm:$0xff] 0.0
    $region45: #{tpu_custom_call.1} parent=1 // pred_fallthru
      _
    %v83 = vld [vmem:[%s0] sm:$0xff]
    %v84 = vld [vmem:[%s0 + $0x8] sm:$0xff]
    %v85 = vld [vmem:[%s0 + $0x10] sm:$0xff]
    %v86 = vld [vmem:[%s0 + $0x18] sm:$0xff]
    %v87 = vld [vmem:[%s0 + $0x20] sm:$0xff]
    %v88 = vld [vmem:[%s0 + $0x28] sm:$0xff]
    %v89 = vld [vmem:[%s0 + $0x30] sm:$0xff]
    %v90 = vld [vmem:[%s0 + $0x38] sm:$0xff]
    %v91 = vpack.c.bf16 %v84, %v83
    %v92 = vpack.c.bf16 %v86, %v85
    %v93 = vpack.c.bf16 %v88, %v87
    %v94 = vpack.c.bf16 %v90, %v89
    %v95 = vld [vmem:[%s1] sm:$0xff]
    %v96 = vld [vmem:[%s3] sm:$0xf]
    %v98 = vlaneseq
    %v99 = vshrl.u32 %v98, 7
    %v100 = vsub.s32 0, %v99
    %v101 = vrot.slane %v96, %v100
    %v102 = vlaneseq
    %v103 = vshrl.u32 %v102, 7
    %v104 = vsub.s32 1, %v103
    %v105 = vrot.slane %v96, %v104
    %v106 = vlaneseq
    %v107 = vshrl.u32 %v106, 7
    %v108 = vsub.s32 2, %v107
    %v109 = vrot.slane %v96, %v108
    %v110 = vlaneseq
    %v111 = vshrl.u32 %v110, 7
    %v112 = vsub.s32 3, %v111
    %v113 = vrot.slane %v96, %v112
    %v119 = vcombine.high %v95, %v95
    %v121 = vunpack.c.l.s4 1983009808
    %v122 = vunpack.c.0.s8 %v121
    %v123 = vlaneseq
    %v124 = vshrl.u32 %v123, 7
    %v125 = vsub.s32 %v122, %v124
    %v126 = vrot.slane %v95, %v125
    %v128 = vunpack.c.l.s4 1983009808
    %v129 = vunpack.c.0.s8 %v128
    %v130 = vlaneseq
    %v131 = vshrl.u32 %v130, 7
    %v132 = vsub.s32 %v129, %v131
    %v133 = vrot.slane %v119, %v132
    %v134 = vcombine.high %v126, %v126
    %v135 = vcombine.high %v133, %v133
    %vm136 = vcmask 31744
    %v138 = vsel %vm136, %v91, 0
    %v141 = vsel %vm136, %v92, 0
    %v144 = vsel %vm136, %v93, 0
    %v147 = vsel %vm136, %v94, 0
    %vm149 = vcmask 1041408
    %v151 = vsel %vm149, %v126, 0
    %v154 = vsel %vm149, %v134, 0
    %v157 = vsel %vm149, %v133, 0
    %v160 = vsel %vm149, %v135, 0
    %162 = vmatprep.subr.bf16.mxu0 %v154
    %163 = vmatpush1.bf16.msra.mxu0 %v151
    %164 = vmatprep.subr.bf16.mxu0 0
    %165 = vmatpush1.bf16.msra.mxu0 0
    %166 = vmatprep.subr.bf16.mxu0 0
    %167 = vmatpush1.bf16.msra.mxu0 0
    %168 = vmatprep.subr.bf16.mxu0 0
    %169 = vmatpush1.bf16.msra.mxu0 0
    %170 = vmatprep.subr.bf16.mxu0 0
    %171 = vmatpush1.bf16.msra.mxu0 0
    %172 = vmatprep.subr.bf16.mxu0 0
    %173 = vmatpush1.bf16.msra.mxu0 0
    %174 = vmatprep.subr.bf16.mxu0 0
    %175 = vmatpush1.bf16.msra.mxu0 0
    %176 = vmatprep.subr.bf16.mxu0 0
    %177 = vmatpush1.bf16.msra.mxu0 0
    %178 = vmatprep.subr.bf16.mxu0 0
    %179 = vmatpush1.bf16.msra.mxu0 0
    %180 = vmatprep.subr.bf16.mxu0 0
    %181 = vmatpush1.bf16.msra.mxu0 0
    %182 = vmatprep.subr.bf16.mxu0 0
    %183 = vmatpush1.bf16.msra.mxu0 0
    %184 = vmatprep.subr.bf16.mxu0 0
    %185 = vmatpush1.bf16.msra.mxu0 0
    %186 = vmatprep.subr.bf16.mxu0 0
    %187 = vmatpush1.bf16.msra.mxu0 0
    %188 = vmatprep.subr.bf16.mxu0 0
    %189 = vmatpush1.bf16.msra.mxu0 0
    %190 = vmatprep.subr.bf16.mxu0 0
    %191 = vmatpush1.bf16.msra.mxu0 0
    %192 = vmatprep.subr.bf16.mxu0 0
    %193 = vmatpush1.bf16.msra.mxu0 0
    %194 = vmatprep.mubr.bf16.mxu0 0
    %195 = vmatmul.mubr.bf16.gmra.mrb[0].mxu0 %v138
    %v196 = vpop.f32.mrb[0].mxu0
    %v197 = vadd.f32 %v101, %v196
    %v198 = vpop.f32.mrb[0].mxu0
    %v199 = vadd.f32 %v105, %v198
    %v200 = vpop.f32.mrb[0].mxu0
    %v201 = vadd.f32 %v101, %v200
    %v202 = vpop.f32.mrb[0].mxu0
    %v203 = vadd.f32 %v105, %v202
    %204 = vmatprep.mubr.bf16.mxu0 0
    %205 = vmatmul.mubr.bf16.gmra.mrb[0].mxu0 %v141
    %v206 = vpop.f32.mrb[0].mxu0
    %v207 = vadd.f32 %v101, %v206
    %v208 = vpop.f32.mrb[0].mxu0
    %v209 = vadd.f32 %v105, %v208
    %v210 = vpop.f32.mrb[0].mxu0
    %v211 = vadd.f32 %v101, %v210
    %v212 = vpop.f32.mrb[0].mxu0
    %v213 = vadd.f32 %v105, %v212
    %214 = vmatprep.mubr.bf16.mxu0 0
    %215 = vmatmul.mubr.bf16.gmra.mrb[0].mxu0 %v144
    %v216 = vpop.f32.mrb[0].mxu0
    %v217 = vadd.f32 %v101, %v216
    %v218 = vpop.f32.mrb[0].mxu0
    %v219 = vadd.f32 %v105, %v218
    %v220 = vpop.f32.mrb[0].mxu0
    %v221 = vadd.f32 %v101, %v220
    %v222 = vpop.f32.mrb[0].mxu0
    %v223 = vadd.f32 %v105, %v222
    %224 = vmatprep.mubr.bf16.mxu0 0
    %225 = vmatmul.mubr.bf16.gmra.mrb[0].mxu0 %v147
    %v226 = vpop.f32.mrb[0].mxu0
    %v227 = vadd.f32 %v101, %v226
    %v228 = vpop.f32.mrb[0].mxu0
    %v229 = vadd.f32 %v105, %v228
    %v230 = vpop.f32.mrb[0].mxu0
    %v231 = vadd.f32 %v101, %v230
    %v232 = vpop.f32.mrb[0].mxu0
    %v233 = vadd.f32 %v105, %v232
    %234 = vdwg.mxu0
    %235 = vmatprep.subr.bf16.mxu0 %v160
    %236 = vmatpush1.bf16.msra.mxu0 %v157
    %237 = vmatprep.subr.bf16.mxu0 0
    %238 = vmatpush1.bf16.msra.mxu0 0
    %239 = vmatprep.subr.bf16.mxu0 0
    %240 = vmatpush1.bf16.msra.mxu0 0
    %241 = vmatprep.subr.bf16.mxu0 0
    %242 = vmatpush1.bf16.msra.mxu0 0
    %243 = vmatprep.subr.bf16.mxu0 0
    %244 = vmatpush1.bf16.msra.mxu0 0
    %245 = vmatprep.subr.bf16.mxu0 0
    %246 = vmatpush1.bf16.msra.mxu0 0
    %247 = vmatprep.subr.bf16.mxu0 0
    %248 = vmatpush1.bf16.msra.mxu0 0
    %249 = vmatprep.subr.bf16.mxu0 0
    %250 = vmatpush1.bf16.msra.mxu0 0
    %251 = vmatprep.subr.bf16.mxu0 0
    %252 = vmatpush1.bf16.msra.mxu0 0
    %253 = vmatprep.subr.bf16.mxu0 0
    %254 = vmatpush1.bf16.msra.mxu0 0
    %255 = vmatprep.subr.bf16.mxu0 0
    %256 = vmatpush1.bf16.msra.mxu0 0
    %257 = vmatprep.subr.bf16.mxu0 0
    %258 = vmatpush1.bf16.msra.mxu0 0
    %259 = vmatprep.subr.bf16.mxu0 0
    %260 = vmatpush1.bf16.msra.mxu0 0
    %261 = vmatprep.subr.bf16.mxu0 0
    %262 = vmatpush1.bf16.msra.mxu0 0
    %263 = vmatprep.subr.bf16.mxu0 0
    %264 = vmatpush1.bf16.msra.mxu0 0
    %265 = vmatprep.subr.bf16.mxu0 0
    %266 = vmatpush1.bf16.msra.mxu0 0
    %267 = vmatprep.mubr.bf16.mxu0 0
    %268 = vmatmul.mubr.bf16.gmra.mrb[0].mxu0 %v138
    %v269 = vpop.f32.mrb[0].mxu0
    %v270 = vadd.f32 %v109, %v269
    %v271 = vpop.f32.mrb[0].mxu0
    %v272 = vadd.f32 %v113, %v271
    %v273 = vpop.f32.mrb[0].mxu0
    %v274 = vadd.f32 %v109, %v273
    %v275 = vpop.f32.mrb[0].mxu0
    %v276 = vadd.f32 %v113, %v275
    %277 = vmatprep.mubr.bf16.mxu0 0
    %278 = vmatmul.mubr.bf16.gmra.mrb[0].mxu0 %v141
    %v279 = vpop.f32.mrb[0].mxu0
    %v280 = vadd.f32 %v109, %v279
    %v281 = vpop.f32.mrb[0].mxu0
    %v282 = vadd.f32 %v113, %v281
    %v283 = vpop.f32.mrb[0].mxu0
    %v284 = vadd.f32 %v109, %v283
    %v285 = vpop.f32.mrb[0].mxu0
    %v286 = vadd.f32 %v113, %v285
    %287 = vmatprep.mubr.bf16.mxu0 0
    %288 = vmatmul.mubr.bf16.gmra.mrb[0].mxu0 %v144
    %v289 = vpop.f32.mrb[0].mxu0
    %v290 = vadd.f32 %v109, %v289
    %v291 = vpop.f32.mrb[0].mxu0
    %v292 = vadd.f32 %v113, %v291
    %v293 = vpop.f32.mrb[0].mxu0
    %v294 = vadd.f32 %v109, %v293
    %v295 = vpop.f32.mrb[0].mxu0
    %v296 = vadd.f32 %v113, %v295
    %297 = vmatprep.mubr.bf16.mxu0 0
    %298 = vmatmul.mubr.bf16.gmra.mrb[0].mxu0 %v147
    %v299 = vpop.f32.mrb[0].mxu0
    %v300 = vadd.f32 %v109, %v299
    %v301 = vpop.f32.mrb[0].mxu0
    %v302 = vadd.f32 %v113, %v301
    %v303 = vpop.f32.mrb[0].mxu0
    %v304 = vadd.f32 %v109, %v303
    %v305 = vpop.f32.mrb[0].mxu0
    %v306 = vadd.f32 %v113, %v305
    %307 = vdwg.mxu0
    %308 = vst [vmem:[#allocation2] sm:$0xff] %v197
    %309 = vst [vmem:[#allocation2 + $0x8] sm:$0xff] %v199
    %310 = vst [vmem:[#allocation2 + $0x10] sm:$0xff] %v270
    %311 = vst [vmem:[#allocation2 + $0x18] sm:$0xff] %v272
    %312 = vst [vmem:[#allocation2 + $0x20] sm:$0xff] %v201
    %313 = vst [vmem:[#allocation2 + $0x28] sm:$0xff] %v203
    %314 = vst [vmem:[#allocation2 + $0x30] sm:$0xff] %v274
    %315 = vst [vmem:[#allocation2 + $0x38] sm:$0xff] %v276
    %316 = vst [vmem:[#allocation2 + $0x40] sm:$0xff] %v207
    %317 = vst [vmem:[#allocation2 + $0x48] sm:$0xff] %v209
    %318 = vst [vmem:[#allocation2 + $0x50] sm:$0xff] %v280
    %319 = vst [vmem:[#allocation2 + $0x58] sm:$0xff] %v282
    %320 = vst [vmem:[#allocation2 + $0x60] sm:$0xff] %v211
    %321 = vst [vmem:[#allocation2 + $0x68] sm:$0xff] %v213
    %322 = vst [vmem:[#allocation2 + $0x70] sm:$0xff] %v284
    %323 = vst [vmem:[#allocation2 + $0x78] sm:$0xff] %v286
    %324 = vst [vmem:[#allocation2 + $0x80] sm:$0xff] %v217
    %325 = vst [vmem:[#allocation2 + $0x88] sm:$0xff] %v219
    %326 = vst [vmem:[#allocation2 + $0x90] sm:$0xff] %v290
    %327 = vst [vmem:[#allocation2 + $0x98] sm:$0xff] %v292
    %328 = vst [vmem:[#allocation2 + $0xa0] sm:$0xff] %v221
    %329 = vst [vmem:[#allocation2 + $0xa8] sm:$0xff] %v223
    %330 = vst [vmem:[#allocation2 + $0xb0] sm:$0xff] %v294
    %331 = vst [vmem:[#allocation2 + $0xb8] sm:$0xff] %v296
    %332 = vst [vmem:[#allocation2 + $0xc0] sm:$0xff] %v227
    %333 = vst [vmem:[#allocation2 + $0xc8] sm:$0xff] %v229
    %334 = vst [vmem:[#allocation2 + $0xd0] sm:$0xff] %v300
    %335 = vst [vmem:[#allocation2 + $0xd8] sm:$0xff] %v302
    %336 = vst [vmem:[#allocation2 + $0xe0] sm:$0xff] %v231
    %337 = vst [vmem:[#allocation2 + $0xe8] sm:$0xff] %v233
    %338 = vst [vmem:[#allocation2 + $0xf0] sm:$0xff] %v304
    %339 = vst [vmem:[#allocation2 + $0xf8] sm:$0xff] %v306
    %s340 = smul.u32 0, 4
    %s341 = smul.addr %s340, 8
    %s342 = scalar_lea.vmem [#allocation2], %s341
    %v343 = vld [vmem:[%s342] sm:$0xff]
    %v344 = vld [vmem:[%s342 + $0x8] sm:$0xff]
    %v345 = vld [vmem:[%s342 + $0x10] sm:$0xff]
    %v346 = vld [vmem:[%s342 + $0x18] sm:$0xff]
    %v347 = vld [vmem:[#allocation4] sm:$0xff]
    %v348 = vld [vmem:[#allocation8] sm:$0xff]
    %v349 = vld [vmem:[#allocation8 + $0x8] sm:$0xff]
    %v350 = vld [vmem:[#allocation8 + $0x10] sm:$0xff]
    %v351 = vld [vmem:[#allocation8 + $0x18] sm:$0xff]
    %v352 = vld [vmem:[#allocation8 + $0x20] sm:$0xff]
    %v353 = vld [vmem:[#allocation8 + $0x28] sm:$0xff]
    %v354 = vld [vmem:[#allocation8 + $0x30] sm:$0xff]
    %v355 = vld [vmem:[#allocation8 + $0x38] sm:$0xff]
    %v356 = vld [vmem:[#allocation8 + $0x40] sm:$0xff]
    %v357 = vld [vmem:[#allocation8 + $0x48] sm:$0xff]
    %v358 = vld [vmem:[#allocation8 + $0x50] sm:$0xff]
    %v359 = vld [vmem:[#allocation8 + $0x58] sm:$0xff]
    %v360 = vld [vmem:[#allocation8 + $0x60] sm:$0xff]
    %v361 = vld [vmem:[#allocation8 + $0x68] sm:$0xff]
    %v362 = vld [vmem:[#allocation8 + $0x70] sm:$0xff]
    %v363 = vld [vmem:[#allocation8 + $0x78] sm:$0xff]
    %v364 = vld [vmem:[#allocation8 + $0x80] sm:$0xff]
    %v365 = vld [vmem:[#allocation8 + $0x88] sm:$0xff]
    %v366 = vld [vmem:[#allocation8 + $0x90] sm:$0xff]
    %v367 = vld [vmem:[#allocation8 + $0x98] sm:$0xff]
    %v368 = vld [vmem:[#allocation8 + $0xa0] sm:$0xff]
    %v369 = vld [vmem:[#allocation8 + $0xa8] sm:$0xff]
    %v370 = vld [vmem:[#allocation8 + $0xb0] sm:$0xff]
    %v371 = vld [vmem:[#allocation8 + $0xb8] sm:$0xff]
    %v372 = vld [vmem:[#allocation8 + $0xc0] sm:$0xff]
    %v373 = vld [vmem:[#allocation8 + $0xc8] sm:$0xff]
    %v374 = vld [vmem:[#allocation8 + $0xd0] sm:$0xff]
    %v375 = vld [vmem:[#allocation8 + $0xd8] sm:$0xff]
    %v376 = vld [vmem:[#allocation8 + $0xe0] sm:$0xff]
    %v377 = vld [vmem:[#allocation8 + $0xe8] sm:$0xff]
    %v378 = vld [vmem:[#allocation8 + $0xf0] sm:$0xff]
    %v379 = vld [vmem:[#allocation8 + $0xf8] sm:$0xff]
    %v380 = vld [vmem:[#allocation8 + $0x100] sm:$0xff]
    %v381 = vld [vmem:[#allocation8 + $0x108] sm:$0xff]
    %v382 = vld [vmem:[#allocation8 + $0x110] sm:$0xff]
    %v383 = vld [vmem:[#allocation8 + $0x118] sm:$0xff]
    %v384 = vld [vmem:[#allocation8 + $0x120] sm:$0xff]
    %v385 = vld [vmem:[#allocation8 + $0x128] sm:$0xff]
    %v386 = vld [vmem:[#allocation8 + $0x130] sm:$0xff]
    %v387 = vld [vmem:[#allocation8 + $0x138] sm:$0xff]
    %v388 = vld [vmem:[#allocation8 + $0x140] sm:$0xff]
    %v389 = vld [vmem:[#allocation8 + $0x148] sm:$0xff]
    %v390 = vld [vmem:[#allocation8 + $0x150] sm:$0xff]
    %v391 = vld [vmem:[#allocation8 + $0x158] sm:$0xff]
    %v392 = vld [vmem:[#allocation8 + $0x160] sm:$0xff]
    %v393 = vld [vmem:[#allocation8 + $0x168] sm:$0xff]
    %v394 = vld [vmem:[#allocation8 + $0x170] sm:$0xff]
    %v395 = vld [vmem:[#allocation8 + $0x178] sm:$0xff]
    %v396 = vld [vmem:[#allocation8 + $0x180] sm:$0xff]
    %v397 = vld [vmem:[#allocation8 + $0x188] sm:$0xff]
    %v398 = vld [vmem:[#allocation8 + $0x190] sm:$0xff]
    %v399 = vld [vmem:[#allocation8 + $0x198] sm:$0xff]
    %v400 = vld [vmem:[#allocation8 + $0x1a0] sm:$0xff]
    %v401 = vld [vmem:[#allocation8 + $0x1a8] sm:$0xff]
    %v402 = vld [vmem:[#allocation8 + $0x1b0] sm:$0xff]
    %v403 = vld [vmem:[#allocation8 + $0x1b8] sm:$0xff]
    %v404 = vld [vmem:[#allocation8 + $0x1c0] sm:$0xff]
    %v405 = vld [vmem:[#allocation8 + $0x1c8] sm:$0xff]
    %v406 = vld [vmem:[#allocation8 + $0x1d0] sm:$0xff]
    %v407 = vld [vmem:[#allocation8 + $0x1d8] sm:$0xff]
    %v408 = vld [vmem:[#allocation8 + $0x1e0] sm:$0xff]
    %v409 = vld [vmem:[#allocation8 + $0x1e8] sm:$0xff]
    %v410 = vld [vmem:[#allocation8 + $0x1f0] sm:$0xff]
    %v411 = vld [vmem:[#allocation8 + $0x1f8] sm:$0xff]
    %412 = vmatprep.subr.mxu0 %v349
    %413 = vmatpush1.msra.mxu0 %v348
    %414 = vmatprep.subr.mxu0 %v353
    %415 = vmatpush1.msra.mxu0 %v352
    %416 = vmatprep.subr.mxu0 %v357
    %417 = vmatpush1.msra.mxu0 %v356
    %418 = vmatprep.subr.mxu0 %v361
    %419 = vmatpush1.msra.mxu0 %v360
    %420 = vmatprep.subr.mxu0 %v365
    %421 = vmatpush1.msra.mxu0 %v364
    %422 = vmatprep.subr.mxu0 %v369
    %423 = vmatpush1.msra.mxu0 %v368
    %424 = vmatprep.subr.mxu0 %v373
    %425 = vmatpush1.msra.mxu0 %v372
    %426 = vmatprep.subr.mxu0 %v377
    %427 = vmatpush1.msra.mxu0 %v376
    %428 = vmatprep.subr.mxu0 %v381
    %429 = vmatpush1.msra.mxu0 %v380
    %430 = vmatprep.subr.mxu0 %v385
    %431 = vmatpush1.msra.mxu0 %v384
    %432 = vmatprep.subr.mxu0 %v389
    %433 = vmatpush1.msra.mxu0 %v388
    %434 = vmatprep.subr.mxu0 %v393
    %435 = vmatpush1.msra.mxu0 %v392
    %436 = vmatprep.subr.mxu0 %v397
    %437 = vmatpush1.msra.mxu0 %v396
    %438 = vmatprep.subr.mxu0 %v401
    %439 = vmatpush1.msra.mxu0 %v400
    %440 = vmatprep.subr.mxu0 %v405
    %441 = vmatpush1.msra.mxu0 %v404
    %442 = vmatprep.subr.mxu0 %v409
    %443 = vmatpush1.msra.mxu0 %v408
    %444 = vmatprep.subr.mxu0 0.0
    %445 = vmatpush1.msra.mxu0 0.0
    %446 = vmatprep.subr.mxu0 0.0
    %447 = vmatpush1.msra.mxu0 0.0
    %448 = vmatprep.subr.mxu0 0.0
    %449 = vmatpush1.msra.mxu0 0.0
    %450 = vmatprep.subr.mxu0 0.0
    %451 = vmatpush1.msra.mxu0 0.0
    %452 = vmatprep.subr.mxu0 0.0
    %453 = vmatpush1.msra.mxu0 0.0
    %454 = vmatprep.subr.mxu0 0.0
    %455 = vmatpush1.msra.mxu0 0.0
    %456 = vmatprep.subr.mxu0 0.0
    %457 = vmatpush1.msra.mxu0 0.0
    %458 = vmatprep.subr.mxu0 0.0
    %459 = vmatpush1.msra.mxu0 0.0
    %460 = vmatprep.subr.mxu0 0.0
    %461 = vmatpush1.msra.mxu0 0.0
    %462 = vmatprep.subr.mxu0 0.0
    %463 = vmatpush1.msra.mxu0 0.0
    %464 = vmatprep.subr.mxu0 0.0
    %465 = vmatpush1.msra.mxu0 0.0
    %466 = vmatprep.subr.mxu0 0.0
    %467 = vmatpush1.msra.mxu0 0.0
    %468 = vmatprep.subr.mxu0 0.0
    %469 = vmatpush1.msra.mxu0 0.0
    %470 = vmatprep.subr.mxu0 0.0
    %471 = vmatpush1.msra.mxu0 0.0
    %472 = vmatprep.subr.mxu0 0.0
    %473 = vmatpush1.msra.mxu0 0.0
    %474 = vmatprep.subr.mxu0 0.0
    %475 = vmatpush1.msra.mxu0 0.0
    %476 = vmatprep.mubr.f32.mxu0 0.0
    %477 = vmatmul.mubr.f32.gmra.mrb[0].mxu0 %v347
    %v478 = vpop.f32.mrb[0].mxu0
    %v479 = vadd.f32 0.0, %v478
    %v480 = vpop.f32.mrb[0].mxu0
    %v481 = vadd.f32 0.0, %v480
    %482 = vdwg.mxu0
    %483 = vmatprep.subr.mxu0 %v351
    %484 = vmatpush1.msra.mxu0 %v350
    %485 = vmatprep.subr.mxu0 %v355
    %486 = vmatpush1.msra.mxu0 %v354
    %487 = vmatprep.subr.mxu0 %v359
    %488 = vmatpush1.msra.mxu0 %v358
    %489 = vmatprep.subr.mxu0 %v363
    %490 = vmatpush1.msra.mxu0 %v362
    %491 = vmatprep.subr.mxu0 %v367
    %492 = vmatpush1.msra.mxu0 %v366
    %493 = vmatprep.subr.mxu0 %v371
    %494 = vmatpush1.msra.mxu0 %v370
    %495 = vmatprep.subr.mxu0 %v375
    %496 = vmatpush1.msra.mxu0 %v374
    %497 = vmatprep.subr.mxu0 %v379
    %498 = vmatpush1.msra.mxu0 %v378
    %499 = vmatprep.subr.mxu0 %v383
    %500 = vmatpush1.msra.mxu0 %v382
    %501 = vmatprep.subr.mxu0 %v387
    %502 = vmatpush1.msra.mxu0 %v386
    %503 = vmatprep.subr.mxu0 %v391
    %504 = vmatpush1.msra.mxu0 %v390
    %505 = vmatprep.subr.mxu0 %v395
    %506 = vmatpush1.msra.mxu0 %v394
    %507 = vmatprep.subr.mxu0 %v399
    %508 = vmatpush1.msra.mxu0 %v398
    %509 = vmatprep.subr.mxu0 %v403
    %510 = vmatpush1.msra.mxu0 %v402
    %511 = vmatprep.subr.mxu0 %v407
    %512 = vmatpush1.msra.mxu0 %v406
    %513 = vmatprep.subr.mxu0 %v411
    %514 = vmatpush1.msra.mxu0 %v410
    %515 = vmatprep.subr.mxu0 0.0
    %516 = vmatpush1.msra.mxu0 0.0
    %517 = vmatprep.subr.mxu0 0.0
    %518 = vmatpush1.msra.mxu0 0.0
    %519 = vmatprep.subr.mxu0 0.0
    %520 = vmatpush1.msra.mxu0 0.0
    %521 = vmatprep.subr.mxu0 0.0
    %522 = vmatpush1.msra.mxu0 0.0
    %523 = vmatprep.subr.mxu0 0.0
    %524 = vmatpush1.msra.mxu0 0.0
    %525 = vmatprep.subr.mxu0 0.0
    %526 = vmatpush1.msra.mxu0 0.0
    %527 = vmatprep.subr.mxu0 0.0
    %528 = vmatpush1.msra.mxu0 0.0
    %529 = vmatprep.subr.mxu0 0.0
    %530 = vmatpush1.msra.mxu0 0.0
    %531 = vmatprep.subr.mxu0 0.0
    %532 = vmatpush1.msra.mxu0 0.0
    %533 = vmatprep.subr.mxu0 0.0
    %534 = vmatpush1.msra.mxu0 0.0
    %535 = vmatprep.subr.mxu0 0.0
    %536 = vmatpush1.msra.mxu0 0.0
    %537 = vmatprep.subr.mxu0 0.0
    %538 = vmatpush1.msra.mxu0 0.0
    %539 = vmatprep.subr.mxu0 0.0
    %540 = vmatpush1.msra.mxu0 0.0
    %541 = vmatprep.subr.mxu0 0.0
    %542 = vmatpush1.msra.mxu0 0.0
    %543 = vmatprep.subr.mxu0 0.0
    %544 = vmatpush1.msra.mxu0 0.0
    %545 = vmatprep.subr.mxu0 0.0
    %546 = vmatpush1.msra.mxu0 0.0
    %547 = vmatprep.mubr.f32.mxu0 0.0
    %548 = vmatmul.mubr.f32.gmra.mrb[0].mxu0 %v347
    %v549 = vpop.f32.mrb[0].mxu0
    %v550 = vadd.f32 0.0, %v549
    %v551 = vpop.f32.mrb[0].mxu0
    %v552 = vadd.f32 0.0, %v551
    %553 = vdwg.mxu0
    %v554 = vadd.f32 %v343, %v479
    %v555 = vadd.f32 %v344, %v481
    %v556 = vadd.f32 %v345, %v550
    %v557 = vadd.f32 %v346, %v552
    %v558 = vld [vmem:[#allocation5] sm:$0xff]
    %v559 = vxor.u32 %v554, 2147483648
    %v560 = vmul.f32 %v559, 1.442695
    %v561 = vpow.pop %v560
    %v562 = vadd.f32 %v561, 1.0
    %v563 = vrcp.pop %v562
    %v564 = vmul.f32 1.0, %v563
    %v565 = vxor.u32 %v555, 2147483648
    %v566 = vmul.f32 %v565, 1.442695
    %v567 = vpow.pop %v566
    %v568 = vadd.f32 %v567, 1.0
    %v569 = vrcp.pop %v568
    %v570 = vmul.f32 1.0, %v569
    %v571 = vtanh.pop %v556
    %v572 = vxor.u32 %v557, 2147483648
    %v573 = vmul.f32 %v572, 1.442695
    %v574 = vpow.pop %v573
    %v575 = vadd.f32 %v574, 1.0
    %v576 = vrcp.pop %v575
    %v577 = vmul.f32 1.0, %v576
    %v578 = vmul.f32 %v570, %v558
    %v579 = vmul.f32 %v564, %v571
    %v580 = vadd.f32 %v578, %v579
    %v581 = vtanh.pop %v580
    %v582 = vmul.f32 %v577, %v581
    %583 = vst [vmem:[#allocation4] sm:$0xff] %v582
    %584 = vst [vmem:[#allocation5] sm:$0xff] %v580
    %585 = vst [vmem:[#allocation14] sm:$0xff] %v582
    %s586 = smul.u32 1, 4
    %s587 = smul.addr %s586, 8
    %s588 = scalar_lea.vmem [#allocation2], %s587
    %v589 = vld [vmem:[%s588] sm:$0xff]
    %v590 = vld [vmem:[%s588 + $0x8] sm:$0xff]
    %v591 = vld [vmem:[%s588 + $0x10] sm:$0xff]
    %v592 = vld [vmem:[%s588 + $0x18] sm:$0xff]
    %v593 = vld [vmem:[#allocation4] sm:$0xff]
    %v594 = vld [vmem:[#allocation8] sm:$0xff]
    %v595 = vld [vmem:[#allocation8 + $0x8] sm:$0xff]
    %v596 = vld [vmem:[#allocation8 + $0x10] sm:$0xff]
    %v597 = vld [vmem:[#allocation8 + $0x18] sm:$0xff]
    %v598 = vld [vmem:[#allocation8 + $0x20] sm:$0xff]
    %v599 = vld [vmem:[#allocation8 + $0x28] sm:$0xff]
    %v600 = vld [vmem:[#allocation8 + $0x30] sm:$0xff]
    %v601 = vld [vmem:[#allocation8 + $0x38] sm:$0xff]
    %v602 = vld [vmem:[#allocation8 + $0x40] sm:$0xff]
    %v603 = vld [vmem:[#allocation8 + $0x48] sm:$0xff]
    %v604 = vld [vmem:[#allocation8 + $0x50] sm:$0xff]
    %v605 = vld [vmem:[#allocation8 + $0x58] sm:$0xff]
    %v606 = vld [vmem:[#allocation8 + $0x60] sm:$0xff]
    %v607 = vld [vmem:[#allocation8 + $0x68] sm:$0xff]
    %v608 = vld [vmem:[#allocation8 + $0x70] sm:$0xff]
    %v609 = vld [vmem:[#allocation8 + $0x78] sm:$0xff]
    %v610 = vld [vmem:[#allocation8 + $0x80] sm:$0xff]
    %v611 = vld [vmem:[#allocation8 + $0x88] sm:$0xff]
    %v612 = vld [vmem:[#allocation8 + $0x90] sm:$0xff]
    %v613 = vld [vmem:[#allocation8 + $0x98] sm:$0xff]
    %v614 = vld [vmem:[#allocation8 + $0xa0] sm:$0xff]
    %v615 = vld [vmem:[#allocation8 + $0xa8] sm:$0xff]
    %v616 = vld [vmem:[#allocation8 + $0xb0] sm:$0xff]
    %v617 = vld [vmem:[#allocation8 + $0xb8] sm:$0xff]
    %v618 = vld [vmem:[#allocation8 + $0xc0] sm:$0xff]
    %v619 = vld [vmem:[#allocation8 + $0xc8] sm:$0xff]
    %v620 = vld [vmem:[#allocation8 + $0xd0] sm:$0xff]
    %v621 = vld [vmem:[#allocation8 + $0xd8] sm:$0xff]
    %v622 = vld [vmem:[#allocation8 + $0xe0] sm:$0xff]
    %v623 = vld [vmem:[#allocation8 + $0xe8] sm:$0xff]
    %v624 = vld [vmem:[#allocation8 + $0xf0] sm:$0xff]
    %v625 = vld [vmem:[#allocation8 + $0xf8] sm:$0xff]
    %v626 = vld [vmem:[#allocation8 + $0x100] sm:$0xff]
    %v627 = vld [vmem:[#allocation8 + $0x108] sm:$0xff]
    %v628 = vld [vmem:[#allocation8 + $0x110] sm:$0xff]
    %v629 = vld [vmem:[#allocation8 + $0x118] sm:$0xff]
    %v630 = vld [vmem:[#allocation8 + $0x120] sm:$0xff]
    %v631 = vld [vmem:[#allocation8 + $0x128] sm:$0xff]
    %v632 = vld [vmem:[#allocation8 + $0x130] sm:$0xff]
    %v633 = vld [vmem:[#allocation8 + $0x138] sm:$0xff]
    %v634 = vld [vmem:[#allocation8 + $0x140] sm:$0xff]
    %v635 = vld [vmem:[#allocation8 + $0x148] sm:$0xff]
    %v636 = vld [vmem:[#allocation8 + $0x150] sm:$0xff]
    %v637 = vld [vmem:[#allocation8 + $0x158] sm:$0xff]
    %v638 = vld [vmem:[#allocation8 + $0x160] sm:$0xff]
    %v639 = vld [vmem:[#allocation8 + $0x168] sm:$0xff]
    %v640 = vld [vmem:[#allocation8 + $0x170] sm:$0xff]
    %v641 = vld [vmem:[#allocation8 + $0x178] sm:$0xff]
    %v642 = vld [vmem:[#allocation8 + $0x180] sm:$0xff]
    %v643 = vld [vmem:[#allocation8 + $0x188] sm:$0xff]
    %v644 = vld [vmem:[#allocation8 + $0x190] sm:$0xff]
    %v645 = vld [vmem:[#allocation8 + $0x198] sm:$0xff]
    %v646 = vld [vmem:[#allocation8 + $0x1a0] sm:$0xff]
    %v647 = vld [vmem:[#allocation8 + $0x1a8] sm:$0xff]
    %v648 = vld [vmem:[#allocation8 + $0x1b0] sm:$0xff]
    %v649 = vld [vmem:[#allocation8 + $0x1b8] sm:$0xff]
    %v650 = vld [vmem:[#allocation8 + $0x1c0] sm:$0xff]
    %v651 = vld [vmem:[#allocation8 + $0x1c8] sm:$0xff]
    %v652 = vld [vmem:[#allocation8 + $0x1d0] sm:$0xff]
    %v653 = vld [vmem:[#allocation8 + $0x1d8] sm:$0xff]
    %v654 = vld [vmem:[#allocation8 + $0x1e0] sm:$0xff]
    %v655 = vld [vmem:[#allocation8 + $0x1e8] sm:$0xff]
    %v656 = vld [vmem:[#allocation8 + $0x1f0] sm:$0xff]
    %v657 = vld [vmem:[#allocation8 + $0x1f8] sm:$0xff]
    %658 = vmatprep.subr.mxu0 %v595
    %659 = vmatpush1.msra.mxu0 %v594
    %660 = vmatprep.subr.mxu0 %v599
    %661 = vmatpush1.msra.mxu0 %v598
    %662 = vmatprep.subr.mxu0 %v603
    %663 = vmatpush1.msra.mxu0 %v602
    %664 = vmatprep.subr.mxu0 %v607
    %665 = vmatpush1.msra.mxu0 %v606
    %666 = vmatprep.subr.mxu0 %v611
    %667 = vmatpush1.msra.mxu0 %v610
    %668 = vmatprep.subr.mxu0 %v615
    %669 = vmatpush1.msra.mxu0 %v614
    %670 = vmatprep.subr.mxu0 %v619
    %671 = vmatpush1.msra.mxu0 %v618
    %672 = vmatprep.subr.mxu0 %v623
    %673 = vmatpush1.msra.mxu0 %v622
    %674 = vmatprep.subr.mxu0 %v627
    %675 = vmatpush1.msra.mxu0 %v626
    %676 = vmatprep.subr.mxu0 %v631
    %677 = vmatpush1.msra.mxu0 %v630
    %678 = vmatprep.subr.mxu0 %v635
    %679 = vmatpush1.msra.mxu0 %v634
    %680 = vmatprep.subr.mxu0 %v639
    %681 = vmatpush1.msra.mxu0 %v638
    %682 = vmatprep.subr.mxu0 %v643
    %683 = vmatpush1.msra.mxu0 %v642
    %684 = vmatprep.subr.mxu0 %v647
    %685 = vmatpush1.msra.mxu0 %v646
    %686 = vmatprep.subr.mxu0 %v651
    %687 = vmatpush1.msra.mxu0 %v650
    %688 = vmatprep.subr.mxu0 %v655
    %689 = vmatpush1.msra.mxu0 %v654
    %690 = vmatprep.subr.mxu0 0.0
    %691 = vmatpush1.msra.mxu0 0.0
    %692 = vmatprep.subr.mxu0 0.0
    %693 = vmatpush1.msra.mxu0 0.0
    %694 = vmatprep.subr.mxu0 0.0
    %695 = vmatpush1.msra.mxu0 0.0
    %696 = vmatprep.subr.mxu0 0.0
    %697 = vmatpush1.msra.mxu0 0.0
    %698 = vmatprep.subr.mxu0 0.0
    %699 = vmatpush1.msra.mxu0 0.0
    %700 = vmatprep.subr.mxu0 0.0
    %701 = vmatpush1.msra.mxu0 0.0
    %702 = vmatprep.subr.mxu0 0.0
    %703 = vmatpush1.msra.mxu0 0.0
    %704 = vmatprep.subr.mxu0 0.0
    %705 = vmatpush1.msra.mxu0 0.0
    %706 = vmatprep.subr.mxu0 0.0
    %707 = vmatpush1.msra.mxu0 0.0
    %708 = vmatprep.subr.mxu0 0.0
    %709 = vmatpush1.msra.mxu0 0.0
    %710 = vmatprep.subr.mxu0 0.0
    %711 = vmatpush1.msra.mxu0 0.0
    %712 = vmatprep.subr.mxu0 0.0
    %713 = vmatpush1.msra.mxu0 0.0
    %714 = vmatprep.subr.mxu0 0.0
    %715 = vmatpush1.msra.mxu0 0.0
    %716 = vmatprep.subr.mxu0 0.0
    %717 = vmatpush1.msra.mxu0 0.0
    %718 = vmatprep.subr.mxu0 0.0
    %719 = vmatpush1.msra.mxu0 0.0
    %720 = vmatprep.subr.mxu0 0.0
    %721 = vmatpush1.msra.mxu0 0.0
    %722 = vmatprep.mubr.f32.mxu0 0.0
    %723 = vmatmul.mubr.f32.gmra.mrb[0].mxu0 %v593
    %v724 = vpop.f32.mrb[0].mxu0
    %v725 = vadd.f32 0.0, %v724
    %v726 = vpop.f32.mrb[0].mxu0
    %v727 = vadd.f32 0.0, %v726
    %728 = vdwg.mxu0
    %729 = vmatprep.subr.mxu0 %v597
    %730 = vmatpush1.msra.mxu0 %v596
    %731 = vmatprep.subr.mxu0 %v601
    %732 = vmatpush1.msra.mxu0 %v600
    %733 = vmatprep.subr.mxu0 %v605
    %734 = vmatpush1.msra.mxu0 %v604
    %735 = vmatprep.subr.mxu0 %v609
    %736 = vmatpush1.msra.mxu0 %v608
    %737 = vmatprep.subr.mxu0 %v613
    %738 = vmatpush1.msra.mxu0 %v612
    %739 = vmatprep.subr.mxu0 %v617
    %740 = vmatpush1.msra.mxu0 %v616
    %741 = vmatprep.subr.mxu0 %v621
    %742 = vmatpush1.msra.mxu0 %v620
    %743 = vmatprep.subr.mxu0 %v625
    %744 = vmatpush1.msra.mxu0 %v624
    %745 = vmatprep.subr.mxu0 %v629
    %746 = vmatpush1.msra.mxu0 %v628
    %747 = vmatprep.subr.mxu0 %v633
    %748 = vmatpush1.msra.mxu0 %v632
    %749 = vmatprep.subr.mxu0 %v637
    %750 = vmatpush1.msra.mxu0 %v636
    %751 = vmatprep.subr.mxu0 %v641
    %752 = vmatpush1.msra.mxu0 %v640
    %753 = vmatprep.subr.mxu0 %v645
    %754 = vmatpush1.msra.mxu0 %v644
    %755 = vmatprep.subr.mxu0 %v649
    %756 = vmatpush1.msra.mxu0 %v648
    %757 = vmatprep.subr.mxu0 %v653
    %758 = vmatpush1.msra.mxu0 %v652
    %759 = vmatprep.subr.mxu0 %v657
    %760 = vmatpush1.msra.mxu0 %v656
    %761 = vmatprep.subr.mxu0 0.0
    %762 = vmatpush1.msra.mxu0 0.0
    %763 = vmatprep.subr.mxu0 0.0
    %764 = vmatpush1.msra.mxu0 0.0
    %765 = vmatprep.subr.mxu0 0.0
    %766 = vmatpush1.msra.mxu0 0.0
    %767 = vmatprep.subr.mxu0 0.0
    %768 = vmatpush1.msra.mxu0 0.0
    %769 = vmatprep.subr.mxu0 0.0
    %770 = vmatpush1.msra.mxu0 0.0
    %771 = vmatprep.subr.mxu0 0.0
    %772 = vmatpush1.msra.mxu0 0.0
    %773 = vmatprep.subr.mxu0 0.0
    %774 = vmatpush1.msra.mxu0 0.0
    %775 = vmatprep.subr.mxu0 0.0
    %776 = vmatpush1.msra.mxu0 0.0
    %777 = vmatprep.subr.mxu0 0.0
    %778 = vmatpush1.msra.mxu0 0.0
    %779 = vmatprep.subr.mxu0 0.0
    %780 = vmatpush1.msra.mxu0 0.0
    %781 = vmatprep.subr.mxu0 0.0
    %782 = vmatpush1.msra.mxu0 0.0
    %783 = vmatprep.subr.mxu0 0.0
    %784 = vmatpush1.msra.mxu0 0.0
    %785 = vmatprep.subr.mxu0 0.0
    %786 = vmatpush1.msra.mxu0 0.0
    %787 = vmatprep.subr.mxu0 0.0
    %788 = vmatpush1.msra.mxu0 0.0
    %789 = vmatprep.subr.mxu0 0.0
    %790 = vmatpush1.msra.mxu0 0.0
    %791 = vmatprep.subr.mxu0 0.0
    %792 = vmatpush1.msra.mxu0 0.0
    %793 = vmatprep.mubr.f32.mxu0 0.0
    %794 = vmatmul.mubr.f32.gmra.mrb[0].mxu0 %v593
    %v795 = vpop.f32.mrb[0].mxu0
    %v796 = vadd.f32 0.0, %v795
    %v797 = vpop.f32.mrb[0].mxu0
    %v798 = vadd.f32 0.0, %v797
    %799 = vdwg.mxu0
    %v800 = vadd.f32 %v589, %v725
    %v801 = vadd.f32 %v590, %v727
    %v802 = vadd.f32 %v591, %v796
    %v803 = vadd.f32 %v592, %v798
    %v804 = vld [vmem:[#allocation5] sm:$0xff]
    %v805 = vxor.u32 %v800, 2147483648
    %v806 = vmul.f32 %v805, 1.442695
    %v807 = vpow.pop %v806
    %v808 = vadd.f32 %v807, 1.0
    %v809 = vrcp.pop %v808
    %v810 = vmul.f32 1.0, %v809
    %v811 = vxor.u32 %v801, 2147483648
    %v812 = vmul.f32 %v811, 1.442695
    %v813 = vpow.pop %v812
    %v814 = vadd.f32 %v813, 1.0
    %v815 = vrcp.pop %v814
    %v816 = vmul.f32 1.0, %v815
    %v817 = vtanh.pop %v802
    %v818 = vxor.u32 %v803, 2147483648
    %v819 = vmul.f32 %v818, 1.442695
    %v820 = vpow.pop %v819
    %v821 = vadd.f32 %v820, 1.0
    %v822 = vrcp.pop %v821
    %v823 = vmul.f32 1.0, %v822
    %v824 = vmul.f32 %v816, %v804
    %v825 = vmul.f32 %v810, %v817
    %v826 = vadd.f32 %v824, %v825
    %v827 = vtanh.pop %v826
    %v828 = vmul.f32 %v823, %v827
    %829 = vst [vmem:[#allocation4] sm:$0xff] %v828
    %830 = vst [vmem:[#allocation5] sm:$0xff] %v826
    %s831 = scalar_lea.vmem [#allocation14], 8
    %832 = vst [vmem:[%s831] sm:$0xff] %v828
    %s833 = smul.u32 2, 4
    %s834 = smul.addr %s833, 8
    %s835 = scalar_lea.vmem [#allocation2], %s834
    %v836 = vld [vmem:[%s835] sm:$0xff]
    %v837 = vld [vmem:[%s835 + $0x8] sm:$0xff]
    %v838 = vld [vmem:[%s835 + $0x10] sm:$0xff]
    %v839 = vld [vmem:[%s835 + $0x18] sm:$0xff]
    %v840 = vld [vmem:[#allocation4] sm:$0xff]
    %v841 = vld [vmem:[#allocation8] sm:$0xff]
    %v842 = vld [vmem:[#allocation8 + $0x8] sm:$0xff]
    %v843 = vld [vmem:[#allocation8 + $0x10] sm:$0xff]
    %v844 = vld [vmem:[#allocation8 + $0x18] sm:$0xff]
    %v845 = vld [vmem:[#allocation8 + $0x20] sm:$0xff]
    %v846 = vld [vmem:[#allocation8 + $0x28] sm:$0xff]
    %v847 = vld [vmem:[#allocation8 + $0x30] sm:$0xff]
    %v848 = vld [vmem:[#allocation8 + $0x38] sm:$0xff]
    %v849 = vld [vmem:[#allocation8 + $0x40] sm:$0xff]
    %v850 = vld [vmem:[#allocation8 + $0x48] sm:$0xff]
    %v851 = vld [vmem:[#allocation8 + $0x50] sm:$0xff]
    %v852 = vld [vmem:[#allocation8 + $0x58] sm:$0xff]
    %v853 = vld [vmem:[#allocation8 + $0x60] sm:$0xff]
    %v854 = vld [vmem:[#allocation8 + $0x68] sm:$0xff]
    %v855 = vld [vmem:[#allocation8 + $0x70] sm:$0xff]
    %v856 = vld [vmem:[#allocation8 + $0x78] sm:$0xff]
    %v857 = vld [vmem:[#allocation8 + $0x80] sm:$0xff]
    %v858 = vld [vmem:[#allocation8 + $0x88] sm:$0xff]
    %v859 = vld [vmem:[#allocation8 + $0x90] sm:$0xff]
    %v860 = vld [vmem:[#allocation8 + $0x98] sm:$0xff]
    %v861 = vld [vmem:[#allocation8 + $0xa0] sm:$0xff]
    %v862 = vld [vmem:[#allocation8 + $0xa8] sm:$0xff]
    %v863 = vld [vmem:[#allocation8 + $0xb0] sm:$0xff]
    %v864 = vld [vmem:[#allocation8 + $0xb8] sm:$0xff]
    %v865 = vld [vmem:[#allocation8 + $0xc0] sm:$0xff]
    %v866 = vld [vmem:[#allocation8 + $0xc8] sm:$0xff]
    %v867 = vld [vmem:[#allocation8 + $0xd0] sm:$0xff]
    %v868 = vld [vmem:[#allocation8 + $0xd8] sm:$0xff]
    %v869 = vld [vmem:[#allocation8 + $0xe0] sm:$0xff]
    %v870 = vld [vmem:[#allocation8 + $0xe8] sm:$0xff]
    %v871 = vld [vmem:[#allocation8 + $0xf0] sm:$0xff]
    %v872 = vld [vmem:[#allocation8 + $0xf8] sm:$0xff]
    %v873 = vld [vmem:[#allocation8 + $0x100] sm:$0xff]
    %v874 = vld [vmem:[#allocation8 + $0x108] sm:$0xff]
    %v875 = vld [vmem:[#allocation8 + $0x110] sm:$0xff]
    %v876 = vld [vmem:[#allocation8 + $0x118] sm:$0xff]
    %v877 = vld [vmem:[#allocation8 + $0x120] sm:$0xff]
    %v878 = vld [vmem:[#allocation8 + $0x128] sm:$0xff]
    %v879 = vld [vmem:[#allocation8 + $0x130] sm:$0xff]
    %v880 = vld [vmem:[#allocation8 + $0x138] sm:$0xff]
    %v881 = vld [vmem:[#allocation8 + $0x140] sm:$0xff]
    %v882 = vld [vmem:[#allocation8 + $0x148] sm:$0xff]
    %v883 = vld [vmem:[#allocation8 + $0x150] sm:$0xff]
    %v884 = vld [vmem:[#allocation8 + $0x158] sm:$0xff]
    %v885 = vld [vmem:[#allocation8 + $0x160] sm:$0xff]
    %v886 = vld [vmem:[#allocation8 + $0x168] sm:$0xff]
    %v887 = vld [vmem:[#allocation8 + $0x170] sm:$0xff]
    %v888 = vld [vmem:[#allocation8 + $0x178] sm:$0xff]
    %v889 = vld [vmem:[#allocation8 + $0x180] sm:$0xff]
    %v890 = vld [vmem:[#allocation8 + $0x188] sm:$0xff]
    %v891 = vld [vmem:[#allocation8 + $0x190] sm:$0xff]
    %v892 = vld [vmem:[#allocation8 + $0x198] sm:$0xff]
    %v893 = vld [vmem:[#allocation8 + $0x1a0] sm:$0xff]
    %v894 = vld [vmem:[#allocation8 + $0x1a8] sm:$0xff]
    %v895 = vld [vmem:[#allocation8 + $0x1b0] sm:$0xff]
    %v896 = vld [vmem:[#allocation8 + $0x1b8] sm:$0xff]
    %v897 = vld [vmem:[#allocation8 + $0x1c0] sm:$0xff]
    %v898 = vld [vmem:[#allocation8 + $0x1c8] sm:$0xff]
    %v899 = vld [vmem:[#allocation8 + $0x1d0] sm:$0xff]
    %v900 = vld [vmem:[#allocation8 + $0x1d8] sm:$0xff]
    %v901 = vld [vmem:[#allocation8 + $0x1e0] sm:$0xff]
    %v902 = vld [vmem:[#allocation8 + $0x1e8] sm:$0xff]
    %v903 = vld [vmem:[#allocation8 + $0x1f0] sm:$0xff]
    %v904 = vld [vmem:[#allocation8 + $0x1f8] sm:$0xff]
    %905 = vmatprep.subr.mxu0 %v842
    %906 = vmatpush1.msra.mxu0 %v841
    %907 = vmatprep.subr.mxu0 %v846
    %908 = vmatpush1.msra.mxu0 %v845
    %909 = vmatprep.subr.mxu0 %v850
    %910 = vmatpush1.msra.mxu0 %v849
    %911 = vmatprep.subr.mxu0 %v854
    %912 = vmatpush1.msra.mxu0 %v853
    %913 = vmatprep.subr.mxu0 %v858
    %914 = vmatpush1.msra.mxu0 %v857
    %915 = vmatprep.subr.mxu0 %v862
    %916 = vmatpush1.msra.mxu0 %v861
    %917 = vmatprep.subr.mxu0 %v866
    %918 = vmatpush1.msra.mxu0 %v865
    %919 = vmatprep.subr.mxu0 %v870
    %920 = vmatpush1.msra.mxu0 %v869
    %921 = vmatprep.subr.mxu0 %v874
    %922 = vmatpush1.msra.mxu0 %v873
    %923 = vmatprep.subr.mxu0 %v878
    %924 = vmatpush1.msra.mxu0 %v877
    %925 = vmatprep.subr.mxu0 %v882
    %926 = vmatpush1.msra.mxu0 %v881
    %927 = vmatprep.subr.mxu0 %v886
    %928 = vmatpush1.msra.mxu0 %v885
    %929 = vmatprep.subr.mxu0 %v890
    %930 = vmatpush1.msra.mxu0 %v889
    %931 = vmatprep.subr.mxu0 %v894
    %932 = vmatpush1.msra.mxu0 %v893
    %933 = vmatprep.subr.mxu0 %v898
    %934 = vmatpush1.msra.mxu0 %v897
    %935 = vmatprep.subr.mxu0 %v902
    %936 = vmatpush1.msra.mxu0 %v901
    %937 = vmatprep.subr.mxu0 0.0
    %938 = vmatpush1.msra.mxu0 0.0
    %939 = vmatprep.subr.mxu0 0.0
    %940 = vmatpush1.msra.mxu0 0.0
    %941 = vmatprep.subr.mxu0 0.0
    %942 = vmatpush1.msra.mxu0 0.0
    %943 = vmatprep.subr.mxu0 0.0
    %944 = vmatpush1.msra.mxu0 0.0
    %945 = vmatprep.subr.mxu0 0.0
    %946 = vmatpush1.msra.mxu0 0.0
    %947 = vmatprep.subr.mxu0 0.0
    %948 = vmatpush1.msra.mxu0 0.0
    %949 = vmatprep.subr.mxu0 0.0
    %950 = vmatpush1.msra.mxu0 0.0
    %951 = vmatprep.subr.mxu0 0.0
    %952 = vmatpush1.msra.mxu0 0.0
    %953 = vmatprep.subr.mxu0 0.0
    %954 = vmatpush1.msra.mxu0 0.0
    %955 = vmatprep.subr.mxu0 0.0
    %956 = vmatpush1.msra.mxu0 0.0
    %957 = vmatprep.subr.mxu0 0.0
    %958 = vmatpush1.msra.mxu0 0.0
    %959 = vmatprep.subr.mxu0 0.0
    %960 = vmatpush1.msra.mxu0 0.0
    %961 = vmatprep.subr.mxu0 0.0
    %962 = vmatpush1.msra.mxu0 0.0
    %963 = vmatprep.subr.mxu0 0.0
    %964 = vmatpush1.msra.mxu0 0.0
    %965 = vmatprep.subr.mxu0 0.0
    %966 = vmatpush1.msra.mxu0 0.0
    %967 = vmatprep.subr.mxu0 0.0
    %968 = vmatpush1.msra.mxu0 0.0
    %969 = vmatprep.mubr.f32.mxu0 0.0
    %970 = vmatmul.mubr.f32.gmra.mrb[0].mxu0 %v840
    %v971 = vpop.f32.mrb[0].mxu0
    %v972 = vadd.f32 0.0, %v971
    %v973 = vpop.f32.mrb[0].mxu0
    %v974 = vadd.f32 0.0, %v973
    %975 = vdwg.mxu0
    %976 = vmatprep.subr.mxu0 %v844
    %977 = vmatpush1.msra.mxu0 %v843
    %978 = vmatprep.subr.mxu0 %v848
    %979 = vmatpush1.msra.mxu0 %v847
    %980 = vmatprep.subr.mxu0 %v852
    %981 = vmatpush1.msra.mxu0 %v851
    %982 = vmatprep.subr.mxu0 %v856
    %983 = vmatpush1.msra.mxu0 %v855
    %984 = vmatprep.subr.mxu0 %v860
    %985 = vmatpush1.msra.mxu0 %v859
    %986 = vmatprep.subr.mxu0 %v864
    %987 = vmatpush1.msra.mxu0 %v863
    %988 = vmatprep.subr.mxu0 %v868
    %989 = vmatpush1.msra.mxu0 %v867
    %990 = vmatprep.subr.mxu0 %v872
    %991 = vmatpush1.msra.mxu0 %v871
    %992 = vmatprep.subr.mxu0 %v876
    %993 = vmatpush1.msra.mxu0 %v875
    %994 = vmatprep.subr.mxu0 %v880
    %995 = vmatpush1.msra.mxu0 %v879
    %996 = vmatprep.subr.mxu0 %v884
    %997 = vmatpush1.msra.mxu0 %v883
    %998 = vmatprep.subr.mxu0 %v888
    %999 = vmatpush1.msra.mxu0 %v887
    %1000 = vmatprep.subr.mxu0 %v892
    %1001 = vmatpush1.msra.mxu0 %v891
    %1002 = vmatprep.subr.mxu0 %v896
    %1003 = vmatpush1.msra.mxu0 %v895
    %1004 = vmatprep.subr.mxu0 %v900
    %1005 = vmatpush1.msra.mxu0 %v899
    %1006 = vmatprep.subr.mxu0 %v904
    %1007 = vmatpush1.msra.mxu0 %v903
    %1008 = vmatprep.subr.mxu0 0.0
    %1009 = vmatpush1.msra.mxu0 0.0
    %1010 = vmatprep.subr.mxu0 0.0
    %1011 = vmatpush1.msra.mxu0 0.0
    %1012 = vmatprep.subr.mxu0 0.0
    %1013 = vmatpush1.msra.mxu0 0.0
    %1014 = vmatprep.subr.mxu0 0.0
    %1015 = vmatpush1.msra.mxu0 0.0
    %1016 = vmatprep.subr.mxu0 0.0
    %1017 = vmatpush1.msra.mxu0 0.0
    %1018 = vmatprep.subr.mxu0 0.0
    %1019 = vmatpush1.msra.mxu0 0.0
    %1020 = vmatprep.subr.mxu0 0.0
    %1021 = vmatpush1.msra.mxu0 0.0
    %1022 = vmatprep.subr.mxu0 0.0
    %1023 = vmatpush1.msra.mxu0 0.0
    %1024 = vmatprep.subr.mxu0 0.0
    %1025 = vmatpush1.msra.mxu0 0.0
    %1026 = vmatprep.subr.mxu0 0.0
    %1027 = vmatpush1.msra.mxu0 0.0
    %1028 = vmatprep.subr.mxu0 0.0
    %1029 = vmatpush1.msra.mxu0 0.0
    %1030 = vmatprep.subr.mxu0 0.0
    %1031 = vmatpush1.msra.mxu0 0.0
    %1032 = vmatprep.subr.mxu0 0.0
    %1033 = vmatpush1.msra.mxu0 0.0
    %1034 = vmatprep.subr.mxu0 0.0
    %1035 = vmatpush1.msra.mxu0 0.0
    %1036 = vmatprep.subr.mxu0 0.0
    %1037 = vmatpush1.msra.mxu0 0.0
    %1038 = vmatprep.subr.mxu0 0.0
    %1039 = vmatpush1.msra.mxu0 0.0
    %1040 = vmatprep.mubr.f32.mxu0 0.0
    %1041 = vmatmul.mubr.f32.gmra.mrb[0].mxu0 %v840
    %v1042 = vpop.f32.mrb[0].mxu0
    %v1043 = vadd.f32 0.0, %v1042
    %v1044 = vpop.f32.mrb[0].mxu0
    %v1045 = vadd.f32 0.0, %v1044
    %1046 = vdwg.mxu0
    %v1047 = vadd.f32 %v836, %v972
    %v1048 = vadd.f32 %v837, %v974
    %v1049 = vadd.f32 %v838, %v1043
    %v1050 = vadd.f32 %v839, %v1045
    %v1051 = vld [vmem:[#allocation5] sm:$0xff]
    %v1052 = vxor.u32 %v1047, 2147483648
    %v1053 = vmul.f32 %v1052, 1.442695
    %v1054 = vpow.pop %v1053
    %v1055 = vadd.f32 %v1054, 1.0
    %v1056 = vrcp.pop %v1055
    %v1057 = vmul.f32 1.0, %v1056
    %v1058 = vxor.u32 %v1048, 2147483648
    %v1059 = vmul.f32 %v1058, 1.442695
    %v1060 = vpow.pop %v1059
    %v1061 = vadd.f32 %v1060, 1.0
    %v1062 = vrcp.pop %v1061
    %v1063 = vmul.f32 1.0, %v1062
    %v1064 = vtanh.pop %v1049
    %v1065 = vxor.u32 %v1050, 2147483648
    %v1066 = vmul.f32 %v1065, 1.442695
    %v1067 = vpow.pop %v1066
    %v1068 = vadd.f32 %v1067, 1.0
    %v1069 = vrcp.pop %v1068
    %v1070 = vmul.f32 1.0, %v1069
    %v1071 = vmul.f32 %v1063, %v1051
    %v1072 = vmul.f32 %v1057, %v1064
    %v1073 = vadd.f32 %v1071, %v1072
    %v1074 = vtanh.pop %v1073
    %v1075 = vmul.f32 %v1070, %v1074
    %1076 = vst [vmem:[#allocation4] sm:$0xff] %v1075
    %1077 = vst [vmem:[#allocation5] sm:$0xff] %v1073
    %s1078 = scalar_lea.vmem [#allocation14], 16
    %1079 = vst [vmem:[%s1078] sm:$0xff] %v1075
    %s1080 = smul.u32 3, 4
    %s1081 = smul.addr %s1080, 8
    %s1082 = scalar_lea.vmem [#allocation2], %s1081
    %v1083 = vld [vmem:[%s1082] sm:$0xff]
    %v1084 = vld [vmem:[%s1082 + $0x8] sm:$0xff]
    %v1085 = vld [vmem:[%s1082 + $0x10] sm:$0xff]
    %v1086 = vld [vmem:[%s1082 + $0x18] sm:$0xff]
    %v1087 = vld [vmem:[#allocation4] sm:$0xff]
    %v1088 = vld [vmem:[#allocation8] sm:$0xff]
    %v1089 = vld [vmem:[#allocation8 + $0x8] sm:$0xff]
    %v1090 = vld [vmem:[#allocation8 + $0x10] sm:$0xff]
    %v1091 = vld [vmem:[#allocation8 + $0x18] sm:$0xff]
    %v1092 = vld [vmem:[#allocation8 + $0x20] sm:$0xff]
    %v1093 = vld [vmem:[#allocation8 + $0x28] sm:$0xff]
    %v1094 = vld [vmem:[#allocation8 + $0x30] sm:$0xff]
    %v1095 = vld [vmem:[#allocation8 + $0x38] sm:$0xff]
    %v1096 = vld [vmem:[#allocation8 + $0x40] sm:$0xff]
    %v1097 = vld [vmem:[#allocation8 + $0x48] sm:$0xff]
    %v1098 = vld [vmem:[#allocation8 + $0x50] sm:$0xff]
    %v1099 = vld [vmem:[#allocation8 + $0x58] sm:$0xff]
    %v1100 = vld [vmem:[#allocation8 + $0x60] sm:$0xff]
    %v1101 = vld [vmem:[#allocation8 + $0x68] sm:$0xff]
    %v1102 = vld [vmem:[#allocation8 + $0x70] sm:$0xff]
    %v1103 = vld [vmem:[#allocation8 + $0x78] sm:$0xff]
    %v1104 = vld [vmem:[#allocation8 + $0x80] sm:$0xff]
    %v1105 = vld [vmem:[#allocation8 + $0x88] sm:$0xff]
    %v1106 = vld [vmem:[#allocation8 + $0x90] sm:$0xff]
    %v1107 = vld [vmem:[#allocation8 + $0x98] sm:$0xff]
    %v1108 = vld [vmem:[#allocation8 + $0xa0] sm:$0xff]
    %v1109 = vld [vmem:[#allocation8 + $0xa8] sm:$0xff]
    %v1110 = vld [vmem:[#allocation8 + $0xb0] sm:$0xff]
    %v1111 = vld [vmem:[#allocation8 + $0xb8] sm:$0xff]
    %v1112 = vld [vmem:[#allocation8 + $0xc0] sm:$0xff]
    %v1113 = vld [vmem:[#allocation8 + $0xc8] sm:$0xff]
    %v1114 = vld [vmem:[#allocation8 + $0xd0] sm:$0xff]
    %v1115 = vld [vmem:[#allocation8 + $0xd8] sm:$0xff]
    %v1116 = vld [vmem:[#allocation8 + $0xe0] sm:$0xff]
    %v1117 = vld [vmem:[#allocation8 + $0xe8] sm:$0xff]
    %v1118 = vld [vmem:[#allocation8 + $0xf0] sm:$0xff]
    %v1119 = vld [vmem:[#allocation8 + $0xf8] sm:$0xff]
    %v1120 = vld [vmem:[#allocation8 + $0x100] sm:$0xff]
    %v1121 = vld [vmem:[#allocation8 + $0x108] sm:$0xff]
    %v1122 = vld [vmem:[#allocation8 + $0x110] sm:$0xff]
    %v1123 = vld [vmem:[#allocation8 + $0x118] sm:$0xff]
    %v1124 = vld [vmem:[#allocation8 + $0x120] sm:$0xff]
    %v1125 = vld [vmem:[#allocation8 + $0x128] sm:$0xff]
    %v1126 = vld [vmem:[#allocation8 + $0x130] sm:$0xff]
    %v1127 = vld [vmem:[#allocation8 + $0x138] sm:$0xff]
    %v1128 = vld [vmem:[#allocation8 + $0x140] sm:$0xff]
    %v1129 = vld [vmem:[#allocation8 + $0x148] sm:$0xff]
    %v1130 = vld [vmem:[#allocation8 + $0x150] sm:$0xff]
    %v1131 = vld [vmem:[#allocation8 + $0x158] sm:$0xff]
    %v1132 = vld [vmem:[#allocation8 + $0x160] sm:$0xff]
    %v1133 = vld [vmem:[#allocation8 + $0x168] sm:$0xff]
    %v1134 = vld [vmem:[#allocation8 + $0x170] sm:$0xff]
    %v1135 = vld [vmem:[#allocation8 + $0x178] sm:$0xff]
    %v1136 = vld [vmem:[#allocation8 + $0x180] sm:$0xff]
    %v1137 = vld [vmem:[#allocation8 + $0x188] sm:$0xff]
    %v1138 = vld [vmem:[#allocation8 + $0x190] sm:$0xff]
    %v1139 = vld [vmem:[#allocation8 + $0x198] sm:$0xff]
    %v1140 = vld [vmem:[#allocation8 + $0x1a0] sm:$0xff]
    %v1141 = vld [vmem:[#allocation8 + $0x1a8] sm:$0xff]
    %v1142 = vld [vmem:[#allocation8 + $0x1b0] sm:$0xff]
    %v1143 = vld [vmem:[#allocation8 + $0x1b8] sm:$0xff]
    %v1144 = vld [vmem:[#allocation8 + $0x1c0] sm:$0xff]
    %v1145 = vld [vmem:[#allocation8 + $0x1c8] sm:$0xff]
    %v1146 = vld [vmem:[#allocation8 + $0x1d0] sm:$0xff]
    %v1147 = vld [vmem:[#allocation8 + $0x1d8] sm:$0xff]
    %v1148 = vld [vmem:[#allocation8 + $0x1e0] sm:$0xff]
    %v1149 = vld [vmem:[#allocation8 + $0x1e8] sm:$0xff]
    %v1150 = vld [vmem:[#allocation8 + $0x1f0] sm:$0xff]
    %v1151 = vld [vmem:[#allocation8 + $0x1f8] sm:$0xff]
    %1152 = vmatprep.subr.mxu0 %v1089
    %1153 = vmatpush1.msra.mxu0 %v1088
    %1154 = vmatprep.subr.mxu0 %v1093
    %1155 = vmatpush1.msra.mxu0 %v1092
    %1156 = vmatprep.subr.mxu0 %v1097
    %1157 = vmatpush1.msra.mxu0 %v1096
    %1158 = vmatprep.subr.mxu0 %v1101
    %1159 = vmatpush1.msra.mxu0 %v1100
    %1160 = vmatprep.subr.mxu0 %v1105
    %1161 = vmatpush1.msra.mxu0 %v1104
    %1162 = vmatprep.subr.mxu0 %v1109
    %1163 = vmatpush1.msra.mxu0 %v1108
    %1164 = vmatprep.subr.mxu0 %v1113
    %1165 = vmatpush1.msra.mxu0 %v1112
    %1166 = vmatprep.subr.mxu0 %v1117
    %1167 = vmatpush1.msra.mxu0 %v1116
    %1168 = vmatprep.subr.mxu0 %v1121
    %1169 = vmatpush1.msra.mxu0 %v1120
    %1170 = vmatprep.subr.mxu0 %v1125
    %1171 = vmatpush1.msra.mxu0 %v1124
    %1172 = vmatprep.subr.mxu0 %v1129
    %1173 = vmatpush1.msra.mxu0 %v1128
    %1174 = vmatprep.subr.mxu0 %v1133
    %1175 = vmatpush1.msra.mxu0 %v1132
    %1176 = vmatprep.subr.mxu0 %v1137
    %1177 = vmatpush1.msra.mxu0 %v1136
    %1178 = vmatprep.subr.mxu0 %v1141
    %1179 = vmatpush1.msra.mxu0 %v1140
    %1180 = vmatprep.subr.mxu0 %v1145
    %1181 = vmatpush1.msra.mxu0 %v1144
    %1182 = vmatprep.subr.mxu0 %v1149
    %1183 = vmatpush1.msra.mxu0 %v1148
    %1184 = vmatprep.subr.mxu0 0.0
    %1185 = vmatpush1.msra.mxu0 0.0
    %1186 = vmatprep.subr.mxu0 0.0
    %1187 = vmatpush1.msra.mxu0 0.0
    %1188 = vmatprep.subr.mxu0 0.0
    %1189 = vmatpush1.msra.mxu0 0.0
    %1190 = vmatprep.subr.mxu0 0.0
    %1191 = vmatpush1.msra.mxu0 0.0
    %1192 = vmatprep.subr.mxu0 0.0
    %1193 = vmatpush1.msra.mxu0 0.0
    %1194 = vmatprep.subr.mxu0 0.0
    %1195 = vmatpush1.msra.mxu0 0.0
    %1196 = vmatprep.subr.mxu0 0.0
    %1197 = vmatpush1.msra.mxu0 0.0
    %1198 = vmatprep.subr.mxu0 0.0
    %1199 = vmatpush1.msra.mxu0 0.0
    %1200 = vmatprep.subr.mxu0 0.0
    %1201 = vmatpush1.msra.mxu0 0.0
    %1202 = vmatprep.subr.mxu0 0.0
    %1203 = vmatpush1.msra.mxu0 0.0
    %1204 = vmatprep.subr.mxu0 0.0
    %1205 = vmatpush1.msra.mxu0 0.0
    %1206 = vmatprep.subr.mxu0 0.0
    %1207 = vmatpush1.msra.mxu0 0.0
    %1208 = vmatprep.subr.mxu0 0.0
    %1209 = vmatpush1.msra.mxu0 0.0
    %1210 = vmatprep.subr.mxu0 0.0
    %1211 = vmatpush1.msra.mxu0 0.0
    %1212 = vmatprep.subr.mxu0 0.0
    %1213 = vmatpush1.msra.mxu0 0.0
    %1214 = vmatprep.subr.mxu0 0.0
    %1215 = vmatpush1.msra.mxu0 0.0
    %1216 = vmatprep.mubr.f32.mxu0 0.0
    %1217 = vmatmul.mubr.f32.gmra.mrb[0].mxu0 %v1087
    %v1218 = vpop.f32.mrb[0].mxu0
    %v1219 = vadd.f32 0.0, %v1218
    %v1220 = vpop.f32.mrb[0].mxu0
    %v1221 = vadd.f32 0.0, %v1220
    %1222 = vdwg.mxu0
    %1223 = vmatprep.subr.mxu0 %v1091
    %1224 = vmatpush1.msra.mxu0 %v1090
    %1225 = vmatprep.subr.mxu0 %v1095
    %1226 = vmatpush1.msra.mxu0 %v1094
    %1227 = vmatprep.subr.mxu0 %v1099
    %1228 = vmatpush1.msra.mxu0 %v1098
    %1229 = vmatprep.subr.mxu0 %v1103
    %1230 = vmatpush1.msra.mxu0 %v1102
    %1231 = vmatprep.subr.mxu0 %v1107
    %1232 = vmatpush1.msra.mxu0 %v1106
    %1233 = vmatprep.subr.mxu0 %v1111
    %1234 = vmatpush1.msra.mxu0 %v1110
    %1235 = vmatprep.subr.mxu0 %v1115
    %1236 = vmatpush1.msra.mxu0 %v1114
    %1237 = vmatprep.subr.mxu0 %v1119
    %1238 = vmatpush1.msra.mxu0 %v1118
    %1239 = vmatprep.subr.mxu0 %v1123
    %1240 = vmatpush1.msra.mxu0 %v1122
    %1241 = vmatprep.subr.mxu0 %v1127
    %1242 = vmatpush1.msra.mxu0 %v1126
    %1243 = vmatprep.subr.mxu0 %v1131
    %1244 = vmatpush1.msra.mxu0 %v1130
    %1245 = vmatprep.subr.mxu0 %v1135
    %1246 = vmatpush1.msra.mxu0 %v1134
    %1247 = vmatprep.subr.mxu0 %v1139
    %1248 = vmatpush1.msra.mxu0 %v1138
    %1249 = vmatprep.subr.mxu0 %v1143
    %1250 = vmatpush1.msra.mxu0 %v1142
    %1251 = vmatprep.subr.mxu0 %v1147
    %1252 = vmatpush1.msra.mxu0 %v1146
    %1253 = vmatprep.subr.mxu0 %v1151
    %1254 = vmatpush1.msra.mxu0 %v1150
    %1255 = vmatprep.subr.mxu0 0.0
    %1256 = vmatpush1.msra.mxu0 0.0
    %1257 = vmatprep.subr.mxu0 0.0
    %1258 = vmatpush1.msra.mxu0 0.0
    %1259 = vmatprep.subr.mxu0 0.0
    %1260 = vmatpush1.msra.mxu0 0.0
    %1261 = vmatprep.subr.mxu0 0.0
    %1262 = vmatpush1.msra.mxu0 0.0
    %1263 = vmatprep.subr.mxu0 0.0
    %1264 = vmatpush1.msra.mxu0 0.0
    %1265 = vmatprep.subr.mxu0 0.0
    %1266 = vmatpush1.msra.mxu0 0.0
    %1267 = vmatprep.subr.mxu0 0.0
    %1268 = vmatpush1.msra.mxu0 0.0
    %1269 = vmatprep.subr.mxu0 0.0
    %1270 = vmatpush1.msra.mxu0 0.0
    %1271 = vmatprep.subr.mxu0 0.0
    %1272 = vmatpush1.msra.mxu0 0.0
    %1273 = vmatprep.subr.mxu0 0.0
    %1274 = vmatpush1.msra.mxu0 0.0
    %1275 = vmatprep.subr.mxu0 0.0
    %1276 = vmatpush1.msra.mxu0 0.0
    %1277 = vmatprep.subr.mxu0 0.0
    %1278 = vmatpush1.msra.mxu0 0.0
    %1279 = vmatprep.subr.mxu0 0.0
    %1280 = vmatpush1.msra.mxu0 0.0
    %1281 = vmatprep.subr.mxu0 0.0
    %1282 = vmatpush1.msra.mxu0 0.0
    %1283 = vmatprep.subr.mxu0 0.0
    %1284 = vmatpush1.msra.mxu0 0.0
    %1285 = vmatprep.subr.mxu0 0.0
    %1286 = vmatpush1.msra.mxu0 0.0
    %1287 = vmatprep.mubr.f32.mxu0 0.0
    %1288 = vmatmul.mubr.f32.gmra.mrb[0].mxu0 %v1087
    %v1289 = vpop.f32.mrb[0].mxu0
    %v1290 = vadd.f32 0.0, %v1289
    %v1291 = vpop.f32.mrb[0].mxu0
    %v1292 = vadd.f32 0.0, %v1291
    %1293 = vdwg.mxu0
    %v1294 = vadd.f32 %v1083, %v1219
    %v1295 = vadd.f32 %v1084, %v1221
    %v1296 = vadd.f32 %v1085, %v1290
    %v1297 = vadd.f32 %v1086, %v1292
    %v1298 = vld [vmem:[#allocation5] sm:$0xff]
    %v1299 = vxor.u32 %v1294, 2147483648
    %v1300 = vmul.f32 %v1299, 1.442695
    %v1301 = vpow.pop %v1300
    %v1302 = vadd.f32 %v1301, 1.0
    %v1303 = vrcp.pop %v1302
    %v1304 = vmul.f32 1.0, %v1303
    %v1305 = vxor.u32 %v1295, 2147483648
    %v1306 = vmul.f32 %v1305, 1.442695
    %v1307 = vpow.pop %v1306
    %v1308 = vadd.f32 %v1307, 1.0
    %v1309 = vrcp.pop %v1308
    %v1310 = vmul.f32 1.0, %v1309
    %v1311 = vtanh.pop %v1296
    %v1312 = vxor.u32 %v1297, 2147483648
    %v1313 = vmul.f32 %v1312, 1.442695
    %v1314 = vpow.pop %v1313
    %v1315 = vadd.f32 %v1314, 1.0
    %v1316 = vrcp.pop %v1315
    %v1317 = vmul.f32 1.0, %v1316
    %v1318 = vmul.f32 %v1310, %v1298
    %v1319 = vmul.f32 %v1304, %v1311
    %v1320 = vadd.f32 %v1318, %v1319
    %v1321 = vtanh.pop %v1320
    %v1322 = vmul.f32 %v1317, %v1321
    %1323 = vst [vmem:[#allocation4] sm:$0xff] %v1322
    %1324 = vst [vmem:[#allocation5] sm:$0xff] %v1320
    %s1325 = scalar_lea.vmem [#allocation14], 24
    %1326 = vst [vmem:[%s1325] sm:$0xff] %v1322
    %s1327 = smul.u32 4, 4
    %s1328 = smul.addr %s1327, 8
    %s1329 = scalar_lea.vmem [#allocation2], %s1328
    %v1330 = vld [vmem:[%s1329] sm:$0xff]
    %v1331 = vld [vmem:[%s1329 + $0x8] sm:$0xff]
    %v1332 = vld [vmem:[%s1329 + $0x10] sm:$0xff]
    %v1333 = vld [vmem:[%s1329 + $0x18] sm:$0xff]
    %v1334 = vld [vmem:[#allocation4] sm:$0xff]
    %v1335 = vld [vmem:[#allocation8] sm:$0xff]
    %v1336 = vld [vmem:[#allocation8 + $0x8] sm:$0xff]
    %v1337 = vld [vmem:[#allocation8 + $0x10] sm:$0xff]
    %v1338 = vld [vmem:[#allocation8 + $0x18] sm:$0xff]
    %v1339 = vld [vmem:[#allocation8 + $0x20] sm:$0xff]
    %v1340 = vld [vmem:[#allocation8 + $0x28] sm:$0xff]
    %v1341 = vld [vmem:[#allocation8 + $0x30] sm:$0xff]
    %v1342 = vld [vmem:[#allocation8 + $0x38] sm:$0xff]
    %v1343 = vld [vmem:[#allocation8 + $0x40] sm:$0xff]
    %v1344 = vld [vmem:[#allocation8 + $0x48] sm:$0xff]
    %v1345 = vld [vmem:[#allocation8 + $0x50] sm:$0xff]
    %v1346 = vld [vmem:[#allocation8 + $0x58] sm:$0xff]
    %v1347 = vld [vmem:[#allocation8 + $0x60] sm:$0xff]
    %v1348 = vld [vmem:[#allocation8 + $0x68] sm:$0xff]
    %v1349 = vld [vmem:[#allocation8 + $0x70] sm:$0xff]
    %v1350 = vld [vmem:[#allocation8 + $0x78] sm:$0xff]
    %v1351 = vld [vmem:[#allocation8 + $0x80] sm:$0xff]
    %v1352 = vld [vmem:[#allocation8 + $0x88] sm:$0xff]
    %v1353 = vld [vmem:[#allocation8 + $0x90] sm:$0xff]
    %v1354 = vld [vmem:[#allocation8 + $0x98] sm:$0xff]
    %v1355 = vld [vmem:[#allocation8 + $0xa0] sm:$0xff]
    %v1356 = vld [vmem:[#allocation8 + $0xa8] sm:$0xff]
    %v1357 = vld [vmem:[#allocation8 + $0xb0] sm:$0xff]
    %v1358 = vld [vmem:[#allocation8 + $0xb8] sm:$0xff]
    %v1359 = vld [vmem:[#allocation8 + $0xc0] sm:$0xff]
    %v1360 = vld [vmem:[#allocation8 + $0xc8] sm:$0xff]
    %v1361 = vld [vmem:[#allocation8 + $0xd0] sm:$0xff]
    %v1362 = vld [vmem:[#allocation8 + $0xd8] sm:$0xff]
    %v1363 = vld [vmem:[#allocation8 + $0xe0] sm:$0xff]
    %v1364 = vld [vmem:[#allocation8 + $0xe8] sm:$0xff]
    %v1365 = vld [vmem:[#allocation8 + $0xf0] sm:$0xff]
    %v1366 = vld [vmem:[#allocation8 + $0xf8] sm:$0xff]
    %v1367 = vld [vmem:[#allocation8 + $0x100] sm:$0xff]
    %v1368 = vld [vmem:[#allocation8 + $0x108] sm:$0xff]
    %v1369 = vld [vmem:[#allocation8 + $0x110] sm:$0xff]
    %v1370 = vld [vmem:[#allocation8 + $0x118] sm:$0xff]
    %v1371 = vld [vmem:[#allocation8 + $0x120] sm:$0xff]
    %v1372 = vld [vmem:[#allocation8 + $0x128] sm:$0xff]
    %v1373 = vld [vmem:[#allocation8 + $0x130] sm:$0xff]
    %v1374 = vld [vmem:[#allocation8 + $0x138] sm:$0xff]
    %v1375 = vld [vmem:[#allocation8 + $0x140] sm:$0xff]
    %v1376 = vld [vmem:[#allocation8 + $0x148] sm:$0xff]
    %v1377 = vld [vmem:[#allocation8 + $0x150] sm:$0xff]
    %v1378 = vld [vmem:[#allocation8 + $0x158] sm:$0xff]
    %v1379 = vld [vmem:[#allocation8 + $0x160] sm:$0xff]
    %v1380 = vld [vmem:[#allocation8 + $0x168] sm:$0xff]
    %v1381 = vld [vmem:[#allocation8 + $0x170] sm:$0xff]
    %v1382 = vld [vmem:[#allocation8 + $0x178] sm:$0xff]
    %v1383 = vld [vmem:[#allocation8 + $0x180] sm:$0xff]
    %v1384 = vld [vmem:[#allocation8 + $0x188] sm:$0xff]
    %v1385 = vld [vmem:[#allocation8 + $0x190] sm:$0xff]
    %v1386 = vld [vmem:[#allocation8 + $0x198] sm:$0xff]
    %v1387 = vld [vmem:[#allocation8 + $0x1a0] sm:$0xff]
    %v1388 = vld [vmem:[#allocation8 + $0x1a8] sm:$0xff]
    %v1389 = vld [vmem:[#allocation8 + $0x1b0] sm:$0xff]
    %v1390 = vld [vmem:[#allocation8 + $0x1b8] sm:$0xff]
    %v1391 = vld [vmem:[#allocation8 + $0x1c0] sm:$0xff]
    %v1392 = vld [vmem:[#allocation8 + $0x1c8] sm:$0xff]
    %v1393 = vld [vmem:[#allocation8 + $0x1d0] sm:$0xff]
    %v1394 = vld [vmem:[#allocation8 + $0x1d8] sm:$0xff]
    %v1395 = vld [vmem:[#allocation8 + $0x1e0] sm:$0xff]
    %v1396 = vld [vmem:[#allocation8 + $0x1e8] sm:$0xff]
    %v1397 = vld [vmem:[#allocation8 + $0x1f0] sm:$0xff]
    %v1398 = vld [vmem:[#allocation8 + $0x1f8] sm:$0xff]
    %1399 = vmatprep.subr.mxu0 %v1336
    %1400 = vmatpush1.msra.mxu0 %v1335
    %1401 = vmatprep.subr.mxu0 %v1340
    %1402 = vmatpush1.msra.mxu0 %v1339
    %1403 = vmatprep.subr.mxu0 %v1344
    %1404 = vmatpush1.msra.mxu0 %v1343
    %1405 = vmatprep.subr.mxu0 %v1348
    %1406 = vmatpush1.msra.mxu0 %v1347
    %1407 = vmatprep.subr.mxu0 %v1352
    %1408 = vmatpush1.msra.mxu0 %v1351
    %1409 = vmatprep.subr.mxu0 %v1356
    %1410 = vmatpush1.msra.mxu0 %v1355
    %1411 = vmatprep.subr.mxu0 %v1360
    %1412 = vmatpush1.msra.mxu0 %v1359
    %1413 = vmatprep.subr.mxu0 %v1364
    %1414 = vmatpush1.msra.mxu0 %v1363
    %1415 = vmatprep.subr.mxu0 %v1368
    %1416 = vmatpush1.msra.mxu0 %v1367
    %1417 = vmatprep.subr.mxu0 %v1372
    %1418 = vmatpush1.msra.mxu0 %v1371
    %1419 = vmatprep.subr.mxu0 %v1376
    %1420 = vmatpush1.msra.mxu0 %v1375
    %1421 = vmatprep.subr.mxu0 %v1380
    %1422 = vmatpush1.msra.mxu0 %v1379
    %1423 = vmatprep.subr.mxu0 %v1384
    %1424 = vmatpush1.msra.mxu0 %v1383
    %1425 = vmatprep.subr.mxu0 %v1388
    %1426 = vmatpush1.msra.mxu0 %v1387
    %1427 = vmatprep.subr.mxu0 %v1392
    %1428 = vmatpush1.msra.mxu0 %v1391
    %1429 = vmatprep.subr.mxu0 %v1396
    %1430 = vmatpush1.msra.mxu0 %v1395
    %1431 = vmatprep.subr.mxu0 0.0
    %1432 = vmatpush1.msra.mxu0 0.0
    %1433 = vmatprep.subr.mxu0 0.0
    %1434 = vmatpush1.msra.mxu0 0.0
    %1435 = vmatprep.subr.mxu0 0.0
    %1436 = vmatpush1.msra.mxu0 0.0
    %1437 = vmatprep.subr.mxu0 0.0
    %1438 = vmatpush1.msra.mxu0 0.0
    %1439 = vmatprep.subr.mxu0 0.0
    %1440 = vmatpush1.msra.mxu0 0.0
    %1441 = vmatprep.subr.mxu0 0.0
    %1442 = vmatpush1.msra.mxu0 0.0
    %1443 = vmatprep.subr.mxu0 0.0
    %1444 = vmatpush1.msra.mxu0 0.0
    %1445 = vmatprep.subr.mxu0 0.0
    %1446 = vmatpush1.msra.mxu0 0.0
    %1447 = vmatprep.subr.mxu0 0.0
    %1448 = vmatpush1.msra.mxu0 0.0
    %1449 = vmatprep.subr.mxu0 0.0
    %1450 = vmatpush1.msra.mxu0 0.0
    %1451 = vmatprep.subr.mxu0 0.0
    %1452 = vmatpush1.msra.mxu0 0.0
    %1453 = vmatprep.subr.mxu0 0.0
    %1454 = vmatpush1.msra.mxu0 0.0
    %1455 = vmatprep.subr.mxu0 0.0
    %1456 = vmatpush1.msra.mxu0 0.0
    %1457 = vmatprep.subr.mxu0 0.0
    %1458 = vmatpush1.msra.mxu0 0.0
    %1459 = vmatprep.subr.mxu0 0.0
    %1460 = vmatpush1.msra.mxu0 0.0
    %1461 = vmatprep.subr.mxu0 0.0
    %1462 = vmatpush1.msra.mxu0 0.0
    %1463 = vmatprep.mubr.f32.mxu0 0.0
    %1464 = vmatmul.mubr.f32.gmra.mrb[0].mxu0 %v1334
    %v1465 = vpop.f32.mrb[0].mxu0
    %v1466 = vadd.f32 0.0, %v1465
    %v1467 = vpop.f32.mrb[0].mxu0
    %v1468 = vadd.f32 0.0, %v1467
    %1469 = vdwg.mxu0
    %1470 = vmatprep.subr.mxu0 %v1338
    %1471 = vmatpush1.msra.mxu0 %v1337
    %1472 = vmatprep.subr.mxu0 %v1342
    %1473 = vmatpush1.msra.mxu0 %v1341
    %1474 = vmatprep.subr.mxu0 %v1346
    %1475 = vmatpush1.msra.mxu0 %v1345
    %1476 = vmatprep.subr.mxu0 %v1350
    %1477 = vmatpush1.msra.mxu0 %v1349
    %1478 = vmatprep.subr.mxu0 %v1354
    %1479 = vmatpush1.msra.mxu0 %v1353
    %1480 = vmatprep.subr.mxu0 %v1358
    %1481 = vmatpush1.msra.mxu0 %v1357
    %1482 = vmatprep.subr.mxu0 %v1362
    %1483 = vmatpush1.msra.mxu0 %v1361
    %1484 = vmatprep.subr.mxu0 %v1366
    %1485 = vmatpush1.msra.mxu0 %v1365
    %1486 = vmatprep.subr.mxu0 %v1370
    %1487 = vmatpush1.msra.mxu0 %v1369
    %1488 = vmatprep.subr.mxu0 %v1374
    %1489 = vmatpush1.msra.mxu0 %v1373
    %1490 = vmatprep.subr.mxu0 %v1378
    %1491 = vmatpush1.msra.mxu0 %v1377
    %1492 = vmatprep.subr.mxu0 %v1382
    %1493 = vmatpush1.msra.mxu0 %v1381
    %1494 = vmatprep.subr.mxu0 %v1386
    %1495 = vmatpush1.msra.mxu0 %v1385
    %1496 = vmatprep.subr.mxu0 %v1390
    %1497 = vmatpush1.msra.mxu0 %v1389
    %1498 = vmatprep.subr.mxu0 %v1394
    %1499 = vmatpush1.msra.mxu0 %v1393
    %1500 = vmatprep.subr.mxu0 %v1398
    %1501 = vmatpush1.msra.mxu0 %v1397
    %1502 = vmatprep.subr.mxu0 0.0
    %1503 = vmatpush1.msra.mxu0 0.0
    %1504 = vmatprep.subr.mxu0 0.0
    %1505 = vmatpush1.msra.mxu0 0.0
    %1506 = vmatprep.subr.mxu0 0.0
    %1507 = vmatpush1.msra.mxu0 0.0
    %1508 = vmatprep.subr.mxu0 0.0
    %1509 = vmatpush1.msra.mxu0 0.0
    %1510 = vmatprep.subr.mxu0 0.0
    %1511 = vmatpush1.msra.mxu0 0.0
    %1512 = vmatprep.subr.mxu0 0.0
    %1513 = vmatpush1.msra.mxu0 0.0
    %1514 = vmatprep.subr.mxu0 0.0
    %1515 = vmatpush1.msra.mxu0 0.0
    %1516 = vmatprep.subr.mxu0 0.0
    %1517 = vmatpush1.msra.mxu0 0.0
    %1518 = vmatprep.subr.mxu0 0.0
    %1519 = vmatpush1.msra.mxu0 0.0
    %1520 = vmatprep.subr.mxu0 0.0
    %1521 = vmatpush1.msra.mxu0 0.0
    %1522 = vmatprep.subr.mxu0 0.0
    %1523 = vmatpush1.msra.mxu0 0.0
    %1524 = vmatprep.subr.mxu0 0.0
    %1525 = vmatpush1.msra.mxu0 0.0
    %1526 = vmatprep.subr.mxu0 0.0
    %1527 = vmatpush1.msra.mxu0 0.0
    %1528 = vmatprep.subr.mxu0 0.0
    %1529 = vmatpush1.msra.mxu0 0.0
    %1530 = vmatprep.subr.mxu0 0.0
    %1531 = vmatpush1.msra.mxu0 0.0
    %1532 = vmatprep.subr.mxu0 0.0
    %1533 = vmatpush1.msra.mxu0 0.0
    %1534 = vmatprep.mubr.f32.mxu0 0.0
    %1535 = vmatmul.mubr.f32.gmra.mrb[0].mxu0 %v1334
    %v1536 = vpop.f32.mrb[0].mxu0
    %v1537 = vadd.f32 0.0, %v1536
    %v1538 = vpop.f32.mrb[0].mxu0
    %v1539 = vadd.f32 0.0, %v1538
    %1540 = vdwg.mxu0
    %v1541 = vadd.f32 %v1330, %v1466
    %v1542 = vadd.f32 %v1331, %v1468
    %v1543 = vadd.f32 %v1332, %v1537
    %v1544 = vadd.f32 %v1333, %v1539
    %v1545 = vld [vmem:[#allocation5] sm:$0xff]
    %v1546 = vxor.u32 %v1541, 2147483648
    %v1547 = vmul.f32 %v1546, 1.442695
    %v1548 = vpow.pop %v1547
    %v1549 = vadd.f32 %v1548, 1.0
    %v1550 = vrcp.pop %v1549
    %v1551 = vmul.f32 1.0, %v1550
    %v1552 = vxor.u32 %v1542, 2147483648
    %v1553 = vmul.f32 %v1552, 1.442695
    %v1554 = vpow.pop %v1553
    %v1555 = vadd.f32 %v1554, 1.0
    %v1556 = vrcp.pop %v1555
    %v1557 = vmul.f32 1.0, %v1556
    %v1558 = vtanh.pop %v1543
    %v1559 = vxor.u32 %v1544, 2147483648
    %v1560 = vmul.f32 %v1559, 1.442695
    %v1561 = vpow.pop %v1560
    %v1562 = vadd.f32 %v1561, 1.0
    %v1563 = vrcp.pop %v1562
    %v1564 = vmul.f32 1.0, %v1563
    %v1565 = vmul.f32 %v1557, %v1545
    %v1566 = vmul.f32 %v1551, %v1558
    %v1567 = vadd.f32 %v1565, %v1566
    %v1568 = vtanh.pop %v1567
    %v1569 = vmul.f32 %v1564, %v1568
    %1570 = vst [vmem:[#allocation4] sm:$0xff] %v1569
    %1571 = vst [vmem:[#allocation5] sm:$0xff] %v1567
    %s1572 = scalar_lea.vmem [#allocation14], 32
    %1573 = vst [vmem:[%s1572] sm:$0xff] %v1569
    %s1574 = smul.u32 5, 4
    %s1575 = smul.addr %s1574, 8
    %s1576 = scalar_lea.vmem [#allocation2], %s1575
    %v1577 = vld [vmem:[%s1576] sm:$0xff]
    %v1578 = vld [vmem:[%s1576 + $0x8] sm:$0xff]
    %v1579 = vld [vmem:[%s1576 + $0x10] sm:$0xff]
    %v1580 = vld [vmem:[%s1576 + $0x18] sm:$0xff]
    %v1581 = vld [vmem:[#allocation4] sm:$0xff]
    %v1582 = vld [vmem:[#allocation8] sm:$0xff]
    %v1583 = vld [vmem:[#allocation8 + $0x8] sm:$0xff]
    %v1584 = vld [vmem:[#allocation8 + $0x10] sm:$0xff]
    %v1585 = vld [vmem:[#allocation8 + $0x18] sm:$0xff]
    %v1586 = vld [vmem:[#allocation8 + $0x20] sm:$0xff]
    %v1587 = vld [vmem:[#allocation8 + $0x28] sm:$0xff]
    %v1588 = vld [vmem:[#allocation8 + $0x30] sm:$0xff]
    %v1589 = vld [vmem:[#allocation8 + $0x38] sm:$0xff]
    %v1590 = vld [vmem:[#allocation8 + $0x40] sm:$0xff]
    %v1591 = vld [vmem:[#allocation8 + $0x48] sm:$0xff]
    %v1592 = vld [vmem:[#allocation8 + $0x50] sm:$0xff]
    %v1593 = vld [vmem:[#allocation8 + $0x58] sm:$0xff]
    %v1594 = vld [vmem:[#allocation8 + $0x60] sm:$0xff]
    %v1595 = vld [vmem:[#allocation8 + $0x68] sm:$0xff]
    %v1596 = vld [vmem:[#allocation8 + $0x70] sm:$0xff]
    %v1597 = vld [vmem:[#allocation8 + $0x78] sm:$0xff]
    %v1598 = vld [vmem:[#allocation8 + $0x80] sm:$0xff]
    %v1599 = vld [vmem:[#allocation8 + $0x88] sm:$0xff]
    %v1600 = vld [vmem:[#allocation8 + $0x90] sm:$0xff]
    %v1601 = vld [vmem:[#allocation8 + $0x98] sm:$0xff]
    %v1602 = vld [vmem:[#allocation8 + $0xa0] sm:$0xff]
    %v1603 = vld [vmem:[#allocation8 + $0xa8] sm:$0xff]
    %v1604 = vld [vmem:[#allocation8 + $0xb0] sm:$0xff]
    %v1605 = vld [vmem:[#allocation8 + $0xb8] sm:$0xff]
    %v1606 = vld [vmem:[#allocation8 + $0xc0] sm:$0xff]
    %v1607 = vld [vmem:[#allocation8 + $0xc8] sm:$0xff]
    %v1608 = vld [vmem:[#allocation8 + $0xd0] sm:$0xff]
    %v1609 = vld [vmem:[#allocation8 + $0xd8] sm:$0xff]
    %v1610 = vld [vmem:[#allocation8 + $0xe0] sm:$0xff]
    %v1611 = vld [vmem:[#allocation8 + $0xe8] sm:$0xff]
    %v1612 = vld [vmem:[#allocation8 + $0xf0] sm:$0xff]
    %v1613 = vld [vmem:[#allocation8 + $0xf8] sm:$0xff]
    %v1614 = vld [vmem:[#allocation8 + $0x100] sm:$0xff]
    %v1615 = vld [vmem:[#allocation8 + $0x108] sm:$0xff]
    %v1616 = vld [vmem:[#allocation8 + $0x110] sm:$0xff]
    %v1617 = vld [vmem:[#allocation8 + $0x118] sm:$0xff]
    %v1618 = vld [vmem:[#allocation8 + $0x120] sm:$0xff]
    %v1619 = vld [vmem:[#allocation8 + $0x128] sm:$0xff]
    %v1620 = vld [vmem:[#allocation8 + $0x130] sm:$0xff]
    %v1621 = vld [vmem:[#allocation8 + $0x138] sm:$0xff]
    %v1622 = vld [vmem:[#allocation8 + $0x140] sm:$0xff]
    %v1623 = vld [vmem:[#allocation8 + $0x148] sm:$0xff]
    %v1624 = vld [vmem:[#allocation8 + $0x150] sm:$0xff]
    %v1625 = vld [vmem:[#allocation8 + $0x158] sm:$0xff]
    %v1626 = vld [vmem:[#allocation8 + $0x160] sm:$0xff]
    %v1627 = vld [vmem:[#allocation8 + $0x168] sm:$0xff]
    %v1628 = vld [vmem:[#allocation8 + $0x170] sm:$0xff]
    %v1629 = vld [vmem:[#allocation8 + $0x178] sm:$0xff]
    %v1630 = vld [vmem:[#allocation8 + $0x180] sm:$0xff]
    %v1631 = vld [vmem:[#allocation8 + $0x188] sm:$0xff]
    %v1632 = vld [vmem:[#allocation8 + $0x190] sm:$0xff]
    %v1633 = vld [vmem:[#allocation8 + $0x198] sm:$0xff]
    %v1634 = vld [vmem:[#allocation8 + $0x1a0] sm:$0xff]
    %v1635 = vld [vmem:[#allocation8 + $0x1a8] sm:$0xff]
    %v1636 = vld [vmem:[#allocation8 + $0x1b0] sm:$0xff]
    %v1637 = vld [vmem:[#allocation8 + $0x1b8] sm:$0xff]
    %v1638 = vld [vmem:[#allocation8 + $0x1c0] sm:$0xff]
    %v1639 = vld [vmem:[#allocation8 + $0x1c8] sm:$0xff]
    %v1640 = vld [vmem:[#allocation8 + $0x1d0] sm:$0xff]
    %v1641 = vld [vmem:[#allocation8 + $0x1d8] sm:$0xff]
    %v1642 = vld [vmem:[#allocation8 + $0x1e0] sm:$0xff]
    %v1643 = vld [vmem:[#allocation8 + $0x1e8] sm:$0xff]
    %v1644 = vld [vmem:[#allocation8 + $0x1f0] sm:$0xff]
    %v1645 = vld [vmem:[#allocation8 + $0x1f8] sm:$0xff]
    %1646 = vmatprep.subr.mxu0 %v1583
    %1647 = vmatpush1.msra.mxu0 %v1582
    %1648 = vmatprep.subr.mxu0 %v1587
    %1649 = vmatpush1.msra.mxu0 %v1586
    %1650 = vmatprep.subr.mxu0 %v1591
    %1651 = vmatpush1.msra.mxu0 %v1590
    %1652 = vmatprep.subr.mxu0 %v1595
    %1653 = vmatpush1.msra.mxu0 %v1594
    %1654 = vmatprep.subr.mxu0 %v1599
    %1655 = vmatpush1.msra.mxu0 %v1598
    %1656 = vmatprep.subr.mxu0 %v1603
    %1657 = vmatpush1.msra.mxu0 %v1602
    %1658 = vmatprep.subr.mxu0 %v1607
    %1659 = vmatpush1.msra.mxu0 %v1606
    %1660 = vmatprep.subr.mxu0 %v1611
    %1661 = vmatpush1.msra.mxu0 %v1610
    %1662 = vmatprep.subr.mxu0 %v1615
    %1663 = vmatpush1.msra.mxu0 %v1614
    %1664 = vmatprep.subr.mxu0 %v1619
    %1665 = vmatpush1.msra.mxu0 %v1618
    %1666 = vmatprep.subr.mxu0 %v1623
    %1667 = vmatpush1.msra.mxu0 %v1622
    %1668 = vmatprep.subr.mxu0 %v1627
    %1669 = vmatpush1.msra.mxu0 %v1626
    %1670 = vmatprep.subr.mxu0 %v1631
    %1671 = vmatpush1.msra.mxu0 %v1630
    %1672 = vmatprep.subr.mxu0 %v1635
    %1673 = vmatpush1.msra.mxu0 %v1634
    %1674 = vmatprep.subr.mxu0 %v1639
    %1675 = vmatpush1.msra.mxu0 %v1638
    %1676 = vmatprep.subr.mxu0 %v1643
    %1677 = vmatpush1.msra.mxu0 %v1642
    %1678 = vmatprep.subr.mxu0 0.0
    %1679 = vmatpush1.msra.mxu0 0.0
    %1680 = vmatprep.subr.mxu0 0.0
    %1681 = vmatpush1.msra.mxu0 0.0
    %1682 = vmatprep.subr.mxu0 0.0
    %1683 = vmatpush1.msra.mxu0 0.0
    %1684 = vmatprep.subr.mxu0 0.0
    %1685 = vmatpush1.msra.mxu0 0.0
    %1686 = vmatprep.subr.mxu0 0.0
    %1687 = vmatpush1.msra.mxu0 0.0
    %1688 = vmatprep.subr.mxu0 0.0
    %1689 = vmatpush1.msra.mxu0 0.0
    %1690 = vmatprep.subr.mxu0 0.0
    %1691 = vmatpush1.msra.mxu0 0.0
    %1692 = vmatprep.subr.mxu0 0.0
    %1693 = vmatpush1.msra.mxu0 0.0
    %1694 = vmatprep.subr.mxu0 0.0
    %1695 = vmatpush1.msra.mxu0 0.0
    %1696 = vmatprep.subr.mxu0 0.0
    %1697 = vmatpush1.msra.mxu0 0.0
    %1698 = vmatprep.subr.mxu0 0.0
    %1699 = vmatpush1.msra.mxu0 0.0
    %1700 = vmatprep.subr.mxu0 0.0
    %1701 = vmatpush1.msra.mxu0 0.0
    %1702 = vmatprep.subr.mxu0 0.0
    %1703 = vmatpush1.msra.mxu0 0.0
    %1704 = vmatprep.subr.mxu0 0.0
    %1705 = vmatpush1.msra.mxu0 0.0
    %1706 = vmatprep.subr.mxu0 0.0
    %1707 = vmatpush1.msra.mxu0 0.0
    %1708 = vmatprep.subr.mxu0 0.0
    %1709 = vmatpush1.msra.mxu0 0.0
    %1710 = vmatprep.mubr.f32.mxu0 0.0
    %1711 = vmatmul.mubr.f32.gmra.mrb[0].mxu0 %v1581
    %v1712 = vpop.f32.mrb[0].mxu0
    %v1713 = vadd.f32 0.0, %v1712
    %v1714 = vpop.f32.mrb[0].mxu0
    %v1715 = vadd.f32 0.0, %v1714
    %1716 = vdwg.mxu0
    %1717 = vmatprep.subr.mxu0 %v1585
    %1718 = vmatpush1.msra.mxu0 %v1584
    %1719 = vmatprep.subr.mxu0 %v1589
    %1720 = vmatpush1.msra.mxu0 %v1588
    %1721 = vmatprep.subr.mxu0 %v1593
    %1722 = vmatpush1.msra.mxu0 %v1592
    %1723 = vmatprep.subr.mxu0 %v1597
    %1724 = vmatpush1.msra.mxu0 %v1596
    %1725 = vmatprep.subr.mxu0 %v1601
    %1726 = vmatpush1.msra.mxu0 %v1600
    %1727 = vmatprep.subr.mxu0 %v1605
    %1728 = vmatpush1.msra.mxu0 %v1604
    %1729 = vmatprep.subr.mxu0 %v1609
    %1730 = vmatpush1.msra.mxu0 %v1608
    %1731 = vmatprep.subr.mxu0 %v1613
    %1732 = vmatpush1.msra.mxu0 %v1612
    %1733 = vmatprep.subr.mxu0 %v1617
    %1734 = vmatpush1.msra.mxu0 %v1616
    %1735 = vmatprep.subr.mxu0 %v1621
    %1736 = vmatpush1.msra.mxu0 %v1620
    %1737 = vmatprep.subr.mxu0 %v1625
    %1738 = vmatpush1.msra.mxu0 %v1624
    %1739 = vmatprep.subr.mxu0 %v1629
    %1740 = vmatpush1.msra.mxu0 %v1628
    %1741 = vmatprep.subr.mxu0 %v1633
    %1742 = vmatpush1.msra.mxu0 %v1632
    %1743 = vmatprep.subr.mxu0 %v1637
    %1744 = vmatpush1.msra.mxu0 %v1636
    %1745 = vmatprep.subr.mxu0 %v1641
    %1746 = vmatpush1.msra.mxu0 %v1640
    %1747 = vmatprep.subr.mxu0 %v1645
    %1748 = vmatpush1.msra.mxu0 %v1644
    %1749 = vmatprep.subr.mxu0 0.0
    %1750 = vmatpush1.msra.mxu0 0.0
    %1751 = vmatprep.subr.mxu0 0.0
    %1752 = vmatpush1.msra.mxu0 0.0
    %1753 = vmatprep.subr.mxu0 0.0
    %1754 = vmatpush1.msra.mxu0 0.0
    %1755 = vmatprep.subr.mxu0 0.0
    %1756 = vmatpush1.msra.mxu0 0.0
    %1757 = vmatprep.subr.mxu0 0.0
    %1758 = vmatpush1.msra.mxu0 0.0
    %1759 = vmatprep.subr.mxu0 0.0
    %1760 = vmatpush1.msra.mxu0 0.0
    %1761 = vmatprep.subr.mxu0 0.0
    %1762 = vmatpush1.msra.mxu0 0.0
    %1763 = vmatprep.subr.mxu0 0.0
    %1764 = vmatpush1.msra.mxu0 0.0
    %1765 = vmatprep.subr.mxu0 0.0
    %1766 = vmatpush1.msra.mxu0 0.0
    %1767 = vmatprep.subr.mxu0 0.0
    %1768 = vmatpush1.msra.mxu0 0.0
    %1769 = vmatprep.subr.mxu0 0.0
    %1770 = vmatpush1.msra.mxu0 0.0
    %1771 = vmatprep.subr.mxu0 0.0
    %1772 = vmatpush1.msra.mxu0 0.0
    %1773 = vmatprep.subr.mxu0 0.0
    %1774 = vmatpush1.msra.mxu0 0.0
    %1775 = vmatprep.subr.mxu0 0.0
    %1776 = vmatpush1.msra.mxu0 0.0
    %1777 = vmatprep.subr.mxu0 0.0
    %1778 = vmatpush1.msra.mxu0 0.0
    %1779 = vmatprep.subr.mxu0 0.0
    %1780 = vmatpush1.msra.mxu0 0.0
    %1781 = vmatprep.mubr.f32.mxu0 0.0
    %1782 = vmatmul.mubr.f32.gmra.mrb[0].mxu0 %v1581
    %v1783 = vpop.f32.mrb[0].mxu0
    %v1784 = vadd.f32 0.0, %v1783
    %v1785 = vpop.f32.mrb[0].mxu0
    %v1786 = vadd.f32 0.0, %v1785
    %1787 = vdwg.mxu0
    %v1788 = vadd.f32 %v1577, %v1713
    %v1789 = vadd.f32 %v1578, %v1715
    %v1790 = vadd.f32 %v1579, %v1784
    %v1791 = vadd.f32 %v1580, %v1786
    %v1792 = vld [vmem:[#allocation5] sm:$0xff]
    %v1793 = vxor.u32 %v1788, 2147483648
    %v1794 = vmul.f32 %v1793, 1.442695
    %v1795 = vpow.pop %v1794
    %v1796 = vadd.f32 %v1795, 1.0
    %v1797 = vrcp.pop %v1796
    %v1798 = vmul.f32 1.0, %v1797
    %v1799 = vxor.u32 %v1789, 2147483648
    %v1800 = vmul.f32 %v1799, 1.442695
    %v1801 = vpow.pop %v1800
    %v1802 = vadd.f32 %v1801, 1.0
    %v1803 = vrcp.pop %v1802
    %v1804 = vmul.f32 1.0, %v1803
    %v1805 = vtanh.pop %v1790
    %v1806 = vxor.u32 %v1791, 2147483648
    %v1807 = vmul.f32 %v1806, 1.442695
    %v1808 = vpow.pop %v1807
    %v1809 = vadd.f32 %v1808, 1.0
    %v1810 = vrcp.pop %v1809
    %v1811 = vmul.f32 1.0, %v1810
    %v1812 = vmul.f32 %v1804, %v1792
    %v1813 = vmul.f32 %v1798, %v1805
    %v1814 = vadd.f32 %v1812, %v1813
    %v1815 = vtanh.pop %v1814
    %v1816 = vmul.f32 %v1811, %v1815
    %1817 = vst [vmem:[#allocation4] sm:$0xff] %v1816
    %1818 = vst [vmem:[#allocation5] sm:$0xff] %v1814
    %s1819 = scalar_lea.vmem [#allocation14], 40
    %1820 = vst [vmem:[%s1819] sm:$0xff] %v1816
    %s1821 = smul.u32 6, 4
    %s1822 = smul.addr %s1821, 8
    %s1823 = scalar_lea.vmem [#allocation2], %s1822
    %v1824 = vld [vmem:[%s1823] sm:$0xff]
    %v1825 = vld [vmem:[%s1823 + $0x8] sm:$0xff]
    %v1826 = vld [vmem:[%s1823 + $0x10] sm:$0xff]
    %v1827 = vld [vmem:[%s1823 + $0x18] sm:$0xff]
    %v1828 = vld [vmem:[#allocation4] sm:$0xff]
    %v1829 = vld [vmem:[#allocation8] sm:$0xff]
    %v1830 = vld [vmem:[#allocation8 + $0x8] sm:$0xff]
    %v1831 = vld [vmem:[#allocation8 + $0x10] sm:$0xff]
    %v1832 = vld [vmem:[#allocation8 + $0x18] sm:$0xff]
    %v1833 = vld [vmem:[#allocation8 + $0x20] sm:$0xff]
    %v1834 = vld [vmem:[#allocation8 + $0x28] sm:$0xff]
    %v1835 = vld [vmem:[#allocation8 + $0x30] sm:$0xff]
    %v1836 = vld [vmem:[#allocation8 + $0x38] sm:$0xff]
    %v1837 = vld [vmem:[#allocation8 + $0x40] sm:$0xff]
    %v1838 = vld [vmem:[#allocation8 + $0x48] sm:$0xff]
    %v1839 = vld [vmem:[#allocation8 + $0x50] sm:$0xff]
    %v1840 = vld [vmem:[#allocation8 + $0x58] sm:$0xff]
    %v1841 = vld [vmem:[#allocation8 + $0x60] sm:$0xff]
    %v1842 = vld [vmem:[#allocation8 + $0x68] sm:$0xff]
    %v1843 = vld [vmem:[#allocation8 + $0x70] sm:$0xff]
    %v1844 = vld [vmem:[#allocation8 + $0x78] sm:$0xff]
    %v1845 = vld [vmem:[#allocation8 + $0x80] sm:$0xff]
    %v1846 = vld [vmem:[#allocation8 + $0x88] sm:$0xff]
    %v1847 = vld [vmem:[#allocation8 + $0x90] sm:$0xff]
    %v1848 = vld [vmem:[#allocation8 + $0x98] sm:$0xff]
    %v1849 = vld [vmem:[#allocation8 + $0xa0] sm:$0xff]
    %v1850 = vld [vmem:[#allocation8 + $0xa8] sm:$0xff]
    %v1851 = vld [vmem:[#allocation8 + $0xb0] sm:$0xff]
    %v1852 = vld [vmem:[#allocation8 + $0xb8] sm:$0xff]
    %v1853 = vld [vmem:[#allocation8 + $0xc0] sm:$0xff]
    %v1854 = vld [vmem:[#allocation8 + $0xc8] sm:$0xff]
    %v1855 = vld [vmem:[#allocation8 + $0xd0] sm:$0xff]
    %v1856 = vld [vmem:[#allocation8 + $0xd8] sm:$0xff]
    %v1857 = vld [vmem:[#allocation8 + $0xe0] sm:$0xff]
    %v1858 = vld [vmem:[#allocation8 + $0xe8] sm:$0xff]
    %v1859 = vld [vmem:[#allocation8 + $0xf0] sm:$0xff]
    %v1860 = vld [vmem:[#allocation8 + $0xf8] sm:$0xff]
    %v1861 = vld [vmem:[#allocation8 + $0x100] sm:$0xff]
    %v1862 = vld [vmem:[#allocation8 + $0x108] sm:$0xff]
    %v1863 = vld [vmem:[#allocation8 + $0x110] sm:$0xff]
    %v1864 = vld [vmem:[#allocation8 + $0x118] sm:$0xff]
    %v1865 = vld [vmem:[#allocation8 + $0x120] sm:$0xff]
    %v1866 = vld [vmem:[#allocation8 + $0x128] sm:$0xff]
    %v1867 = vld [vmem:[#allocation8 + $0x130] sm:$0xff]
    %v1868 = vld [vmem:[#allocation8 + $0x138] sm:$0xff]
    %v1869 = vld [vmem:[#allocation8 + $0x140] sm:$0xff]
    %v1870 = vld [vmem:[#allocation8 + $0x148] sm:$0xff]
    %v1871 = vld [vmem:[#allocation8 + $0x150] sm:$0xff]
    %v1872 = vld [vmem:[#allocation8 + $0x158] sm:$0xff]
    %v1873 = vld [vmem:[#allocation8 + $0x160] sm:$0xff]
    %v1874 = vld [vmem:[#allocation8 + $0x168] sm:$0xff]
    %v1875 = vld [vmem:[#allocation8 + $0x170] sm:$0xff]
    %v1876 = vld [vmem:[#allocation8 + $0x178] sm:$0xff]
    %v1877 = vld [vmem:[#allocation8 + $0x180] sm:$0xff]
    %v1878 = vld [vmem:[#allocation8 + $0x188] sm:$0xff]
    %v1879 = vld [vmem:[#allocation8 + $0x190] sm:$0xff]
    %v1880 = vld [vmem:[#allocation8 + $0x198] sm:$0xff]
    %v1881 = vld [vmem:[#allocation8 + $0x1a0] sm:$0xff]
    %v1882 = vld [vmem:[#allocation8 + $0x1a8] sm:$0xff]
    %v1883 = vld [vmem:[#allocation8 + $0x1b0] sm:$0xff]
    %v1884 = vld [vmem:[#allocation8 + $0x1b8] sm:$0xff]
    %v1885 = vld [vmem:[#allocation8 + $0x1c0] sm:$0xff]
    %v1886 = vld [vmem:[#allocation8 + $0x1c8] sm:$0xff]
    %v1887 = vld [vmem:[#allocation8 + $0x1d0] sm:$0xff]
    %v1888 = vld [vmem:[#allocation8 + $0x1d8] sm:$0xff]
    %v1889 = vld [vmem:[#allocation8 + $0x1e0] sm:$0xff]
    %v1890 = vld [vmem:[#allocation8 + $0x1e8] sm:$0xff]
    %v1891 = vld [vmem:[#allocation8 + $0x1f0] sm:$0xff]
    %v1892 = vld [vmem:[#allocation8 + $0x1f8] sm:$0xff]
    %1893 = vmatprep.subr.mxu0 %v1830
    %1894 = vmatpush1.msra.mxu0 %v1829
    %1895 = vmatprep.subr.mxu0 %v1834
    %1896 = vmatpush1.msra.mxu0 %v1833
    %1897 = vmatprep.subr.mxu0 %v1838
    %1898 = vmatpush1.msra.mxu0 %v1837
    %1899 = vmatprep.subr.mxu0 %v1842
    %1900 = vmatpush1.msra.mxu0 %v1841
    %1901 = vmatprep.subr.mxu0 %v1846
    %1902 = vmatpush1.msra.mxu0 %v1845
    %1903 = vmatprep.subr.mxu0 %v1850
    %1904 = vmatpush1.msra.mxu0 %v1849
    %1905 = vmatprep.subr.mxu0 %v1854
    %1906 = vmatpush1.msra.mxu0 %v1853
    %1907 = vmatprep.subr.mxu0 %v1858
    %1908 = vmatpush1.msra.mxu0 %v1857
    %1909 = vmatprep.subr.mxu0 %v1862
    %1910 = vmatpush1.msra.mxu0 %v1861
    %1911 = vmatprep.subr.mxu0 %v1866
    %1912 = vmatpush1.msra.mxu0 %v1865
    %1913 = vmatprep.subr.mxu0 %v1870
    %1914 = vmatpush1.msra.mxu0 %v1869
    %1915 = vmatprep.subr.mxu0 %v1874
    %1916 = vmatpush1.msra.mxu0 %v1873
    %1917 = vmatprep.subr.mxu0 %v1878
    %1918 = vmatpush1.msra.mxu0 %v1877
    %1919 = vmatprep.subr.mxu0 %v1882
    %1920 = vmatpush1.msra.mxu0 %v1881
    %1921 = vmatprep.subr.mxu0 %v1886
    %1922 = vmatpush1.msra.mxu0 %v1885
    %1923 = vmatprep.subr.mxu0 %v1890
    %1924 = vmatpush1.msra.mxu0 %v1889
    %1925 = vmatprep.subr.mxu0 0.0
    %1926 = vmatpush1.msra.mxu0 0.0
    %1927 = vmatprep.subr.mxu0 0.0
    %1928 = vmatpush1.msra.mxu0 0.0
    %1929 = vmatprep.subr.mxu0 0.0
    %1930 = vmatpush1.msra.mxu0 0.0
    %1931 = vmatprep.subr.mxu0 0.0
    %1932 = vmatpush1.msra.mxu0 0.0
    %1933 = vmatprep.subr.mxu0 0.0
    %1934 = vmatpush1.msra.mxu0 0.0
    %1935 = vmatprep.subr.mxu0 0.0
    %1936 = vmatpush1.msra.mxu0 0.0
    %1937 = vmatprep.subr.mxu0 0.0
    %1938 = vmatpush1.msra.mxu0 0.0
    %1939 = vmatprep.subr.mxu0 0.0
    %1940 = vmatpush1.msra.mxu0 0.0
    %1941 = vmatprep.subr.mxu0 0.0
    %1942 = vmatpush1.msra.mxu0 0.0
    %1943 = vmatprep.subr.mxu0 0.0
    %1944 = vmatpush1.msra.mxu0 0.0
    %1945 = vmatprep.subr.mxu0 0.0
    %1946 = vmatpush1.msra.mxu0 0.0
    %1947 = vmatprep.subr.mxu0 0.0
    %1948 = vmatpush1.msra.mxu0 0.0
    %1949 = vmatprep.subr.mxu0 0.0
    %1950 = vmatpush1.msra.mxu0 0.0
    %1951 = vmatprep.subr.mxu0 0.0
    %1952 = vmatpush1.msra.mxu0 0.0
    %1953 = vmatprep.subr.mxu0 0.0
    %1954 = vmatpush1.msra.mxu0 0.0
    %1955 = vmatprep.subr.mxu0 0.0
    %1956 = vmatpush1.msra.mxu0 0.0
    %1957 = vmatprep.mubr.f32.mxu0 0.0
    %1958 = vmatmul.mubr.f32.gmra.mrb[0].mxu0 %v1828
    %v1959 = vpop.f32.mrb[0].mxu0
    %v1960 = vadd.f32 0.0, %v1959
    %v1961 = vpop.f32.mrb[0].mxu0
    %v1962 = vadd.f32 0.0, %v1961
    %1963 = vdwg.mxu0
    %1964 = vmatprep.subr.mxu0 %v1832
    %1965 = vmatpush1.msra.mxu0 %v1831
    %1966 = vmatprep.subr.mxu0 %v1836
    %1967 = vmatpush1.msra.mxu0 %v1835
    %1968 = vmatprep.subr.mxu0 %v1840
    %1969 = vmatpush1.msra.mxu0 %v1839
    %1970 = vmatprep.subr.mxu0 %v1844
    %1971 = vmatpush1.msra.mxu0 %v1843
    %1972 = vmatprep.subr.mxu0 %v1848
    %1973 = vmatpush1.msra.mxu0 %v1847
    %1974 = vmatprep.subr.mxu0 %v1852
    %1975 = vmatpush1.msra.mxu0 %v1851
    %1976 = vmatprep.subr.mxu0 %v1856
    %1977 = vmatpush1.msra.mxu0 %v1855
    %1978 = vmatprep.subr.mxu0 %v1860
    %1979 = vmatpush1.msra.mxu0 %v1859
    %1980 = vmatprep.subr.mxu0 %v1864
    %1981 = vmatpush1.msra.mxu0 %v1863
    %1982 = vmatprep.subr.mxu0 %v1868
    %1983 = vmatpush1.msra.mxu0 %v1867
    %1984 = vmatprep.subr.mxu0 %v1872
    %1985 = vmatpush1.msra.mxu0 %v1871
    %1986 = vmatprep.subr.mxu0 %v1876
    %1987 = vmatpush1.msra.mxu0 %v1875
    %1988 = vmatprep.subr.mxu0 %v1880
    %1989 = vmatpush1.msra.mxu0 %v1879
    %1990 = vmatprep.subr.mxu0 %v1884
    %1991 = vmatpush1.msra.mxu0 %v1883
    %1992 = vmatprep.subr.mxu0 %v1888
    %1993 = vmatpush1.msra.mxu0 %v1887
    %1994 = vmatprep.subr.mxu0 %v1892
    %1995 = vmatpush1.msra.mxu0 %v1891
    %1996 = vmatprep.subr.mxu0 0.0
    %1997 = vmatpush1.msra.mxu0 0.0
    %1998 = vmatprep.subr.mxu0 0.0
    %1999 = vmatpush1.msra.mxu0 0.0
    %2000 = vmatprep.subr.mxu0 0.0
    %2001 = vmatpush1.msra.mxu0 0.0
    %2002 = vmatprep.subr.mxu0 0.0
    %2003 = vmatpush1.msra.mxu0 0.0
    %2004 = vmatprep.subr.mxu0 0.0
    %2005 = vmatpush1.msra.mxu0 0.0
    %2006 = vmatprep.subr.mxu0 0.0
    %2007 = vmatpush1.msra.mxu0 0.0
    %2008 = vmatprep.subr.mxu0 0.0
    %2009 = vmatpush1.msra.mxu0 0.0
    %2010 = vmatprep.subr.mxu0 0.0
    %2011 = vmatpush1.msra.mxu0 0.0
    %2012 = vmatprep.subr.mxu0 0.0
    %2013 = vmatpush1.msra.mxu0 0.0
    %2014 = vmatprep.subr.mxu0 0.0
    %2015 = vmatpush1.msra.mxu0 0.0
    %2016 = vmatprep.subr.mxu0 0.0
    %2017 = vmatpush1.msra.mxu0 0.0
    %2018 = vmatprep.subr.mxu0 0.0
    %2019 = vmatpush1.msra.mxu0 0.0
    %2020 = vmatprep.subr.mxu0 0.0
    %2021 = vmatpush1.msra.mxu0 0.0
    %2022 = vmatprep.subr.mxu0 0.0
    %2023 = vmatpush1.msra.mxu0 0.0
    %2024 = vmatprep.subr.mxu0 0.0
    %2025 = vmatpush1.msra.mxu0 0.0
    %2026 = vmatprep.subr.mxu0 0.0
    %2027 = vmatpush1.msra.mxu0 0.0
    %2028 = vmatprep.mubr.f32.mxu0 0.0
    %2029 = vmatmul.mubr.f32.gmra.mrb[0].mxu0 %v1828
    %v2030 = vpop.f32.mrb[0].mxu0
    %v2031 = vadd.f32 0.0, %v2030
    %v2032 = vpop.f32.mrb[0].mxu0
    %v2033 = vadd.f32 0.0, %v2032
    %2034 = vdwg.mxu0
    %v2035 = vadd.f32 %v1824, %v1960
    %v2036 = vadd.f32 %v1825, %v1962
    %v2037 = vadd.f32 %v1826, %v2031
    %v2038 = vadd.f32 %v1827, %v2033
    %v2039 = vld [vmem:[#allocation5] sm:$0xff]
    %v2040 = vxor.u32 %v2035, 2147483648
    %v2041 = vmul.f32 %v2040, 1.442695
    %v2042 = vpow.pop %v2041
    %v2043 = vadd.f32 %v2042, 1.0
    %v2044 = vrcp.pop %v2043
    %v2045 = vmul.f32 1.0, %v2044
    %v2046 = vxor.u32 %v2036, 2147483648
    %v2047 = vmul.f32 %v2046, 1.442695
    %v2048 = vpow.pop %v2047
    %v2049 = vadd.f32 %v2048, 1.0
    %v2050 = vrcp.pop %v2049
    %v2051 = vmul.f32 1.0, %v2050
    %v2052 = vtanh.pop %v2037
    %v2053 = vxor.u32 %v2038, 2147483648
    %v2054 = vmul.f32 %v2053, 1.442695
    %v2055 = vpow.pop %v2054
    %v2056 = vadd.f32 %v2055, 1.0
    %v2057 = vrcp.pop %v2056
    %v2058 = vmul.f32 1.0, %v2057
    %v2059 = vmul.f32 %v2051, %v2039
    %v2060 = vmul.f32 %v2045, %v2052
    %v2061 = vadd.f32 %v2059, %v2060
    %v2062 = vtanh.pop %v2061
    %v2063 = vmul.f32 %v2058, %v2062
    %2064 = vst [vmem:[#allocation4] sm:$0xff] %v2063
    %2065 = vst [vmem:[#allocation5] sm:$0xff] %v2061
    %s2066 = scalar_lea.vmem [#allocation14], 48
    %2067 = vst [vmem:[%s2066] sm:$0xff] %v2063
    %s2068 = smul.u32 7, 4
    %s2069 = smul.addr %s2068, 8
    %s2070 = scalar_lea.vmem [#allocation2], %s2069
    %v2071 = vld [vmem:[%s2070] sm:$0xff]
    %v2072 = vld [vmem:[%s2070 + $0x8] sm:$0xff]
    %v2073 = vld [vmem:[%s2070 + $0x10] sm:$0xff]
    %v2074 = vld [vmem:[%s2070 + $0x18] sm:$0xff]
    %v2075 = vld [vmem:[#allocation4] sm:$0xff]
    %v2076 = vld [vmem:[#allocation8] sm:$0xff]
    %v2077 = vld [vmem:[#allocation8 + $0x8] sm:$0xff]
    %v2078 = vld [vmem:[#allocation8 + $0x10] sm:$0xff]
    %v2079 = vld [vmem:[#allocation8 + $0x18] sm:$0xff]
    %v2080 = vld [vmem:[#allocation8 + $0x20] sm:$0xff]
    %v2081 = vld [vmem:[#allocation8 + $0x28] sm:$0xff]
    %v2082 = vld [vmem:[#allocation8 + $0x30] sm:$0xff]
    %v2083 = vld [vmem:[#allocation8 + $0x38] sm:$0xff]
    %v2084 = vld [vmem:[#allocation8 + $0x40] sm:$0xff]
    %v2085 = vld [vmem:[#allocation8 + $0x48] sm:$0xff]
    %v2086 = vld [vmem:[#allocation8 + $0x50] sm:$0xff]
    %v2087 = vld [vmem:[#allocation8 + $0x58] sm:$0xff]
    %v2088 = vld [vmem:[#allocation8 + $0x60] sm:$0xff]
    %v2089 = vld [vmem:[#allocation8 + $0x68] sm:$0xff]
    %v2090 = vld [vmem:[#allocation8 + $0x70] sm:$0xff]
    %v2091 = vld [vmem:[#allocation8 + $0x78] sm:$0xff]
    %v2092 = vld [vmem:[#allocation8 + $0x80] sm:$0xff]
    %v2093 = vld [vmem:[#allocation8 + $0x88] sm:$0xff]
    %v2094 = vld [vmem:[#allocation8 + $0x90] sm:$0xff]
    %v2095 = vld [vmem:[#allocation8 + $0x98] sm:$0xff]
    %v2096 = vld [vmem:[#allocation8 + $0xa0] sm:$0xff]
    %v2097 = vld [vmem:[#allocation8 + $0xa8] sm:$0xff]
    %v2098 = vld [vmem:[#allocation8 + $0xb0] sm:$0xff]
    %v2099 = vld [vmem:[#allocation8 + $0xb8] sm:$0xff]
    %v2100 = vld [vmem:[#allocation8 + $0xc0] sm:$0xff]
    %v2101 = vld [vmem:[#allocation8 + $0xc8] sm:$0xff]
    %v2102 = vld [vmem:[#allocation8 + $0xd0] sm:$0xff]
    %v2103 = vld [vmem:[#allocation8 + $0xd8] sm:$0xff]
    %v2104 = vld [vmem:[#allocation8 + $0xe0] sm:$0xff]
    %v2105 = vld [vmem:[#allocation8 + $0xe8] sm:$0xff]
    %v2106 = vld [vmem:[#allocation8 + $0xf0] sm:$0xff]
    %v2107 = vld [vmem:[#allocation8 + $0xf8] sm:$0xff]
    %v2108 = vld [vmem:[#allocation8 + $0x100] sm:$0xff]
    %v2109 = vld [vmem:[#allocation8 + $0x108] sm:$0xff]
    %v2110 = vld [vmem:[#allocation8 + $0x110] sm:$0xff]
    %v2111 = vld [vmem:[#allocation8 + $0x118] sm:$0xff]
    %v2112 = vld [vmem:[#allocation8 + $0x120] sm:$0xff]
    %v2113 = vld [vmem:[#allocation8 + $0x128] sm:$0xff]
    %v2114 = vld [vmem:[#allocation8 + $0x130] sm:$0xff]
    %v2115 = vld [vmem:[#allocation8 + $0x138] sm:$0xff]
    %v2116 = vld [vmem:[#allocation8 + $0x140] sm:$0xff]
    %v2117 = vld [vmem:[#allocation8 + $0x148] sm:$0xff]
    %v2118 = vld [vmem:[#allocation8 + $0x150] sm:$0xff]
    %v2119 = vld [vmem:[#allocation8 + $0x158] sm:$0xff]
    %v2120 = vld [vmem:[#allocation8 + $0x160] sm:$0xff]
    %v2121 = vld [vmem:[#allocation8 + $0x168] sm:$0xff]
    %v2122 = vld [vmem:[#allocation8 + $0x170] sm:$0xff]
    %v2123 = vld [vmem:[#allocation8 + $0x178] sm:$0xff]
    %v2124 = vld [vmem:[#allocation8 + $0x180] sm:$0xff]
    %v2125 = vld [vmem:[#allocation8 + $0x188] sm:$0xff]
    %v2126 = vld [vmem:[#allocation8 + $0x190] sm:$0xff]
    %v2127 = vld [vmem:[#allocation8 + $0x198] sm:$0xff]
    %v2128 = vld [vmem:[#allocation8 + $0x1a0] sm:$0xff]
    %v2129 = vld [vmem:[#allocation8 + $0x1a8] sm:$0xff]
    %v2130 = vld [vmem:[#allocation8 + $0x1b0] sm:$0xff]
    %v2131 = vld [vmem:[#allocation8 + $0x1b8] sm:$0xff]
    %v2132 = vld [vmem:[#allocation8 + $0x1c0] sm:$0xff]
    %v2133 = vld [vmem:[#allocation8 + $0x1c8] sm:$0xff]
    %v2134 = vld [vmem:[#allocation8 + $0x1d0] sm:$0xff]
    %v2135 = vld [vmem:[#allocation8 + $0x1d8] sm:$0xff]
    %v2136 = vld [vmem:[#allocation8 + $0x1e0] sm:$0xff]
    %v2137 = vld [vmem:[#allocation8 + $0x1e8] sm:$0xff]
    %v2138 = vld [vmem:[#allocation8 + $0x1f0] sm:$0xff]
    %v2139 = vld [vmem:[#allocation8 + $0x1f8] sm:$0xff]
    %2140 = vmatprep.subr.mxu0 %v2077
    %2141 = vmatpush1.msra.mxu0 %v2076
    %2142 = vmatprep.subr.mxu0 %v2081
    %2143 = vmatpush1.msra.mxu0 %v2080
    %2144 = vmatprep.subr.mxu0 %v2085
    %2145 = vmatpush1.msra.mxu0 %v2084
    %2146 = vmatprep.subr.mxu0 %v2089
    %2147 = vmatpush1.msra.mxu0 %v2088
    %2148 = vmatprep.subr.mxu0 %v2093
    %2149 = vmatpush1.msra.mxu0 %v2092
    %2150 = vmatprep.subr.mxu0 %v2097
    %2151 = vmatpush1.msra.mxu0 %v2096
    %2152 = vmatprep.subr.mxu0 %v2101
    %2153 = vmatpush1.msra.mxu0 %v2100
    %2154 = vmatprep.subr.mxu0 %v2105
    %2155 = vmatpush1.msra.mxu0 %v2104
    %2156 = vmatprep.subr.mxu0 %v2109
    %2157 = vmatpush1.msra.mxu0 %v2108
    %2158 = vmatprep.subr.mxu0 %v2113
    %2159 = vmatpush1.msra.mxu0 %v2112
    %2160 = vmatprep.subr.mxu0 %v2117
    %2161 = vmatpush1.msra.mxu0 %v2116
    %2162 = vmatprep.subr.mxu0 %v2121
    %2163 = vmatpush1.msra.mxu0 %v2120
    %2164 = vmatprep.subr.mxu0 %v2125
    %2165 = vmatpush1.msra.mxu0 %v2124
    %2166 = vmatprep.subr.mxu0 %v2129
    %2167 = vmatpush1.msra.mxu0 %v2128
    %2168 = vmatprep.subr.mxu0 %v2133
    %2169 = vmatpush1.msra.mxu0 %v2132
    %2170 = vmatprep.subr.mxu0 %v2137
    %2171 = vmatpush1.msra.mxu0 %v2136
    %2172 = vmatprep.subr.mxu0 0.0
    %2173 = vmatpush1.msra.mxu0 0.0
    %2174 = vmatprep.subr.mxu0 0.0
    %2175 = vmatpush1.msra.mxu0 0.0
    %2176 = vmatprep.subr.mxu0 0.0
    %2177 = vmatpush1.msra.mxu0 0.0
    %2178 = vmatprep.subr.mxu0 0.0
    %2179 = vmatpush1.msra.mxu0 0.0
    %2180 = vmatprep.subr.mxu0 0.0
    %2181 = vmatpush1.msra.mxu0 0.0
    %2182 = vmatprep.subr.mxu0 0.0
    %2183 = vmatpush1.msra.mxu0 0.0
    %2184 = vmatprep.subr.mxu0 0.0
    %2185 = vmatpush1.msra.mxu0 0.0
    %2186 = vmatprep.subr.mxu0 0.0
    %2187 = vmatpush1.msra.mxu0 0.0
    %2188 = vmatprep.subr.mxu0 0.0
    %2189 = vmatpush1.msra.mxu0 0.0
    %2190 = vmatprep.subr.mxu0 0.0
    %2191 = vmatpush1.msra.mxu0 0.0
    %2192 = vmatprep.subr.mxu0 0.0
    %2193 = vmatpush1.msra.mxu0 0.0
    %2194 = vmatprep.subr.mxu0 0.0
    %2195 = vmatpush1.msra.mxu0 0.0
    %2196 = vmatprep.subr.mxu0 0.0
    %2197 = vmatpush1.msra.mxu0 0.0
    %2198 = vmatprep.subr.mxu0 0.0
    %2199 = vmatpush1.msra.mxu0 0.0
    %2200 = vmatprep.subr.mxu0 0.0
    %2201 = vmatpush1.msra.mxu0 0.0
    %2202 = vmatprep.subr.mxu0 0.0
    %2203 = vmatpush1.msra.mxu0 0.0
    %2204 = vmatprep.mubr.f32.mxu0 0.0
    %2205 = vmatmul.mubr.f32.gmra.mrb[0].mxu0 %v2075
    %v2206 = vpop.f32.mrb[0].mxu0
    %v2207 = vadd.f32 0.0, %v2206
    %v2208 = vpop.f32.mrb[0].mxu0
    %v2209 = vadd.f32 0.0, %v2208
    %2210 = vdwg.mxu0
    %2211 = vmatprep.subr.mxu0 %v2079
    %2212 = vmatpush1.msra.mxu0 %v2078
    %2213 = vmatprep.subr.mxu0 %v2083
    %2214 = vmatpush1.msra.mxu0 %v2082
    %2215 = vmatprep.subr.mxu0 %v2087
    %2216 = vmatpush1.msra.mxu0 %v2086
    %2217 = vmatprep.subr.mxu0 %v2091
    %2218 = vmatpush1.msra.mxu0 %v2090
    %2219 = vmatprep.subr.mxu0 %v2095
    %2220 = vmatpush1.msra.mxu0 %v2094
    %2221 = vmatprep.subr.mxu0 %v2099
    %2222 = vmatpush1.msra.mxu0 %v2098
    %2223 = vmatprep.subr.mxu0 %v2103
    %2224 = vmatpush1.msra.mxu0 %v2102
    %2225 = vmatprep.subr.mxu0 %v2107
    %2226 = vmatpush1.msra.mxu0 %v2106
    %2227 = vmatprep.subr.mxu0 %v2111
    %2228 = vmatpush1.msra.mxu0 %v2110
    %2229 = vmatprep.subr.mxu0 %v2115
    %2230 = vmatpush1.msra.mxu0 %v2114
    %2231 = vmatprep.subr.mxu0 %v2119
    %2232 = vmatpush1.msra.mxu0 %v2118
    %2233 = vmatprep.subr.mxu0 %v2123
    %2234 = vmatpush1.msra.mxu0 %v2122
    %2235 = vmatprep.subr.mxu0 %v2127
    %2236 = vmatpush1.msra.mxu0 %v2126
    %2237 = vmatprep.subr.mxu0 %v2131
    %2238 = vmatpush1.msra.mxu0 %v2130
    %2239 = vmatprep.subr.mxu0 %v2135
    %2240 = vmatpush1.msra.mxu0 %v2134
    %2241 = vmatprep.subr.mxu0 %v2139
    %2242 = vmatpush1.msra.mxu0 %v2138
    %2243 = vmatprep.subr.mxu0 0.0
    %2244 = vmatpush1.msra.mxu0 0.0
    %2245 = vmatprep.subr.mxu0 0.0
    %2246 = vmatpush1.msra.mxu0 0.0
    %2247 = vmatprep.subr.mxu0 0.0
    %2248 = vmatpush1.msra.mxu0 0.0
    %2249 = vmatprep.subr.mxu0 0.0
    %2250 = vmatpush1.msra.mxu0 0.0
    %2251 = vmatprep.subr.mxu0 0.0
    %2252 = vmatpush1.msra.mxu0 0.0
    %2253 = vmatprep.subr.mxu0 0.0
    %2254 = vmatpush1.msra.mxu0 0.0
    %2255 = vmatprep.subr.mxu0 0.0
    %2256 = vmatpush1.msra.mxu0 0.0
    %2257 = vmatprep.subr.mxu0 0.0
    %2258 = vmatpush1.msra.mxu0 0.0
    %2259 = vmatprep.subr.mxu0 0.0
    %2260 = vmatpush1.msra.mxu0 0.0
    %2261 = vmatprep.subr.mxu0 0.0
    %2262 = vmatpush1.msra.mxu0 0.0
    %2263 = vmatprep.subr.mxu0 0.0
    %2264 = vmatpush1.msra.mxu0 0.0
    %2265 = vmatprep.subr.mxu0 0.0
    %2266 = vmatpush1.msra.mxu0 0.0
    %2267 = vmatprep.subr.mxu0 0.0
    %2268 = vmatpush1.msra.mxu0 0.0
    %2269 = vmatprep.subr.mxu0 0.0
    %2270 = vmatpush1.msra.mxu0 0.0
    %2271 = vmatprep.subr.mxu0 0.0
    %2272 = vmatpush1.msra.mxu0 0.0
    %2273 = vmatprep.subr.mxu0 0.0
    %2274 = vmatpush1.msra.mxu0 0.0
    %2275 = vmatprep.mubr.f32.mxu0 0.0
    %2276 = vmatmul.mubr.f32.gmra.mrb[0].mxu0 %v2075
    %v2277 = vpop.f32.mrb[0].mxu0
    %v2278 = vadd.f32 0.0, %v2277
    %v2279 = vpop.f32.mrb[0].mxu0
    %v2280 = vadd.f32 0.0, %v2279
    %2281 = vdwg.mxu0
    %v2282 = vadd.f32 %v2071, %v2207
    %v2283 = vadd.f32 %v2072, %v2209
    %v2284 = vadd.f32 %v2073, %v2278
    %v2285 = vadd.f32 %v2074, %v2280
    %v2286 = vld [vmem:[#allocation5] sm:$0xff]
    %v2287 = vxor.u32 %v2282, 2147483648
    %v2288 = vmul.f32 %v2287, 1.442695
    %v2289 = vpow.pop %v2288
    %v2290 = vadd.f32 %v2289, 1.0
    %v2291 = vrcp.pop %v2290
    %v2292 = vmul.f32 1.0, %v2291
    %v2293 = vxor.u32 %v2283, 2147483648
    %v2294 = vmul.f32 %v2293, 1.442695
    %v2295 = vpow.pop %v2294
    %v2296 = vadd.f32 %v2295, 1.0
    %v2297 = vrcp.pop %v2296
    %v2298 = vmul.f32 1.0, %v2297
    %v2299 = vtanh.pop %v2284
    %v2300 = vxor.u32 %v2285, 2147483648
    %v2301 = vmul.f32 %v2300, 1.442695
    %v2302 = vpow.pop %v2301
    %v2303 = vadd.f32 %v2302, 1.0
    %v2304 = vrcp.pop %v2303
    %v2305 = vmul.f32 1.0, %v2304
    %v2306 = vmul.f32 %v2298, %v2286
    %v2307 = vmul.f32 %v2292, %v2299
    %v2308 = vadd.f32 %v2306, %v2307
    %v2309 = vtanh.pop %v2308
    %v2310 = vmul.f32 %v2305, %v2309
    %2311 = vst [vmem:[#allocation4] sm:$0xff] %v2310
    %2312 = vst [vmem:[#allocation5] sm:$0xff] %v2308
    %s2313 = scalar_lea.vmem [#allocation14], 56
    %2314 = vst [vmem:[%s2313] sm:$0xff] %v2310
    %v2315 = vld [vmem:[#allocation4] sm:$0xff]
    %2316 = vst [vmem:[#allocation15] sm:$0xff] %v2315
    %v2317 = vld [vmem:[#allocation5] sm:$0xff]
    %2318 = vst [vmem:[#allocation17] sm:$0xff] %v2317
    %v2319 = vld [vmem:[#allocation14] sm:$0xff]
    %v2320 = vld [vmem:[#allocation14 + $0x8] sm:$0xff]
    %v2321 = vld [vmem:[#allocation14 + $0x10] sm:$0xff]
    %v2322 = vld [vmem:[#allocation14 + $0x18] sm:$0xff]
    %v2323 = vld [vmem:[#allocation14 + $0x20] sm:$0xff]
    %v2324 = vld [vmem:[#allocation14 + $0x28] sm:$0xff]
    %v2325 = vld [vmem:[#allocation14 + $0x30] sm:$0xff]
    %v2326 = vld [vmem:[#allocation14 + $0x38] sm:$0xff]
    %v2327 = vpack.c.bf16 %v2320, %v2319
    %v2328 = vpack.c.bf16 %v2322, %v2321
    %v2329 = vpack.c.bf16 %v2324, %v2323
    %v2330 = vpack.c.bf16 %v2326, %v2325
    %v2331 = vld [vmem:[#allocation11] sm:$0xff]
    %v2332 = vld [vmem:[#allocation11 + $0x8] sm:$0xff]
    %v2333 = vld [vmem:[#allocation11 + $0x10] sm:$0xff]
    %v2334 = vld [vmem:[#allocation11 + $0x18] sm:$0xff]
    %v2335 = vld [vmem:[#allocation11 + $0x20] sm:$0xff]
    %v2336 = vld [vmem:[#allocation11 + $0x28] sm:$0xff]
    %v2337 = vld [vmem:[#allocation11 + $0x30] sm:$0xff]
    %v2338 = vld [vmem:[#allocation11 + $0x38] sm:$0xff]
    %v2339 = vld [vmem:[#allocation11 + $0x40] sm:$0xff]
    %v2340 = vld [vmem:[#allocation11 + $0x48] sm:$0xff]
    %v2341 = vld [vmem:[#allocation11 + $0x50] sm:$0xff]
    %v2342 = vld [vmem:[#allocation11 + $0x58] sm:$0xff]
    %v2343 = vld [vmem:[#allocation11 + $0x60] sm:$0xff]
    %v2344 = vld [vmem:[#allocation11 + $0x68] sm:$0xff]
    %v2345 = vld [vmem:[#allocation11 + $0x70] sm:$0xff]
    %v2346 = vld [vmem:[#allocation11 + $0x78] sm:$0xff]
    %v2347 = vld [vmem:[#allocation11 + $0x80] sm:$0xff]
    %v2348 = vld [vmem:[#allocation11 + $0x88] sm:$0xff]
    %v2349 = vld [vmem:[#allocation11 + $0x90] sm:$0xff]
    %v2350 = vld [vmem:[#allocation11 + $0x98] sm:$0xff]
    %v2351 = vld [vmem:[#allocation11 + $0xa0] sm:$0xff]
    %v2352 = vld [vmem:[#allocation11 + $0xa8] sm:$0xff]
    %v2353 = vld [vmem:[#allocation11 + $0xb0] sm:$0xff]
    %v2354 = vld [vmem:[#allocation11 + $0xb8] sm:$0xff]
    %v2355 = vld [vmem:[#allocation11 + $0xc0] sm:$0xff]
    %v2356 = vld [vmem:[#allocation11 + $0xc8] sm:$0xff]
    %v2357 = vld [vmem:[#allocation11 + $0xd0] sm:$0xff]
    %v2358 = vld [vmem:[#allocation11 + $0xd8] sm:$0xff]
    %v2359 = vld [vmem:[#allocation11 + $0xe0] sm:$0xff]
    %v2360 = vld [vmem:[#allocation11 + $0xe8] sm:$0xff]
    %v2361 = vld [vmem:[#allocation11 + $0xf0] sm:$0xff]
    %v2362 = vld [vmem:[#allocation11 + $0xf8] sm:$0xff]
    %v2363 = vld [vmem:[%s6] sm:$0xf]
    %v2365 = vlaneseq
    %v2366 = vshrl.u32 %v2365, 7
    %v2367 = vsub.s32 0, %v2366
    %v2368 = vrot.slane %v2363, %v2367
    %v2369 = vlaneseq
    %v2370 = vshrl.u32 %v2369, 7
    %v2371 = vsub.s32 1, %v2370
    %v2372 = vrot.slane %v2363, %v2371
    %v2373 = vlaneseq
    %v2374 = vshrl.u32 %v2373, 7
    %v2375 = vsub.s32 2, %v2374
    %v2376 = vrot.slane %v2363, %v2375
    %v2377 = vlaneseq
    %v2378 = vshrl.u32 %v2377, 7
    %v2379 = vsub.s32 3, %v2378
    %v2380 = vrot.slane %v2363, %v2379
    %v2417 = vunpack.c.l.b16 %v2331
    %v2418 = vunpack.c.h.b16 %v2331
    %v2419 = vunpack.c.l.b16 %v2332
    %v2420 = vunpack.c.h.b16 %v2332
    %v2421 = vunpack.c.l.b16 %v2333
    %v2422 = vunpack.c.h.b16 %v2333
    %v2423 = vunpack.c.l.b16 %v2334
    %v2424 = vunpack.c.h.b16 %v2334
    %v2425 = vunpack.c.l.b16 %v2335
    %v2426 = vunpack.c.h.b16 %v2335
    %v2427 = vunpack.c.l.b16 %v2336
    %v2428 = vunpack.c.h.b16 %v2336
    %v2429 = vunpack.c.l.b16 %v2337
    %v2430 = vunpack.c.h.b16 %v2337
    %v2431 = vunpack.c.l.b16 %v2338
    %v2432 = vunpack.c.h.b16 %v2338
    %v2433 = vunpack.c.l.b16 %v2339
    %v2434 = vunpack.c.h.b16 %v2339
    %v2435 = vunpack.c.l.b16 %v2340
    %v2436 = vunpack.c.h.b16 %v2340
    %v2437 = vunpack.c.l.b16 %v2341
    %v2438 = vunpack.c.h.b16 %v2341
    %v2439 = vunpack.c.l.b16 %v2342
    %v2440 = vunpack.c.h.b16 %v2342
    %v2441 = vunpack.c.l.b16 %v2343
    %v2442 = vunpack.c.h.b16 %v2343
    %v2443 = vunpack.c.l.b16 %v2344
    %v2444 = vunpack.c.h.b16 %v2344
    %v2445 = vunpack.c.l.b16 %v2345
    %v2446 = vunpack.c.h.b16 %v2345
    %v2447 = vunpack.c.l.b16 %v2346
    %v2448 = vunpack.c.h.b16 %v2346
    %v2449 = vunpack.c.l.b16 %v2347
    %v2450 = vunpack.c.h.b16 %v2347
    %v2451 = vunpack.c.l.b16 %v2348
    %v2452 = vunpack.c.h.b16 %v2348
    %v2453 = vunpack.c.l.b16 %v2349
    %v2454 = vunpack.c.h.b16 %v2349
    %v2455 = vunpack.c.l.b16 %v2350
    %v2456 = vunpack.c.h.b16 %v2350
    %v2457 = vunpack.c.l.b16 %v2351
    %v2458 = vunpack.c.h.b16 %v2351
    %v2459 = vunpack.c.l.b16 %v2352
    %v2460 = vunpack.c.h.b16 %v2352
    %v2461 = vunpack.c.l.b16 %v2353
    %v2462 = vunpack.c.h.b16 %v2353
    %v2463 = vunpack.c.l.b16 %v2354
    %v2464 = vunpack.c.h.b16 %v2354
    %v2465 = vunpack.c.l.b16 %v2355
    %v2466 = vunpack.c.h.b16 %v2355
    %v2467 = vunpack.c.l.b16 %v2356
    %v2468 = vunpack.c.h.b16 %v2356
    %v2469 = vunpack.c.l.b16 %v2357
    %v2470 = vunpack.c.h.b16 %v2357
    %v2471 = vunpack.c.l.b16 %v2358
    %v2472 = vunpack.c.h.b16 %v2358
    %v2473 = vunpack.c.l.b16 %v2359
    %v2474 = vunpack.c.h.b16 %v2359
    %v2475 = vunpack.c.l.b16 %v2360
    %v2476 = vunpack.c.h.b16 %v2360
    %v2477 = vunpack.c.l.b16 %v2361
    %v2478 = vunpack.c.h.b16 %v2361
    %v2479 = vunpack.c.l.b16 %v2362
    %v2480 = vunpack.c.h.b16 %v2362
    %v2481 = vpack.c.b16 %v2421, %v2417
    %v2482 = vpack.c.b16 %v2422, %v2418
    %v2483 = vpack.c.b16 %v2423, %v2419
    %v2484 = vpack.c.b16 %v2424, %v2420
    %v2485 = vpack.c.b16 %v2429, %v2425
    %v2486 = vpack.c.b16 %v2430, %v2426
    %v2487 = vpack.c.b16 %v2431, %v2427
    %v2488 = vpack.c.b16 %v2432, %v2428
    %v2489 = vpack.c.b16 %v2437, %v2433
    %v2490 = vpack.c.b16 %v2438, %v2434
    %v2491 = vpack.c.b16 %v2439, %v2435
    %v2492 = vpack.c.b16 %v2440, %v2436
    %v2493 = vpack.c.b16 %v2445, %v2441
    %v2494 = vpack.c.b16 %v2446, %v2442
    %v2495 = vpack.c.b16 %v2447, %v2443
    %v2496 = vpack.c.b16 %v2448, %v2444
    %v2497 = vpack.c.b16 %v2453, %v2449
    %v2498 = vpack.c.b16 %v2454, %v2450
    %v2499 = vpack.c.b16 %v2455, %v2451
    %v2500 = vpack.c.b16 %v2456, %v2452
    %v2501 = vpack.c.b16 %v2461, %v2457
    %v2502 = vpack.c.b16 %v2462, %v2458
    %v2503 = vpack.c.b16 %v2463, %v2459
    %v2504 = vpack.c.b16 %v2464, %v2460
    %v2505 = vpack.c.b16 %v2469, %v2465
    %v2506 = vpack.c.b16 %v2470, %v2466
    %v2507 = vpack.c.b16 %v2471, %v2467
    %v2508 = vpack.c.b16 %v2472, %v2468
    %v2509 = vpack.c.b16 %v2477, %v2473
    %v2510 = vpack.c.b16 %v2478, %v2474
    %v2511 = vpack.c.b16 %v2479, %v2475
    %v2512 = vpack.c.b16 %v2480, %v2476
    %2545 = vmatprep.subr.bf16.mxu0 %v2482
    %2546 = vmatpush1.bf16.msra.mxu0 %v2481
    %2547 = vmatprep.subr.bf16.mxu0 %v2486
    %2548 = vmatpush1.bf16.msra.mxu0 %v2485
    %2549 = vmatprep.subr.bf16.mxu0 %v2490
    %2550 = vmatpush1.bf16.msra.mxu0 %v2489
    %2551 = vmatprep.subr.bf16.mxu0 %v2494
    %2552 = vmatpush1.bf16.msra.mxu0 %v2493
    %2553 = vmatprep.subr.bf16.mxu0 %v2498
    %2554 = vmatpush1.bf16.msra.mxu0 %v2497
    %2555 = vmatprep.subr.bf16.mxu0 %v2502
    %2556 = vmatpush1.bf16.msra.mxu0 %v2501
    %2557 = vmatprep.subr.bf16.mxu0 %v2506
    %2558 = vmatpush1.bf16.msra.mxu0 %v2505
    %2559 = vmatprep.subr.bf16.mxu0 %v2510
    %2560 = vmatpush1.bf16.msra.mxu0 %v2509
    %2561 = vmatprep.subr.bf16.mxu0 0
    %2562 = vmatpush1.bf16.msra.mxu0 0
    %2563 = vmatprep.subr.bf16.mxu0 0
    %2564 = vmatpush1.bf16.msra.mxu0 0
    %2565 = vmatprep.subr.bf16.mxu0 0
    %2566 = vmatpush1.bf16.msra.mxu0 0
    %2567 = vmatprep.subr.bf16.mxu0 0
    %2568 = vmatpush1.bf16.msra.mxu0 0
    %2569 = vmatprep.subr.bf16.mxu0 0
    %2570 = vmatpush1.bf16.msra.mxu0 0
    %2571 = vmatprep.subr.bf16.mxu0 0
    %2572 = vmatpush1.bf16.msra.mxu0 0
    %2573 = vmatprep.subr.bf16.mxu0 0
    %2574 = vmatpush1.bf16.msra.mxu0 0
    %2575 = vmatprep.subr.bf16.mxu0 0
    %2576 = vmatpush1.bf16.msra.mxu0 0
    %2577 = vmatprep.mubr.bf16.mxu0 0
    %2578 = vmatmul.mubr.bf16.gmra.mrb[0].mxu0 %v2327
    %v2579 = vpop.f32.mrb[0].mxu0
    %v2580 = vadd.f32 %v2368, %v2579
    %v2581 = vpop.f32.mrb[0].mxu0
    %v2582 = vadd.f32 %v2372, %v2581
    %v2583 = vpop.f32.mrb[0].mxu0
    %v2584 = vadd.f32 %v2368, %v2583
    %v2585 = vpop.f32.mrb[0].mxu0
    %v2586 = vadd.f32 %v2372, %v2585
    %2587 = vmatprep.mubr.bf16.mxu0 0
    %2588 = vmatmul.mubr.bf16.gmra.mrb[0].mxu0 %v2328
    %v2589 = vpop.f32.mrb[0].mxu0
    %v2590 = vadd.f32 %v2368, %v2589
    %v2591 = vpop.f32.mrb[0].mxu0
    %v2592 = vadd.f32 %v2372, %v2591
    %v2593 = vpop.f32.mrb[0].mxu0
    %v2594 = vadd.f32 %v2368, %v2593
    %v2595 = vpop.f32.mrb[0].mxu0
    %v2596 = vadd.f32 %v2372, %v2595
    %2597 = vmatprep.mubr.bf16.mxu0 0
    %2598 = vmatmul.mubr.bf16.gmra.mrb[0].mxu0 %v2329
    %v2599 = vpop.f32.mrb[0].mxu0
    %v2600 = vadd.f32 %v2368, %v2599
    %v2601 = vpop.f32.mrb[0].mxu0
    %v2602 = vadd.f32 %v2372, %v2601
    %v2603 = vpop.f32.mrb[0].mxu0
    %v2604 = vadd.f32 %v2368, %v2603
    %v2605 = vpop.f32.mrb[0].mxu0
    %v2606 = vadd.f32 %v2372, %v2605
    %2607 = vmatprep.mubr.bf16.mxu0 0
    %2608 = vmatmul.mubr.bf16.gmra.mrb[0].mxu0 %v2330
    %v2609 = vpop.f32.mrb[0].mxu0
    %v2610 = vadd.f32 %v2368, %v2609
    %v2611 = vpop.f32.mrb[0].mxu0
    %v2612 = vadd.f32 %v2372, %v2611
    %v2613 = vpop.f32.mrb[0].mxu0
    %v2614 = vadd.f32 %v2368, %v2613
    %v2615 = vpop.f32.mrb[0].mxu0
    %v2616 = vadd.f32 %v2372, %v2615
    %2617 = vdwg.mxu0
    %2618 = vmatprep.subr.bf16.mxu0 %v2484
    %2619 = vmatpush1.bf16.msra.mxu0 %v2483
    %2620 = vmatprep.subr.bf16.mxu0 %v2488
    %2621 = vmatpush1.bf16.msra.mxu0 %v2487
    %2622 = vmatprep.subr.bf16.mxu0 %v2492
    %2623 = vmatpush1.bf16.msra.mxu0 %v2491
    %2624 = vmatprep.subr.bf16.mxu0 %v2496
    %2625 = vmatpush1.bf16.msra.mxu0 %v2495
    %2626 = vmatprep.subr.bf16.mxu0 %v2500
    %2627 = vmatpush1.bf16.msra.mxu0 %v2499
    %2628 = vmatprep.subr.bf16.mxu0 %v2504
    %2629 = vmatpush1.bf16.msra.mxu0 %v2503
    %2630 = vmatprep.subr.bf16.mxu0 %v2508
    %2631 = vmatpush1.bf16.msra.mxu0 %v2507
    %2632 = vmatprep.subr.bf16.mxu0 %v2512
    %2633 = vmatpush1.bf16.msra.mxu0 %v2511
    %2634 = vmatprep.subr.bf16.mxu0 0
    %2635 = vmatpush1.bf16.msra.mxu0 0
    %2636 = vmatprep.subr.bf16.mxu0 0
    %2637 = vmatpush1.bf16.msra.mxu0 0
    %2638 = vmatprep.subr.bf16.mxu0 0
    %2639 = vmatpush1.bf16.msra.mxu0 0
    %2640 = vmatprep.subr.bf16.mxu0 0
    %2641 = vmatpush1.bf16.msra.mxu0 0
    %2642 = vmatprep.subr.bf16.mxu0 0
    %2643 = vmatpush1.bf16.msra.mxu0 0
    %2644 = vmatprep.subr.bf16.mxu0 0
    %2645 = vmatpush1.bf16.msra.mxu0 0
    %2646 = vmatprep.subr.bf16.mxu0 0
    %2647 = vmatpush1.bf16.msra.mxu0 0
    %2648 = vmatprep.subr.bf16.mxu0 0
    %2649 = vmatpush1.bf16.msra.mxu0 0
    %2650 = vmatprep.mubr.bf16.mxu0 0
    %2651 = vmatmul.mubr.bf16.gmra.mrb[0].mxu0 %v2327
    %v2652 = vpop.f32.mrb[0].mxu0
    %v2653 = vadd.f32 %v2376, %v2652
    %v2654 = vpop.f32.mrb[0].mxu0
    %v2655 = vadd.f32 %v2380, %v2654
    %v2656 = vpop.f32.mrb[0].mxu0
    %v2657 = vadd.f32 %v2376, %v2656
    %v2658 = vpop.f32.mrb[0].mxu0
    %v2659 = vadd.f32 %v2380, %v2658
    %2660 = vmatprep.mubr.bf16.mxu0 0
    %2661 = vmatmul.mubr.bf16.gmra.mrb[0].mxu0 %v2328
    %v2662 = vpop.f32.mrb[0].mxu0
    %v2663 = vadd.f32 %v2376, %v2662
    %v2664 = vpop.f32.mrb[0].mxu0
    %v2665 = vadd.f32 %v2380, %v2664
    %v2666 = vpop.f32.mrb[0].mxu0
    %v2667 = vadd.f32 %v2376, %v2666
    %v2668 = vpop.f32.mrb[0].mxu0
    %v2669 = vadd.f32 %v2380, %v2668
    %2670 = vmatprep.mubr.bf16.mxu0 0
    %2671 = vmatmul.mubr.bf16.gmra.mrb[0].mxu0 %v2329
    %v2672 = vpop.f32.mrb[0].mxu0
    %v2673 = vadd.f32 %v2376, %v2672
    %v2674 = vpop.f32.mrb[0].mxu0
    %v2675 = vadd.f32 %v2380, %v2674
    %v2676 = vpop.f32.mrb[0].mxu0
    %v2677 = vadd.f32 %v2376, %v2676
    %v2678 = vpop.f32.mrb[0].mxu0
    %v2679 = vadd.f32 %v2380, %v2678
    %2680 = vmatprep.mubr.bf16.mxu0 0
    %2681 = vmatmul.mubr.bf16.gmra.mrb[0].mxu0 %v2330
    %v2682 = vpop.f32.mrb[0].mxu0
    %v2683 = vadd.f32 %v2376, %v2682
    %v2684 = vpop.f32.mrb[0].mxu0
    %v2685 = vadd.f32 %v2380, %v2684
    %v2686 = vpop.f32.mrb[0].mxu0
    %v2687 = vadd.f32 %v2376, %v2686
    %v2688 = vpop.f32.mrb[0].mxu0
    %v2689 = vadd.f32 %v2380, %v2688
    %2690 = vdwg.mxu0
    %2691 = vst [vmem:[#allocation3] sm:$0xff] %v2580
    %2692 = vst [vmem:[#allocation3 + $0x8] sm:$0xff] %v2582
    %2693 = vst [vmem:[#allocation3 + $0x10] sm:$0xff] %v2653
    %2694 = vst [vmem:[#allocation3 + $0x18] sm:$0xff] %v2655
    %2695 = vst [vmem:[#allocation3 + $0x20] sm:$0xff] %v2584
    %2696 = vst [vmem:[#allocation3 + $0x28] sm:$0xff] %v2586
    %2697 = vst [vmem:[#allocation3 + $0x30] sm:$0xff] %v2657
    %2698 = vst [vmem:[#allocation3 + $0x38] sm:$0xff] %v2659
    %2699 = vst [vmem:[#allocation3 + $0x40] sm:$0xff] %v2590
    %2700 = vst [vmem:[#allocation3 + $0x48] sm:$0xff] %v2592
    %2701 = vst [vmem:[#allocation3 + $0x50] sm:$0xff] %v2663
    %2702 = vst [vmem:[#allocation3 + $0x58] sm:$0xff] %v2665
    %2703 = vst [vmem:[#allocation3 + $0x60] sm:$0xff] %v2594
    %2704 = vst [vmem:[#allocation3 + $0x68] sm:$0xff] %v2596
    %2705 = vst [vmem:[#allocation3 + $0x70] sm:$0xff] %v2667
    %2706 = vst [vmem:[#allocation3 + $0x78] sm:$0xff] %v2669
    %2707 = vst [vmem:[#allocation3 + $0x80] sm:$0xff] %v2600
    %2708 = vst [vmem:[#allocation3 + $0x88] sm:$0xff] %v2602
    %2709 = vst [vmem:[#allocation3 + $0x90] sm:$0xff] %v2673
    %2710 = vst [vmem:[#allocation3 + $0x98] sm:$0xff] %v2675
    %2711 = vst [vmem:[#allocation3 + $0xa0] sm:$0xff] %v2604
    %2712 = vst [vmem:[#allocation3 + $0xa8] sm:$0xff] %v2606
    %2713 = vst [vmem:[#allocation3 + $0xb0] sm:$0xff] %v2677
    %2714 = vst [vmem:[#allocation3 + $0xb8] sm:$0xff] %v2679
    %2715 = vst [vmem:[#allocation3 + $0xc0] sm:$0xff] %v2610
    %2716 = vst [vmem:[#allocation3 + $0xc8] sm:$0xff] %v2612
    %2717 = vst [vmem:[#allocation3 + $0xd0] sm:$0xff] %v2683
    %2718 = vst [vmem:[#allocation3 + $0xd8] sm:$0xff] %v2685
    %2719 = vst [vmem:[#allocation3 + $0xe0] sm:$0xff] %v2614
    %2720 = vst [vmem:[#allocation3 + $0xe8] sm:$0xff] %v2616
    %2721 = vst [vmem:[#allocation3 + $0xf0] sm:$0xff] %v2687
    %2722 = vst [vmem:[#allocation3 + $0xf8] sm:$0xff] %v2689
    %s2723 = smul.addr %s340, 8
    %s2724 = scalar_lea.vmem [#allocation3], %s2723
    %v2725 = vld [vmem:[%s2724] sm:$0xff]
    %v2726 = vld [vmem:[%s2724 + $0x8] sm:$0xff]
    %v2727 = vld [vmem:[%s2724 + $0x10] sm:$0xff]
    %v2728 = vld [vmem:[%s2724 + $0x18] sm:$0xff]
    %v2729 = vld [vmem:[#allocation6] sm:$0xff]
    %v2730 = vld [vmem:[#allocation13] sm:$0xff]
    %v2731 = vld [vmem:[#allocation13 + $0x8] sm:$0xff]
    %v2732 = vld [vmem:[#allocation13 + $0x10] sm:$0xff]
    %v2733 = vld [vmem:[#allocation13 + $0x18] sm:$0xff]
    %v2734 = vld [vmem:[#allocation13 + $0x20] sm:$0xff]
    %v2735 = vld [vmem:[#allocation13 + $0x28] sm:$0xff]
    %v2736 = vld [vmem:[#allocation13 + $0x30] sm:$0xff]
    %v2737 = vld [vmem:[#allocation13 + $0x38] sm:$0xff]
    %v2738 = vld [vmem:[#allocation13 + $0x40] sm:$0xff]
    %v2739 = vld [vmem:[#allocation13 + $0x48] sm:$0xff]
    %v2740 = vld [vmem:[#allocation13 + $0x50] sm:$0xff]
    %v2741 = vld [vmem:[#allocation13 + $0x58] sm:$0xff]
    %v2742 = vld [vmem:[#allocation13 + $0x60] sm:$0xff]
    %v2743 = vld [vmem:[#allocation13 + $0x68] sm:$0xff]
    %v2744 = vld [vmem:[#allocation13 + $0x70] sm:$0xff]
    %v2745 = vld [vmem:[#allocation13 + $0x78] sm:$0xff]
    %v2746 = vld [vmem:[#allocation13 + $0x80] sm:$0xff]
    %v2747 = vld [vmem:[#allocation13 + $0x88] sm:$0xff]
    %v2748 = vld [vmem:[#allocation13 + $0x90] sm:$0xff]
    %v2749 = vld [vmem:[#allocation13 + $0x98] sm:$0xff]
    %v2750 = vld [vmem:[#allocation13 + $0xa0] sm:$0xff]
    %v2751 = vld [vmem:[#allocation13 + $0xa8] sm:$0xff]
    %v2752 = vld [vmem:[#allocation13 + $0xb0] sm:$0xff]
    %v2753 = vld [vmem:[#allocation13 + $0xb8] sm:$0xff]
    %v2754 = vld [vmem:[#allocation13 + $0xc0] sm:$0xff]
    %v2755 = vld [vmem:[#allocation13 + $0xc8] sm:$0xff]
    %v2756 = vld [vmem:[#allocation13 + $0xd0] sm:$0xff]
    %v2757 = vld [vmem:[#allocation13 + $0xd8] sm:$0xff]
    %v2758 = vld [vmem:[#allocation13 + $0xe0] sm:$0xff]
    %v2759 = vld [vmem:[#allocation13 + $0xe8] sm:$0xff]
    %v2760 = vld [vmem:[#allocation13 + $0xf0] sm:$0xff]
    %v2761 = vld [vmem:[#allocation13 + $0xf8] sm:$0xff]
    %v2762 = vld [vmem:[#allocation13 + $0x100] sm:$0xff]
    %v2763 = vld [vmem:[#allocation13 + $0x108] sm:$0xff]
    %v2764 = vld [vmem:[#allocation13 + $0x110] sm:$0xff]
    %v2765 = vld [vmem:[#allocation13 + $0x118] sm:$0xff]
    %v2766 = vld [vmem:[#allocation13 + $0x120] sm:$0xff]
    %v2767 = vld [vmem:[#allocation13 + $0x128] sm:$0xff]
    %v2768 = vld [vmem:[#allocation13 + $0x130] sm:$0xff]
    %v2769 = vld [vmem:[#allocation13 + $0x138] sm:$0xff]
    %v2770 = vld [vmem:[#allocation13 + $0x140] sm:$0xff]
    %v2771 = vld [vmem:[#allocation13 + $0x148] sm:$0xff]
    %v2772 = vld [vmem:[#allocation13 + $0x150] sm:$0xff]
    %v2773 = vld [vmem:[#allocation13 + $0x158] sm:$0xff]
    %v2774 = vld [vmem:[#allocation13 + $0x160] sm:$0xff]
    %v2775 = vld [vmem:[#allocation13 + $0x168] sm:$0xff]
    %v2776 = vld [vmem:[#allocation13 + $0x170] sm:$0xff]
    %v2777 = vld [vmem:[#allocation13 + $0x178] sm:$0xff]
    %v2778 = vld [vmem:[#allocation13 + $0x180] sm:$0xff]
    %v2779 = vld [vmem:[#allocation13 + $0x188] sm:$0xff]
    %v2780 = vld [vmem:[#allocation13 + $0x190] sm:$0xff]
    %v2781 = vld [vmem:[#allocation13 + $0x198] sm:$0xff]
    %v2782 = vld [vmem:[#allocation13 + $0x1a0] sm:$0xff]
    %v2783 = vld [vmem:[#allocation13 + $0x1a8] sm:$0xff]
    %v2784 = vld [vmem:[#allocation13 + $0x1b0] sm:$0xff]
    %v2785 = vld [vmem:[#allocation13 + $0x1b8] sm:$0xff]
    %v2786 = vld [vmem:[#allocation13 + $0x1c0] sm:$0xff]
    %v2787 = vld [vmem:[#allocation13 + $0x1c8] sm:$0xff]
    %v2788 = vld [vmem:[#allocation13 + $0x1d0] sm:$0xff]
    %v2789 = vld [vmem:[#allocation13 + $0x1d8] sm:$0xff]
    %v2790 = vld [vmem:[#allocation13 + $0x1e0] sm:$0xff]
    %v2791 = vld [vmem:[#allocation13 + $0x1e8] sm:$0xff]
    %v2792 = vld [vmem:[#allocation13 + $0x1f0] sm:$0xff]
    %v2793 = vld [vmem:[#allocation13 + $0x1f8] sm:$0xff]
    %2794 = vmatprep.subr.mxu0 %v2731
    %2795 = vmatpush1.msra.mxu0 %v2730
    %2796 = vmatprep.subr.mxu0 %v2735
    %2797 = vmatpush1.msra.mxu0 %v2734
    %2798 = vmatprep.subr.mxu0 %v2739
    %2799 = vmatpush1.msra.mxu0 %v2738
    %2800 = vmatprep.subr.mxu0 %v2743
    %2801 = vmatpush1.msra.mxu0 %v2742
    %2802 = vmatprep.subr.mxu0 %v2747
    %2803 = vmatpush1.msra.mxu0 %v2746
    %2804 = vmatprep.subr.mxu0 %v2751
    %2805 = vmatpush1.msra.mxu0 %v2750
    %2806 = vmatprep.subr.mxu0 %v2755
    %2807 = vmatpush1.msra.mxu0 %v2754
    %2808 = vmatprep.subr.mxu0 %v2759
    %2809 = vmatpush1.msra.mxu0 %v2758
    %2810 = vmatprep.subr.mxu0 %v2763
    %2811 = vmatpush1.msra.mxu0 %v2762
    %2812 = vmatprep.subr.mxu0 %v2767
    %2813 = vmatpush1.msra.mxu0 %v2766
    %2814 = vmatprep.subr.mxu0 %v2771
    %2815 = vmatpush1.msra.mxu0 %v2770
    %2816 = vmatprep.subr.mxu0 %v2775
    %2817 = vmatpush1.msra.mxu0 %v2774
    %2818 = vmatprep.subr.mxu0 %v2779
    %2819 = vmatpush1.msra.mxu0 %v2778
    %2820 = vmatprep.subr.mxu0 %v2783
    %2821 = vmatpush1.msra.mxu0 %v2782
    %2822 = vmatprep.subr.mxu0 %v2787
    %2823 = vmatpush1.msra.mxu0 %v2786
    %2824 = vmatprep.subr.mxu0 %v2791
    %2825 = vmatpush1.msra.mxu0 %v2790
    %2826 = vmatprep.subr.mxu0 0.0
    %2827 = vmatpush1.msra.mxu0 0.0
    %2828 = vmatprep.subr.mxu0 0.0
    %2829 = vmatpush1.msra.mxu0 0.0
    %2830 = vmatprep.subr.mxu0 0.0
    %2831 = vmatpush1.msra.mxu0 0.0
    %2832 = vmatprep.subr.mxu0 0.0
    %2833 = vmatpush1.msra.mxu0 0.0
    %2834 = vmatprep.subr.mxu0 0.0
    %2835 = vmatpush1.msra.mxu0 0.0
    %2836 = vmatprep.subr.mxu0 0.0
    %2837 = vmatpush1.msra.mxu0 0.0
    %2838 = vmatprep.subr.mxu0 0.0
    %2839 = vmatpush1.msra.mxu0 0.0
    %2840 = vmatprep.subr.mxu0 0.0
    %2841 = vmatpush1.msra.mxu0 0.0
    %2842 = vmatprep.subr.mxu0 0.0
    %2843 = vmatpush1.msra.mxu0 0.0
    %2844 = vmatprep.subr.mxu0 0.0
    %2845 = vmatpush1.msra.mxu0 0.0
    %2846 = vmatprep.subr.mxu0 0.0
    %2847 = vmatpush1.msra.mxu0 0.0
    %2848 = vmatprep.subr.mxu0 0.0
    %2849 = vmatpush1.msra.mxu0 0.0
    %2850 = vmatprep.subr.mxu0 0.0
    %2851 = vmatpush1.msra.mxu0 0.0
    %2852 = vmatprep.subr.mxu0 0.0
    %2853 = vmatpush1.msra.mxu0 0.0
    %2854 = vmatprep.subr.mxu0 0.0
    %2855 = vmatpush1.msra.mxu0 0.0
    %2856 = vmatprep.subr.mxu0 0.0
    %2857 = vmatpush1.msra.mxu0 0.0
    %2858 = vmatprep.mubr.f32.mxu0 0.0
    %2859 = vmatmul.mubr.f32.gmra.mrb[0].mxu0 %v2729
    %v2860 = vpop.f32.mrb[0].mxu0
    %v2861 = vadd.f32 0.0, %v2860
    %v2862 = vpop.f32.mrb[0].mxu0
    %v2863 = vadd.f32 0.0, %v2862
    %2864 = vdwg.mxu0
    %2865 = vmatprep.subr.mxu0 %v2733
    %2866 = vmatpush1.msra.mxu0 %v2732
    %2867 = vmatprep.subr.mxu0 %v2737
    %2868 = vmatpush1.msra.mxu0 %v2736
    %2869 = vmatprep.subr.mxu0 %v2741
    %2870 = vmatpush1.msra.mxu0 %v2740
    %2871 = vmatprep.subr.mxu0 %v2745
    %2872 = vmatpush1.msra.mxu0 %v2744
    %2873 = vmatprep.subr.mxu0 %v2749
    %2874 = vmatpush1.msra.mxu0 %v2748
    %2875 = vmatprep.subr.mxu0 %v2753
    %2876 = vmatpush1.msra.mxu0 %v2752
    %2877 = vmatprep.subr.mxu0 %v2757
    %2878 = vmatpush1.msra.mxu0 %v2756
    %2879 = vmatprep.subr.mxu0 %v2761
    %2880 = vmatpush1.msra.mxu0 %v2760
    %2881 = vmatprep.subr.mxu0 %v2765
    %2882 = vmatpush1.msra.mxu0 %v2764
    %2883 = vmatprep.subr.mxu0 %v2769
    %2884 = vmatpush1.msra.mxu0 %v2768
    %2885 = vmatprep.subr.mxu0 %v2773
    %2886 = vmatpush1.msra.mxu0 %v2772
    %2887 = vmatprep.subr.mxu0 %v2777
    %2888 = vmatpush1.msra.mxu0 %v2776
    %2889 = vmatprep.subr.mxu0 %v2781
    %2890 = vmatpush1.msra.mxu0 %v2780
    %2891 = vmatprep.subr.mxu0 %v2785
    %2892 = vmatpush1.msra.mxu0 %v2784
    %2893 = vmatprep.subr.mxu0 %v2789
    %2894 = vmatpush1.msra.mxu0 %v2788
    %2895 = vmatprep.subr.mxu0 %v2793
    %2896 = vmatpush1.msra.mxu0 %v2792
    %2897 = vmatprep.subr.mxu0 0.0
    %2898 = vmatpush1.msra.mxu0 0.0
    %2899 = vmatprep.subr.mxu0 0.0
    %2900 = vmatpush1.msra.mxu0 0.0
    %2901 = vmatprep.subr.mxu0 0.0
    %2902 = vmatpush1.msra.mxu0 0.0
    %2903 = vmatprep.subr.mxu0 0.0
    %2904 = vmatpush1.msra.mxu0 0.0
    %2905 = vmatprep.subr.mxu0 0.0
    %2906 = vmatpush1.msra.mxu0 0.0
    %2907 = vmatprep.subr.mxu0 0.0
    %2908 = vmatpush1.msra.mxu0 0.0
    %2909 = vmatprep.subr.mxu0 0.0
    %2910 = vmatpush1.msra.mxu0 0.0
    %2911 = vmatprep.subr.mxu0 0.0
    %2912 = vmatpush1.msra.mxu0 0.0
    %2913 = vmatprep.subr.mxu0 0.0
    %2914 = vmatpush1.msra.mxu0 0.0
    %2915 = vmatprep.subr.mxu0 0.0
    %2916 = vmatpush1.msra.mxu0 0.0
    %2917 = vmatprep.subr.mxu0 0.0
    %2918 = vmatpush1.msra.mxu0 0.0
    %2919 = vmatprep.subr.mxu0 0.0
    %2920 = vmatpush1.msra.mxu0 0.0
    %2921 = vmatprep.subr.mxu0 0.0
    %2922 = vmatpush1.msra.mxu0 0.0
    %2923 = vmatprep.subr.mxu0 0.0
    %2924 = vmatpush1.msra.mxu0 0.0
    %2925 = vmatprep.subr.mxu0 0.0
    %2926 = vmatpush1.msra.mxu0 0.0
    %2927 = vmatprep.subr.mxu0 0.0
    %2928 = vmatpush1.msra.mxu0 0.0
    %2929 = vmatprep.mubr.f32.mxu0 0.0
    %2930 = vmatmul.mubr.f32.gmra.mrb[0].mxu0 %v2729
    %v2931 = vpop.f32.mrb[0].mxu0
    %v2932 = vadd.f32 0.0, %v2931
    %v2933 = vpop.f32.mrb[0].mxu0
    %v2934 = vadd.f32 0.0, %v2933
    %2935 = vdwg.mxu0
    %v2936 = vadd.f32 %v2725, %v2861
    %v2937 = vadd.f32 %v2726, %v2863
    %v2938 = vadd.f32 %v2727, %v2932
    %v2939 = vadd.f32 %v2728, %v2934
    %v2940 = vld [vmem:[#allocation7] sm:$0xff]
    %v2941 = vxor.u32 %v2936, 2147483648
    %v2942 = vmul.f32 %v2941, 1.442695
    %v2943 = vpow.pop %v2942
    %v2944 = vadd.f32 %v2943, 1.0
    %v2945 = vrcp.pop %v2944
    %v2946 = vmul.f32 1.0, %v2945
    %v2947 = vxor.u32 %v2937, 2147483648
    %v2948 = vmul.f32 %v2947, 1.442695
    %v2949 = vpow.pop %v2948
    %v2950 = vadd.f32 %v2949, 1.0
    %v2951 = vrcp.pop %v2950
    %v2952 = vmul.f32 1.0, %v2951
    %v2953 = vtanh.pop %v2938
    %v2954 = vxor.u32 %v2939, 2147483648
    %v2955 = vmul.f32 %v2954, 1.442695
    %v2956 = vpow.pop %v2955
    %v2957 = vadd.f32 %v2956, 1.0
    %v2958 = vrcp.pop %v2957
    %v2959 = vmul.f32 1.0, %v2958
    %v2960 = vmul.f32 %v2952, %v2940
    %v2961 = vmul.f32 %v2946, %v2953
    %v2962 = vadd.f32 %v2960, %v2961
    %v2963 = vtanh.pop %v2962
    %v2964 = vmul.f32 %v2959, %v2963
    %2965 = vst [vmem:[#allocation6] sm:$0xff] %v2964
    %2966 = vst [vmem:[#allocation7] sm:$0xff] %v2962
    %s2967 = smul.addr %s586, 8
    %s2968 = scalar_lea.vmem [#allocation3], %s2967
    %v2969 = vld [vmem:[%s2968] sm:$0xff]
    %v2970 = vld [vmem:[%s2968 + $0x8] sm:$0xff]
    %v2971 = vld [vmem:[%s2968 + $0x10] sm:$0xff]
    %v2972 = vld [vmem:[%s2968 + $0x18] sm:$0xff]
    %v2973 = vld [vmem:[#allocation6] sm:$0xff]
    %v2974 = vld [vmem:[#allocation13] sm:$0xff]
    %v2975 = vld [vmem:[#allocation13 + $0x8] sm:$0xff]
    %v2976 = vld [vmem:[#allocation13 + $0x10] sm:$0xff]
    %v2977 = vld [vmem:[#allocation13 + $0x18] sm:$0xff]
    %v2978 = vld [vmem:[#allocation13 + $0x20] sm:$0xff]
    %v2979 = vld [vmem:[#allocation13 + $0x28] sm:$0xff]
    %v2980 = vld [vmem:[#allocation13 + $0x30] sm:$0xff]
    %v2981 = vld [vmem:[#allocation13 + $0x38] sm:$0xff]
    %v2982 = vld [vmem:[#allocation13 + $0x40] sm:$0xff]
    %v2983 = vld [vmem:[#allocation13 + $0x48] sm:$0xff]
    %v2984 = vld [vmem:[#allocation13 + $0x50] sm:$0xff]
    %v2985 = vld [vmem:[#allocation13 + $0x58] sm:$0xff]
    %v2986 = vld [vmem:[#allocation13 + $0x60] sm:$0xff]
    %v2987 = vld [vmem:[#allocation13 + $0x68] sm:$0xff]
    %v2988 = vld [vmem:[#allocation13 + $0x70] sm:$0xff]
    %v2989 = vld [vmem:[#allocation13 + $0x78] sm:$0xff]
    %v2990 = vld [vmem:[#allocation13 + $0x80] sm:$0xff]
    %v2991 = vld [vmem:[#allocation13 + $0x88] sm:$0xff]
    %v2992 = vld [vmem:[#allocation13 + $0x90] sm:$0xff]
    %v2993 = vld [vmem:[#allocation13 + $0x98] sm:$0xff]
    %v2994 = vld [vmem:[#allocation13 + $0xa0] sm:$0xff]
    %v2995 = vld [vmem:[#allocation13 + $0xa8] sm:$0xff]
    %v2996 = vld [vmem:[#allocation13 + $0xb0] sm:$0xff]
    %v2997 = vld [vmem:[#allocation13 + $0xb8] sm:$0xff]
    %v2998 = vld [vmem:[#allocation13 + $0xc0] sm:$0xff]
    %v2999 = vld [vmem:[#allocation13 + $0xc8] sm:$0xff]
    %v3000 = vld [vmem:[#allocation13 + $0xd0] sm:$0xff]
    %v3001 = vld [vmem:[#allocation13 + $0xd8] sm:$0xff]
    %v3002 = vld [vmem:[#allocation13 + $0xe0] sm:$0xff]
    %v3003 = vld [vmem:[#allocation13 + $0xe8] sm:$0xff]
    %v3004 = vld [vmem:[#allocation13 + $0xf0] sm:$0xff]
    %v3005 = vld [vmem:[#allocation13 + $0xf8] sm:$0xff]
    %v3006 = vld [vmem:[#allocation13 + $0x100] sm:$0xff]
    %v3007 = vld [vmem:[#allocation13 + $0x108] sm:$0xff]
    %v3008 = vld [vmem:[#allocation13 + $0x110] sm:$0xff]
    %v3009 = vld [vmem:[#allocation13 + $0x118] sm:$0xff]
    %v3010 = vld [vmem:[#allocation13 + $0x120] sm:$0xff]
    %v3011 = vld [vmem:[#allocation13 + $0x128] sm:$0xff]
    %v3012 = vld [vmem:[#allocation13 + $0x130] sm:$0xff]
    %v3013 = vld [vmem:[#allocation13 + $0x138] sm:$0xff]
    %v3014 = vld [vmem:[#allocation13 + $0x140] sm:$0xff]
    %v3015 = vld [vmem:[#allocation13 + $0x148] sm:$0xff]
    %v3016 = vld [vmem:[#allocation13 + $0x150] sm:$0xff]
    %v3017 = vld [vmem:[#allocation13 + $0x158] sm:$0xff]
    %v3018 = vld [vmem:[#allocation13 + $0x160] sm:$0xff]
    %v3019 = vld [vmem:[#allocation13 + $0x168] sm:$0xff]
    %v3020 = vld [vmem:[#allocation13 + $0x170] sm:$0xff]
    %v3021 = vld [vmem:[#allocation13 + $0x178] sm:$0xff]
    %v3022 = vld [vmem:[#allocation13 + $0x180] sm:$0xff]
    %v3023 = vld [vmem:[#allocation13 + $0x188] sm:$0xff]
    %v3024 = vld [vmem:[#allocation13 + $0x190] sm:$0xff]
    %v3025 = vld [vmem:[#allocation13 + $0x198] sm:$0xff]
    %v3026 = vld [vmem:[#allocation13 + $0x1a0] sm:$0xff]
    %v3027 = vld [vmem:[#allocation13 + $0x1a8] sm:$0xff]
    %v3028 = vld [vmem:[#allocation13 + $0x1b0] sm:$0xff]
    %v3029 = vld [vmem:[#allocation13 + $0x1b8] sm:$0xff]
    %v3030 = vld [vmem:[#allocation13 + $0x1c0] sm:$0xff]
    %v3031 = vld [vmem:[#allocation13 + $0x1c8] sm:$0xff]
    %v3032 = vld [vmem:[#allocation13 + $0x1d0] sm:$0xff]
    %v3033 = vld [vmem:[#allocation13 + $0x1d8] sm:$0xff]
    %v3034 = vld [vmem:[#allocation13 + $0x1e0] sm:$0xff]
    %v3035 = vld [vmem:[#allocation13 + $0x1e8] sm:$0xff]
    %v3036 = vld [vmem:[#allocation13 + $0x1f0] sm:$0xff]
    %v3037 = vld [vmem:[#allocation13 + $0x1f8] sm:$0xff]
    %3038 = vmatprep.subr.mxu0 %v2975
    %3039 = vmatpush1.msra.mxu0 %v2974
    %3040 = vmatprep.subr.mxu0 %v2979
    %3041 = vmatpush1.msra.mxu0 %v2978
    %3042 = vmatprep.subr.mxu0 %v2983
    %3043 = vmatpush1.msra.mxu0 %v2982
    %3044 = vmatprep.subr.mxu0 %v2987
    %3045 = vmatpush1.msra.mxu0 %v2986
    %3046 = vmatprep.subr.mxu0 %v2991
    %3047 = vmatpush1.msra.mxu0 %v2990
    %3048 = vmatprep.subr.mxu0 %v2995
    %3049 = vmatpush1.msra.mxu0 %v2994
    %3050 = vmatprep.subr.mxu0 %v2999
    %3051 = vmatpush1.msra.mxu0 %v2998
    %3052 = vmatprep.subr.mxu0 %v3003
    %3053 = vmatpush1.msra.mxu0 %v3002
    %3054 = vmatprep.subr.mxu0 %v3007
    %3055 = vmatpush1.msra.mxu0 %v3006
    %3056 = vmatprep.subr.mxu0 %v3011
    %3057 = vmatpush1.msra.mxu0 %v3010
    %3058 = vmatprep.subr.mxu0 %v3015
    %3059 = vmatpush1.msra.mxu0 %v3014
    %3060 = vmatprep.subr.mxu0 %v3019
    %3061 = vmatpush1.msra.mxu0 %v3018
    %3062 = vmatprep.subr.mxu0 %v3023
    %3063 = vmatpush1.msra.mxu0 %v3022
    %3064 = vmatprep.subr.mxu0 %v3027
    %3065 = vmatpush1.msra.mxu0 %v3026
    %3066 = vmatprep.subr.mxu0 %v3031
    %3067 = vmatpush1.msra.mxu0 %v3030
    %3068 = vmatprep.subr.mxu0 %v3035
    %3069 = vmatpush1.msra.mxu0 %v3034
    %3070 = vmatprep.subr.mxu0 0.0
    %3071 = vmatpush1.msra.mxu0 0.0
    %3072 = vmatprep.subr.mxu0 0.0
    %3073 = vmatpush1.msra.mxu0 0.0
    %3074 = vmatprep.subr.mxu0 0.0
    %3075 = vmatpush1.msra.mxu0 0.0
    %3076 = vmatprep.subr.mxu0 0.0
    %3077 = vmatpush1.msra.mxu0 0.0
    %3078 = vmatprep.subr.mxu0 0.0
    %3079 = vmatpush1.msra.mxu0 0.0
    %3080 = vmatprep.subr.mxu0 0.0
    %3081 = vmatpush1.msra.mxu0 0.0
    %3082 = vmatprep.subr.mxu0 0.0
    %3083 = vmatpush1.msra.mxu0 0.0
    %3084 = vmatprep.subr.mxu0 0.0
    %3085 = vmatpush1.msra.mxu0 0.0
    %3086 = vmatprep.subr.mxu0 0.0
    %3087 = vmatpush1.msra.mxu0 0.0
    %3088 = vmatprep.subr.mxu0 0.0
    %3089 = vmatpush1.msra.mxu0 0.0
    %3090 = vmatprep.subr.mxu0 0.0
    %3091 = vmatpush1.msra.mxu0 0.0
    %3092 = vmatprep.subr.mxu0 0.0
    %3093 = vmatpush1.msra.mxu0 0.0
    %3094 = vmatprep.subr.mxu0 0.0
    %3095 = vmatpush1.msra.mxu0 0.0
    %3096 = vmatprep.subr.mxu0 0.0
    %3097 = vmatpush1.msra.mxu0 0.0
    %3098 = vmatprep.subr.mxu0 0.0
    %3099 = vmatpush1.msra.mxu0 0.0
    %3100 = vmatprep.subr.mxu0 0.0
    %3101 = vmatpush1.msra.mxu0 0.0
    %3102 = vmatprep.mubr.f32.mxu0 0.0
    %3103 = vmatmul.mubr.f32.gmra.mrb[0].mxu0 %v2973
    %v3104 = vpop.f32.mrb[0].mxu0
    %v3105 = vadd.f32 0.0, %v3104
    %v3106 = vpop.f32.mrb[0].mxu0
    %v3107 = vadd.f32 0.0, %v3106
    %3108 = vdwg.mxu0
    %3109 = vmatprep.subr.mxu0 %v2977
    %3110 = vmatpush1.msra.mxu0 %v2976
    %3111 = vmatprep.subr.mxu0 %v2981
    %3112 = vmatpush1.msra.mxu0 %v2980
    %3113 = vmatprep.subr.mxu0 %v2985
    %3114 = vmatpush1.msra.mxu0 %v2984
    %3115 = vmatprep.subr.mxu0 %v2989
    %3116 = vmatpush1.msra.mxu0 %v2988
    %3117 = vmatprep.subr.mxu0 %v2993
    %3118 = vmatpush1.msra.mxu0 %v2992
    %3119 = vmatprep.subr.mxu0 %v2997
    %3120 = vmatpush1.msra.mxu0 %v2996
    %3121 = vmatprep.subr.mxu0 %v3001
    %3122 = vmatpush1.msra.mxu0 %v3000
    %3123 = vmatprep.subr.mxu0 %v3005
    %3124 = vmatpush1.msra.mxu0 %v3004
    %3125 = vmatprep.subr.mxu0 %v3009
    %3126 = vmatpush1.msra.mxu0 %v3008
    %3127 = vmatprep.subr.mxu0 %v3013
    %3128 = vmatpush1.msra.mxu0 %v3012
    %3129 = vmatprep.subr.mxu0 %v3017
    %3130 = vmatpush1.msra.mxu0 %v3016
    %3131 = vmatprep.subr.mxu0 %v3021
    %3132 = vmatpush1.msra.mxu0 %v3020
    %3133 = vmatprep.subr.mxu0 %v3025
    %3134 = vmatpush1.msra.mxu0 %v3024
    %3135 = vmatprep.subr.mxu0 %v3029
    %3136 = vmatpush1.msra.mxu0 %v3028
    %3137 = vmatprep.subr.mxu0 %v3033
    %3138 = vmatpush1.msra.mxu0 %v3032
    %3139 = vmatprep.subr.mxu0 %v3037
    %3140 = vmatpush1.msra.mxu0 %v3036
    %3141 = vmatprep.subr.mxu0 0.0
    %3142 = vmatpush1.msra.mxu0 0.0
    %3143 = vmatprep.subr.mxu0 0.0
    %3144 = vmatpush1.msra.mxu0 0.0
    %3145 = vmatprep.subr.mxu0 0.0
    %3146 = vmatpush1.msra.mxu0 0.0
    %3147 = vmatprep.subr.mxu0 0.0
    %3148 = vmatpush1.msra.mxu0 0.0
    %3149 = vmatprep.subr.mxu0 0.0
    %3150 = vmatpush1.msra.mxu0 0.0
    %3151 = vmatprep.subr.mxu0 0.0
    %3152 = vmatpush1.msra.mxu0 0.0
    %3153 = vmatprep.subr.mxu0 0.0
    %3154 = vmatpush1.msra.mxu0 0.0
    %3155 = vmatprep.subr.mxu0 0.0
    %3156 = vmatpush1.msra.mxu0 0.0
    %3157 = vmatprep.subr.mxu0 0.0
    %3158 = vmatpush1.msra.mxu0 0.0
    %3159 = vmatprep.subr.mxu0 0.0
    %3160 = vmatpush1.msra.mxu0 0.0
    %3161 = vmatprep.subr.mxu0 0.0
    %3162 = vmatpush1.msra.mxu0 0.0
    %3163 = vmatprep.subr.mxu0 0.0
    %3164 = vmatpush1.msra.mxu0 0.0
    %3165 = vmatprep.subr.mxu0 0.0
    %3166 = vmatpush1.msra.mxu0 0.0
    %3167 = vmatprep.subr.mxu0 0.0
    %3168 = vmatpush1.msra.mxu0 0.0
    %3169 = vmatprep.subr.mxu0 0.0
    %3170 = vmatpush1.msra.mxu0 0.0
    %3171 = vmatprep.subr.mxu0 0.0
    %3172 = vmatpush1.msra.mxu0 0.0
    %3173 = vmatprep.mubr.f32.mxu0 0.0
    %3174 = vmatmul.mubr.f32.gmra.mrb[0].mxu0 %v2973
    %v3175 = vpop.f32.mrb[0].mxu0
    %v3176 = vadd.f32 0.0, %v3175
    %v3177 = vpop.f32.mrb[0].mxu0
    %v3178 = vadd.f32 0.0, %v3177
    %3179 = vdwg.mxu0
    %v3180 = vadd.f32 %v2969, %v3105
    %v3181 = vadd.f32 %v2970, %v3107
    %v3182 = vadd.f32 %v2971, %v3176
    %v3183 = vadd.f32 %v2972, %v3178
    %v3184 = vld [vmem:[#allocation7] sm:$0xff]
    %v3185 = vxor.u32 %v3180, 2147483648
    %v3186 = vmul.f32 %v3185, 1.442695
    %v3187 = vpow.pop %v3186
    %v3188 = vadd.f32 %v3187, 1.0
    %v3189 = vrcp.pop %v3188
    %v3190 = vmul.f32 1.0, %v3189
    %v3191 = vxor.u32 %v3181, 2147483648
    %v3192 = vmul.f32 %v3191, 1.442695
    %v3193 = vpow.pop %v3192
    %v3194 = vadd.f32 %v3193, 1.0
    %v3195 = vrcp.pop %v3194
    %v3196 = vmul.f32 1.0, %v3195
    %v3197 = vtanh.pop %v3182
    %v3198 = vxor.u32 %v3183, 2147483648
    %v3199 = vmul.f32 %v3198, 1.442695
    %v3200 = vpow.pop %v3199
    %v3201 = vadd.f32 %v3200, 1.0
    %v3202 = vrcp.pop %v3201
    %v3203 = vmul.f32 1.0, %v3202
    %v3204 = vmul.f32 %v3196, %v3184
    %v3205 = vmul.f32 %v3190, %v3197
    %v3206 = vadd.f32 %v3204, %v3205
    %v3207 = vtanh.pop %v3206
    %v3208 = vmul.f32 %v3203, %v3207
    %3209 = vst [vmem:[#allocation6] sm:$0xff] %v3208
    %3210 = vst [vmem:[#allocation7] sm:$0xff] %v3206
    %s3211 = smul.addr %s833, 8
    %s3212 = scalar_lea.vmem [#allocation3], %s3211
    %v3213 = vld [vmem:[%s3212] sm:$0xff]
    %v3214 = vld [vmem:[%s3212 + $0x8] sm:$0xff]
    %v3215 = vld [vmem:[%s3212 + $0x10] sm:$0xff]
    %v3216 = vld [vmem:[%s3212 + $0x18] sm:$0xff]
    %v3217 = vld [vmem:[#allocation6] sm:$0xff]
    %v3218 = vld [vmem:[#allocation13] sm:$0xff]
    %v3219 = vld [vmem:[#allocation13 + $0x8] sm:$0xff]
    %v3220 = vld [vmem:[#allocation13 + $0x10] sm:$0xff]
    %v3221 = vld [vmem:[#allocation13 + $0x18] sm:$0xff]
    %v3222 = vld [vmem:[#allocation13 + $0x20] sm:$0xff]
    %v3223 = vld [vmem:[#allocation13 + $0x28] sm:$0xff]
    %v3224 = vld [vmem:[#allocation13 + $0x30] sm:$0xff]
    %v3225 = vld [vmem:[#allocation13 + $0x38] sm:$0xff]
    %v3226 = vld [vmem:[#allocation13 + $0x40] sm:$0xff]
    %v3227 = vld [vmem:[#allocation13 + $0x48] sm:$0xff]
    %v3228 = vld [vmem:[#allocation13 + $0x50] sm:$0xff]
    %v3229 = vld [vmem:[#allocation13 + $0x58] sm:$0xff]
    %v3230 = vld [vmem:[#allocation13 + $0x60] sm:$0xff]
    %v3231 = vld [vmem:[#allocation13 + $0x68] sm:$0xff]
    %v3232 = vld [vmem:[#allocation13 + $0x70] sm:$0xff]
    %v3233 = vld [vmem:[#allocation13 + $0x78] sm:$0xff]
    %v3234 = vld [vmem:[#allocation13 + $0x80] sm:$0xff]
    %v3235 = vld [vmem:[#allocation13 + $0x88] sm:$0xff]
    %v3236 = vld [vmem:[#allocation13 + $0x90] sm:$0xff]
    %v3237 = vld [vmem:[#allocation13 + $0x98] sm:$0xff]
    %v3238 = vld [vmem:[#allocation13 + $0xa0] sm:$0xff]
    %v3239 = vld [vmem:[#allocation13 + $0xa8] sm:$0xff]
    %v3240 = vld [vmem:[#allocation13 + $0xb0] sm:$0xff]
    %v3241 = vld [vmem:[#allocation13 + $0xb8] sm:$0xff]
    %v3242 = vld [vmem:[#allocation13 + $0xc0] sm:$0xff]
    %v3243 = vld [vmem:[#allocation13 + $0xc8] sm:$0xff]
    %v3244 = vld [vmem:[#allocation13 + $0xd0] sm:$0xff]
    %v3245 = vld [vmem:[#allocation13 + $0xd8] sm:$0xff]
    %v3246 = vld [vmem:[#allocation13 + $0xe0] sm:$0xff]
    %v3247 = vld [vmem:[#allocation13 + $0xe8] sm:$0xff]
    %v3248 = vld [vmem:[#allocation13 + $0xf0] sm:$0xff]
    %v3249 = vld [vmem:[#allocation13 + $0xf8] sm:$0xff]
    %v3250 = vld [vmem:[#allocation13 + $0x100] sm:$0xff]
    %v3251 = vld [vmem:[#allocation13 + $0x108] sm:$0xff]
    %v3252 = vld [vmem:[#allocation13 + $0x110] sm:$0xff]
    %v3253 = vld [vmem:[#allocation13 + $0x118] sm:$0xff]
    %v3254 = vld [vmem:[#allocation13 + $0x120] sm:$0xff]
    %v3255 = vld [vmem:[#allocation13 + $0x128] sm:$0xff]
    %v3256 = vld [vmem:[#allocation13 + $0x130] sm:$0xff]
    %v3257 = vld [vmem:[#allocation13 + $0x138] sm:$0xff]
    %v3258 = vld [vmem:[#allocation13 + $0x140] sm:$0xff]
    %v3259 = vld [vmem:[#allocation13 + $0x148] sm:$0xff]
    %v3260 = vld [vmem:[#allocation13 + $0x150] sm:$0xff]
    %v3261 = vld [vmem:[#allocation13 + $0x158] sm:$0xff]
    %v3262 = vld [vmem:[#allocation13 + $0x160] sm:$0xff]
    %v3263 = vld [vmem:[#allocation13 + $0x168] sm:$0xff]
    %v3264 = vld [vmem:[#allocation13 + $0x170] sm:$0xff]
    %v3265 = vld [vmem:[#allocation13 + $0x178] sm:$0xff]
    %v3266 = vld [vmem:[#allocation13 + $0x180] sm:$0xff]
    %v3267 = vld [vmem:[#allocation13 + $0x188] sm:$0xff]
    %v3268 = vld [vmem:[#allocation13 + $0x190] sm:$0xff]
    %v3269 = vld [vmem:[#allocation13 + $0x198] sm:$0xff]
    %v3270 = vld [vmem:[#allocation13 + $0x1a0] sm:$0xff]
    %v3271 = vld [vmem:[#allocation13 + $0x1a8] sm:$0xff]
    %v3272 = vld [vmem:[#allocation13 + $0x1b0] sm:$0xff]
    %v3273 = vld [vmem:[#allocation13 + $0x1b8] sm:$0xff]
    %v3274 = vld [vmem:[#allocation13 + $0x1c0] sm:$0xff]
    %v3275 = vld [vmem:[#allocation13 + $0x1c8] sm:$0xff]
    %v3276 = vld [vmem:[#allocation13 + $0x1d0] sm:$0xff]
    %v3277 = vld [vmem:[#allocation13 + $0x1d8] sm:$0xff]
    %v3278 = vld [vmem:[#allocation13 + $0x1e0] sm:$0xff]
    %v3279 = vld [vmem:[#allocation13 + $0x1e8] sm:$0xff]
    %v3280 = vld [vmem:[#allocation13 + $0x1f0] sm:$0xff]
    %v3281 = vld [vmem:[#allocation13 + $0x1f8] sm:$0xff]
    %3282 = vmatprep.subr.mxu0 %v3219
    %3283 = vmatpush1.msra.mxu0 %v3218
    %3284 = vmatprep.subr.mxu0 %v3223
    %3285 = vmatpush1.msra.mxu0 %v3222
    %3286 = vmatprep.subr.mxu0 %v3227
    %3287 = vmatpush1.msra.mxu0 %v3226
    %3288 = vmatprep.subr.mxu0 %v3231
    %3289 = vmatpush1.msra.mxu0 %v3230
    %3290 = vmatprep.subr.mxu0 %v3235
    %3291 = vmatpush1.msra.mxu0 %v3234
    %3292 = vmatprep.subr.mxu0 %v3239
    %3293 = vmatpush1.msra.mxu0 %v3238
    %3294 = vmatprep.subr.mxu0 %v3243
    %3295 = vmatpush1.msra.mxu0 %v3242
    %3296 = vmatprep.subr.mxu0 %v3247
    %3297 = vmatpush1.msra.mxu0 %v3246
    %3298 = vmatprep.subr.mxu0 %v3251
    %3299 = vmatpush1.msra.mxu0 %v3250
    %3300 = vmatprep.subr.mxu0 %v3255
    %3301 = vmatpush1.msra.mxu0 %v3254
    %3302 = vmatprep.subr.mxu0 %v3259
    %3303 = vmatpush1.msra.mxu0 %v3258
    %3304 = vmatprep.subr.mxu0 %v3263
    %3305 = vmatpush1.msra.mxu0 %v3262
    %3306 = vmatprep.subr.mxu0 %v3267
    %3307 = vmatpush1.msra.mxu0 %v3266
    %3308 = vmatprep.subr.mxu0 %v3271
    %3309 = vmatpush1.msra.mxu0 %v3270
    %3310 = vmatprep.subr.mxu0 %v3275
    %3311 = vmatpush1.msra.mxu0 %v3274
    %3312 = vmatprep.subr.mxu0 %v3279
    %3313 = vmatpush1.msra.mxu0 %v3278
    %3314 = vmatprep.subr.mxu0 0.0
    %3315 = vmatpush1.msra.mxu0 0.0
    %3316 = vmatprep.subr.mxu0 0.0
    %3317 = vmatpush1.msra.mxu0 0.0
    %3318 = vmatprep.subr.mxu0 0.0
    %3319 = vmatpush1.msra.mxu0 0.0
    %3320 = vmatprep.subr.mxu0 0.0
    %3321 = vmatpush1.msra.mxu0 0.0
    %3322 = vmatprep.subr.mxu0 0.0
    %3323 = vmatpush1.msra.mxu0 0.0
    %3324 = vmatprep.subr.mxu0 0.0
    %3325 = vmatpush1.msra.mxu0 0.0
    %3326 = vmatprep.subr.mxu0 0.0
    %3327 = vmatpush1.msra.mxu0 0.0
    %3328 = vmatprep.subr.mxu0 0.0
    %3329 = vmatpush1.msra.mxu0 0.0
    %3330 = vmatprep.subr.mxu0 0.0
    %3331 = vmatpush1.msra.mxu0 0.0
    %3332 = vmatprep.subr.mxu0 0.0
    %3333 = vmatpush1.msra.mxu0 0.0
    %3334 = vmatprep.subr.mxu0 0.0
    %3335 = vmatpush1.msra.mxu0 0.0
    %3336 = vmatprep.subr.mxu0 0.0
    %3337 = vmatpush1.msra.mxu0 0.0
    %3338 = vmatprep.subr.mxu0 0.0
    %3339 = vmatpush1.msra.mxu0 0.0
    %3340 = vmatprep.subr.mxu0 0.0
    %3341 = vmatpush1.msra.mxu0 0.0
    %3342 = vmatprep.subr.mxu0 0.0
    %3343 = vmatpush1.msra.mxu0 0.0
    %3344 = vmatprep.subr.mxu0 0.0
    %3345 = vmatpush1.msra.mxu0 0.0
    %3346 = vmatprep.mubr.f32.mxu0 0.0
    %3347 = vmatmul.mubr.f32.gmra.mrb[0].mxu0 %v3217
    %v3348 = vpop.f32.mrb[0].mxu0
    %v3349 = vadd.f32 0.0, %v3348
    %v3350 = vpop.f32.mrb[0].mxu0
    %v3351 = vadd.f32 0.0, %v3350
    %3352 = vdwg.mxu0
    %3353 = vmatprep.subr.mxu0 %v3221
    %3354 = vmatpush1.msra.mxu0 %v3220
    %3355 = vmatprep.subr.mxu0 %v3225
    %3356 = vmatpush1.msra.mxu0 %v3224
    %3357 = vmatprep.subr.mxu0 %v3229
    %3358 = vmatpush1.msra.mxu0 %v3228
    %3359 = vmatprep.subr.mxu0 %v3233
    %3360 = vmatpush1.msra.mxu0 %v3232
    %3361 = vmatprep.subr.mxu0 %v3237
    %3362 = vmatpush1.msra.mxu0 %v3236
    %3363 = vmatprep.subr.mxu0 %v3241
    %3364 = vmatpush1.msra.mxu0 %v3240
    %3365 = vmatprep.subr.mxu0 %v3245
    %3366 = vmatpush1.msra.mxu0 %v3244
    %3367 = vmatprep.subr.mxu0 %v3249
    %3368 = vmatpush1.msra.mxu0 %v3248
    %3369 = vmatprep.subr.mxu0 %v3253
    %3370 = vmatpush1.msra.mxu0 %v3252
    %3371 = vmatprep.subr.mxu0 %v3257
    %3372 = vmatpush1.msra.mxu0 %v3256
    %3373 = vmatprep.subr.mxu0 %v3261
    %3374 = vmatpush1.msra.mxu0 %v3260
    %3375 = vmatprep.subr.mxu0 %v3265
    %3376 = vmatpush1.msra.mxu0 %v3264
    %3377 = vmatprep.subr.mxu0 %v3269
    %3378 = vmatpush1.msra.mxu0 %v3268
    %3379 = vmatprep.subr.mxu0 %v3273
    %3380 = vmatpush1.msra.mxu0 %v3272
    %3381 = vmatprep.subr.mxu0 %v3277
    %3382 = vmatpush1.msra.mxu0 %v3276
    %3383 = vmatprep.subr.mxu0 %v3281
    %3384 = vmatpush1.msra.mxu0 %v3280
    %3385 = vmatprep.subr.mxu0 0.0
    %3386 = vmatpush1.msra.mxu0 0.0
    %3387 = vmatprep.subr.mxu0 0.0
    %3388 = vmatpush1.msra.mxu0 0.0
    %3389 = vmatprep.subr.mxu0 0.0
    %3390 = vmatpush1.msra.mxu0 0.0
    %3391 = vmatprep.subr.mxu0 0.0
    %3392 = vmatpush1.msra.mxu0 0.0
    %3393 = vmatprep.subr.mxu0 0.0
    %3394 = vmatpush1.msra.mxu0 0.0
    %3395 = vmatprep.subr.mxu0 0.0
    %3396 = vmatpush1.msra.mxu0 0.0
    %3397 = vmatprep.subr.mxu0 0.0
    %3398 = vmatpush1.msra.mxu0 0.0
    %3399 = vmatprep.subr.mxu0 0.0
    %3400 = vmatpush1.msra.mxu0 0.0
    %3401 = vmatprep.subr.mxu0 0.0
    %3402 = vmatpush1.msra.mxu0 0.0
    %3403 = vmatprep.subr.mxu0 0.0
    %3404 = vmatpush1.msra.mxu0 0.0
    %3405 = vmatprep.subr.mxu0 0.0
    %3406 = vmatpush1.msra.mxu0 0.0
    %3407 = vmatprep.subr.mxu0 0.0
    %3408 = vmatpush1.msra.mxu0 0.0
    %3409 = vmatprep.subr.mxu0 0.0
    %3410 = vmatpush1.msra.mxu0 0.0
    %3411 = vmatprep.subr.mxu0 0.0
    %3412 = vmatpush1.msra.mxu0 0.0
    %3413 = vmatprep.subr.mxu0 0.0
    %3414 = vmatpush1.msra.mxu0 0.0
    %3415 = vmatprep.subr.mxu0 0.0
    %3416 = vmatpush1.msra.mxu0 0.0
    %3417 = vmatprep.mubr.f32.mxu0 0.0
    %3418 = vmatmul.mubr.f32.gmra.mrb[0].mxu0 %v3217
    %v3419 = vpop.f32.mrb[0].mxu0
    %v3420 = vadd.f32 0.0, %v3419
    %v3421 = vpop.f32.mrb[0].mxu0
    %v3422 = vadd.f32 0.0, %v3421
    %3423 = vdwg.mxu0
    %v3424 = vadd.f32 %v3213, %v3349
    %v3425 = vadd.f32 %v3214, %v3351
    %v3426 = vadd.f32 %v3215, %v3420
    %v3427 = vadd.f32 %v3216, %v3422
    %v3428 = vld [vmem:[#allocation7] sm:$0xff]
    %v3429 = vxor.u32 %v3424, 2147483648
    %v3430 = vmul.f32 %v3429, 1.442695
    %v3431 = vpow.pop %v3430
    %v3432 = vadd.f32 %v3431, 1.0
    %v3433 = vrcp.pop %v3432
    %v3434 = vmul.f32 1.0, %v3433
    %v3435 = vxor.u32 %v3425, 2147483648
    %v3436 = vmul.f32 %v3435, 1.442695
    %v3437 = vpow.pop %v3436
    %v3438 = vadd.f32 %v3437, 1.0
    %v3439 = vrcp.pop %v3438
    %v3440 = vmul.f32 1.0, %v3439
    %v3441 = vtanh.pop %v3426
    %v3442 = vxor.u32 %v3427, 2147483648
    %v3443 = vmul.f32 %v3442, 1.442695
    %v3444 = vpow.pop %v3443
    %v3445 = vadd.f32 %v3444, 1.0
    %v3446 = vrcp.pop %v3445
    %v3447 = vmul.f32 1.0, %v3446
    %v3448 = vmul.f32 %v3440, %v3428
    %v3449 = vmul.f32 %v3434, %v3441
    %v3450 = vadd.f32 %v3448, %v3449
    %v3451 = vtanh.pop %v3450
    %v3452 = vmul.f32 %v3447, %v3451
    %3453 = vst [vmem:[#allocation6] sm:$0xff] %v3452
    %3454 = vst [vmem:[#allocation7] sm:$0xff] %v3450
    %s3455 = smul.addr %s1080, 8
    %s3456 = scalar_lea.vmem [#allocation3], %s3455
    %v3457 = vld [vmem:[%s3456] sm:$0xff]
    %v3458 = vld [vmem:[%s3456 + $0x8] sm:$0xff]
    %v3459 = vld [vmem:[%s3456 + $0x10] sm:$0xff]
    %v3460 = vld [vmem:[%s3456 + $0x18] sm:$0xff]
    %v3461 = vld [vmem:[#allocation6] sm:$0xff]
    %v3462 = vld [vmem:[#allocation13] sm:$0xff]
    %v3463 = vld [vmem:[#allocation13 + $0x8] sm:$0xff]
    %v3464 = vld [vmem:[#allocation13 + $0x10] sm:$0xff]
    %v3465 = vld [vmem:[#allocation13 + $0x18] sm:$0xff]
    %v3466 = vld [vmem:[#allocation13 + $0x20] sm:$0xff]
    %v3467 = vld [vmem:[#allocation13 + $0x28] sm:$0xff]
    %v3468 = vld [vmem:[#allocation13 + $0x30] sm:$0xff]
    %v3469 = vld [vmem:[#allocation13 + $0x38] sm:$0xff]
    %v3470 = vld [vmem:[#allocation13 + $0x40] sm:$0xff]
    %v3471 = vld [vmem:[#allocation13 + $0x48] sm:$0xff]
    %v3472 = vld [vmem:[#allocation13 + $0x50] sm:$0xff]
    %v3473 = vld [vmem:[#allocation13 + $0x58] sm:$0xff]
    %v3474 = vld [vmem:[#allocation13 + $0x60] sm:$0xff]
    %v3475 = vld [vmem:[#allocation13 + $0x68] sm:$0xff]
    %v3476 = vld [vmem:[#allocation13 + $0x70] sm:$0xff]
    %v3477 = vld [vmem:[#allocation13 + $0x78] sm:$0xff]
    %v3478 = vld [vmem:[#allocation13 + $0x80] sm:$0xff]
    %v3479 = vld [vmem:[#allocation13 + $0x88] sm:$0xff]
    %v3480 = vld [vmem:[#allocation13 + $0x90] sm:$0xff]
    %v3481 = vld [vmem:[#allocation13 + $0x98] sm:$0xff]
    %v3482 = vld [vmem:[#allocation13 + $0xa0] sm:$0xff]
    %v3483 = vld [vmem:[#allocation13 + $0xa8] sm:$0xff]
    %v3484 = vld [vmem:[#allocation13 + $0xb0] sm:$0xff]
    %v3485 = vld [vmem:[#allocation13 + $0xb8] sm:$0xff]
    %v3486 = vld [vmem:[#allocation13 + $0xc0] sm:$0xff]
    %v3487 = vld [vmem:[#allocation13 + $0xc8] sm:$0xff]
    %v3488 = vld [vmem:[#allocation13 + $0xd0] sm:$0xff]
    %v3489 = vld [vmem:[#allocation13 + $0xd8] sm:$0xff]
    %v3490 = vld [vmem:[#allocation13 + $0xe0] sm:$0xff]
    %v3491 = vld [vmem:[#allocation13 + $0xe8] sm:$0xff]
    %v3492 = vld [vmem:[#allocation13 + $0xf0] sm:$0xff]
    %v3493 = vld [vmem:[#allocation13 + $0xf8] sm:$0xff]
    %v3494 = vld [vmem:[#allocation13 + $0x100] sm:$0xff]
    %v3495 = vld [vmem:[#allocation13 + $0x108] sm:$0xff]
    %v3496 = vld [vmem:[#allocation13 + $0x110] sm:$0xff]
    %v3497 = vld [vmem:[#allocation13 + $0x118] sm:$0xff]
    %v3498 = vld [vmem:[#allocation13 + $0x120] sm:$0xff]
    %v3499 = vld [vmem:[#allocation13 + $0x128] sm:$0xff]
    %v3500 = vld [vmem:[#allocation13 + $0x130] sm:$0xff]
    %v3501 = vld [vmem:[#allocation13 + $0x138] sm:$0xff]
    %v3502 = vld [vmem:[#allocation13 + $0x140] sm:$0xff]
    %v3503 = vld [vmem:[#allocation13 + $0x148] sm:$0xff]
    %v3504 = vld [vmem:[#allocation13 + $0x150] sm:$0xff]
    %v3505 = vld [vmem:[#allocation13 + $0x158] sm:$0xff]
    %v3506 = vld [vmem:[#allocation13 + $0x160] sm:$0xff]
    %v3507 = vld [vmem:[#allocation13 + $0x168] sm:$0xff]
    %v3508 = vld [vmem:[#allocation13 + $0x170] sm:$0xff]
    %v3509 = vld [vmem:[#allocation13 + $0x178] sm:$0xff]
    %v3510 = vld [vmem:[#allocation13 + $0x180] sm:$0xff]
    %v3511 = vld [vmem:[#allocation13 + $0x188] sm:$0xff]
    %v3512 = vld [vmem:[#allocation13 + $0x190] sm:$0xff]
    %v3513 = vld [vmem:[#allocation13 + $0x198] sm:$0xff]
    %v3514 = vld [vmem:[#allocation13 + $0x1a0] sm:$0xff]
    %v3515 = vld [vmem:[#allocation13 + $0x1a8] sm:$0xff]
    %v3516 = vld [vmem:[#allocation13 + $0x1b0] sm:$0xff]
    %v3517 = vld [vmem:[#allocation13 + $0x1b8] sm:$0xff]
    %v3518 = vld [vmem:[#allocation13 + $0x1c0] sm:$0xff]
    %v3519 = vld [vmem:[#allocation13 + $0x1c8] sm:$0xff]
    %v3520 = vld [vmem:[#allocation13 + $0x1d0] sm:$0xff]
    %v3521 = vld [vmem:[#allocation13 + $0x1d8] sm:$0xff]
    %v3522 = vld [vmem:[#allocation13 + $0x1e0] sm:$0xff]
    %v3523 = vld [vmem:[#allocation13 + $0x1e8] sm:$0xff]
    %v3524 = vld [vmem:[#allocation13 + $0x1f0] sm:$0xff]
    %v3525 = vld [vmem:[#allocation13 + $0x1f8] sm:$0xff]
    %3526 = vmatprep.subr.mxu0 %v3463
    %3527 = vmatpush1.msra.mxu0 %v3462
    %3528 = vmatprep.subr.mxu0 %v3467
    %3529 = vmatpush1.msra.mxu0 %v3466
    %3530 = vmatprep.subr.mxu0 %v3471
    %3531 = vmatpush1.msra.mxu0 %v3470
    %3532 = vmatprep.subr.mxu0 %v3475
    %3533 = vmatpush1.msra.mxu0 %v3474
    %3534 = vmatprep.subr.mxu0 %v3479
    %3535 = vmatpush1.msra.mxu0 %v3478
    %3536 = vmatprep.subr.mxu0 %v3483
    %3537 = vmatpush1.msra.mxu0 %v3482
    %3538 = vmatprep.subr.mxu0 %v3487
    %3539 = vmatpush1.msra.mxu0 %v3486
    %3540 = vmatprep.subr.mxu0 %v3491
    %3541 = vmatpush1.msra.mxu0 %v3490
    %3542 = vmatprep.subr.mxu0 %v3495
    %3543 = vmatpush1.msra.mxu0 %v3494
    %3544 = vmatprep.subr.mxu0 %v3499
    %3545 = vmatpush1.msra.mxu0 %v3498
    %3546 = vmatprep.subr.mxu0 %v3503
    %3547 = vmatpush1.msra.mxu0 %v3502
    %3548 = vmatprep.subr.mxu0 %v3507
    %3549 = vmatpush1.msra.mxu0 %v3506
    %3550 = vmatprep.subr.mxu0 %v3511
    %3551 = vmatpush1.msra.mxu0 %v3510
    %3552 = vmatprep.subr.mxu0 %v3515
    %3553 = vmatpush1.msra.mxu0 %v3514
    %3554 = vmatprep.subr.mxu0 %v3519
    %3555 = vmatpush1.msra.mxu0 %v3518
    %3556 = vmatprep.subr.mxu0 %v3523
    %3557 = vmatpush1.msra.mxu0 %v3522
    %3558 = vmatprep.subr.mxu0 0.0
    %3559 = vmatpush1.msra.mxu0 0.0
    %3560 = vmatprep.subr.mxu0 0.0
    %3561 = vmatpush1.msra.mxu0 0.0
    %3562 = vmatprep.subr.mxu0 0.0
    %3563 = vmatpush1.msra.mxu0 0.0
    %3564 = vmatprep.subr.mxu0 0.0
    %3565 = vmatpush1.msra.mxu0 0.0
    %3566 = vmatprep.subr.mxu0 0.0
    %3567 = vmatpush1.msra.mxu0 0.0
    %3568 = vmatprep.subr.mxu0 0.0
    %3569 = vmatpush1.msra.mxu0 0.0
    %3570 = vmatprep.subr.mxu0 0.0
    %3571 = vmatpush1.msra.mxu0 0.0
    %3572 = vmatprep.subr.mxu0 0.0
    %3573 = vmatpush1.msra.mxu0 0.0
    %3574 = vmatprep.subr.mxu0 0.0
    %3575 = vmatpush1.msra.mxu0 0.0
    %3576 = vmatprep.subr.mxu0 0.0
    %3577 = vmatpush1.msra.mxu0 0.0
    %3578 = vmatprep.subr.mxu0 0.0
    %3579 = vmatpush1.msra.mxu0 0.0
    %3580 = vmatprep.subr.mxu0 0.0
    %3581 = vmatpush1.msra.mxu0 0.0
    %3582 = vmatprep.subr.mxu0 0.0
    %3583 = vmatpush1.msra.mxu0 0.0
    %3584 = vmatprep.subr.mxu0 0.0
    %3585 = vmatpush1.msra.mxu0 0.0
    %3586 = vmatprep.subr.mxu0 0.0
    %3587 = vmatpush1.msra.mxu0 0.0
    %3588 = vmatprep.subr.mxu0 0.0
    %3589 = vmatpush1.msra.mxu0 0.0
    %3590 = vmatprep.mubr.f32.mxu0 0.0
    %3591 = vmatmul.mubr.f32.gmra.mrb[0].mxu0 %v3461
    %v3592 = vpop.f32.mrb[0].mxu0
    %v3593 = vadd.f32 0.0, %v3592
    %v3594 = vpop.f32.mrb[0].mxu0
    %v3595 = vadd.f32 0.0, %v3594
    %3596 = vdwg.mxu0
    %3597 = vmatprep.subr.mxu0 %v3465
    %3598 = vmatpush1.msra.mxu0 %v3464
    %3599 = vmatprep.subr.mxu0 %v3469
    %3600 = vmatpush1.msra.mxu0 %v3468
    %3601 = vmatprep.subr.mxu0 %v3473
    %3602 = vmatpush1.msra.mxu0 %v3472
    %3603 = vmatprep.subr.mxu0 %v3477
    %3604 = vmatpush1.msra.mxu0 %v3476
    %3605 = vmatprep.subr.mxu0 %v3481
    %3606 = vmatpush1.msra.mxu0 %v3480
    %3607 = vmatprep.subr.mxu0 %v3485
    %3608 = vmatpush1.msra.mxu0 %v3484
    %3609 = vmatprep.subr.mxu0 %v3489
    %3610 = vmatpush1.msra.mxu0 %v3488
    %3611 = vmatprep.subr.mxu0 %v3493
    %3612 = vmatpush1.msra.mxu0 %v3492
    %3613 = vmatprep.subr.mxu0 %v3497
    %3614 = vmatpush1.msra.mxu0 %v3496
    %3615 = vmatprep.subr.mxu0 %v3501
    %3616 = vmatpush1.msra.mxu0 %v3500
    %3617 = vmatprep.subr.mxu0 %v3505
    %3618 = vmatpush1.msra.mxu0 %v3504
    %3619 = vmatprep.subr.mxu0 %v3509
    %3620 = vmatpush1.msra.mxu0 %v3508
    %3621 = vmatprep.subr.mxu0 %v3513
    %3622 = vmatpush1.msra.mxu0 %v3512
    %3623 = vmatprep.subr.mxu0 %v3517
    %3624 = vmatpush1.msra.mxu0 %v3516
    %3625 = vmatprep.subr.mxu0 %v3521
    %3626 = vmatpush1.msra.mxu0 %v3520
    %3627 = vmatprep.subr.mxu0 %v3525
    %3628 = vmatpush1.msra.mxu0 %v3524
    %3629 = vmatprep.subr.mxu0 0.0
    %3630 = vmatpush1.msra.mxu0 0.0
    %3631 = vmatprep.subr.mxu0 0.0
    %3632 = vmatpush1.msra.mxu0 0.0
    %3633 = vmatprep.subr.mxu0 0.0
    %3634 = vmatpush1.msra.mxu0 0.0
    %3635 = vmatprep.subr.mxu0 0.0
    %3636 = vmatpush1.msra.mxu0 0.0
    %3637 = vmatprep.subr.mxu0 0.0
    %3638 = vmatpush1.msra.mxu0 0.0
    %3639 = vmatprep.subr.mxu0 0.0
    %3640 = vmatpush1.msra.mxu0 0.0
    %3641 = vmatprep.subr.mxu0 0.0
    %3642 = vmatpush1.msra.mxu0 0.0
    %3643 = vmatprep.subr.mxu0 0.0
    %3644 = vmatpush1.msra.mxu0 0.0
    %3645 = vmatprep.subr.mxu0 0.0
    %3646 = vmatpush1.msra.mxu0 0.0
    %3647 = vmatprep.subr.mxu0 0.0
    %3648 = vmatpush1.msra.mxu0 0.0
    %3649 = vmatprep.subr.mxu0 0.0
    %3650 = vmatpush1.msra.mxu0 0.0
    %3651 = vmatprep.subr.mxu0 0.0
    %3652 = vmatpush1.msra.mxu0 0.0
    %3653 = vmatprep.subr.mxu0 0.0
    %3654 = vmatpush1.msra.mxu0 0.0
    %3655 = vmatprep.subr.mxu0 0.0
    %3656 = vmatpush1.msra.mxu0 0.0
    %3657 = vmatprep.subr.mxu0 0.0
    %3658 = vmatpush1.msra.mxu0 0.0
    %3659 = vmatprep.subr.mxu0 0.0
    %3660 = vmatpush1.msra.mxu0 0.0
    %3661 = vmatprep.mubr.f32.mxu0 0.0
    %3662 = vmatmul.mubr.f32.gmra.mrb[0].mxu0 %v3461
    %v3663 = vpop.f32.mrb[0].mxu0
    %v3664 = vadd.f32 0.0, %v3663
    %v3665 = vpop.f32.mrb[0].mxu0
    %v3666 = vadd.f32 0.0, %v3665
    %3667 = vdwg.mxu0
    %v3668 = vadd.f32 %v3457, %v3593
    %v3669 = vadd.f32 %v3458, %v3595
    %v3670 = vadd.f32 %v3459, %v3664
    %v3671 = vadd.f32 %v3460, %v3666
    %v3672 = vld [vmem:[#allocation7] sm:$0xff]
    %v3673 = vxor.u32 %v3668, 2147483648
    %v3674 = vmul.f32 %v3673, 1.442695
    %v3675 = vpow.pop %v3674
    %v3676 = vadd.f32 %v3675, 1.0
    %v3677 = vrcp.pop %v3676
    %v3678 = vmul.f32 1.0, %v3677
    %v3679 = vxor.u32 %v3669, 2147483648
    %v3680 = vmul.f32 %v3679, 1.442695
    %v3681 = vpow.pop %v3680
    %v3682 = vadd.f32 %v3681, 1.0
    %v3683 = vrcp.pop %v3682
    %v3684 = vmul.f32 1.0, %v3683
    %v3685 = vtanh.pop %v3670
    %v3686 = vxor.u32 %v3671, 2147483648
    %v3687 = vmul.f32 %v3686, 1.442695
    %v3688 = vpow.pop %v3687
    %v3689 = vadd.f32 %v3688, 1.0
    %v3690 = vrcp.pop %v3689
    %v3691 = vmul.f32 1.0, %v3690
    %v3692 = vmul.f32 %v3684, %v3672
    %v3693 = vmul.f32 %v3678, %v3685
    %v3694 = vadd.f32 %v3692, %v3693
    %v3695 = vtanh.pop %v3694
    %v3696 = vmul.f32 %v3691, %v3695
    %3697 = vst [vmem:[#allocation6] sm:$0xff] %v3696
    %3698 = vst [vmem:[#allocation7] sm:$0xff] %v3694
    %s3699 = smul.addr %s1327, 8
    %s3700 = scalar_lea.vmem [#allocation3], %s3699
    %v3701 = vld [vmem:[%s3700] sm:$0xff]
    %v3702 = vld [vmem:[%s3700 + $0x8] sm:$0xff]
    %v3703 = vld [vmem:[%s3700 + $0x10] sm:$0xff]
    %v3704 = vld [vmem:[%s3700 + $0x18] sm:$0xff]
    %v3705 = vld [vmem:[#allocation6] sm:$0xff]
    %v3706 = vld [vmem:[#allocation13] sm:$0xff]
    %v3707 = vld [vmem:[#allocation13 + $0x8] sm:$0xff]
    %v3708 = vld [vmem:[#allocation13 + $0x10] sm:$0xff]
    %v3709 = vld [vmem:[#allocation13 + $0x18] sm:$0xff]
    %v3710 = vld [vmem:[#allocation13 + $0x20] sm:$0xff]
    %v3711 = vld [vmem:[#allocation13 + $0x28] sm:$0xff]
    %v3712 = vld [vmem:[#allocation13 + $0x30] sm:$0xff]
    %v3713 = vld [vmem:[#allocation13 + $0x38] sm:$0xff]
    %v3714 = vld [vmem:[#allocation13 + $0x40] sm:$0xff]
    %v3715 = vld [vmem:[#allocation13 + $0x48] sm:$0xff]
    %v3716 = vld [vmem:[#allocation13 + $0x50] sm:$0xff]
    %v3717 = vld [vmem:[#allocation13 + $0x58] sm:$0xff]
    %v3718 = vld [vmem:[#allocation13 + $0x60] sm:$0xff]
    %v3719 = vld [vmem:[#allocation13 + $0x68] sm:$0xff]
    %v3720 = vld [vmem:[#allocation13 + $0x70] sm:$0xff]
    %v3721 = vld [vmem:[#allocation13 + $0x78] sm:$0xff]
    %v3722 = vld [vmem:[#allocation13 + $0x80] sm:$0xff]
    %v3723 = vld [vmem:[#allocation13 + $0x88] sm:$0xff]
    %v3724 = vld [vmem:[#allocation13 + $0x90] sm:$0xff]
    %v3725 = vld [vmem:[#allocation13 + $0x98] sm:$0xff]
    %v3726 = vld [vmem:[#allocation13 + $0xa0] sm:$0xff]
    %v3727 = vld [vmem:[#allocation13 + $0xa8] sm:$0xff]
    %v3728 = vld [vmem:[#allocation13 + $0xb0] sm:$0xff]
    %v3729 = vld [vmem:[#allocation13 + $0xb8] sm:$0xff]
    %v3730 = vld [vmem:[#allocation13 + $0xc0] sm:$0xff]
    %v3731 = vld [vmem:[#allocation13 + $0xc8] sm:$0xff]
    %v3732 = vld [vmem:[#allocation13 + $0xd0] sm:$0xff]
    %v3733 = vld [vmem:[#allocation13 + $0xd8] sm:$0xff]
    %v3734 = vld [vmem:[#allocation13 + $0xe0] sm:$0xff]
    %v3735 = vld [vmem:[#allocation13 + $0xe8] sm:$0xff]
    %v3736 = vld [vmem:[#allocation13 + $0xf0] sm:$0xff]
    %v3737 = vld [vmem:[#allocation13 + $0xf8] sm:$0xff]
    %v3738 = vld [vmem:[#allocation13 + $0x100] sm:$0xff]
    %v3739 = vld [vmem:[#allocation13 + $0x108] sm:$0xff]
    %v3740 = vld [vmem:[#allocation13 + $0x110] sm:$0xff]
    %v3741 = vld [vmem:[#allocation13 + $0x118] sm:$0xff]
    %v3742 = vld [vmem:[#allocation13 + $0x120] sm:$0xff]
    %v3743 = vld [vmem:[#allocation13 + $0x128] sm:$0xff]
    %v3744 = vld [vmem:[#allocation13 + $0x130] sm:$0xff]
    %v3745 = vld [vmem:[#allocation13 + $0x138] sm:$0xff]
    %v3746 = vld [vmem:[#allocation13 + $0x140] sm:$0xff]
    %v3747 = vld [vmem:[#allocation13 + $0x148] sm:$0xff]
    %v3748 = vld [vmem:[#allocation13 + $0x150] sm:$0xff]
    %v3749 = vld [vmem:[#allocation13 + $0x158] sm:$0xff]
    %v3750 = vld [vmem:[#allocation13 + $0x160] sm:$0xff]
    %v3751 = vld [vmem:[#allocation13 + $0x168] sm:$0xff]
    %v3752 = vld [vmem:[#allocation13 + $0x170] sm:$0xff]
    %v3753 = vld [vmem:[#allocation13 + $0x178] sm:$0xff]
    %v3754 = vld [vmem:[#allocation13 + $0x180] sm:$0xff]
    %v3755 = vld [vmem:[#allocation13 + $0x188] sm:$0xff]
    %v3756 = vld [vmem:[#allocation13 + $0x190] sm:$0xff]
    %v3757 = vld [vmem:[#allocation13 + $0x198] sm:$0xff]
    %v3758 = vld [vmem:[#allocation13 + $0x1a0] sm:$0xff]
    %v3759 = vld [vmem:[#allocation13 + $0x1a8] sm:$0xff]
    %v3760 = vld [vmem:[#allocation13 + $0x1b0] sm:$0xff]
    %v3761 = vld [vmem:[#allocation13 + $0x1b8] sm:$0xff]
    %v3762 = vld [vmem:[#allocation13 + $0x1c0] sm:$0xff]
    %v3763 = vld [vmem:[#allocation13 + $0x1c8] sm:$0xff]
    %v3764 = vld [vmem:[#allocation13 + $0x1d0] sm:$0xff]
    %v3765 = vld [vmem:[#allocation13 + $0x1d8] sm:$0xff]
    %v3766 = vld [vmem:[#allocation13 + $0x1e0] sm:$0xff]
    %v3767 = vld [vmem:[#allocation13 + $0x1e8] sm:$0xff]
    %v3768 = vld [vmem:[#allocation13 + $0x1f0] sm:$0xff]
    %v3769 = vld [vmem:[#allocation13 + $0x1f8] sm:$0xff]
    %3770 = vmatprep.subr.mxu0 %v3707
    %3771 = vmatpush1.msra.mxu0 %v3706
    %3772 = vmatprep.subr.mxu0 %v3711
    %3773 = vmatpush1.msra.mxu0 %v3710
    %3774 = vmatprep.subr.mxu0 %v3715
    %3775 = vmatpush1.msra.mxu0 %v3714
    %3776 = vmatprep.subr.mxu0 %v3719
    %3777 = vmatpush1.msra.mxu0 %v3718
    %3778 = vmatprep.subr.mxu0 %v3723
    %3779 = vmatpush1.msra.mxu0 %v3722
    %3780 = vmatprep.subr.mxu0 %v3727
    %3781 = vmatpush1.msra.mxu0 %v3726
    %3782 = vmatprep.subr.mxu0 %v3731
    %3783 = vmatpush1.msra.mxu0 %v3730
    %3784 = vmatprep.subr.mxu0 %v3735
    %3785 = vmatpush1.msra.mxu0 %v3734
    %3786 = vmatprep.subr.mxu0 %v3739
    %3787 = vmatpush1.msra.mxu0 %v3738
    %3788 = vmatprep.subr.mxu0 %v3743
    %3789 = vmatpush1.msra.mxu0 %v3742
    %3790 = vmatprep.subr.mxu0 %v3747
    %3791 = vmatpush1.msra.mxu0 %v3746
    %3792 = vmatprep.subr.mxu0 %v3751
    %3793 = vmatpush1.msra.mxu0 %v3750
    %3794 = vmatprep.subr.mxu0 %v3755
    %3795 = vmatpush1.msra.mxu0 %v3754
    %3796 = vmatprep.subr.mxu0 %v3759
    %3797 = vmatpush1.msra.mxu0 %v3758
    %3798 = vmatprep.subr.mxu0 %v3763
    %3799 = vmatpush1.msra.mxu0 %v3762
    %3800 = vmatprep.subr.mxu0 %v3767
    %3801 = vmatpush1.msra.mxu0 %v3766
    %3802 = vmatprep.subr.mxu0 0.0
    %3803 = vmatpush1.msra.mxu0 0.0
    %3804 = vmatprep.subr.mxu0 0.0
    %3805 = vmatpush1.msra.mxu0 0.0
    %3806 = vmatprep.subr.mxu0 0.0
    %3807 = vmatpush1.msra.mxu0 0.0
    %3808 = vmatprep.subr.mxu0 0.0
    %3809 = vmatpush1.msra.mxu0 0.0
    %3810 = vmatprep.subr.mxu0 0.0
    %3811 = vmatpush1.msra.mxu0 0.0
    %3812 = vmatprep.subr.mxu0 0.0
    %3813 = vmatpush1.msra.mxu0 0.0
    %3814 = vmatprep.subr.mxu0 0.0
    %3815 = vmatpush1.msra.mxu0 0.0
    %3816 = vmatprep.subr.mxu0 0.0
    %3817 = vmatpush1.msra.mxu0 0.0
    %3818 = vmatprep.subr.mxu0 0.0
    %3819 = vmatpush1.msra.mxu0 0.0
    %3820 = vmatprep.subr.mxu0 0.0
    %3821 = vmatpush1.msra.mxu0 0.0
    %3822 = vmatprep.subr.mxu0 0.0
    %3823 = vmatpush1.msra.mxu0 0.0
    %3824 = vmatprep.subr.mxu0 0.0
    %3825 = vmatpush1.msra.mxu0 0.0
    %3826 = vmatprep.subr.mxu0 0.0
    %3827 = vmatpush1.msra.mxu0 0.0
    %3828 = vmatprep.subr.mxu0 0.0
    %3829 = vmatpush1.msra.mxu0 0.0
    %3830 = vmatprep.subr.mxu0 0.0
    %3831 = vmatpush1.msra.mxu0 0.0
    %3832 = vmatprep.subr.mxu0 0.0
    %3833 = vmatpush1.msra.mxu0 0.0
    %3834 = vmatprep.mubr.f32.mxu0 0.0
    %3835 = vmatmul.mubr.f32.gmra.mrb[0].mxu0 %v3705
    %v3836 = vpop.f32.mrb[0].mxu0
    %v3837 = vadd.f32 0.0, %v3836
    %v3838 = vpop.f32.mrb[0].mxu0
    %v3839 = vadd.f32 0.0, %v3838
    %3840 = vdwg.mxu0
    %3841 = vmatprep.subr.mxu0 %v3709
    %3842 = vmatpush1.msra.mxu0 %v3708
    %3843 = vmatprep.subr.mxu0 %v3713
    %3844 = vmatpush1.msra.mxu0 %v3712
    %3845 = vmatprep.subr.mxu0 %v3717
    %3846 = vmatpush1.msra.mxu0 %v3716
    %3847 = vmatprep.subr.mxu0 %v3721
    %3848 = vmatpush1.msra.mxu0 %v3720
    %3849 = vmatprep.subr.mxu0 %v3725
    %3850 = vmatpush1.msra.mxu0 %v3724
    %3851 = vmatprep.subr.mxu0 %v3729
    %3852 = vmatpush1.msra.mxu0 %v3728
    %3853 = vmatprep.subr.mxu0 %v3733
    %3854 = vmatpush1.msra.mxu0 %v3732
    %3855 = vmatprep.subr.mxu0 %v3737
    %3856 = vmatpush1.msra.mxu0 %v3736
    %3857 = vmatprep.subr.mxu0 %v3741
    %3858 = vmatpush1.msra.mxu0 %v3740
    %3859 = vmatprep.subr.mxu0 %v3745
    %3860 = vmatpush1.msra.mxu0 %v3744
    %3861 = vmatprep.subr.mxu0 %v3749
    %3862 = vmatpush1.msra.mxu0 %v3748
    %3863 = vmatprep.subr.mxu0 %v3753
    %3864 = vmatpush1.msra.mxu0 %v3752
    %3865 = vmatprep.subr.mxu0 %v3757
    %3866 = vmatpush1.msra.mxu0 %v3756
    %3867 = vmatprep.subr.mxu0 %v3761
    %3868 = vmatpush1.msra.mxu0 %v3760
    %3869 = vmatprep.subr.mxu0 %v3765
    %3870 = vmatpush1.msra.mxu0 %v3764
    %3871 = vmatprep.subr.mxu0 %v3769
    %3872 = vmatpush1.msra.mxu0 %v3768
    %3873 = vmatprep.subr.mxu0 0.0
    %3874 = vmatpush1.msra.mxu0 0.0
    %3875 = vmatprep.subr.mxu0 0.0
    %3876 = vmatpush1.msra.mxu0 0.0
    %3877 = vmatprep.subr.mxu0 0.0
    %3878 = vmatpush1.msra.mxu0 0.0
    %3879 = vmatprep.subr.mxu0 0.0
    %3880 = vmatpush1.msra.mxu0 0.0
    %3881 = vmatprep.subr.mxu0 0.0
    %3882 = vmatpush1.msra.mxu0 0.0
    %3883 = vmatprep.subr.mxu0 0.0
    %3884 = vmatpush1.msra.mxu0 0.0
    %3885 = vmatprep.subr.mxu0 0.0
    %3886 = vmatpush1.msra.mxu0 0.0
    %3887 = vmatprep.subr.mxu0 0.0
    %3888 = vmatpush1.msra.mxu0 0.0
    %3889 = vmatprep.subr.mxu0 0.0
    %3890 = vmatpush1.msra.mxu0 0.0
    %3891 = vmatprep.subr.mxu0 0.0
    %3892 = vmatpush1.msra.mxu0 0.0
    %3893 = vmatprep.subr.mxu0 0.0
    %3894 = vmatpush1.msra.mxu0 0.0
    %3895 = vmatprep.subr.mxu0 0.0
    %3896 = vmatpush1.msra.mxu0 0.0
    %3897 = vmatprep.subr.mxu0 0.0
    %3898 = vmatpush1.msra.mxu0 0.0
    %3899 = vmatprep.subr.mxu0 0.0
    %3900 = vmatpush1.msra.mxu0 0.0
    %3901 = vmatprep.subr.mxu0 0.0
    %3902 = vmatpush1.msra.mxu0 0.0
    %3903 = vmatprep.subr.mxu0 0.0
    %3904 = vmatpush1.msra.mxu0 0.0
    %3905 = vmatprep.mubr.f32.mxu0 0.0
    %3906 = vmatmul.mubr.f32.gmra.mrb[0].mxu0 %v3705
    %v3907 = vpop.f32.mrb[0].mxu0
    %v3908 = vadd.f32 0.0, %v3907
    %v3909 = vpop.f32.mrb[0].mxu0
    %v3910 = vadd.f32 0.0, %v3909
    %3911 = vdwg.mxu0
    %v3912 = vadd.f32 %v3701, %v3837
    %v3913 = vadd.f32 %v3702, %v3839
    %v3914 = vadd.f32 %v3703, %v3908
    %v3915 = vadd.f32 %v3704, %v3910
    %v3916 = vld [vmem:[#allocation7] sm:$0xff]
    %v3917 = vxor.u32 %v3912, 2147483648
    %v3918 = vmul.f32 %v3917, 1.442695
    %v3919 = vpow.pop %v3918
    %v3920 = vadd.f32 %v3919, 1.0
    %v3921 = vrcp.pop %v3920
    %v3922 = vmul.f32 1.0, %v3921
    %v3923 = vxor.u32 %v3913, 2147483648
    %v3924 = vmul.f32 %v3923, 1.442695
    %v3925 = vpow.pop %v3924
    %v3926 = vadd.f32 %v3925, 1.0
    %v3927 = vrcp.pop %v3926
    %v3928 = vmul.f32 1.0, %v3927
    %v3929 = vtanh.pop %v3914
    %v3930 = vxor.u32 %v3915, 2147483648
    %v3931 = vmul.f32 %v3930, 1.442695
    %v3932 = vpow.pop %v3931
    %v3933 = vadd.f32 %v3932, 1.0
    %v3934 = vrcp.pop %v3933
    %v3935 = vmul.f32 1.0, %v3934
    %v3936 = vmul.f32 %v3928, %v3916
    %v3937 = vmul.f32 %v3922, %v3929
    %v3938 = vadd.f32 %v3936, %v3937
    %v3939 = vtanh.pop %v3938
    %v3940 = vmul.f32 %v3935, %v3939
    %3941 = vst [vmem:[#allocation6] sm:$0xff] %v3940
    %3942 = vst [vmem:[#allocation7] sm:$0xff] %v3938
    %s3943 = smul.addr %s1574, 8
    %s3944 = scalar_lea.vmem [#allocation3], %s3943
    %v3945 = vld [vmem:[%s3944] sm:$0xff]
    %v3946 = vld [vmem:[%s3944 + $0x8] sm:$0xff]
    %v3947 = vld [vmem:[%s3944 + $0x10] sm:$0xff]
    %v3948 = vld [vmem:[%s3944 + $0x18] sm:$0xff]
    %v3949 = vld [vmem:[#allocation6] sm:$0xff]
    %v3950 = vld [vmem:[#allocation13] sm:$0xff]
    %v3951 = vld [vmem:[#allocation13 + $0x8] sm:$0xff]
    %v3952 = vld [vmem:[#allocation13 + $0x10] sm:$0xff]
    %v3953 = vld [vmem:[#allocation13 + $0x18] sm:$0xff]
    %v3954 = vld [vmem:[#allocation13 + $0x20] sm:$0xff]
    %v3955 = vld [vmem:[#allocation13 + $0x28] sm:$0xff]
    %v3956 = vld [vmem:[#allocation13 + $0x30] sm:$0xff]
    %v3957 = vld [vmem:[#allocation13 + $0x38] sm:$0xff]
    %v3958 = vld [vmem:[#allocation13 + $0x40] sm:$0xff]
    %v3959 = vld [vmem:[#allocation13 + $0x48] sm:$0xff]
    %v3960 = vld [vmem:[#allocation13 + $0x50] sm:$0xff]
    %v3961 = vld [vmem:[#allocation13 + $0x58] sm:$0xff]
    %v3962 = vld [vmem:[#allocation13 + $0x60] sm:$0xff]
    %v3963 = vld [vmem:[#allocation13 + $0x68] sm:$0xff]
    %v3964 = vld [vmem:[#allocation13 + $0x70] sm:$0xff]
    %v3965 = vld [vmem:[#allocation13 + $0x78] sm:$0xff]
    %v3966 = vld [vmem:[#allocation13 + $0x80] sm:$0xff]
    %v3967 = vld [vmem:[#allocation13 + $0x88] sm:$0xff]
    %v3968 = vld [vmem:[#allocation13 + $0x90] sm:$0xff]
    %v3969 = vld [vmem:[#allocation13 + $0x98] sm:$0xff]
    %v3970 = vld [vmem:[#allocation13 + $0xa0] sm:$0xff]
    %v3971 = vld [vmem:[#allocation13 + $0xa8] sm:$0xff]
    %v3972 = vld [vmem:[#allocation13 + $0xb0] sm:$0xff]
    %v3973 = vld [vmem:[#allocation13 + $0xb8] sm:$0xff]
    %v3974 = vld [vmem:[#allocation13 + $0xc0] sm:$0xff]
    %v3975 = vld [vmem:[#allocation13 + $0xc8] sm:$0xff]
    %v3976 = vld [vmem:[#allocation13 + $0xd0] sm:$0xff]
    %v3977 = vld [vmem:[#allocation13 + $0xd8] sm:$0xff]
    %v3978 = vld [vmem:[#allocation13 + $0xe0] sm:$0xff]
    %v3979 = vld [vmem:[#allocation13 + $0xe8] sm:$0xff]
    %v3980 = vld [vmem:[#allocation13 + $0xf0] sm:$0xff]
    %v3981 = vld [vmem:[#allocation13 + $0xf8] sm:$0xff]
    %v3982 = vld [vmem:[#allocation13 + $0x100] sm:$0xff]
    %v3983 = vld [vmem:[#allocation13 + $0x108] sm:$0xff]
    %v3984 = vld [vmem:[#allocation13 + $0x110] sm:$0xff]
    %v3985 = vld [vmem:[#allocation13 + $0x118] sm:$0xff]
    %v3986 = vld [vmem:[#allocation13 + $0x120] sm:$0xff]
    %v3987 = vld [vmem:[#allocation13 + $0x128] sm:$0xff]
    %v3988 = vld [vmem:[#allocation13 + $0x130] sm:$0xff]
    %v3989 = vld [vmem:[#allocation13 + $0x138] sm:$0xff]
    %v3990 = vld [vmem:[#allocation13 + $0x140] sm:$0xff]
    %v3991 = vld [vmem:[#allocation13 + $0x148] sm:$0xff]
    %v3992 = vld [vmem:[#allocation13 + $0x150] sm:$0xff]
    %v3993 = vld [vmem:[#allocation13 + $0x158] sm:$0xff]
    %v3994 = vld [vmem:[#allocation13 + $0x160] sm:$0xff]
    %v3995 = vld [vmem:[#allocation13 + $0x168] sm:$0xff]
    %v3996 = vld [vmem:[#allocation13 + $0x170] sm:$0xff]
    %v3997 = vld [vmem:[#allocation13 + $0x178] sm:$0xff]
    %v3998 = vld [vmem:[#allocation13 + $0x180] sm:$0xff]
    %v3999 = vld [vmem:[#allocation13 + $0x188] sm:$0xff]
    %v4000 = vld [vmem:[#allocation13 + $0x190] sm:$0xff]
    %v4001 = vld [vmem:[#allocation13 + $0x198] sm:$0xff]
    %v4002 = vld [vmem:[#allocation13 + $0x1a0] sm:$0xff]
    %v4003 = vld [vmem:[#allocation13 + $0x1a8] sm:$0xff]
    %v4004 = vld [vmem:[#allocation13 + $0x1b0] sm:$0xff]
    %v4005 = vld [vmem:[#allocation13 + $0x1b8] sm:$0xff]
    %v4006 = vld [vmem:[#allocation13 + $0x1c0] sm:$0xff]
    %v4007 = vld [vmem:[#allocation13 + $0x1c8] sm:$0xff]
    %v4008 = vld [vmem:[#allocation13 + $0x1d0] sm:$0xff]
    %v4009 = vld [vmem:[#allocation13 + $0x1d8] sm:$0xff]
    %v4010 = vld [vmem:[#allocation13 + $0x1e0] sm:$0xff]
    %v4011 = vld [vmem:[#allocation13 + $0x1e8] sm:$0xff]
    %v4012 = vld [vmem:[#allocation13 + $0x1f0] sm:$0xff]
    %v4013 = vld [vmem:[#allocation13 + $0x1f8] sm:$0xff]
    %4014 = vmatprep.subr.mxu0 %v3951
    %4015 = vmatpush1.msra.mxu0 %v3950
    %4016 = vmatprep.subr.mxu0 %v3955
    %4017 = vmatpush1.msra.mxu0 %v3954
    %4018 = vmatprep.subr.mxu0 %v3959
    %4019 = vmatpush1.msra.mxu0 %v3958
    %4020 = vmatprep.subr.mxu0 %v3963
    %4021 = vmatpush1.msra.mxu0 %v3962
    %4022 = vmatprep.subr.mxu0 %v3967
    %4023 = vmatpush1.msra.mxu0 %v3966
    %4024 = vmatprep.subr.mxu0 %v3971
    %4025 = vmatpush1.msra.mxu0 %v3970
    %4026 = vmatprep.subr.mxu0 %v3975
    %4027 = vmatpush1.msra.mxu0 %v3974
    %4028 = vmatprep.subr.mxu0 %v3979
    %4029 = vmatpush1.msra.mxu0 %v3978
    %4030 = vmatprep.subr.mxu0 %v3983
    %4031 = vmatpush1.msra.mxu0 %v3982
    %4032 = vmatprep.subr.mxu0 %v3987
    %4033 = vmatpush1.msra.mxu0 %v3986
    %4034 = vmatprep.subr.mxu0 %v3991
    %4035 = vmatpush1.msra.mxu0 %v3990
    %4036 = vmatprep.subr.mxu0 %v3995
    %4037 = vmatpush1.msra.mxu0 %v3994
    %4038 = vmatprep.subr.mxu0 %v3999
    %4039 = vmatpush1.msra.mxu0 %v3998
    %4040 = vmatprep.subr.mxu0 %v4003
    %4041 = vmatpush1.msra.mxu0 %v4002
    %4042 = vmatprep.subr.mxu0 %v4007
    %4043 = vmatpush1.msra.mxu0 %v4006
    %4044 = vmatprep.subr.mxu0 %v4011
    %4045 = vmatpush1.msra.mxu0 %v4010
    %4046 = vmatprep.subr.mxu0 0.0
    %4047 = vmatpush1.msra.mxu0 0.0
    %4048 = vmatprep.subr.mxu0 0.0
    %4049 = vmatpush1.msra.mxu0 0.0
    %4050 = vmatprep.subr.mxu0 0.0
    %4051 = vmatpush1.msra.mxu0 0.0
    %4052 = vmatprep.subr.mxu0 0.0
    %4053 = vmatpush1.msra.mxu0 0.0
    %4054 = vmatprep.subr.mxu0 0.0
    %4055 = vmatpush1.msra.mxu0 0.0
    %4056 = vmatprep.subr.mxu0 0.0
    %4057 = vmatpush1.msra.mxu0 0.0
    %4058 = vmatprep.subr.mxu0 0.0
    %4059 = vmatpush1.msra.mxu0 0.0
    %4060 = vmatprep.subr.mxu0 0.0
    %4061 = vmatpush1.msra.mxu0 0.0
    %4062 = vmatprep.subr.mxu0 0.0
    %4063 = vmatpush1.msra.mxu0 0.0
    %4064 = vmatprep.subr.mxu0 0.0
    %4065 = vmatpush1.msra.mxu0 0.0
    %4066 = vmatprep.subr.mxu0 0.0
    %4067 = vmatpush1.msra.mxu0 0.0
    %4068 = vmatprep.subr.mxu0 0.0
    %4069 = vmatpush1.msra.mxu0 0.0
    %4070 = vmatprep.subr.mxu0 0.0
    %4071 = vmatpush1.msra.mxu0 0.0
    %4072 = vmatprep.subr.mxu0 0.0
    %4073 = vmatpush1.msra.mxu0 0.0
    %4074 = vmatprep.subr.mxu0 0.0
    %4075 = vmatpush1.msra.mxu0 0.0
    %4076 = vmatprep.subr.mxu0 0.0
    %4077 = vmatpush1.msra.mxu0 0.0
    %4078 = vmatprep.mubr.f32.mxu0 0.0
    %4079 = vmatmul.mubr.f32.gmra.mrb[0].mxu0 %v3949
    %v4080 = vpop.f32.mrb[0].mxu0
    %v4081 = vadd.f32 0.0, %v4080
    %v4082 = vpop.f32.mrb[0].mxu0
    %v4083 = vadd.f32 0.0, %v4082
    %4084 = vdwg.mxu0
    %4085 = vmatprep.subr.mxu0 %v3953
    %4086 = vmatpush1.msra.mxu0 %v3952
    %4087 = vmatprep.subr.mxu0 %v3957
    %4088 = vmatpush1.msra.mxu0 %v3956
    %4089 = vmatprep.subr.mxu0 %v3961
    %4090 = vmatpush1.msra.mxu0 %v3960
    %4091 = vmatprep.subr.mxu0 %v3965
    %4092 = vmatpush1.msra.mxu0 %v3964
    %4093 = vmatprep.subr.mxu0 %v3969
    %4094 = vmatpush1.msra.mxu0 %v3968
    %4095 = vmatprep.subr.mxu0 %v3973
    %4096 = vmatpush1.msra.mxu0 %v3972
    %4097 = vmatprep.subr.mxu0 %v3977
    %4098 = vmatpush1.msra.mxu0 %v3976
    %4099 = vmatprep.subr.mxu0 %v3981
    %4100 = vmatpush1.msra.mxu0 %v3980
    %4101 = vmatprep.subr.mxu0 %v3985
    %4102 = vmatpush1.msra.mxu0 %v3984
    %4103 = vmatprep.subr.mxu0 %v3989
    %4104 = vmatpush1.msra.mxu0 %v3988
    %4105 = vmatprep.subr.mxu0 %v3993
    %4106 = vmatpush1.msra.mxu0 %v3992
    %4107 = vmatprep.subr.mxu0 %v3997
    %4108 = vmatpush1.msra.mxu0 %v3996
    %4109 = vmatprep.subr.mxu0 %v4001
    %4110 = vmatpush1.msra.mxu0 %v4000
    %4111 = vmatprep.subr.mxu0 %v4005
    %4112 = vmatpush1.msra.mxu0 %v4004
    %4113 = vmatprep.subr.mxu0 %v4009
    %4114 = vmatpush1.msra.mxu0 %v4008
    %4115 = vmatprep.subr.mxu0 %v4013
    %4116 = vmatpush1.msra.mxu0 %v4012
    %4117 = vmatprep.subr.mxu0 0.0
    %4118 = vmatpush1.msra.mxu0 0.0
    %4119 = vmatprep.subr.mxu0 0.0
    %4120 = vmatpush1.msra.mxu0 0.0
    %4121 = vmatprep.subr.mxu0 0.0
    %4122 = vmatpush1.msra.mxu0 0.0
    %4123 = vmatprep.subr.mxu0 0.0
    %4124 = vmatpush1.msra.mxu0 0.0
    %4125 = vmatprep.subr.mxu0 0.0
    %4126 = vmatpush1.msra.mxu0 0.0
    %4127 = vmatprep.subr.mxu0 0.0
    %4128 = vmatpush1.msra.mxu0 0.0
    %4129 = vmatprep.subr.mxu0 0.0
    %4130 = vmatpush1.msra.mxu0 0.0
    %4131 = vmatprep.subr.mxu0 0.0
    %4132 = vmatpush1.msra.mxu0 0.0
    %4133 = vmatprep.subr.mxu0 0.0
    %4134 = vmatpush1.msra.mxu0 0.0
    %4135 = vmatprep.subr.mxu0 0.0
    %4136 = vmatpush1.msra.mxu0 0.0
    %4137 = vmatprep.subr.mxu0 0.0
    %4138 = vmatpush1.msra.mxu0 0.0
    %4139 = vmatprep.subr.mxu0 0.0
    %4140 = vmatpush1.msra.mxu0 0.0
    %4141 = vmatprep.subr.mxu0 0.0
    %4142 = vmatpush1.msra.mxu0 0.0
    %4143 = vmatprep.subr.mxu0 0.0
    %4144 = vmatpush1.msra.mxu0 0.0
    %4145 = vmatprep.subr.mxu0 0.0
    %4146 = vmatpush1.msra.mxu0 0.0
    %4147 = vmatprep.subr.mxu0 0.0
    %4148 = vmatpush1.msra.mxu0 0.0
    %4149 = vmatprep.mubr.f32.mxu0 0.0
    %4150 = vmatmul.mubr.f32.gmra.mrb[0].mxu0 %v3949
    %v4151 = vpop.f32.mrb[0].mxu0
    %v4152 = vadd.f32 0.0, %v4151
    %v4153 = vpop.f32.mrb[0].mxu0
    %v4154 = vadd.f32 0.0, %v4153
    %4155 = vdwg.mxu0
    %v4156 = vadd.f32 %v3945, %v4081
    %v4157 = vadd.f32 %v3946, %v4083
    %v4158 = vadd.f32 %v3947, %v4152
    %v4159 = vadd.f32 %v3948, %v4154
    %v4160 = vld [vmem:[#allocation7] sm:$0xff]
    %v4161 = vxor.u32 %v4156, 2147483648
    %v4162 = vmul.f32 %v4161, 1.442695
    %v4163 = vpow.pop %v4162
    %v4164 = vadd.f32 %v4163, 1.0
    %v4165 = vrcp.pop %v4164
    %v4166 = vmul.f32 1.0, %v4165
    %v4167 = vxor.u32 %v4157, 2147483648
    %v4168 = vmul.f32 %v4167, 1.442695
    %v4169 = vpow.pop %v4168
    %v4170 = vadd.f32 %v4169, 1.0
    %v4171 = vrcp.pop %v4170
    %v4172 = vmul.f32 1.0, %v4171
    %v4173 = vtanh.pop %v4158
    %v4174 = vxor.u32 %v4159, 2147483648
    %v4175 = vmul.f32 %v4174, 1.442695
    %v4176 = vpow.pop %v4175
    %v4177 = vadd.f32 %v4176, 1.0
    %v4178 = vrcp.pop %v4177
    %v4179 = vmul.f32 1.0, %v4178
    %v4180 = vmul.f32 %v4172, %v4160
    %v4181 = vmul.f32 %v4166, %v4173
    %v4182 = vadd.f32 %v4180, %v4181
    %v4183 = vtanh.pop %v4182
    %v4184 = vmul.f32 %v4179, %v4183
    %4185 = vst [vmem:[#allocation6] sm:$0xff] %v4184
    %4186 = vst [vmem:[#allocation7] sm:$0xff] %v4182
    %s4187 = smul.addr %s1821, 8
    %s4188 = scalar_lea.vmem [#allocation3], %s4187
    %v4189 = vld [vmem:[%s4188] sm:$0xff]
    %v4190 = vld [vmem:[%s4188 + $0x8] sm:$0xff]
    %v4191 = vld [vmem:[%s4188 + $0x10] sm:$0xff]
    %v4192 = vld [vmem:[%s4188 + $0x18] sm:$0xff]
    %v4193 = vld [vmem:[#allocation6] sm:$0xff]
    %v4194 = vld [vmem:[#allocation13] sm:$0xff]
    %v4195 = vld [vmem:[#allocation13 + $0x8] sm:$0xff]
    %v4196 = vld [vmem:[#allocation13 + $0x10] sm:$0xff]
    %v4197 = vld [vmem:[#allocation13 + $0x18] sm:$0xff]
    %v4198 = vld [vmem:[#allocation13 + $0x20] sm:$0xff]
    %v4199 = vld [vmem:[#allocation13 + $0x28] sm:$0xff]
    %v4200 = vld [vmem:[#allocation13 + $0x30] sm:$0xff]
    %v4201 = vld [vmem:[#allocation13 + $0x38] sm:$0xff]
    %v4202 = vld [vmem:[#allocation13 + $0x40] sm:$0xff]
    %v4203 = vld [vmem:[#allocation13 + $0x48] sm:$0xff]
    %v4204 = vld [vmem:[#allocation13 + $0x50] sm:$0xff]
    %v4205 = vld [vmem:[#allocation13 + $0x58] sm:$0xff]
    %v4206 = vld [vmem:[#allocation13 + $0x60] sm:$0xff]
    %v4207 = vld [vmem:[#allocation13 + $0x68] sm:$0xff]
    %v4208 = vld [vmem:[#allocation13 + $0x70] sm:$0xff]
    %v4209 = vld [vmem:[#allocation13 + $0x78] sm:$0xff]
    %v4210 = vld [vmem:[#allocation13 + $0x80] sm:$0xff]
    %v4211 = vld [vmem:[#allocation13 + $0x88] sm:$0xff]
    %v4212 = vld [vmem:[#allocation13 + $0x90] sm:$0xff]
    %v4213 = vld [vmem:[#allocation13 + $0x98] sm:$0xff]
    %v4214 = vld [vmem:[#allocation13 + $0xa0] sm:$0xff]
    %v4215 = vld [vmem:[#allocation13 + $0xa8] sm:$0xff]
    %v4216 = vld [vmem:[#allocation13 + $0xb0] sm:$0xff]
    %v4217 = vld [vmem:[#allocation13 + $0xb8] sm:$0xff]
    %v4218 = vld [vmem:[#allocation13 + $0xc0] sm:$0xff]
    %v4219 = vld [vmem:[#allocation13 + $0xc8] sm:$0xff]
    %v4220 = vld [vmem:[#allocation13 + $0xd0] sm:$0xff]
    %v4221 = vld [vmem:[#allocation13 + $0xd8] sm:$0xff]
    %v4222 = vld [vmem:[#allocation13 + $0xe0] sm:$0xff]
    %v4223 = vld [vmem:[#allocation13 + $0xe8] sm:$0xff]
    %v4224 = vld [vmem:[#allocation13 + $0xf0] sm:$0xff]
    %v4225 = vld [vmem:[#allocation13 + $0xf8] sm:$0xff]
    %v4226 = vld [vmem:[#allocation13 + $0x100] sm:$0xff]
    %v4227 = vld [vmem:[#allocation13 + $0x108] sm:$0xff]
    %v4228 = vld [vmem:[#allocation13 + $0x110] sm:$0xff]
    %v4229 = vld [vmem:[#allocation13 + $0x118] sm:$0xff]
    %v4230 = vld [vmem:[#allocation13 + $0x120] sm:$0xff]
    %v4231 = vld [vmem:[#allocation13 + $0x128] sm:$0xff]
    %v4232 = vld [vmem:[#allocation13 + $0x130] sm:$0xff]
    %v4233 = vld [vmem:[#allocation13 + $0x138] sm:$0xff]
    %v4234 = vld [vmem:[#allocation13 + $0x140] sm:$0xff]
    %v4235 = vld [vmem:[#allocation13 + $0x148] sm:$0xff]
    %v4236 = vld [vmem:[#allocation13 + $0x150] sm:$0xff]
    %v4237 = vld [vmem:[#allocation13 + $0x158] sm:$0xff]
    %v4238 = vld [vmem:[#allocation13 + $0x160] sm:$0xff]
    %v4239 = vld [vmem:[#allocation13 + $0x168] sm:$0xff]
    %v4240 = vld [vmem:[#allocation13 + $0x170] sm:$0xff]
    %v4241 = vld [vmem:[#allocation13 + $0x178] sm:$0xff]
    %v4242 = vld [vmem:[#allocation13 + $0x180] sm:$0xff]
    %v4243 = vld [vmem:[#allocation13 + $0x188] sm:$0xff]
    %v4244 = vld [vmem:[#allocation13 + $0x190] sm:$0xff]
    %v4245 = vld [vmem:[#allocation13 + $0x198] sm:$0xff]
    %v4246 = vld [vmem:[#allocation13 + $0x1a0] sm:$0xff]
    %v4247 = vld [vmem:[#allocation13 + $0x1a8] sm:$0xff]
    %v4248 = vld [vmem:[#allocation13 + $0x1b0] sm:$0xff]
    %v4249 = vld [vmem:[#allocation13 + $0x1b8] sm:$0xff]
    %v4250 = vld [vmem:[#allocation13 + $0x1c0] sm:$0xff]
    %v4251 = vld [vmem:[#allocation13 + $0x1c8] sm:$0xff]
    %v4252 = vld [vmem:[#allocation13 + $0x1d0] sm:$0xff]
    %v4253 = vld [vmem:[#allocation13 + $0x1d8] sm:$0xff]
    %v4254 = vld [vmem:[#allocation13 + $0x1e0] sm:$0xff]
    %v4255 = vld [vmem:[#allocation13 + $0x1e8] sm:$0xff]
    %v4256 = vld [vmem:[#allocation13 + $0x1f0] sm:$0xff]
    %v4257 = vld [vmem:[#allocation13 + $0x1f8] sm:$0xff]
    %4258 = vmatprep.subr.mxu0 %v4195
    %4259 = vmatpush1.msra.mxu0 %v4194
    %4260 = vmatprep.subr.mxu0 %v4199
    %4261 = vmatpush1.msra.mxu0 %v4198
    %4262 = vmatprep.subr.mxu0 %v4203
    %4263 = vmatpush1.msra.mxu0 %v4202
    %4264 = vmatprep.subr.mxu0 %v4207
    %4265 = vmatpush1.msra.mxu0 %v4206
    %4266 = vmatprep.subr.mxu0 %v4211
    %4267 = vmatpush1.msra.mxu0 %v4210
    %4268 = vmatprep.subr.mxu0 %v4215
    %4269 = vmatpush1.msra.mxu0 %v4214
    %4270 = vmatprep.subr.mxu0 %v4219
    %4271 = vmatpush1.msra.mxu0 %v4218
    %4272 = vmatprep.subr.mxu0 %v4223
    %4273 = vmatpush1.msra.mxu0 %v4222
    %4274 = vmatprep.subr.mxu0 %v4227
    %4275 = vmatpush1.msra.mxu0 %v4226
    %4276 = vmatprep.subr.mxu0 %v4231
    %4277 = vmatpush1.msra.mxu0 %v4230
    %4278 = vmatprep.subr.mxu0 %v4235
    %4279 = vmatpush1.msra.mxu0 %v4234
    %4280 = vmatprep.subr.mxu0 %v4239
    %4281 = vmatpush1.msra.mxu0 %v4238
    %4282 = vmatprep.subr.mxu0 %v4243
    %4283 = vmatpush1.msra.mxu0 %v4242
    %4284 = vmatprep.subr.mxu0 %v4247
    %4285 = vmatpush1.msra.mxu0 %v4246
    %4286 = vmatprep.subr.mxu0 %v4251
    %4287 = vmatpush1.msra.mxu0 %v4250
    %4288 = vmatprep.subr.mxu0 %v4255
    %4289 = vmatpush1.msra.mxu0 %v4254
    %4290 = vmatprep.subr.mxu0 0.0
    %4291 = vmatpush1.msra.mxu0 0.0
    %4292 = vmatprep.subr.mxu0 0.0
    %4293 = vmatpush1.msra.mxu0 0.0
    %4294 = vmatprep.subr.mxu0 0.0
    %4295 = vmatpush1.msra.mxu0 0.0
    %4296 = vmatprep.subr.mxu0 0.0
    %4297 = vmatpush1.msra.mxu0 0.0
    %4298 = vmatprep.subr.mxu0 0.0
    %4299 = vmatpush1.msra.mxu0 0.0
    %4300 = vmatprep.subr.mxu0 0.0
    %4301 = vmatpush1.msra.mxu0 0.0
    %4302 = vmatprep.subr.mxu0 0.0
    %4303 = vmatpush1.msra.mxu0 0.0
    %4304 = vmatprep.subr.mxu0 0.0
    %4305 = vmatpush1.msra.mxu0 0.0
    %4306 = vmatprep.subr.mxu0 0.0
    %4307 = vmatpush1.msra.mxu0 0.0
    %4308 = vmatprep.subr.mxu0 0.0
    %4309 = vmatpush1.msra.mxu0 0.0
    %4310 = vmatprep.subr.mxu0 0.0
    %4311 = vmatpush1.msra.mxu0 0.0
    %4312 = vmatprep.subr.mxu0 0.0
    %4313 = vmatpush1.msra.mxu0 0.0
    %4314 = vmatprep.subr.mxu0 0.0
    %4315 = vmatpush1.msra.mxu0 0.0
    %4316 = vmatprep.subr.mxu0 0.0
    %4317 = vmatpush1.msra.mxu0 0.0
    %4318 = vmatprep.subr.mxu0 0.0
    %4319 = vmatpush1.msra.mxu0 0.0
    %4320 = vmatprep.subr.mxu0 0.0
    %4321 = vmatpush1.msra.mxu0 0.0
    %4322 = vmatprep.mubr.f32.mxu0 0.0
    %4323 = vmatmul.mubr.f32.gmra.mrb[0].mxu0 %v4193
    %v4324 = vpop.f32.mrb[0].mxu0
    %v4325 = vadd.f32 0.0, %v4324
    %v4326 = vpop.f32.mrb[0].mxu0
    %v4327 = vadd.f32 0.0, %v4326
    %4328 = vdwg.mxu0
    %4329 = vmatprep.subr.mxu0 %v4197
    %4330 = vmatpush1.msra.mxu0 %v4196
    %4331 = vmatprep.subr.mxu0 %v4201
    %4332 = vmatpush1.msra.mxu0 %v4200
    %4333 = vmatprep.subr.mxu0 %v4205
    %4334 = vmatpush1.msra.mxu0 %v4204
    %4335 = vmatprep.subr.mxu0 %v4209
    %4336 = vmatpush1.msra.mxu0 %v4208
    %4337 = vmatprep.subr.mxu0 %v4213
    %4338 = vmatpush1.msra.mxu0 %v4212
    %4339 = vmatprep.subr.mxu0 %v4217
    %4340 = vmatpush1.msra.mxu0 %v4216
    %4341 = vmatprep.subr.mxu0 %v4221
    %4342 = vmatpush1.msra.mxu0 %v4220
    %4343 = vmatprep.subr.mxu0 %v4225
    %4344 = vmatpush1.msra.mxu0 %v4224
    %4345 = vmatprep.subr.mxu0 %v4229
    %4346 = vmatpush1.msra.mxu0 %v4228
    %4347 = vmatprep.subr.mxu0 %v4233
    %4348 = vmatpush1.msra.mxu0 %v4232
    %4349 = vmatprep.subr.mxu0 %v4237
    %4350 = vmatpush1.msra.mxu0 %v4236
    %4351 = vmatprep.subr.mxu0 %v4241
    %4352 = vmatpush1.msra.mxu0 %v4240
    %4353 = vmatprep.subr.mxu0 %v4245
    %4354 = vmatpush1.msra.mxu0 %v4244
    %4355 = vmatprep.subr.mxu0 %v4249
    %4356 = vmatpush1.msra.mxu0 %v4248
    %4357 = vmatprep.subr.mxu0 %v4253
    %4358 = vmatpush1.msra.mxu0 %v4252
    %4359 = vmatprep.subr.mxu0 %v4257
    %4360 = vmatpush1.msra.mxu0 %v4256
    %4361 = vmatprep.subr.mxu0 0.0
    %4362 = vmatpush1.msra.mxu0 0.0
    %4363 = vmatprep.subr.mxu0 0.0
    %4364 = vmatpush1.msra.mxu0 0.0
    %4365 = vmatprep.subr.mxu0 0.0
    %4366 = vmatpush1.msra.mxu0 0.0
    %4367 = vmatprep.subr.mxu0 0.0
    %4368 = vmatpush1.msra.mxu0 0.0
    %4369 = vmatprep.subr.mxu0 0.0
    %4370 = vmatpush1.msra.mxu0 0.0
    %4371 = vmatprep.subr.mxu0 0.0
    %4372 = vmatpush1.msra.mxu0 0.0
    %4373 = vmatprep.subr.mxu0 0.0
    %4374 = vmatpush1.msra.mxu0 0.0
    %4375 = vmatprep.subr.mxu0 0.0
    %4376 = vmatpush1.msra.mxu0 0.0
    %4377 = vmatprep.subr.mxu0 0.0
    %4378 = vmatpush1.msra.mxu0 0.0
    %4379 = vmatprep.subr.mxu0 0.0
    %4380 = vmatpush1.msra.mxu0 0.0
    %4381 = vmatprep.subr.mxu0 0.0
    %4382 = vmatpush1.msra.mxu0 0.0
    %4383 = vmatprep.subr.mxu0 0.0
    %4384 = vmatpush1.msra.mxu0 0.0
    %4385 = vmatprep.subr.mxu0 0.0
    %4386 = vmatpush1.msra.mxu0 0.0
    %4387 = vmatprep.subr.mxu0 0.0
    %4388 = vmatpush1.msra.mxu0 0.0
    %4389 = vmatprep.subr.mxu0 0.0
    %4390 = vmatpush1.msra.mxu0 0.0
    %4391 = vmatprep.subr.mxu0 0.0
    %4392 = vmatpush1.msra.mxu0 0.0
    %4393 = vmatprep.mubr.f32.mxu0 0.0
    %4394 = vmatmul.mubr.f32.gmra.mrb[0].mxu0 %v4193
    %v4395 = vpop.f32.mrb[0].mxu0
    %v4396 = vadd.f32 0.0, %v4395
    %v4397 = vpop.f32.mrb[0].mxu0
    %v4398 = vadd.f32 0.0, %v4397
    %4399 = vdwg.mxu0
    %v4400 = vadd.f32 %v4189, %v4325
    %v4401 = vadd.f32 %v4190, %v4327
    %v4402 = vadd.f32 %v4191, %v4396
    %v4403 = vadd.f32 %v4192, %v4398
    %v4404 = vld [vmem:[#allocation7] sm:$0xff]
    %v4405 = vxor.u32 %v4400, 2147483648
    %v4406 = vmul.f32 %v4405, 1.442695
    %v4407 = vpow.pop %v4406
    %v4408 = vadd.f32 %v4407, 1.0
    %v4409 = vrcp.pop %v4408
    %v4410 = vmul.f32 1.0, %v4409
    %v4411 = vxor.u32 %v4401, 2147483648
    %v4412 = vmul.f32 %v4411, 1.442695
    %v4413 = vpow.pop %v4412
    %v4414 = vadd.f32 %v4413, 1.0
    %v4415 = vrcp.pop %v4414
    %v4416 = vmul.f32 1.0, %v4415
    %v4417 = vtanh.pop %v4402
    %v4418 = vxor.u32 %v4403, 2147483648
    %v4419 = vmul.f32 %v4418, 1.442695
    %v4420 = vpow.pop %v4419
    %v4421 = vadd.f32 %v4420, 1.0
    %v4422 = vrcp.pop %v4421
    %v4423 = vmul.f32 1.0, %v4422
    %v4424 = vmul.f32 %v4416, %v4404
    %v4425 = vmul.f32 %v4410, %v4417
    %v4426 = vadd.f32 %v4424, %v4425
    %v4427 = vtanh.pop %v4426
    %v4428 = vmul.f32 %v4423, %v4427
    %4429 = vst [vmem:[#allocation6] sm:$0xff] %v4428
    %4430 = vst [vmem:[#allocation7] sm:$0xff] %v4426
    %s4431 = smul.addr %s2068, 8
    %s4432 = scalar_lea.vmem [#allocation3], %s4431
    %v4433 = vld [vmem:[%s4432] sm:$0xff]
    %v4434 = vld [vmem:[%s4432 + $0x8] sm:$0xff]
    %v4435 = vld [vmem:[%s4432 + $0x10] sm:$0xff]
    %v4436 = vld [vmem:[%s4432 + $0x18] sm:$0xff]
    %v4437 = vld [vmem:[#allocation6] sm:$0xff]
    %v4438 = vld [vmem:[#allocation13] sm:$0xff]
    %v4439 = vld [vmem:[#allocation13 + $0x8] sm:$0xff]
    %v4440 = vld [vmem:[#allocation13 + $0x10] sm:$0xff]
    %v4441 = vld [vmem:[#allocation13 + $0x18] sm:$0xff]
    %v4442 = vld [vmem:[#allocation13 + $0x20] sm:$0xff]
    %v4443 = vld [vmem:[#allocation13 + $0x28] sm:$0xff]
    %v4444 = vld [vmem:[#allocation13 + $0x30] sm:$0xff]
    %v4445 = vld [vmem:[#allocation13 + $0x38] sm:$0xff]
    %v4446 = vld [vmem:[#allocation13 + $0x40] sm:$0xff]
    %v4447 = vld [vmem:[#allocation13 + $0x48] sm:$0xff]
    %v4448 = vld [vmem:[#allocation13 + $0x50] sm:$0xff]
    %v4449 = vld [vmem:[#allocation13 + $0x58] sm:$0xff]
    %v4450 = vld [vmem:[#allocation13 + $0x60] sm:$0xff]
    %v4451 = vld [vmem:[#allocation13 + $0x68] sm:$0xff]
    %v4452 = vld [vmem:[#allocation13 + $0x70] sm:$0xff]
    %v4453 = vld [vmem:[#allocation13 + $0x78] sm:$0xff]
    %v4454 = vld [vmem:[#allocation13 + $0x80] sm:$0xff]
    %v4455 = vld [vmem:[#allocation13 + $0x88] sm:$0xff]
    %v4456 = vld [vmem:[#allocation13 + $0x90] sm:$0xff]
    %v4457 = vld [vmem:[#allocation13 + $0x98] sm:$0xff]
    %v4458 = vld [vmem:[#allocation13 + $0xa0] sm:$0xff]
    %v4459 = vld [vmem:[#allocation13 + $0xa8] sm:$0xff]
    %v4460 = vld [vmem:[#allocation13 + $0xb0] sm:$0xff]
    %v4461 = vld [vmem:[#allocation13 + $0xb8] sm:$0xff]
    %v4462 = vld [vmem:[#allocation13 + $0xc0] sm:$0xff]
    %v4463 = vld [vmem:[#allocation13 + $0xc8] sm:$0xff]
    %v4464 = vld [vmem:[#allocation13 + $0xd0] sm:$0xff]
    %v4465 = vld [vmem:[#allocation13 + $0xd8] sm:$0xff]
    %v4466 = vld [vmem:[#allocation13 + $0xe0] sm:$0xff]
    %v4467 = vld [vmem:[#allocation13 + $0xe8] sm:$0xff]
    %v4468 = vld [vmem:[#allocation13 + $0xf0] sm:$0xff]
    %v4469 = vld [vmem:[#allocation13 + $0xf8] sm:$0xff]
    %v4470 = vld [vmem:[#allocation13 + $0x100] sm:$0xff]
    %v4471 = vld [vmem:[#allocation13 + $0x108] sm:$0xff]
    %v4472 = vld [vmem:[#allocation13 + $0x110] sm:$0xff]
    %v4473 = vld [vmem:[#allocation13 + $0x118] sm:$0xff]
    %v4474 = vld [vmem:[#allocation13 + $0x120] sm:$0xff]
    %v4475 = vld [vmem:[#allocation13 + $0x128] sm:$0xff]
    %v4476 = vld [vmem:[#allocation13 + $0x130] sm:$0xff]
    %v4477 = vld [vmem:[#allocation13 + $0x138] sm:$0xff]
    %v4478 = vld [vmem:[#allocation13 + $0x140] sm:$0xff]
    %v4479 = vld [vmem:[#allocation13 + $0x148] sm:$0xff]
    %v4480 = vld [vmem:[#allocation13 + $0x150] sm:$0xff]
    %v4481 = vld [vmem:[#allocation13 + $0x158] sm:$0xff]
    %v4482 = vld [vmem:[#allocation13 + $0x160] sm:$0xff]
    %v4483 = vld [vmem:[#allocation13 + $0x168] sm:$0xff]
    %v4484 = vld [vmem:[#allocation13 + $0x170] sm:$0xff]
    %v4485 = vld [vmem:[#allocation13 + $0x178] sm:$0xff]
    %v4486 = vld [vmem:[#allocation13 + $0x180] sm:$0xff]
    %v4487 = vld [vmem:[#allocation13 + $0x188] sm:$0xff]
    %v4488 = vld [vmem:[#allocation13 + $0x190] sm:$0xff]
    %v4489 = vld [vmem:[#allocation13 + $0x198] sm:$0xff]
    %v4490 = vld [vmem:[#allocation13 + $0x1a0] sm:$0xff]
    %v4491 = vld [vmem:[#allocation13 + $0x1a8] sm:$0xff]
    %v4492 = vld [vmem:[#allocation13 + $0x1b0] sm:$0xff]
    %v4493 = vld [vmem:[#allocation13 + $0x1b8] sm:$0xff]
    %v4494 = vld [vmem:[#allocation13 + $0x1c0] sm:$0xff]
    %v4495 = vld [vmem:[#allocation13 + $0x1c8] sm:$0xff]
    %v4496 = vld [vmem:[#allocation13 + $0x1d0] sm:$0xff]
    %v4497 = vld [vmem:[#allocation13 + $0x1d8] sm:$0xff]
    %v4498 = vld [vmem:[#allocation13 + $0x1e0] sm:$0xff]
    %v4499 = vld [vmem:[#allocation13 + $0x1e8] sm:$0xff]
    %v4500 = vld [vmem:[#allocation13 + $0x1f0] sm:$0xff]
    %v4501 = vld [vmem:[#allocation13 + $0x1f8] sm:$0xff]
    %4502 = vmatprep.subr.mxu0 %v4439
    %4503 = vmatpush1.msra.mxu0 %v4438
    %4504 = vmatprep.subr.mxu0 %v4443
    %4505 = vmatpush1.msra.mxu0 %v4442
    %4506 = vmatprep.subr.mxu0 %v4447
    %4507 = vmatpush1.msra.mxu0 %v4446
    %4508 = vmatprep.subr.mxu0 %v4451
    %4509 = vmatpush1.msra.mxu0 %v4450
    %4510 = vmatprep.subr.mxu0 %v4455
    %4511 = vmatpush1.msra.mxu0 %v4454
    %4512 = vmatprep.subr.mxu0 %v4459
    %4513 = vmatpush1.msra.mxu0 %v4458
    %4514 = vmatprep.subr.mxu0 %v4463
    %4515 = vmatpush1.msra.mxu0 %v4462
    %4516 = vmatprep.subr.mxu0 %v4467
    %4517 = vmatpush1.msra.mxu0 %v4466
    %4518 = vmatprep.subr.mxu0 %v4471
    %4519 = vmatpush1.msra.mxu0 %v4470
    %4520 = vmatprep.subr.mxu0 %v4475
    %4521 = vmatpush1.msra.mxu0 %v4474
    %4522 = vmatprep.subr.mxu0 %v4479
    %4523 = vmatpush1.msra.mxu0 %v4478
    %4524 = vmatprep.subr.mxu0 %v4483
    %4525 = vmatpush1.msra.mxu0 %v4482
    %4526 = vmatprep.subr.mxu0 %v4487
    %4527 = vmatpush1.msra.mxu0 %v4486
    %4528 = vmatprep.subr.mxu0 %v4491
    %4529 = vmatpush1.msra.mxu0 %v4490
    %4530 = vmatprep.subr.mxu0 %v4495
    %4531 = vmatpush1.msra.mxu0 %v4494
    %4532 = vmatprep.subr.mxu0 %v4499
    %4533 = vmatpush1.msra.mxu0 %v4498
    %4534 = vmatprep.subr.mxu0 0.0
    %4535 = vmatpush1.msra.mxu0 0.0
    %4536 = vmatprep.subr.mxu0 0.0
    %4537 = vmatpush1.msra.mxu0 0.0
    %4538 = vmatprep.subr.mxu0 0.0
    %4539 = vmatpush1.msra.mxu0 0.0
    %4540 = vmatprep.subr.mxu0 0.0
    %4541 = vmatpush1.msra.mxu0 0.0
    %4542 = vmatprep.subr.mxu0 0.0
    %4543 = vmatpush1.msra.mxu0 0.0
    %4544 = vmatprep.subr.mxu0 0.0
    %4545 = vmatpush1.msra.mxu0 0.0
    %4546 = vmatprep.subr.mxu0 0.0
    %4547 = vmatpush1.msra.mxu0 0.0
    %4548 = vmatprep.subr.mxu0 0.0
    %4549 = vmatpush1.msra.mxu0 0.0
    %4550 = vmatprep.subr.mxu0 0.0
    %4551 = vmatpush1.msra.mxu0 0.0
    %4552 = vmatprep.subr.mxu0 0.0
    %4553 = vmatpush1.msra.mxu0 0.0
    %4554 = vmatprep.subr.mxu0 0.0
    %4555 = vmatpush1.msra.mxu0 0.0
    %4556 = vmatprep.subr.mxu0 0.0
    %4557 = vmatpush1.msra.mxu0 0.0
    %4558 = vmatprep.subr.mxu0 0.0
    %4559 = vmatpush1.msra.mxu0 0.0
    %4560 = vmatprep.subr.mxu0 0.0
    %4561 = vmatpush1.msra.mxu0 0.0
    %4562 = vmatprep.subr.mxu0 0.0
    %4563 = vmatpush1.msra.mxu0 0.0
    %4564 = vmatprep.subr.mxu0 0.0
    %4565 = vmatpush1.msra.mxu0 0.0
    %4566 = vmatprep.mubr.f32.mxu0 0.0
    %4567 = vmatmul.mubr.f32.gmra.mrb[0].mxu0 %v4437
    %v4568 = vpop.f32.mrb[0].mxu0
    %v4569 = vadd.f32 0.0, %v4568
    %v4570 = vpop.f32.mrb[0].mxu0
    %v4571 = vadd.f32 0.0, %v4570
    %4572 = vdwg.mxu0
    %4573 = vmatprep.subr.mxu0 %v4441
    %4574 = vmatpush1.msra.mxu0 %v4440
    %4575 = vmatprep.subr.mxu0 %v4445
    %4576 = vmatpush1.msra.mxu0 %v4444
    %4577 = vmatprep.subr.mxu0 %v4449
    %4578 = vmatpush1.msra.mxu0 %v4448
    %4579 = vmatprep.subr.mxu0 %v4453
    %4580 = vmatpush1.msra.mxu0 %v4452
    %4581 = vmatprep.subr.mxu0 %v4457
    %4582 = vmatpush1.msra.mxu0 %v4456
    %4583 = vmatprep.subr.mxu0 %v4461
    %4584 = vmatpush1.msra.mxu0 %v4460
    %4585 = vmatprep.subr.mxu0 %v4465
    %4586 = vmatpush1.msra.mxu0 %v4464
    %4587 = vmatprep.subr.mxu0 %v4469
    %4588 = vmatpush1.msra.mxu0 %v4468
    %4589 = vmatprep.subr.mxu0 %v4473
    %4590 = vmatpush1.msra.mxu0 %v4472
    %4591 = vmatprep.subr.mxu0 %v4477
    %4592 = vmatpush1.msra.mxu0 %v4476
    %4593 = vmatprep.subr.mxu0 %v4481
    %4594 = vmatpush1.msra.mxu0 %v4480
    %4595 = vmatprep.subr.mxu0 %v4485
    %4596 = vmatpush1.msra.mxu0 %v4484
    %4597 = vmatprep.subr.mxu0 %v4489
    %4598 = vmatpush1.msra.mxu0 %v4488
    %4599 = vmatprep.subr.mxu0 %v4493
    %4600 = vmatpush1.msra.mxu0 %v4492
    %4601 = vmatprep.subr.mxu0 %v4497
    %4602 = vmatpush1.msra.mxu0 %v4496
    %4603 = vmatprep.subr.mxu0 %v4501
    %4604 = vmatpush1.msra.mxu0 %v4500
    %4605 = vmatprep.subr.mxu0 0.0
    %4606 = vmatpush1.msra.mxu0 0.0
    %4607 = vmatprep.subr.mxu0 0.0
    %4608 = vmatpush1.msra.mxu0 0.0
    %4609 = vmatprep.subr.mxu0 0.0
    %4610 = vmatpush1.msra.mxu0 0.0
    %4611 = vmatprep.subr.mxu0 0.0
    %4612 = vmatpush1.msra.mxu0 0.0
    %4613 = vmatprep.subr.mxu0 0.0
    %4614 = vmatpush1.msra.mxu0 0.0
    %4615 = vmatprep.subr.mxu0 0.0
    %4616 = vmatpush1.msra.mxu0 0.0
    %4617 = vmatprep.subr.mxu0 0.0
    %4618 = vmatpush1.msra.mxu0 0.0
    %4619 = vmatprep.subr.mxu0 0.0
    %4620 = vmatpush1.msra.mxu0 0.0
    %4621 = vmatprep.subr.mxu0 0.0
    %4622 = vmatpush1.msra.mxu0 0.0
    %4623 = vmatprep.subr.mxu0 0.0
    %4624 = vmatpush1.msra.mxu0 0.0
    %4625 = vmatprep.subr.mxu0 0.0
    %4626 = vmatpush1.msra.mxu0 0.0
    %4627 = vmatprep.subr.mxu0 0.0
    %4628 = vmatpush1.msra.mxu0 0.0
    %4629 = vmatprep.subr.mxu0 0.0
    %4630 = vmatpush1.msra.mxu0 0.0
    %4631 = vmatprep.subr.mxu0 0.0
    %4632 = vmatpush1.msra.mxu0 0.0
    %4633 = vmatprep.subr.mxu0 0.0
    %4634 = vmatpush1.msra.mxu0 0.0
    %4635 = vmatprep.subr.mxu0 0.0
    %4636 = vmatpush1.msra.mxu0 0.0
    %4637 = vmatprep.mubr.f32.mxu0 0.0
    %4638 = vmatmul.mubr.f32.gmra.mrb[0].mxu0 %v4437
    %v4639 = vpop.f32.mrb[0].mxu0
    %v4640 = vadd.f32 0.0, %v4639
    %v4641 = vpop.f32.mrb[0].mxu0
    %v4642 = vadd.f32 0.0, %v4641
    %4643 = vdwg.mxu0
    %v4644 = vadd.f32 %v4433, %v4569
    %v4645 = vadd.f32 %v4434, %v4571
    %v4646 = vadd.f32 %v4435, %v4640
    %v4647 = vadd.f32 %v4436, %v4642
    %v4648 = vld [vmem:[#allocation7] sm:$0xff]
    %v4649 = vxor.u32 %v4644, 2147483648
    %v4650 = vmul.f32 %v4649, 1.442695
    %v4651 = vpow.pop %v4650
    %v4652 = vadd.f32 %v4651, 1.0
    %v4653 = vrcp.pop %v4652
    %v4654 = vmul.f32 1.0, %v4653
    %v4655 = vxor.u32 %v4645, 2147483648
    %v4656 = vmul.f32 %v4655, 1.442695
    %v4657 = vpow.pop %v4656
    %v4658 = vadd.f32 %v4657, 1.0
    %v4659 = vrcp.pop %v4658
    %v4660 = vmul.f32 1.0, %v4659
    %v4661 = vtanh.pop %v4646
    %v4662 = vxor.u32 %v4647, 2147483648
    %v4663 = vmul.f32 %v4662, 1.442695
    %v4664 = vpow.pop %v4663
    %v4665 = vadd.f32 %v4664, 1.0
    %v4666 = vrcp.pop %v4665
    %v4667 = vmul.f32 1.0, %v4666
    %v4668 = vmul.f32 %v4660, %v4648
    %v4669 = vmul.f32 %v4654, %v4661
    %v4670 = vadd.f32 %v4668, %v4669
    %v4671 = vtanh.pop %v4670
    %v4672 = vmul.f32 %v4667, %v4671
    %4673 = vst [vmem:[#allocation6] sm:$0xff] %v4672
    %4674 = vst [vmem:[#allocation7] sm:$0xff] %v4670
    %v4675 = vld [vmem:[#allocation6] sm:$0xff]
    %4676 = vst [vmem:[#allocation18] sm:$0xff] %v4675
    // Predicated region
    $region46: #{tpu_custom_call.1} parent=1 // pred_check
      _
    $region47: #{tpu_custom_call.1} parent=1 // pred_check_branch
      %4678 = sbr.rel (0) target = $region49
    $region48: #{tpu_custom_call.1} parent=1 // pred_region
      %s4680 = ssub.s32 1024, 1024
      %4681 = vsyncadd [#allocation10], %s4680
      %s4682 = sshll.u32 [#allocation14], 4
      %s4683 = int_to_ptr.vmem [resolvable:$true] %s4682
      %4688 = dma.vmem_to_hbm [thread:$0]  %s4683, 1024, %s7, [#allocation10], 128, 128, 8
    $region49: #{tpu_custom_call.1} parent=1 // pred_fallthru
      _
    // Predicated region
    $region50: #{tpu_custom_call.1} parent=1 // pred_check
      _
    $region51: #{tpu_custom_call.1} parent=1 // pred_check_branch
      %4690 = sbr.rel (0) target = $region53
    $region52: #{tpu_custom_call.1} parent=1 // pred_region
      %s4692 = ssub.s32 128, 128
      %4693 = vsyncadd [#allocation16], %s4692
      %s4695 = sshll.u32 [#allocation15], 4
      %s4696 = int_to_ptr.vmem [resolvable:$true] %s4695
      %4698 = dma.vmem_to_hbm [thread:$0]  %s4696, 128, %s8, [#allocation16]
    $region53: #{tpu_custom_call.1} parent=1 // pred_fallthru
      _
    // Predicated region
    $region54: #{tpu_custom_call.1} parent=1 // pred_check
      _
    $region55: #{tpu_custom_call.1} parent=1 // pred_check_branch
      %4700 = sbr.rel (0) target = $region57
    $region56: #{tpu_custom_call.1} parent=1 // pred_region
      %s4702 = ssub.s32 128, 128
      %4703 = vsyncadd [#allocation16], %s4702
      %s4705 = sshll.u32 [#allocation17], 4
      %s4706 = int_to_ptr.vmem [resolvable:$true] %s4705
      %4708 = dma.vmem_to_hbm [thread:$0]  %s4706, 128, %s9, [#allocation16]
    $region57: #{tpu_custom_call.1} parent=1 // pred_fallthru
      _
    // Predicated region
    $region58: #{tpu_custom_call.1} parent=1 // pred_check
      _
    $region59: #{tpu_custom_call.1} parent=1 // pred_check_branch
      %4710 = sbr.rel (0) target = $region61
    $region60: #{tpu_custom_call.1} parent=1 // pred_region
      %s4712 = ssub.s32 128, 128
      %4713 = vsyncadd [#allocation19], %s4712
      %s4715 = sshll.u32 [#allocation18], 4
      %s4716 = int_to_ptr.vmem [resolvable:$true] %s4715
      %4718 = dma.vmem_to_hbm [thread:$0]  %s4716, 128, %s10, [#allocation19]
    $region61: #{tpu_custom_call.1} parent=1 // pred_fallthru
      _
    // Predicated region
    $region62: #{tpu_custom_call.1} parent=1 // pred_check
      _
    $region63: #{tpu_custom_call.1} parent=1 // pred_check_branch
      %4720 = sbr.rel (0) target = $region65
    $region64: #{tpu_custom_call.1} parent=1 // pred_region
      %4721 = dma.done [#allocation10], 1024
    $region65: #{tpu_custom_call.1} parent=1 // pred_fallthru
      _
    // Predicated region
    $region66: #{tpu_custom_call.1} parent=1 // pred_check
      _
    $region67: #{tpu_custom_call.1} parent=1 // pred_check_branch
      %4723 = sbr.rel (0) target = $region69
    $region68: #{tpu_custom_call.1} parent=1 // pred_region
      %4724 = dma.done [#allocation16], 128
    $region69: #{tpu_custom_call.1} parent=1 // pred_fallthru
      _
    // Predicated region
    $region70: #{tpu_custom_call.1} parent=1 // pred_check
      _
    $region71: #{tpu_custom_call.1} parent=1 // pred_check_branch
      %4726 = sbr.rel (0) target = $region73
    $region72: #{tpu_custom_call.1} parent=1 // pred_region
      %4727 = dma.done [#allocation16], 128
    $region73: #{tpu_custom_call.1} parent=1 // pred_fallthru
      _
    // Predicated region
    $region74: #{tpu_custom_call.1} parent=1 // pred_check
      _
    $region75: #{tpu_custom_call.1} parent=1 // pred_check_branch
      %4729 = sbr.rel (0) target = $region77
    $region76: #{tpu_custom_call.1} parent=1 // pred_region
      %4730 = dma.done [#allocation19], 128
    $region77: #{tpu_custom_call.1} parent=1 // pred_fallthru
      _
    %4731 = vsyncpa [#allocation9], 1
    %4732 = vsyncpa [#allocation12], 1
    %4733 = vsyncpa [#allocation10], 1
    %4734 = vsyncpa [#allocation16], 1
    %4735 = vsyncpa [#allocation19], 1

</llo_original>
